<compile_context>
chip_gen: v6e
topology: v6e:2x2x1
jax: 0.10.0
libtpu: 0.0.40
codegen_flags: <defaults>
</compile_context>

<pallas_src>
import numpy as np
import jax
import jax.numpy as jnp
from jax import lax
from jax.experimental import pallas as pl
from jax.experimental.pallas import tpu as pltpu


def _round_up(x, m):
    return ((x + m - 1) // m) * m


def _pick_batch_tile(B, cap=64):
    """Batch tile: >=2 grid steps when possible (v7x megacore), multiple of 8, VMEM-capped."""
    if B <= 8:
        return B
    if B <= 2 * cap:
        return _round_up((B + 1) // 2, 8)
    return cap


# ---------------------------------------------------------------------------
# Pallas kernels
# ---------------------------------------------------------------------------
def _conv_pool_kernel(x_ref, w_ref, b_ref, o_ref):
    """Fused Conv2d(5x5,p=2) + ReLU + MaxPool2d(2) on one (batch_tile*Ho) row block.

    x_ref : (tm, Kband)      bf16   rows = (image, pooled_row), lanes = h-halo phase views
    w_ref : (4, Kband, N)    bf16   one banded weight per pool-window quarter
    b_ref : (1, N)           f32    per-channel bias tiled over Wo
    o_ref : (tm, N)          bf16   rows = (image, pooled_row), lanes = (pooled_col, channel)

    max over quarters == maxpool; relu(max(.)) == max(relu(.)) since ReLU is monotone and
    the bias is shared, so bias + ReLU are applied once after the running max.
    """
    x = x_ref[...]
    m = jnp.dot(x, w_ref[0], preferred_element_type=jnp.float32)
    for q in range(1, 4):
        m = jnp.maximum(m, jnp.dot(x, w_ref[q], preferred_element_type=jnp.float32))
    o_ref[...] = jnp.maximum(m + b_ref[...], 0.0).astype(o_ref.dtype)


def _tail_kernel(
    flat_ref, lab_ref, tab_ref,
    wf_ref, bf_ref,                               # img_fc
    w1_ref, b1_ref, w2_ref, b2_ref,               # conditional embedding MLP
    ja_ref, jb_ref, jb1_ref, jw2_ref, jb2_ref,    # joiner (w1 split into img/lab halves)
    o_ref,
):
    """Fused tail on one batch tile: img_fc Linear, (Embedding -> Linear -> SiLU -> Linear),
    joiner (Linear(2*dim,dim) -> SiLU -> Linear(dim,dim))."""
    img_emb = (
        jnp.dot(flat_ref[...], wf_ref[...], preferred_element_type=jnp.float32)
        + bf_ref[...]
    )

    # label embedding: one-hot lookup via tiny matmul (free after fusion)
    Bt = lab_ref.shape[0]
    V = tab_ref.shape[0]
    iota = lax.broadcasted_iota(jnp.int32, (Bt, V), 1)
    onehot = (iota == lab_ref[...]).astype(jnp.float32)
    emb = jnp.dot(onehot, tab_ref[...], preferred_element_type=jnp.float32)
    h = jnp.dot(emb, w1_ref[...], preferred_element_type=jnp.float32) + b1_ref[...]
    h = h * jax.nn.sigmoid(h)  # SiLU
    lab_emb = jnp.dot(h, w2_ref[...], preferred_element_type=jnp.float32) + b2_ref[...]

    # joiner: concat([img_emb, lab_emb]) @ W1 computed as split matmuls (no concat)
    hj = (
        jnp.dot(img_emb, ja_ref[...], preferred_element_type=jnp.float32)
        + jnp.dot(lab_emb, jb_ref[...], preferred_element_type=jnp.float32)
        + jb1_ref[...]
    )
    hj = hj * jax.nn.sigmoid(hj)
    out = jnp.dot(hj, jw2_ref[...], preferred_element_type=jnp.float32) + jb2_ref[...]
    o_ref[...] = out.astype(o_ref.dtype)


# ---------------------------------------------------------------------------
# One-time weight preparation (banded conv weights, folded flatten permutation)
# ---------------------------------------------------------------------------
def _build_conv_band(w, b, H, W):
    """Torch conv weight (Cout, Cin, 5, 5) -> banded matmul weights.

    Returns wband (4, 6*Wp*Cin, Wo*Cout) bf16 and bband (1, Wo*Cout) f32, where
      * the kernel lhs row for (image, pooled_row i) is the concat over s = p*3 + r of
        padded-activation rows 2*(i+r) + p (p = h-phase, r = 0..2), each flattened as (w, c);
      * band entry [q=(dh,dw), s, wp, c, j, o] = W[o, c, kh, kw] iff s encodes a = dh+kh and
        wp = 2*j + dw + kw, else 0.  So x @ band[q] is the conv output at (2i+dh, 2j+dw),
        and max over q is the 2x2 max pool.
    """
    Cout, Cin, K, _ = w.shape
    assert K == 5
    Ho, Wo = H // 2, W // 2
    Wp = W + 4
    wt = np.transpose(np.asarray(w, dtype=np.float32), (2, 3, 1, 0))  # (kh, kw, Cin, Cout)
    bands = np.zeros((2, 2, 6, Wp, Cin, Wo, Cout), np.float32)
    jj = np.arange(Wo)
    for dh in range(2):
        for dw in range(2):
            for kh in range(K):
                a = dh + kh
                s = (a % 2) * 3 + (a // 2)
                for kw in range(K):
                    bands[dh, dw, s, 2 * jj + dw + kw, :, jj, :] = wt[kh, kw]
    wband = jnp.asarray(bands.reshape(4, 6 * Wp * Cin, Wo * Cout), jnp.bfloat16)
    bband = jnp.asarray(np.tile(np.asarray(b, np.float32), Wo).reshape(1, Wo * Cout))
    return wband, bband


def init_params(key, num_labels, d_model, channels, dim, hw=32):
    out_shape = {28: 32 * 7 * 7, 32: 32 * 8 * 8}[hw]
    ks = jax.random.split(key, 15)

    def nrm(k, shape, scale=0.05):
        return jax.random.normal(k, shape, jnp.float32) * scale

    table = nrm(ks[0], (num_labels + 1, d_model))
    table = table.at[0].set(0.0)  # padding_idx=0 row is zero-initialized in torch
    return dict(
        conv1_w=nrm(ks[1], (16, channels, 5, 5)),
        conv1_b=nrm(ks[2], (16,)),
        conv2_w=nrm(ks[3], (32, 16, 5, 5)),
        conv2_b=nrm(ks[4], (32,)),
        img_fc_w=nrm(ks[5], (out_shape, dim)),
        img_fc_b=nrm(ks[6], (dim,)),
        emb_table=table,
        cond_w1=nrm(ks[7], (d_model, dim)),
        cond_b1=nrm(ks[8], (dim,)),
        cond_w2=nrm(ks[9], (dim, dim)),
        cond_b2=nrm(ks[10], (dim,)),
        join_w1=nrm(ks[11], (2 * dim, dim)),
        join_b1=nrm(ks[12], (dim,)),
        join_w2=nrm(ks[13], (dim, dim)),
        join_b2=nrm(ks[14], (dim,)),
    )


def prepare_params(params, hw):
    """One-time (outside jit) conversion of torch-layout params into kernel-ready arrays."""
    Ho1 = hw // 2
    Ho2 = Ho1 // 2
    dim = params["img_fc_w"].shape[1]
    w1b, b1b = _build_conv_band(params["conv1_w"], params["conv1_b"], hw, hw)
    w2b, b2b = _build_conv_band(params["conv2_w"], params["conv2_b"], Ho1, Ho1)
    # torch Flatten on NCHW yields (c, h, w) feature order; our conv2 output is (h, w, c):
    # fold the permutation into img_fc_w once (zero runtime cost).
    wf = (
        params["img_fc_w"]
        .reshape(32, Ho2, Ho2, dim)
        .transpose(1, 2, 0, 3)
        .reshape(Ho2 * Ho2 * 32, dim)
        .astype(jnp.bfloat16)
    )
    return dict(
        conv1_wband=w1b, conv1_bband=b1b,
        conv2_wband=w2b, conv2_bband=b2b,
        img_fc_w=wf,
        img_fc_b=params["img_fc_b"].reshape(1, -1).astype(jnp.float32),
        emb_table=params["emb_table"].astype(jnp.float32),
        cond_w1=params["cond_w1"], cond_b1=params["cond_b1"].reshape(1, -1),
        cond_w2=params["cond_w2"], cond_b2=params["cond_b2"].reshape(1, -1),
        join_wa=params["join_w1"][:dim], join_wb=params["join_w1"][dim:],
        join_b1=params["join_b1"].reshape(1, -1),
        join_w2=params["join_w2"], join_b2=params["join_b2"].reshape(1, -1),
    )


# ---------------------------------------------------------------------------
# Glue (cheap: pad + h-phase halo views; ~2.7x the activation bytes, not 25x)
# ---------------------------------------------------------------------------
def _prep_conv_input(x):
    """x: (Bp, H, W, C) -> (Bp*Ho, 6*Wp*C) bf16 (h-halo phase views concatenated in lanes)."""
    B, H, W, C = x.shape
    Ho = H // 2
    Wp = W + 4
    xp = jnp.pad(x, ((0, 0), (2, 2), (2, 2), (0, 0))).astype(jnp.bfloat16)
    xe = xp[:, 0::2]                      # even padded rows: (B, Ho+2, Wp, C)
    xo = xp[:, 1::2]                      # odd  padded rows
    views = [xe[:, r:r + Ho] for r in range(3)] + [xo[:, r:r + Ho] for r in range(3)]
    xcat = jnp.concatenate([v.reshape(B, Ho, Wp * C) for v in views], axis=-1)
    return xcat.reshape(B * Ho, 6 * Wp * C)


def conv_relu_pool(xcat, wband, bband, tb, Ho):
    """Fused Conv2d(5x5,p=2)+ReLU+MaxPool2d(2) via banded matmuls; output bf16, lane-dense."""
    M, Kband = xcat.shape
    _, _, N = wband.shape
    tm = tb * Ho
    grid = (M // tm,)
    return pl.pallas_call(
        _conv_pool_kernel,
        out_shape=jax.ShapeDtypeStruct((M, N), jnp.bfloat16),
        grid=grid,
        in_specs=[
            pl.BlockSpec((tm, Kband), lambda i: (i, 0)),
            pl.BlockSpec((4, Kband, N), lambda i: (0, 0, 0)),
            pl.BlockSpec((1, N), lambda i: (0, 0)),
        ],
        out_specs=pl.BlockSpec((tm, N), lambda i: (i, 0)),
        compiler_params=pltpu.CompilerParams(dimension_semantics=("parallel",)),
    )(xcat, wband, bband)


def _full2d(a):
    return pl.BlockSpec(a.shape, lambda i: (0, 0))


def tail_forward(flat, lab2, p, tb):
    Bp, F = flat.shape
    dim = p["join_w2"].shape[1]
    grid = (Bp // tb,)
    return pl.pallas_call(
        _tail_kernel,
        out_shape=jax.ShapeDtypeStruct((Bp, dim), jnp.float32),
        grid=grid,
        in_specs=[
            pl.BlockSpec((tb, F), lambda i: (i, 0)),
            pl.BlockSpec((tb, 1), lambda i: (i, 0)),
            _full2d(p["emb_table"]),
            _full2d(p["img_fc_w"]), _full2d(p["img_fc_b"]),
            _full2d(p["cond_w1"]), _full2d(p["cond_b1"]),
            _full2d(p["cond_w2"]), _full2d(p["cond_b2"]),
            _full2d(p["join_wa"]), _full2d(p["join_wb"]),
            _full2d(p["join_b1"]),
            _full2d(p["join_w2"]), _full2d(p["join_b2"]),
        ],
        out_specs=pl.BlockSpec((tb, dim), lambda i: (i, 0)),
        compiler_params=pltpu.CompilerParams(dimension_semantics=("parallel",)),
    )(
        flat, lab2, p["emb_table"],
        p["img_fc_w"], p["img_fc_b"],
        p["cond_w1"], p["cond_b1"], p["cond_w2"], p["cond_b2"],
        p["join_wa"], p["join_wb"], p["join_b1"], p["join_w2"], p["join_b2"],
    )


# ---------------------------------------------------------------------------
# Full forward (drop_label=False, drop_image=False path)
# ---------------------------------------------------------------------------
def joint_embedding_forward(prep, img, lab):
    B, C, H, W = img.shape
    Ho1 = H // 2
    Ho2 = Ho1 // 2

    tb = _pick_batch_tile(B)
    Bp = _round_up(B, tb)

    x = jnp.transpose(img, (0, 2, 3, 1))                               # NCHW -> NHWC
    if Bp != B:
        x = jnp.pad(x, ((0, Bp - B), (0, 0), (0, 0), (0, 0)))

    # conv trunk: two fused conv+relu+pool launches, bf16 lane-dense intermediates
    x1 = _prep_conv_input(x)                                           # (Bp*Ho1, 6*Wp1*C)
    y1 = conv_relu_pool(x1, prep["conv1_wband"], prep["conv1_bband"], tb, Ho1)
    h1 = y1.reshape(Bp, Ho1, Ho1, 16)                                  # (b, h, w, c)

    x2 = _prep_conv_input(h1)                                          # (Bp*Ho2, 6*Wp2*16)
    y2 = conv_relu_pool(x2, prep["conv2_wband"], prep["conv2_bband"], tb, Ho2)

    # (Bp*Ho2, Wo2*32) rows=(b,h) lanes=(w,c) -> (Bp, h*w*c); permutation already folded
    # into img_fc_w at prepare time, so no runtime transpose.
    flat = y2.reshape(Bp, Ho2 * Ho2 * 32)                              # bf16

    lab2 = lab.astype(jnp.int32).reshape(B, 1)
    if Bp != B:
        lab2 = jnp.pad(lab2, ((0, Bp - B), (0, 0)))

    out = tail_forward(flat, lab2, prep, tb)
    return out[:B]


# ---------------------------------------------------------------------------
# Pure-JAX reference (independent implementation via lax.conv) for sanity check
# ---------------------------------------------------------------------------
def reference_forward(params, img, lab):
    def silu(x):
        return x * jax.nn.sigmoid(x)

    def conv_ref(x, w, b):
        K = w.shape[2]
        p = K // 2
        y = lax.conv_general_dilated(
            x, w, window_strides=(1, 1), padding=((p, p), (p, p)),
            dimension_numbers=("NCHW", "OIHW", "NCHW"))
        return jnp.maximum(y + b[None, :, None, None], 0.0)

    def pool_ref(x):
        return lax.reduce_window(x, -jnp.inf, lax.max, (1, 1, 2, 2), (1, 1, 2, 2), "VALID")

    B = img.shape[0]
    h = pool_ref(conv_ref(img, params["conv1_w"], params["conv1_b"]))
    h = pool_ref(conv_ref(h, params["conv2_w"], params["conv2_b"]))
    img_emb = h.reshape(B, -1) @ params["img_fc_w"] + params["img_fc_b"]
    emb = params["emb_table"][lab]
    lab_emb = (
        silu(emb @ params["cond_w1"] + params["cond_b1"]) @ params["cond_w2"]
        + params["cond_b2"]
    )
    cat = jnp.concatenate([img_emb, lab_emb], axis=1)
    return (
        silu(cat @ params["join_w1"] + params["join_b1"]) @ params["join_w2"]
        + params["join_b2"]
    )


if __name__ == "__main__":
    # Small shapes consistent with the module: hw=32 (so Flatten gives 32*8*8).
    num_labels, d_model, channels, dim, hw = 10, 32, 4, 32, 32
    B = 2

    key = jax.random.PRNGKey(0)
    kp, ki, kl = jax.random.split(key, 3)
    params = init_params(kp, num_labels, d_model, channels, dim, hw)
    prep = prepare_params(params, hw)
    img = jax.random.normal(ki, (B, channels, hw, hw), jnp.float32)
    lab = jax.random.randint(kl, (B,), 0, num_labels + 1)

    out = jax.jit(joint_embedding_forward)(prep, img, lab)
    out = jax.block_until_ready(out)

    assert out.shape == (B, dim)
    assert bool(jnp.all(jnp.isfinite(out)))

    ref = reference_forward(params, img, lab)
    rel_err = float(jnp.max(jnp.abs(out - ref)) / (jnp.max(jnp.abs(ref)) + 1e-6))
    assert rel_err < 5e-2, f"relative error too large: {rel_err}"

    print("KERNEL_OK")
</pallas_src>

<mosaic_0001>
module attributes {stable_mosaic.version = 11 : i64} {
  func.func @_conv_pool_kernel(%arg0: i32, %arg1: memref<32x864xbf16, #tpu.memory_space<vmem>>, %arg2: memref<4x864x256xbf16, #tpu.memory_space<vmem>>, %arg3: memref<1x256xf32, #tpu.memory_space<vmem>>, %arg4: memref<32x256xbf16, #tpu.memory_space<vmem>>) attributes {dimension_semantics = [#tpu.dimension_semantics<parallel>], iteration_bounds = array<i64: 1>, scalar_prefetch = 0 : i64, scratch_operands = 0 : i64, tpu.core_type = #tpu.core_type<tc>, window_params = [{transform_indices = @transform_0, window_bounds = array<i64: 32, 864>}, {pipeline_mode = #tpu.pipeline_mode<synchronous>, transform_indices = @transform_1, window_bounds = array<i64: 4, 864, 256>}, {pipeline_mode = #tpu.pipeline_mode<synchronous>, transform_indices = @transform_2, window_bounds = array<i64: 1, 256>}, {transform_indices = @transform_3, window_bounds = array<i64: 32, 256>}]} {
    %c0 = arith.constant 0 : index
    %c0_0 = arith.constant 0 : index
    %0 = vector.load %arg1[%c0, %c0_0] : memref<32x864xbf16, #tpu.memory_space<vmem>>, vector<32x864xbf16>
    %c0_1 = arith.constant 0 : index
    %c0_2 = arith.constant 0 : index
    %c0_3 = arith.constant 0 : index
    %1 = vector.load %arg2[%c0_1, %c0_2, %c0_3] : memref<4x864x256xbf16, #tpu.memory_space<vmem>>, vector<1x864x256xbf16>
    %2 = vector.shape_cast %1 : vector<1x864x256xbf16> to vector<864x256xbf16>
    %cst = arith.constant dense<0.000000e+00> : vector<32x256xf32>
    %3 = tpu.matmul %0, %2, %cst {dimension_numbers = #tpu.dot_dimension_numbers<[1], [0], [0], [1], [0, 0, 1, 1], [], []>} : vector<32x864xbf16>, vector<864x256xbf16>, vector<32x256xf32> -> vector<32x256xf32>
    %c1 = arith.constant 1 : index
    %c0_4 = arith.constant 0 : index
    %c0_5 = arith.constant 0 : index
    %4 = vector.load %arg2[%c1, %c0_4, %c0_5] : memref<4x864x256xbf16, #tpu.memory_space<vmem>>, vector<1x864x256xbf16>
    %5 = vector.shape_cast %4 : vector<1x864x256xbf16> to vector<864x256xbf16>
    %cst_6 = arith.constant dense<0.000000e+00> : vector<32x256xf32>
    %6 = tpu.matmul %0, %5, %cst_6 {dimension_numbers = #tpu.dot_dimension_numbers<[1], [0], [0], [1], [0, 0, 1, 1], [], []>} : vector<32x864xbf16>, vector<864x256xbf16>, vector<32x256xf32> -> vector<32x256xf32>
    %7 = arith.maximumf %3, %6 : vector<32x256xf32>
    %c2 = arith.constant 2 : index
    %c0_7 = arith.constant 0 : index
    %c0_8 = arith.constant 0 : index
    %8 = vector.load %arg2[%c2, %c0_7, %c0_8] : memref<4x864x256xbf16, #tpu.memory_space<vmem>>, vector<1x864x256xbf16>
    %9 = vector.shape_cast %8 : vector<1x864x256xbf16> to vector<864x256xbf16>
    %cst_9 = arith.constant dense<0.000000e+00> : vector<32x256xf32>
    %10 = tpu.matmul %0, %9, %cst_9 {dimension_numbers = #tpu.dot_dimension_numbers<[1], [0], [0], [1], [0, 0, 1, 1], [], []>} : vector<32x864xbf16>, vector<864x256xbf16>, vector<32x256xf32> -> vector<32x256xf32>
    %11 = arith.maximumf %7, %10 : vector<32x256xf32>
    %c3 = arith.constant 3 : index
    %c0_10 = arith.constant 0 : index
    %c0_11 = arith.constant 0 : index
    %12 = vector.load %arg2[%c3, %c0_10, %c0_11] : memref<4x864x256xbf16, #tpu.memory_space<vmem>>, vector<1x864x256xbf16>
    %13 = vector.shape_cast %12 : vector<1x864x256xbf16> to vector<864x256xbf16>
    %cst_12 = arith.constant dense<0.000000e+00> : vector<32x256xf32>
    %14 = tpu.matmul %0, %13, %cst_12 {dimension_numbers = #tpu.dot_dimension_numbers<[1], [0], [0], [1], [0, 0, 1, 1], [], []>} : vector<32x864xbf16>, vector<864x256xbf16>, vector<32x256xf32> -> vector<32x256xf32>
    %15 = arith.maximumf %11, %14 : vector<32x256xf32>
    %c0_13 = arith.constant 0 : index
    %c0_14 = arith.constant 0 : index
    %16 = vector.load %arg3[%c0_13, %c0_14] : memref<1x256xf32, #tpu.memory_space<vmem>>, vector<1x256xf32>
    %17 = vector.broadcast %16 : vector<1x256xf32> to vector<32x256xf32>
    %18 = arith.addf %15, %17 : vector<32x256xf32>
    %cst_15 = arith.constant 0.000000e+00 : f32
    %19 = vector.broadcast %cst_15 : f32 to vector<32x256xf32>
    %20 = arith.maximumf %18, %19 : vector<32x256xf32>
    %21 = arith.truncf %20 : vector<32x256xf32> to vector<32x256xbf16>
    %c0_16 = arith.constant 0 : index
    %c0_17 = arith.constant 0 : index
    %22 = vector.load %arg4[%c0_16, %c0_17] : memref<32x256xbf16, #tpu.memory_space<vmem>>, vector<32x256xbf16>
    tpu.vector_store %arg4[%c0_16, %c0_17], %21 {strides = array<i32>} : memref<32x256xbf16, #tpu.memory_space<vmem>>, vector<32x256xbf16>,
    return
  }
  func.func @transform_0(%arg0: i32) -> (i32, i32) {
    %c0_i32 = arith.constant 0 : i32
    %c0_i32_0 = arith.constant 0 : i32
    return %arg0, %c0_i32 : i32, i32
  }
  func.func @transform_1(%arg0: i32) -> (i32, i32, i32) {
    %c0_i32 = arith.constant 0 : i32
    %c0_i32_0 = arith.constant 0 : i32
    %c0_i32_1 = arith.constant 0 : i32
    %c0_i32_2 = arith.constant 0 : i32
    return %c0_i32, %c0_i32_0, %c0_i32_1 : i32, i32, i32
  }
  func.func @transform_2(%arg0: i32) -> (i32, i32) {
    %c0_i32 = arith.constant 0 : i32
    %c0_i32_0 = arith.constant 0 : i32
    %c0_i32_1 = arith.constant 0 : i32
    return %c0_i32, %c0_i32_0 : i32, i32
  }
  func.func @transform_3(%arg0: i32) -> (i32, i32) {
    %c0_i32 = arith.constant 0 : i32
    %c0_i32_0 = arith.constant 0 : i32
    return %arg0, %c0_i32 : i32, i32
  }
}

module attributes {stable_mosaic.version = 11 : i64} {
  func.func @_conv_pool_kernel(%arg0: i32, %arg1: memref<16x1920xbf16, #tpu.memory_space<vmem>>, %arg2: memref<4x1920x256xbf16, #tpu.memory_space<vmem>>, %arg3: memref<1x256xf32, #tpu.memory_space<vmem>>, %arg4: memref<16x256xbf16, #tpu.memory_space<vmem>>) attributes {dimension_semantics = [#tpu.dimension_semantics<parallel>], iteration_bounds = array<i64: 1>, scalar_prefetch = 0 : i64, scratch_operands = 0 : i64, tpu.core_type = #tpu.core_type<tc>, window_params = [{transform_indices = @transform_0, window_bounds = array<i64: 16, 1920>}, {pipeline_mode = #tpu.pipeline_mode<synchronous>, transform_indices = @transform_1, window_bounds = array<i64: 4, 1920, 256>}, {pipeline_mode = #tpu.pipeline_mode<synchronous>, transform_indices = @transform_2, window_bounds = array<i64: 1, 256>}, {transform_indices = @transform_3, window_bounds = array<i64: 16, 256>}]} {
    %c0 = arith.constant 0 : index
    %c0_0 = arith.constant 0 : index
    %0 = vector.load %arg1[%c0, %c0_0] : memref<16x1920xbf16, #tpu.memory_space<vmem>>, vector<16x1920xbf16>
    %c0_1 = arith.constant 0 : index
    %c0_2 = arith.constant 0 : index
    %c0_3 = arith.constant 0 : index
    %1 = vector.load %arg2[%c0_1, %c0_2, %c0_3] : memref<4x1920x256xbf16, #tpu.memory_space<vmem>>, vector<1x1920x256xbf16>
    %2 = vector.shape_cast %1 : vector<1x1920x256xbf16> to vector<1920x256xbf16>
    %cst = arith.constant dense<0.000000e+00> : vector<16x256xf32>
    %3 = tpu.matmul %0, %2, %cst {dimension_numbers = #tpu.dot_dimension_numbers<[1], [0], [0], [1], [0, 0, 1, 1], [], []>} : vector<16x1920xbf16>, vector<1920x256xbf16>, vector<16x256xf32> -> vector<16x256xf32>
    %c1 = arith.constant 1 : index
    %c0_4 = arith.constant 0 : index
    %c0_5 = arith.constant 0 : index
    %4 = vector.load %arg2[%c1, %c0_4, %c0_5] : memref<4x1920x256xbf16, #tpu.memory_space<vmem>>, vector<1x1920x256xbf16>
    %5 = vector.shape_cast %4 : vector<1x1920x256xbf16> to vector<1920x256xbf16>
    %cst_6 = arith.constant dense<0.000000e+00> : vector<16x256xf32>
    %6 = tpu.matmul %0, %5, %cst_6 {dimension_numbers = #tpu.dot_dimension_numbers<[1], [0], [0], [1], [0, 0, 1, 1], [], []>} : vector<16x1920xbf16>, vector<1920x256xbf16>, vector<16x256xf32> -> vector<16x256xf32>
    %7 = arith.maximumf %3, %6 : vector<16x256xf32>
    %c2 = arith.constant 2 : index
    %c0_7 = arith.constant 0 : index
    %c0_8 = arith.constant 0 : index
    %8 = vector.load %arg2[%c2, %c0_7, %c0_8] : memref<4x1920x256xbf16, #tpu.memory_space<vmem>>, vector<1x1920x256xbf16>
    %9 = vector.shape_cast %8 : vector<1x1920x256xbf16> to vector<1920x256xbf16>
    %cst_9 = arith.constant dense<0.000000e+00> : vector<16x256xf32>
    %10 = tpu.matmul %0, %9, %cst_9 {dimension_numbers = #tpu.dot_dimension_numbers<[1], [0], [0], [1], [0, 0, 1, 1], [], []>} : vector<16x1920xbf16>, vector<1920x256xbf16>, vector<16x256xf32> -> vector<16x256xf32>
    %11 = arith.maximumf %7, %10 : vector<16x256xf32>
    %c3 = arith.constant 3 : index
    %c0_10 = arith.constant 0 : index
    %c0_11 = arith.constant 0 : index
    %12 = vector.load %arg2[%c3, %c0_10, %c0_11] : memref<4x1920x256xbf16, #tpu.memory_space<vmem>>, vector<1x1920x256xbf16>
    %13 = vector.shape_cast %12 : vector<1x1920x256xbf16> to vector<1920x256xbf16>
    %cst_12 = arith.constant dense<0.000000e+00> : vector<16x256xf32>
    %14 = tpu.matmul %0, %13, %cst_12 {dimension_numbers = #tpu.dot_dimension_numbers<[1], [0], [0], [1], [0, 0, 1, 1], [], []>} : vector<16x1920xbf16>, vector<1920x256xbf16>, vector<16x256xf32> -> vector<16x256xf32>
    %15 = arith.maximumf %11, %14 : vector<16x256xf32>
    %c0_13 = arith.constant 0 : index
    %c0_14 = arith.constant 0 : index
    %16 = vector.load %arg3[%c0_13, %c0_14] : memref<1x256xf32, #tpu.memory_space<vmem>>, vector<1x256xf32>
    %17 = vector.broadcast %16 : vector<1x256xf32> to vector<16x256xf32>
    %18 = arith.addf %15, %17 : vector<16x256xf32>
    %cst_15 = arith.constant 0.000000e+00 : f32
    %19 = vector.broadcast %cst_15 : f32 to vector<16x256xf32>
    %20 = arith.maximumf %18, %19 : vector<16x256xf32>
    %21 = arith.truncf %20 : vector<16x256xf32> to vector<16x256xbf16>
    %c0_16 = arith.constant 0 : index
    %c0_17 = arith.constant 0 : index
    %22 = vector.load %arg4[%c0_16, %c0_17] : memref<16x256xbf16, #tpu.memory_space<vmem>>, vector<16x256xbf16>
    tpu.vector_store %arg4[%c0_16, %c0_17], %21 {strides = array<i32>} : memref<16x256xbf16, #tpu.memory_space<vmem>>, vector<16x256xbf16>,
    return
  }
  func.func @transform_0(%arg0: i32) -> (i32, i32) {
    %c0_i32 = arith.constant 0 : i32
    %c0_i32_0 = arith.constant 0 : i32
    return %arg0, %c0_i32 : i32, i32
  }
  func.func @transform_1(%arg0: i32) -> (i32, i32, i32) {
    %c0_i32 = arith.constant 0 : i32
    %c0_i32_0 = arith.constant 0 : i32
    %c0_i32_1 = arith.constant 0 : i32
    %c0_i32_2 = arith.constant 0 : i32
    return %c0_i32, %c0_i32_0, %c0_i32_1 : i32, i32, i32
  }
  func.func @transform_2(%arg0: i32) -> (i32, i32) {
    %c0_i32 = arith.constant 0 : i32
    %c0_i32_0 = arith.constant 0 : i32
    %c0_i32_1 = arith.constant 0 : i32
    return %c0_i32, %c0_i32_0 : i32, i32
  }
  func.func @transform_3(%arg0: i32) -> (i32, i32) {
    %c0_i32 = arith.constant 0 : i32
    %c0_i32_0 = arith.constant 0 : i32
    return %arg0, %c0_i32 : i32, i32
  }
}

module attributes {stable_mosaic.version = 11 : i64} {
  func.func @_tail_kernel(%arg0: i32, %arg1: memref<2x2048xbf16, #tpu.memory_space<vmem>>, %arg2: memref<2x1xi32, #tpu.memory_space<vmem>>, %arg3: memref<11x32xf32, #tpu.memory_space<vmem>>, %arg4: memref<2048x32xbf16, #tpu.memory_space<vmem>>, %arg5: memref<1x32xf32, #tpu.memory_space<vmem>>, %arg6: memref<32x32xf32, #tpu.memory_space<vmem>>, %arg7: memref<1x32xf32, #tpu.memory_space<vmem>>, %arg8: memref<32x32xf32, #tpu.memory_space<vmem>>, %arg9: memref<1x32xf32, #tpu.memory_space<vmem>>, %arg10: memref<32x32xf32, #tpu.memory_space<vmem>>, %arg11: memref<32x32xf32, #tpu.memory_space<vmem>>, %arg12: memref<1x32xf32, #tpu.memory_space<vmem>>, %arg13: memref<32x32xf32, #tpu.memory_space<vmem>>, %arg14: memref<1x32xf32, #tpu.memory_space<vmem>>, %arg15: memref<2x32xf32, #tpu.memory_space<vmem>>) attributes {dimension_semantics = [#tpu.dimension_semantics<parallel>], iteration_bounds = array<i64: 1>, scalar_prefetch = 0 : i64, scratch_operands = 0 : i64, tpu.core_type = #tpu.core_type<tc>, window_params = [{transform_indices = @transform_0, window_bounds = array<i64: 2, 2048>}, {transform_indices = @transform_1, window_bounds = array<i64: 2, 1>}, {pipeline_mode = #tpu.pipeline_mode<synchronous>, transform_indices = @transform_2, window_bounds = array<i64: 11, 32>}, {pipeline_mode = #tpu.pipeline_mode<synchronous>, transform_indices = @transform_3, window_bounds = array<i64: 2048, 32>}, {pipeline_mode = #tpu.pipeline_mode<synchronous>, transform_indices = @transform_4, window_bounds = array<i64: 1, 32>}, {pipeline_mode = #tpu.pipeline_mode<synchronous>, transform_indices = @transform_5, window_bounds = array<i64: 32, 32>}, {pipeline_mode = #tpu.pipeline_mode<synchronous>, transform_indices = @transform_6, window_bounds = array<i64: 1, 32>}, {pipeline_mode = #tpu.pipeline_mode<synchronous>, transform_indices = @transform_7, window_bounds = array<i64: 32, 32>}, {pipeline_mode = #tpu.pipeline_mode<synchronous>, transform_indices = @transform_8, window_bounds = array<i64: 1, 32>}, {pipeline_mode = #tpu.pipeline_mode<synchronous>, transform_indices = @transform_9, window_bounds = array<i64: 32, 32>}, {pipeline_mode = #tpu.pipeline_mode<synchronous>, transform_indices = @transform_10, window_bounds = array<i64: 32, 32>}, {pipeline_mode = #tpu.pipeline_mode<synchronous>, transform_indices = @transform_11, window_bounds = array<i64: 1, 32>}, {pipeline_mode = #tpu.pipeline_mode<synchronous>, transform_indices = @transform_12, window_bounds = array<i64: 32, 32>}, {pipeline_mode = #tpu.pipeline_mode<synchronous>, transform_indices = @transform_13, window_bounds = array<i64: 1, 32>}, {transform_indices = @transform_14, window_bounds = array<i64: 2, 32>}]} {
    %c0 = arith.constant 0 : index
    %c0_0 = arith.constant 0 : index
    %0 = vector.load %arg1[%c0, %c0_0] : memref<2x2048xbf16, #tpu.memory_space<vmem>>, vector<2x2048xbf16>
    %c0_1 = arith.constant 0 : index
    %c0_2 = arith.constant 0 : index
    %1 = vector.load %arg4[%c0_1, %c0_2] : memref<2048x32xbf16, #tpu.memory_space<vmem>>, vector<2048x32xbf16>
    %cst = arith.constant dense<0.000000e+00> : vector<2x32xf32>
    %2 = tpu.matmul %0, %1, %cst {dimension_numbers = #tpu.dot_dimension_numbers<[1], [0], [0], [1], [0, 0, 1, 1], [], []>} : vector<2x2048xbf16>, vector<2048x32xbf16>, vector<2x32xf32> -> vector<2x32xf32>
    %c0_3 = arith.constant 0 : index
    %c0_4 = arith.constant 0 : index
    %3 = vector.load %arg5[%c0_3, %c0_4] : memref<1x32xf32, #tpu.memory_space<vmem>>, vector<1x32xf32>
    %4 = vector.broadcast %3 : vector<1x32xf32> to vector<2x32xf32>
    %5 = arith.addf %2, %4 : vector<2x32xf32>
    %6 = tpu.iota {dimensions = array<i32: 1>} : vector<2x11xi32>
    %c0_5 = arith.constant 0 : index
    %c0_6 = arith.constant 0 : index
    %7 = vector.load %arg2[%c0_5, %c0_6] : memref<2x1xi32, #tpu.memory_space<vmem>>, vector<2x1xi32>
    %8 = vector.broadcast %7 : vector<2x1xi32> to vector<2x11xi32>
    %9 = arith.cmpi eq, %6, %8 : vector<2x11xi32>
    %10 = arith.extui %9 : vector<2x11xi1> to vector<2x11xi32>
    %11 = arith.sitofp %10 : vector<2x11xi32> to vector<2x11xf32>
    %c0_7 = arith.constant 0 : index
    %c0_8 = arith.constant 0 : index
    %12 = vector.load %arg3[%c0_7, %c0_8] : memref<11x32xf32, #tpu.memory_space<vmem>>, vector<11x32xf32>
    %cst_9 = arith.constant dense<0.000000e+00> : vector<2x32xf32>
    %13 = tpu.matmul %11, %12, %cst_9 {dimension_numbers = #tpu.dot_dimension_numbers<[1], [0], [0], [1], [0, 0, 1, 1], [], []>} : vector<2x11xf32>, vector<11x32xf32>, vector<2x32xf32> -> vector<2x32xf32>
    %c0_10 = arith.constant 0 : index
    %c0_11 = arith.constant 0 : index
    %14 = vector.load %arg6[%c0_10, %c0_11] : memref<32x32xf32, #tpu.memory_space<vmem>>, vector<32x32xf32>
    %cst_12 = arith.constant dense<0.000000e+00> : vector<2x32xf32>
    %15 = tpu.matmul %13, %14, %cst_12 {dimension_numbers = #tpu.dot_dimension_numbers<[1], [0], [0], [1], [0, 0, 1, 1], [], []>} : vector<2x32xf32>, vector<32x32xf32>, vector<2x32xf32> -> vector<2x32xf32>
    %c0_13 = arith.constant 0 : index
    %c0_14 = arith.constant 0 : index
    %16 = vector.load %arg7[%c0_13, %c0_14] : memref<1x32xf32, #tpu.memory_space<vmem>>, vector<1x32xf32>
    %17 = vector.broadcast %16 : vector<1x32xf32> to vector<2x32xf32>
    %18 = arith.addf %15, %17 : vector<2x32xf32>
    %19 = arith.negf %18 : vector<2x32xf32>
    %20 = math.exp %19 : vector<2x32xf32>
    %cst_15 = arith.constant 1.000000e+00 : f32
    %21 = vector.broadcast %cst_15 : f32 to vector<2x32xf32>
    %22 = arith.addf %21, %20 : vector<2x32xf32>
    %23 = arith.divf %21, %22 : vector<2x32xf32>
    %24 = arith.mulf %18, %23 : vector<2x32xf32>
    %c0_16 = arith.constant 0 : index
    %c0_17 = arith.constant 0 : index
    %25 = vector.load %arg8[%c0_16, %c0_17] : memref<32x32xf32, #tpu.memory_space<vmem>>, vector<32x32xf32>
    %cst_18 = arith.constant dense<0.000000e+00> : vector<2x32xf32>
    %26 = tpu.matmul %24, %25, %cst_18 {dimension_numbers = #tpu.dot_dimension_numbers<[1], [0], [0], [1], [0, 0, 1, 1], [], []>} : vector<2x32xf32>, vector<32x32xf32>, vector<2x32xf32> -> vector<2x32xf32>
    %c0_19 = arith.constant 0 : index
    %c0_20 = arith.constant 0 : index
    %27 = vector.load %arg9[%c0_19, %c0_20] : memref<1x32xf32, #tpu.memory_space<vmem>>, vector<1x32xf32>
    %28 = vector.broadcast %27 : vector<1x32xf32> to vector<2x32xf32>
    %29 = arith.addf %26, %28 : vector<2x32xf32>
    %c0_21 = arith.constant 0 : index
    %c0_22 = arith.constant 0 : index
    %30 = vector.load %arg10[%c0_21, %c0_22] : memref<32x32xf32, #tpu.memory_space<vmem>>, vector<32x32xf32>
    %cst_23 = arith.constant dense<0.000000e+00> : vector<2x32xf32>
    %31 = tpu.matmul %5, %30, %cst_23 {dimension_numbers = #tpu.dot_dimension_numbers<[1], [0], [0], [1], [0, 0, 1, 1], [], []>} : vector<2x32xf32>, vector<32x32xf32>, vector<2x32xf32> -> vector<2x32xf32>
    %c0_24 = arith.constant 0 : index
    %c0_25 = arith.constant 0 : index
    %32 = vector.load %arg11[%c0_24, %c0_25] : memref<32x32xf32, #tpu.memory_space<vmem>>, vector<32x32xf32>
    %cst_26 = arith.constant dense<0.000000e+00> : vector<2x32xf32>
    %33 = tpu.matmul %29, %32, %cst_26 {dimension_numbers = #tpu.dot_dimension_numbers<[1], [0], [0], [1], [0, 0, 1, 1], [], []>} : vector<2x32xf32>, vector<32x32xf32>, vector<2x32xf32> -> vector<2x32xf32>
    %34 = arith.addf %31, %33 : vector<2x32xf32>
    %c0_27 = arith.constant 0 : index
    %c0_28 = arith.constant 0 : index
    %35 = vector.load %arg12[%c0_27, %c0_28] : memref<1x32xf32, #tpu.memory_space<vmem>>, vector<1x32xf32>
    %36 = vector.broadcast %35 : vector<1x32xf32> to vector<2x32xf32>
    %37 = arith.addf %34, %36 : vector<2x32xf32>
    %38 = arith.negf %37 : vector<2x32xf32>
    %39 = math.exp %38 : vector<2x32xf32>
    %cst_29 = arith.constant 1.000000e+00 : f32
    %40 = vector.broadcast %cst_29 : f32 to vector<2x32xf32>
    %41 = arith.addf %40, %39 : vector<2x32xf32>
    %42 = arith.divf %40, %41 : vector<2x32xf32>
    %43 = arith.mulf %37, %42 : vector<2x32xf32>
    %c0_30 = arith.constant 0 : index
    %c0_31 = arith.constant 0 : index
    %44 = vector.load %arg13[%c0_30, %c0_31] : memref<32x32xf32, #tpu.memory_space<vmem>>, vector<32x32xf32>
    %cst_32 = arith.constant dense<0.000000e+00> : vector<2x32xf32>
    %45 = tpu.matmul %43, %44, %cst_32 {dimension_numbers = #tpu.dot_dimension_numbers<[1], [0], [0], [1], [0, 0, 1, 1], [], []>} : vector<2x32xf32>, vector<32x32xf32>, vector<2x32xf32> -> vector<2x32xf32>
    %c0_33 = arith.constant 0 : index
    %c0_34 = arith.constant 0 : index
    %46 = vector.load %arg14[%c0_33, %c0_34] : memref<1x32xf32, #tpu.memory_space<vmem>>, vector<1x32xf32>
    %47 = vector.broadcast %46 : vector<1x32xf32> to vector<2x32xf32>
    %48 = arith.addf %45, %47 : vector<2x32xf32>
    %c0_35 = arith.constant 0 : index
    %c0_36 = arith.constant 0 : index
    %49 = vector.load %arg15[%c0_35, %c0_36] : memref<2x32xf32, #tpu.memory_space<vmem>>, vector<2x32xf32>
    tpu.vector_store %arg15[%c0_35, %c0_36], %48 {strides = array<i32>} : memref<2x32xf32, #tpu.memory_space<vmem>>, vector<2x32xf32>,
    return
  }
  func.func @transform_0(%arg0: i32) -> (i32, i32) {
    %c0_i32 = arith.constant 0 : i32
    %c0_i32_0 = arith.constant 0 : i32
    return %arg0, %c0_i32 : i32, i32
  }
  func.func @transform_1(%arg0: i32) -> (i32, i32) {
    %c0_i32 = arith.constant 0 : i32
    %c0_i32_0 = arith.constant 0 : i32
    return %arg0, %c0_i32 : i32, i32
  }
  func.func @transform_2(%arg0: i32) -> (i32, i32) {
    %c0_i32 = arith.constant 0 : i32
    %c0_i32_0 = arith.constant 0 : i32
    %c0_i32_1 = arith.constant 0 : i32
    return %c0_i32, %c0_i32_0 : i32, i32
  }
  func.func @transform_3(%arg0: i32) -> (i32, i32) {
    %c0_i32 = arith.constant 0 : i32
    %c0_i32_0 = arith.constant 0 : i32
    %c0_i32_1 = arith.constant 0 : i32
    return %c0_i32, %c0_i32_0 : i32, i32
  }
  func.func @transform_4(%arg0: i32) -> (i32, i32) {
    %c0_i32 = arith.constant 0 : i32
    %c0_i32_0 = arith.constant 0 : i32
    %c0_i32_1 = arith.constant 0 : i32
    return %c0_i32, %c0_i32_0 : i32, i32
  }
  func.func @transform_5(%arg0: i32) -> (i32, i32) {
    %c0_i32 = arith.constant 0 : i32
    %c0_i32_0 = arith.constant 0 : i32
    %c0_i32_1 = arith.constant 0 : i32
    return %c0_i32, %c0_i32_0 : i32, i32
  }
  func.func @transform_6(%arg0: i32) -> (i32, i32) {
    %c0_i32 = arith.constant 0 : i32
    %c0_i32_0 = arith.constant 0 : i32
    %c0_i32_1 = arith.constant 0 : i32
    return %c0_i32, %c0_i32_0 : i32, i32
  }
  func.func @transform_7(%arg0: i32) -> (i32, i32) {
    %c0_i32 = arith.constant 0 : i32
    %c0_i32_0 = arith.constant 0 : i32
    %c0_i32_1 = arith.constant 0 : i32
    return %c0_i32, %c0_i32_0 : i32, i32
  }
  func.func @transform_8(%arg0: i32) -> (i32, i32) {
    %c0_i32 = arith.constant 0 : i32
    %c0_i32_0 = arith.constant 0 : i32
    %c0_i32_1 = arith.constant 0 : i32
    return %c0_i32, %c0_i32_0 : i32, i32
  }
  func.func @transform_9(%arg0: i32) -> (i32, i32) {
    %c0_i32 = arith.constant 0 : i32
    %c0_i32_0 = arith.constant 0 : i32
    %c0_i32_1 = arith.constant 0 : i32
    return %c0_i32, %c0_i32_0 : i32, i32
  }
  func.func @transform_10(%arg0: i32) -> (i32, i32) {
    %c0_i32 = arith.constant 0 : i32
    %c0_i32_0 = arith.constant 0 : i32
    %c0_i32_1 = arith.constant 0 : i32
    return %c0_i32, %c0_i32_0 : i32, i32
  }
  func.func @transform_11(%arg0: i32) -> (i32, i32) {
    %c0_i32 = arith.constant 0 : i32
    %c0_i32_0 = arith.constant 0 : i32
    %c0_i32_1 = arith.constant 0 : i32
    return %c0_i32, %c0_i32_0 : i32, i32
  }
  func.func @transform_12(%arg0: i32) -> (i32, i32) {
    %c0_i32 = arith.constant 0 : i32
    %c0_i32_0 = arith.constant 0 : i32
    %c0_i32_1 = arith.constant 0 : i32
    return %c0_i32, %c0_i32_0 : i32, i32
  }
  func.func @transform_13(%arg0: i32) -> (i32, i32) {
    %c0_i32 = arith.constant 0 : i32
    %c0_i32_0 = arith.constant 0 : i32
    %c0_i32_1 = arith.constant 0 : i32
    return %c0_i32, %c0_i32_0 : i32, i32
  }
  func.func @transform_14(%arg0: i32) -> (i32, i32) {
    %c0_i32 = arith.constant 0 : i32
    %c0_i32_0 = arith.constant 0 : i32
    return %arg0, %c0_i32 : i32, i32
  }
}

</mosaic_0001>

<llo_original>
// kernel: joint_embedding_forward.3
$region0: #{joint_embedding_forward.3}
  #allocation0 [shape = 'u32[]', space=smem, size = 0x4, offset = 0x4, fixed_abs, tag = 'smem constant byte address 0x4 - core index']
  #allocation1 [shape = 'u32[144,128]{1,0:T(1,128)}', space=vmem, size = 0x12000, scoped, tag = 'internal scratch']
  %s0 = inlined_call_operand.vmem [shape: bf16[32,864], index: 0, kind: input, shape index: {}]
  %s1 = inlined_call_operand.vmem [shape: bf16[4,864,256], index: 1, kind: input, shape index: {}]
  %s2 = inlined_call_operand.hbm [shape: f32[1,256], index: 2, kind: input, shape index: {}]
  %s3 = inlined_call_operand.vmem [shape: bf16[32,256], index: 3, kind: output, shape index: {}]
  %s4 = sld [smem:[#allocation0]]
  $region26: #{joint_embedding_forward.3} parent=0
    _
  %s6 = ssub.s32 1, %s4
  %s7 = scalar_select 0, %s6, %s4
  $region1: #{joint_embedding_forward.3} parent=0
    #allocation2 [shape = 'u8[1024]{0}', space=vmem, size = 0x400, scoped, tag = 'input window, operand 2, single buffered']
    #allocation3 [shape = 's32[1]{0}', space=sflag, size = 0x4, scoped, tag = 'scoped memory for joint_embedding_forward.3']
    %8 = vsyncpa [#allocation3], 0
    // Predicated region
    $region2: #{joint_embedding_forward.3} parent=1 // pred_check
      _
    $region3: #{joint_embedding_forward.3} parent=1 // pred_check_branch
      %10 = sbr.rel (0) target = $region5
    $region4: #{joint_embedding_forward.3} parent=1 // pred_region
      _
    $region5: #{joint_embedding_forward.3} parent=1 // pred_fallthru
      _
    // Predicated region
    $region6: #{joint_embedding_forward.3} parent=1 // pred_check
      _
    $region7: #{joint_embedding_forward.3} parent=1 // pred_check_branch
      %12 = sbr.rel (0) target = $region9
    $region8: #{joint_embedding_forward.3} parent=1 // pred_region
      _
    $region9: #{joint_embedding_forward.3} parent=1 // pred_fallthru
      _
    // Predicated region
    $region10: #{joint_embedding_forward.3} parent=1 // pred_check
      _
    $region11: #{joint_embedding_forward.3} parent=1 // pred_check_branch
      %14 = sbr.rel (0) target = $region13
    $region12: #{joint_embedding_forward.3} parent=1 // pred_region
      %s16 = ssub.s32 32, 32
      %17 = vsyncadd [#allocation3], %s16
      %s19 = sshll.u32 [#allocation2], 4
      %s20 = int_to_ptr.vmem [resolvable:$true] %s19
      %22 = dma.hbm_to_vmem [thread:$0]  %s2, 32, %s20, [#allocation3]
    $region13: #{joint_embedding_forward.3} parent=1 // pred_fallthru
      _
    // Predicated region
    $region14: #{joint_embedding_forward.3} parent=1 // pred_check
      _
    $region15: #{joint_embedding_forward.3} parent=1 // pred_check_branch
      %24 = sbr.rel (0) target = $region17
    $region16: #{joint_embedding_forward.3} parent=1 // pred_region
      %25 = dma.done [#allocation3], 32
    $region17: #{joint_embedding_forward.3} parent=1 // pred_fallthru
      _
    %v27 = vld [vmem:[%s0] sm:$0xff]
    %v28 = vld [vmem:[%s0 + $0x8] sm:$0xff]
    %v29 = vld [vmem:[%s0 + $0x10] sm:$0xff]
    %v30 = vld [vmem:[%s0 + $0x18] sm:$0xf]
    %v31 = vld [vmem:[%s0 + $0x1c] sm:$0xff]
    %v32 = vld [vmem:[%s0 + $0x24] sm:$0xff]
    %v33 = vld [vmem:[%s0 + $0x2c] sm:$0xff]
    %v34 = vld [vmem:[%s0 + $0x34] sm:$0xf]
    %v35 = vld [vmem:[%s0 + $0x38] sm:$0xff]
    %v36 = vld [vmem:[%s0 + $0x40] sm:$0xff]
    %v37 = vld [vmem:[%s0 + $0x48] sm:$0xff]
    %v38 = vld [vmem:[%s0 + $0x50] sm:$0xf]
    %v39 = vld [vmem:[%s0 + $0x54] sm:$0xff]
    %v40 = vld [vmem:[%s0 + $0x5c] sm:$0xff]
    %v41 = vld [vmem:[%s0 + $0x64] sm:$0xff]
    %v42 = vld [vmem:[%s0 + $0x6c] sm:$0xf]
    %v43 = vld [vmem:[%s1] sm:$0xff]
    %v44 = vld [vmem:[%s1 + $0x8] sm:$0xff]
    %v45 = vld [vmem:[%s1 + $0x10] sm:$0xff]
    %v46 = vld [vmem:[%s1 + $0x18] sm:$0xff]
    %v47 = vld [vmem:[%s1 + $0x20] sm:$0xff]
    %v48 = vld [vmem:[%s1 + $0x28] sm:$0xff]
    %v49 = vld [vmem:[%s1 + $0x30] sm:$0xff]
    %v50 = vld [vmem:[%s1 + $0x38] sm:$0xff]
    %v51 = vld [vmem:[%s1 + $0x40] sm:$0xff]
    %v52 = vld [vmem:[%s1 + $0x48] sm:$0xff]
    %v53 = vld [vmem:[%s1 + $0x50] sm:$0xff]
    %v54 = vld [vmem:[%s1 + $0x58] sm:$0xff]
    %v55 = vld [vmem:[%s1 + $0x60] sm:$0xff]
    %v56 = vld [vmem:[%s1 + $0x68] sm:$0xff]
    %v57 = vld [vmem:[%s1 + $0x70] sm:$0xff]
    %v58 = vld [vmem:[%s1 + $0x78] sm:$0xff]
    %v59 = vld [vmem:[%s1 + $0x80] sm:$0xff]
    %v60 = vld [vmem:[%s1 + $0x88] sm:$0xff]
    %v61 = vld [vmem:[%s1 + $0x90] sm:$0xff]
    %v62 = vld [vmem:[%s1 + $0x98] sm:$0xff]
    %v63 = vld [vmem:[%s1 + $0xa0] sm:$0xff]
    %v64 = vld [vmem:[%s1 + $0xa8] sm:$0xff]
    %v65 = vld [vmem:[%s1 + $0xb0] sm:$0xff]
    %v66 = vld [vmem:[%s1 + $0xb8] sm:$0xff]
    %v67 = vld [vmem:[%s1 + $0xc0] sm:$0xff]
    %v68 = vld [vmem:[%s1 + $0xc8] sm:$0xff]
    %v69 = vld [vmem:[%s1 + $0xd0] sm:$0xff]
    %v70 = vld [vmem:[%s1 + $0xd8] sm:$0xff]
    %v71 = vld [vmem:[%s1 + $0xe0] sm:$0xff]
    %v72 = vld [vmem:[%s1 + $0xe8] sm:$0xff]
    %v73 = vld [vmem:[%s1 + $0xf0] sm:$0xff]
    %v74 = vld [vmem:[%s1 + $0xf8] sm:$0xff]
    %v75 = vld [vmem:[%s1 + $0x100] sm:$0xff]
    %v76 = vld [vmem:[%s1 + $0x108] sm:$0xff]
    %v77 = vld [vmem:[%s1 + $0x110] sm:$0xff]
    %v78 = vld [vmem:[%s1 + $0x118] sm:$0xff]
    %v79 = vld [vmem:[%s1 + $0x120] sm:$0xff]
    %v80 = vld [vmem:[%s1 + $0x128] sm:$0xff]
    %v81 = vld [vmem:[%s1 + $0x130] sm:$0xff]
    %v82 = vld [vmem:[%s1 + $0x138] sm:$0xff]
    %v83 = vld [vmem:[%s1 + $0x140] sm:$0xff]
    %v84 = vld [vmem:[%s1 + $0x148] sm:$0xff]
    %v85 = vld [vmem:[%s1 + $0x150] sm:$0xff]
    %v86 = vld [vmem:[%s1 + $0x158] sm:$0xff]
    %v87 = vld [vmem:[%s1 + $0x160] sm:$0xff]
    %v88 = vld [vmem:[%s1 + $0x168] sm:$0xff]
    %v89 = vld [vmem:[%s1 + $0x170] sm:$0xff]
    %v90 = vld [vmem:[%s1 + $0x178] sm:$0xff]
    %v91 = vld [vmem:[%s1 + $0x180] sm:$0xff]
    %v92 = vld [vmem:[%s1 + $0x188] sm:$0xff]
    %v93 = vld [vmem:[%s1 + $0x190] sm:$0xff]
    %v94 = vld [vmem:[%s1 + $0x198] sm:$0xff]
    %v95 = vld [vmem:[%s1 + $0x1a0] sm:$0xff]
    %v96 = vld [vmem:[%s1 + $0x1a8] sm:$0xff]
    %v97 = vld [vmem:[%s1 + $0x1b0] sm:$0xff]
    %v98 = vld [vmem:[%s1 + $0x1b8] sm:$0xff]
    %v99 = vld [vmem:[%s1 + $0x1c0] sm:$0xff]
    %v100 = vld [vmem:[%s1 + $0x1c8] sm:$0xff]
    %v101 = vld [vmem:[%s1 + $0x1d0] sm:$0xff]
    %v102 = vld [vmem:[%s1 + $0x1d8] sm:$0xff]
    %v103 = vld [vmem:[%s1 + $0x1e0] sm:$0xff]
    %v104 = vld [vmem:[%s1 + $0x1e8] sm:$0xff]
    %v105 = vld [vmem:[%s1 + $0x1f0] sm:$0xff]
    %v106 = vld [vmem:[%s1 + $0x1f8] sm:$0xff]
    %v107 = vld [vmem:[%s1 + $0x200] sm:$0xff]
    %v108 = vld [vmem:[%s1 + $0x208] sm:$0xff]
    %v109 = vld [vmem:[%s1 + $0x210] sm:$0xff]
    %v110 = vld [vmem:[%s1 + $0x218] sm:$0xff]
    %v111 = vld [vmem:[%s1 + $0x220] sm:$0xff]
    %v112 = vld [vmem:[%s1 + $0x228] sm:$0xff]
    %v113 = vld [vmem:[%s1 + $0x230] sm:$0xff]
    %v114 = vld [vmem:[%s1 + $0x238] sm:$0xff]
    %v115 = vld [vmem:[%s1 + $0x240] sm:$0xff]
    %v116 = vld [vmem:[%s1 + $0x248] sm:$0xff]
    %v117 = vld [vmem:[%s1 + $0x250] sm:$0xff]
    %v118 = vld [vmem:[%s1 + $0x258] sm:$0xff]
    %v119 = vld [vmem:[%s1 + $0x260] sm:$0xff]
    %v120 = vld [vmem:[%s1 + $0x268] sm:$0xff]
    %v121 = vld [vmem:[%s1 + $0x270] sm:$0xff]
    %v122 = vld [vmem:[%s1 + $0x278] sm:$0xff]
    %v123 = vld [vmem:[%s1 + $0x280] sm:$0xff]
    %v124 = vld [vmem:[%s1 + $0x288] sm:$0xff]
    %v125 = vld [vmem:[%s1 + $0x290] sm:$0xff]
    %v126 = vld [vmem:[%s1 + $0x298] sm:$0xff]
    %v127 = vld [vmem:[%s1 + $0x2a0] sm:$0xff]
    %v128 = vld [vmem:[%s1 + $0x2a8] sm:$0xff]
    %v129 = vld [vmem:[%s1 + $0x2b0] sm:$0xff]
    %v130 = vld [vmem:[%s1 + $0x2b8] sm:$0xff]
    %v131 = vld [vmem:[%s1 + $0x2c0] sm:$0xff]
    %v132 = vld [vmem:[%s1 + $0x2c8] sm:$0xff]
    %v133 = vld [vmem:[%s1 + $0x2d0] sm:$0xff]
    %v134 = vld [vmem:[%s1 + $0x2d8] sm:$0xff]
    %v135 = vld [vmem:[%s1 + $0x2e0] sm:$0xff]
    %v136 = vld [vmem:[%s1 + $0x2e8] sm:$0xff]
    %v137 = vld [vmem:[%s1 + $0x2f0] sm:$0xff]
    %v138 = vld [vmem:[%s1 + $0x2f8] sm:$0xff]
    %v139 = vld [vmem:[%s1 + $0x300] sm:$0xff]
    %v140 = vld [vmem:[%s1 + $0x308] sm:$0xff]
    %v141 = vld [vmem:[%s1 + $0x310] sm:$0xff]
    %v142 = vld [vmem:[%s1 + $0x318] sm:$0xff]
    %v143 = vld [vmem:[%s1 + $0x320] sm:$0xff]
    %v144 = vld [vmem:[%s1 + $0x328] sm:$0xff]
    %v145 = vld [vmem:[%s1 + $0x330] sm:$0xff]
    %v146 = vld [vmem:[%s1 + $0x338] sm:$0xff]
    %v147 = vld [vmem:[%s1 + $0x340] sm:$0xff]
    %v148 = vld [vmem:[%s1 + $0x348] sm:$0xff]
    %v149 = vld [vmem:[%s1 + $0x350] sm:$0xff]
    %v150 = vld [vmem:[%s1 + $0x358] sm:$0xff]
    %v167 = vunpack.c.l.b16 %v27
    %v168 = vunpack.c.h.b16 %v27
    %v169 = vunpack.c.l.b16 %v28
    %v170 = vunpack.c.h.b16 %v28
    %v171 = vunpack.c.l.b16 %v29
    %v172 = vunpack.c.h.b16 %v29
    %v173 = vunpack.c.l.b16 %v30
    %v174 = vunpack.c.l.b16 %v31
    %v175 = vunpack.c.h.b16 %v31
    %v176 = vunpack.c.l.b16 %v32
    %v177 = vunpack.c.h.b16 %v32
    %v178 = vunpack.c.l.b16 %v33
    %v179 = vunpack.c.h.b16 %v33
    %v180 = vunpack.c.l.b16 %v34
    %v181 = vunpack.c.l.b16 %v35
    %v182 = vunpack.c.h.b16 %v35
    %v183 = vunpack.c.l.b16 %v36
    %v184 = vunpack.c.h.b16 %v36
    %v185 = vunpack.c.l.b16 %v37
    %v186 = vunpack.c.h.b16 %v37
    %v187 = vunpack.c.l.b16 %v38
    %v188 = vunpack.c.l.b16 %v39
    %v189 = vunpack.c.h.b16 %v39
    %v190 = vunpack.c.l.b16 %v40
    %v191 = vunpack.c.h.b16 %v40
    %v192 = vunpack.c.l.b16 %v41
    %v193 = vunpack.c.h.b16 %v41
    %v194 = vunpack.c.l.b16 %v42
    %v195 = vpack.c.b16 %v174, %v167
    %v196 = vpack.c.b16 %v175, %v168
    %v197 = vpack.c.b16 %v176, %v169
    %v198 = vpack.c.b16 %v177, %v170
    %v199 = vpack.c.b16 %v178, %v171
    %v200 = vpack.c.b16 %v179, %v172
    %v201 = vpack.c.b16 %v180, %v173
    %v202 = vpack.c.b16 %v188, %v181
    %v203 = vpack.c.b16 %v189, %v182
    %v204 = vpack.c.b16 %v190, %v183
    %v205 = vpack.c.b16 %v191, %v184
    %v206 = vpack.c.b16 %v192, %v185
    %v207 = vpack.c.b16 %v193, %v186
    %v208 = vpack.c.b16 %v194, %v187
    %v329 = vunpack.c.l.b16 %v43
    %v330 = vunpack.c.h.b16 %v43
    %v331 = vunpack.c.l.b16 %v44
    %v332 = vunpack.c.h.b16 %v44
    %v333 = vunpack.c.l.b16 %v45
    %v334 = vunpack.c.h.b16 %v45
    %v335 = vunpack.c.l.b16 %v46
    %v336 = vunpack.c.h.b16 %v46
    %v337 = vunpack.c.l.b16 %v47
    %v338 = vunpack.c.h.b16 %v47
    %v339 = vunpack.c.l.b16 %v48
    %v340 = vunpack.c.h.b16 %v48
    %v341 = vunpack.c.l.b16 %v49
    %v342 = vunpack.c.h.b16 %v49
    %v343 = vunpack.c.l.b16 %v50
    %v344 = vunpack.c.h.b16 %v50
    %v345 = vunpack.c.l.b16 %v51
    %v346 = vunpack.c.h.b16 %v51
    %v347 = vunpack.c.l.b16 %v52
    %v348 = vunpack.c.h.b16 %v52
    %v349 = vunpack.c.l.b16 %v53
    %v350 = vunpack.c.h.b16 %v53
    %v351 = vunpack.c.l.b16 %v54
    %v352 = vunpack.c.h.b16 %v54
    %v353 = vunpack.c.l.b16 %v55
    %v354 = vunpack.c.h.b16 %v55
    %v355 = vunpack.c.l.b16 %v56
    %v356 = vunpack.c.h.b16 %v56
    %v357 = vunpack.c.l.b16 %v57
    %v358 = vunpack.c.h.b16 %v57
    %v359 = vunpack.c.l.b16 %v58
    %v360 = vunpack.c.h.b16 %v58
    %v361 = vunpack.c.l.b16 %v59
    %v362 = vunpack.c.h.b16 %v59
    %v363 = vunpack.c.l.b16 %v60
    %v364 = vunpack.c.h.b16 %v60
    %v365 = vunpack.c.l.b16 %v61
    %v366 = vunpack.c.h.b16 %v61
    %v367 = vunpack.c.l.b16 %v62
    %v368 = vunpack.c.h.b16 %v62
    %v369 = vunpack.c.l.b16 %v63
    %v370 = vunpack.c.h.b16 %v63
    %v371 = vunpack.c.l.b16 %v64
    %v372 = vunpack.c.h.b16 %v64
    %v373 = vunpack.c.l.b16 %v65
    %v374 = vunpack.c.h.b16 %v65
    %v375 = vunpack.c.l.b16 %v66
    %v376 = vunpack.c.h.b16 %v66
    %v377 = vunpack.c.l.b16 %v67
    %v378 = vunpack.c.h.b16 %v67
    %v379 = vunpack.c.l.b16 %v68
    %v380 = vunpack.c.h.b16 %v68
    %v381 = vunpack.c.l.b16 %v69
    %v382 = vunpack.c.h.b16 %v69
    %v383 = vunpack.c.l.b16 %v70
    %v384 = vunpack.c.h.b16 %v70
    %v385 = vunpack.c.l.b16 %v71
    %v386 = vunpack.c.h.b16 %v71
    %v387 = vunpack.c.l.b16 %v72
    %v388 = vunpack.c.h.b16 %v72
    %v389 = vunpack.c.l.b16 %v73
    %v390 = vunpack.c.h.b16 %v73
    %v391 = vunpack.c.l.b16 %v74
    %v392 = vunpack.c.h.b16 %v74
    %v393 = vunpack.c.l.b16 %v75
    %v394 = vunpack.c.h.b16 %v75
    %v395 = vunpack.c.l.b16 %v76
    %v396 = vunpack.c.h.b16 %v76
    %v397 = vunpack.c.l.b16 %v77
    %v398 = vunpack.c.h.b16 %v77
    %v399 = vunpack.c.l.b16 %v78
    %v400 = vunpack.c.h.b16 %v78
    %v401 = vunpack.c.l.b16 %v79
    %v402 = vunpack.c.h.b16 %v79
    %v403 = vunpack.c.l.b16 %v80
    %v404 = vunpack.c.h.b16 %v80
    %v405 = vunpack.c.l.b16 %v81
    %v406 = vunpack.c.h.b16 %v81
    %v407 = vunpack.c.l.b16 %v82
    %v408 = vunpack.c.h.b16 %v82
    %v409 = vunpack.c.l.b16 %v83
    %v410 = vunpack.c.h.b16 %v83
    %v411 = vunpack.c.l.b16 %v84
    %v412 = vunpack.c.h.b16 %v84
    %v413 = vunpack.c.l.b16 %v85
    %v414 = vunpack.c.h.b16 %v85
    %v415 = vunpack.c.l.b16 %v86
    %v416 = vunpack.c.h.b16 %v86
    %v417 = vunpack.c.l.b16 %v87
    %v418 = vunpack.c.h.b16 %v87
    %v419 = vunpack.c.l.b16 %v88
    %v420 = vunpack.c.h.b16 %v88
    %v421 = vunpack.c.l.b16 %v89
    %v422 = vunpack.c.h.b16 %v89
    %v423 = vunpack.c.l.b16 %v90
    %v424 = vunpack.c.h.b16 %v90
    %v425 = vunpack.c.l.b16 %v91
    %v426 = vunpack.c.h.b16 %v91
    %v427 = vunpack.c.l.b16 %v92
    %v428 = vunpack.c.h.b16 %v92
    %v429 = vunpack.c.l.b16 %v93
    %v430 = vunpack.c.h.b16 %v93
    %v431 = vunpack.c.l.b16 %v94
    %v432 = vunpack.c.h.b16 %v94
    %v433 = vunpack.c.l.b16 %v95
    %v434 = vunpack.c.h.b16 %v95
    %v435 = vunpack.c.l.b16 %v96
    %v436 = vunpack.c.h.b16 %v96
    %v437 = vunpack.c.l.b16 %v97
    %v438 = vunpack.c.h.b16 %v97
    %v439 = vunpack.c.l.b16 %v98
    %v440 = vunpack.c.h.b16 %v98
    %v441 = vunpack.c.l.b16 %v99
    %v442 = vunpack.c.h.b16 %v99
    %v443 = vunpack.c.l.b16 %v100
    %v444 = vunpack.c.h.b16 %v100
    %v445 = vunpack.c.l.b16 %v101
    %v446 = vunpack.c.h.b16 %v101
    %v447 = vunpack.c.l.b16 %v102
    %v448 = vunpack.c.h.b16 %v102
    %v449 = vunpack.c.l.b16 %v103
    %v450 = vunpack.c.h.b16 %v103
    %v451 = vunpack.c.l.b16 %v104
    %v452 = vunpack.c.h.b16 %v104
    %v453 = vunpack.c.l.b16 %v105
    %v454 = vunpack.c.h.b16 %v105
    %v455 = vunpack.c.l.b16 %v106
    %v456 = vunpack.c.h.b16 %v106
    %v457 = vunpack.c.l.b16 %v107
    %v458 = vunpack.c.h.b16 %v107
    %v459 = vunpack.c.l.b16 %v108
    %v460 = vunpack.c.h.b16 %v108
    %v461 = vunpack.c.l.b16 %v109
    %v462 = vunpack.c.h.b16 %v109
    %v463 = vunpack.c.l.b16 %v110
    %v464 = vunpack.c.h.b16 %v110
    %v465 = vunpack.c.l.b16 %v111
    %v466 = vunpack.c.h.b16 %v111
    %v467 = vunpack.c.l.b16 %v112
    %v468 = vunpack.c.h.b16 %v112
    %v469 = vunpack.c.l.b16 %v113
    %v470 = vunpack.c.h.b16 %v113
    %v471 = vunpack.c.l.b16 %v114
    %v472 = vunpack.c.h.b16 %v114
    %v473 = vunpack.c.l.b16 %v115
    %v474 = vunpack.c.h.b16 %v115
    %v475 = vunpack.c.l.b16 %v116
    %v476 = vunpack.c.h.b16 %v116
    %v477 = vunpack.c.l.b16 %v117
    %v478 = vunpack.c.h.b16 %v117
    %v479 = vunpack.c.l.b16 %v118
    %v480 = vunpack.c.h.b16 %v118
    %v481 = vunpack.c.l.b16 %v119
    %v482 = vunpack.c.h.b16 %v119
    %v483 = vunpack.c.l.b16 %v120
    %v484 = vunpack.c.h.b16 %v120
    %v485 = vunpack.c.l.b16 %v121
    %v486 = vunpack.c.h.b16 %v121
    %v487 = vunpack.c.l.b16 %v122
    %v488 = vunpack.c.h.b16 %v122
    %v489 = vunpack.c.l.b16 %v123
    %v490 = vunpack.c.h.b16 %v123
    %v491 = vunpack.c.l.b16 %v124
    %v492 = vunpack.c.h.b16 %v124
    %v493 = vunpack.c.l.b16 %v125
    %v494 = vunpack.c.h.b16 %v125
    %v495 = vunpack.c.l.b16 %v126
    %v496 = vunpack.c.h.b16 %v126
    %v497 = vunpack.c.l.b16 %v127
    %v498 = vunpack.c.h.b16 %v127
    %v499 = vunpack.c.l.b16 %v128
    %v500 = vunpack.c.h.b16 %v128
    %v501 = vunpack.c.l.b16 %v129
    %v502 = vunpack.c.h.b16 %v129
    %v503 = vunpack.c.l.b16 %v130
    %v504 = vunpack.c.h.b16 %v130
    %v505 = vunpack.c.l.b16 %v131
    %v506 = vunpack.c.h.b16 %v131
    %v507 = vunpack.c.l.b16 %v132
    %v508 = vunpack.c.h.b16 %v132
    %v509 = vunpack.c.l.b16 %v133
    %v510 = vunpack.c.h.b16 %v133
    %v511 = vunpack.c.l.b16 %v134
    %v512 = vunpack.c.h.b16 %v134
    %v513 = vunpack.c.l.b16 %v135
    %v514 = vunpack.c.h.b16 %v135
    %v515 = vunpack.c.l.b16 %v136
    %v516 = vunpack.c.h.b16 %v136
    %v517 = vunpack.c.l.b16 %v137
    %v518 = vunpack.c.h.b16 %v137
    %v519 = vunpack.c.l.b16 %v138
    %v520 = vunpack.c.h.b16 %v138
    %v521 = vunpack.c.l.b16 %v139
    %v522 = vunpack.c.h.b16 %v139
    %v523 = vunpack.c.l.b16 %v140
    %v524 = vunpack.c.h.b16 %v140
    %v525 = vunpack.c.l.b16 %v141
    %v526 = vunpack.c.h.b16 %v141
    %v527 = vunpack.c.l.b16 %v142
    %v528 = vunpack.c.h.b16 %v142
    %v529 = vunpack.c.l.b16 %v143
    %v530 = vunpack.c.h.b16 %v143
    %v531 = vunpack.c.l.b16 %v144
    %v532 = vunpack.c.h.b16 %v144
    %v533 = vunpack.c.l.b16 %v145
    %v534 = vunpack.c.h.b16 %v145
    %v535 = vunpack.c.l.b16 %v146
    %v536 = vunpack.c.h.b16 %v146
    %v537 = vunpack.c.l.b16 %v147
    %v538 = vunpack.c.h.b16 %v147
    %v539 = vunpack.c.l.b16 %v148
    %v540 = vunpack.c.h.b16 %v148
    %v541 = vunpack.c.l.b16 %v149
    %v542 = vunpack.c.h.b16 %v149
    %v543 = vunpack.c.l.b16 %v150
    %v544 = vunpack.c.h.b16 %v150
    %v545 = vpack.c.b16 %v331, %v329
    %v546 = vpack.c.b16 %v332, %v330
    %v547 = vpack.c.b16 %v335, %v333
    %v548 = vpack.c.b16 %v336, %v334
    %v549 = vpack.c.b16 %v339, %v337
    %v550 = vpack.c.b16 %v340, %v338
    %v551 = vpack.c.b16 %v343, %v341
    %v552 = vpack.c.b16 %v344, %v342
    %v553 = vpack.c.b16 %v347, %v345
    %v554 = vpack.c.b16 %v348, %v346
    %v555 = vpack.c.b16 %v351, %v349
    %v556 = vpack.c.b16 %v352, %v350
    %v557 = vpack.c.b16 %v355, %v353
    %v558 = vpack.c.b16 %v356, %v354
    %v559 = vpack.c.b16 %v359, %v357
    %v560 = vpack.c.b16 %v360, %v358
    %v561 = vpack.c.b16 %v363, %v361
    %v562 = vpack.c.b16 %v364, %v362
    %v563 = vpack.c.b16 %v367, %v365
    %v564 = vpack.c.b16 %v368, %v366
    %v565 = vpack.c.b16 %v371, %v369
    %v566 = vpack.c.b16 %v372, %v370
    %v567 = vpack.c.b16 %v375, %v373
    %v568 = vpack.c.b16 %v376, %v374
    %v569 = vpack.c.b16 %v379, %v377
    %v570 = vpack.c.b16 %v380, %v378
    %v571 = vpack.c.b16 %v383, %v381
    %v572 = vpack.c.b16 %v384, %v382
    %v573 = vpack.c.b16 %v387, %v385
    %v574 = vpack.c.b16 %v388, %v386
    %v575 = vpack.c.b16 %v391, %v389
    %v576 = vpack.c.b16 %v392, %v390
    %v577 = vpack.c.b16 %v395, %v393
    %v578 = vpack.c.b16 %v396, %v394
    %v579 = vpack.c.b16 %v399, %v397
    %v580 = vpack.c.b16 %v400, %v398
    %v581 = vpack.c.b16 %v403, %v401
    %v582 = vpack.c.b16 %v404, %v402
    %v583 = vpack.c.b16 %v407, %v405
    %v584 = vpack.c.b16 %v408, %v406
    %v585 = vpack.c.b16 %v411, %v409
    %v586 = vpack.c.b16 %v412, %v410
    %v587 = vpack.c.b16 %v415, %v413
    %v588 = vpack.c.b16 %v416, %v414
    %v589 = vpack.c.b16 %v419, %v417
    %v590 = vpack.c.b16 %v420, %v418
    %v591 = vpack.c.b16 %v423, %v421
    %v592 = vpack.c.b16 %v424, %v422
    %v593 = vpack.c.b16 %v427, %v425
    %v594 = vpack.c.b16 %v428, %v426
    %v595 = vpack.c.b16 %v431, %v429
    %v596 = vpack.c.b16 %v432, %v430
    %v597 = vpack.c.b16 %v435, %v433
    %v598 = vpack.c.b16 %v436, %v434
    %v599 = vpack.c.b16 %v439, %v437
    %v600 = vpack.c.b16 %v440, %v438
    %v601 = vpack.c.b16 %v443, %v441
    %v602 = vpack.c.b16 %v444, %v442
    %v603 = vpack.c.b16 %v447, %v445
    %v604 = vpack.c.b16 %v448, %v446
    %v605 = vpack.c.b16 %v451, %v449
    %v606 = vpack.c.b16 %v452, %v450
    %v607 = vpack.c.b16 %v455, %v453
    %v608 = vpack.c.b16 %v456, %v454
    %v609 = vpack.c.b16 %v459, %v457
    %v610 = vpack.c.b16 %v460, %v458
    %v611 = vpack.c.b16 %v463, %v461
    %v612 = vpack.c.b16 %v464, %v462
    %v613 = vpack.c.b16 %v467, %v465
    %v614 = vpack.c.b16 %v468, %v466
    %v615 = vpack.c.b16 %v471, %v469
    %v616 = vpack.c.b16 %v472, %v470
    %v617 = vpack.c.b16 %v475, %v473
    %v618 = vpack.c.b16 %v476, %v474
    %v619 = vpack.c.b16 %v479, %v477
    %v620 = vpack.c.b16 %v480, %v478
    %v621 = vpack.c.b16 %v483, %v481
    %v622 = vpack.c.b16 %v484, %v482
    %v623 = vpack.c.b16 %v487, %v485
    %v624 = vpack.c.b16 %v488, %v486
    %v625 = vpack.c.b16 %v491, %v489
    %v626 = vpack.c.b16 %v492, %v490
    %v627 = vpack.c.b16 %v495, %v493
    %v628 = vpack.c.b16 %v496, %v494
    %v629 = vpack.c.b16 %v499, %v497
    %v630 = vpack.c.b16 %v500, %v498
    %v631 = vpack.c.b16 %v503, %v501
    %v632 = vpack.c.b16 %v504, %v502
    %v633 = vpack.c.b16 %v507, %v505
    %v634 = vpack.c.b16 %v508, %v506
    %v635 = vpack.c.b16 %v511, %v509
    %v636 = vpack.c.b16 %v512, %v510
    %v637 = vpack.c.b16 %v515, %v513
    %v638 = vpack.c.b16 %v516, %v514
    %v639 = vpack.c.b16 %v519, %v517
    %v640 = vpack.c.b16 %v520, %v518
    %v641 = vpack.c.b16 %v523, %v521
    %v642 = vpack.c.b16 %v524, %v522
    %v643 = vpack.c.b16 %v527, %v525
    %v644 = vpack.c.b16 %v528, %v526
    %v645 = vpack.c.b16 %v531, %v529
    %v646 = vpack.c.b16 %v532, %v530
    %v647 = vpack.c.b16 %v535, %v533
    %v648 = vpack.c.b16 %v536, %v534
    %v649 = vpack.c.b16 %v539, %v537
    %v650 = vpack.c.b16 %v540, %v538
    %v651 = vpack.c.b16 %v543, %v541
    %v652 = vpack.c.b16 %v544, %v542
    %vm761 = vcmask 785408
    %v763 = vsel %vm761, %v201, 0
    %v766 = vsel %vm761, %v208, 0
    %768 = vmatprep.subr.bf16.mxu0 %v560
    %769 = vmatpush1.bf16.msra.mxu0 %v559
    %770 = vmatprep.subr.bf16.mxu0 %v558
    %771 = vmatpush1.bf16.msra.mxu0 %v557
    %772 = vmatprep.subr.bf16.mxu0 %v556
    %773 = vmatpush1.bf16.msra.mxu0 %v555
    %774 = vmatprep.subr.bf16.mxu0 %v554
    %775 = vmatpush1.bf16.msra.mxu0 %v553
    %776 = vmatprep.subr.bf16.mxu0 %v552
    %777 = vmatpush1.bf16.msra.mxu0 %v551
    %778 = vmatprep.subr.bf16.mxu0 %v550
    %779 = vmatpush1.bf16.msra.mxu0 %v549
    %780 = vmatprep.subr.bf16.mxu0 %v548
    %781 = vmatpush1.bf16.msra.mxu0 %v547
    %782 = vmatprep.subr.bf16.mxu0 %v546
    %783 = vmatpush1.bf16.msra.mxu0 %v545
    %784 = vmatprep.subr.bf16.mxu0 %v576
    %785 = vmatpush2.bf16.msra.mxu0 %v575
    %786 = vmatprep.subr.bf16.mxu0 %v574
    %787 = vmatpush2.bf16.msra.mxu0 %v573
    %788 = vmatprep.subr.bf16.mxu0 %v572
    %789 = vmatpush2.bf16.msra.mxu0 %v571
    %790 = vmatprep.subr.bf16.mxu0 %v570
    %791 = vmatpush2.bf16.msra.mxu0 %v569
    %792 = vmatprep.subr.bf16.mxu0 %v568
    %793 = vmatpush2.bf16.msra.mxu0 %v567
    %794 = vmatprep.subr.bf16.mxu0 %v566
    %795 = vmatpush2.bf16.msra.mxu0 %v565
    %796 = vmatprep.subr.bf16.mxu0 %v564
    %797 = vmatpush2.bf16.msra.mxu0 %v563
    %798 = vmatprep.subr.bf16.mxu0 %v562
    %799 = vmatpush2.bf16.msra.mxu0 %v561
    %800 = vmatprep.mubr.bf16.mxu0 %v196
    %801 = vmatmul.mubr.bf16.gmra.mxu0 %v195
    %v802 = vpop.f32.mrf.mxu0
    %v803 = vadd.f32 0.0, %v802
    %v804 = vpop.f32.mrf.mxu0
    %v805 = vadd.f32 0.0, %v804
    %v806 = vpop.f32.mrf.mxu0
    %v807 = vadd.f32 0.0, %v806
    %v808 = vpop.f32.mrf.mxu0
    %v809 = vadd.f32 0.0, %v808
    %810 = vmatprep.mubr.bf16.mxu0 %v203
    %811 = vmatmul.mubr.bf16.gmra.mxu0 %v202
    %v812 = vpop.f32.mrf.mxu0
    %v813 = vadd.f32 0.0, %v812
    %v814 = vpop.f32.mrf.mxu0
    %v815 = vadd.f32 0.0, %v814
    %v816 = vpop.f32.mrf.mxu0
    %v817 = vadd.f32 0.0, %v816
    %v818 = vpop.f32.mrf.mxu0
    %v819 = vadd.f32 0.0, %v818
    %820 = vdwg.mxu0
    %821 = vmatprep.subr.bf16.mxu0 %v592
    %822 = vmatpush1.bf16.msra.mxu0 %v591
    %823 = vmatprep.subr.bf16.mxu0 %v590
    %824 = vmatpush1.bf16.msra.mxu0 %v589
    %825 = vmatprep.subr.bf16.mxu0 %v588
    %826 = vmatpush1.bf16.msra.mxu0 %v587
    %827 = vmatprep.subr.bf16.mxu0 %v586
    %828 = vmatpush1.bf16.msra.mxu0 %v585
    %829 = vmatprep.subr.bf16.mxu0 %v584
    %830 = vmatpush1.bf16.msra.mxu0 %v583
    %831 = vmatprep.subr.bf16.mxu0 %v582
    %832 = vmatpush1.bf16.msra.mxu0 %v581
    %833 = vmatprep.subr.bf16.mxu0 %v580
    %834 = vmatpush1.bf16.msra.mxu0 %v579
    %835 = vmatprep.subr.bf16.mxu0 %v578
    %836 = vmatpush1.bf16.msra.mxu0 %v577
    %837 = vmatprep.subr.bf16.mxu0 %v608
    %838 = vmatpush2.bf16.msra.mxu0 %v607
    %839 = vmatprep.subr.bf16.mxu0 %v606
    %840 = vmatpush2.bf16.msra.mxu0 %v605
    %841 = vmatprep.subr.bf16.mxu0 %v604
    %842 = vmatpush2.bf16.msra.mxu0 %v603
    %843 = vmatprep.subr.bf16.mxu0 %v602
    %844 = vmatpush2.bf16.msra.mxu0 %v601
    %845 = vmatprep.subr.bf16.mxu0 %v600
    %846 = vmatpush2.bf16.msra.mxu0 %v599
    %847 = vmatprep.subr.bf16.mxu0 %v598
    %848 = vmatpush2.bf16.msra.mxu0 %v597
    %849 = vmatprep.subr.bf16.mxu0 %v596
    %850 = vmatpush2.bf16.msra.mxu0 %v595
    %851 = vmatprep.subr.bf16.mxu0 %v594
    %852 = vmatpush2.bf16.msra.mxu0 %v593
    %853 = vmatprep.mubr.bf16.mxu0 %v198
    %854 = vmatmul.mubr.bf16.gmra.mxu0 %v197
    %v855 = vpop.f32.mrf.mxu0
    %v856 = vadd.f32 %v803, %v855
    %v857 = vpop.f32.mrf.mxu0
    %v858 = vadd.f32 %v805, %v857
    %v859 = vpop.f32.mrf.mxu0
    %v860 = vadd.f32 %v807, %v859
    %v861 = vpop.f32.mrf.mxu0
    %v862 = vadd.f32 %v809, %v861
    %863 = vmatprep.mubr.bf16.mxu0 %v205
    %864 = vmatmul.mubr.bf16.gmra.mxu0 %v204
    %v865 = vpop.f32.mrf.mxu0
    %v866 = vadd.f32 %v813, %v865
    %v867 = vpop.f32.mrf.mxu0
    %v868 = vadd.f32 %v815, %v867
    %v869 = vpop.f32.mrf.mxu0
    %v870 = vadd.f32 %v817, %v869
    %v871 = vpop.f32.mrf.mxu0
    %v872 = vadd.f32 %v819, %v871
    %873 = vdwg.mxu0
    %874 = vmatprep.subr.bf16.mxu0 %v624
    %875 = vmatpush1.bf16.msra.mxu0 %v623
    %876 = vmatprep.subr.bf16.mxu0 %v622
    %877 = vmatpush1.bf16.msra.mxu0 %v621
    %878 = vmatprep.subr.bf16.mxu0 %v620
    %879 = vmatpush1.bf16.msra.mxu0 %v619
    %880 = vmatprep.subr.bf16.mxu0 %v618
    %881 = vmatpush1.bf16.msra.mxu0 %v617
    %882 = vmatprep.subr.bf16.mxu0 %v616
    %883 = vmatpush1.bf16.msra.mxu0 %v615
    %884 = vmatprep.subr.bf16.mxu0 %v614
    %885 = vmatpush1.bf16.msra.mxu0 %v613
    %886 = vmatprep.subr.bf16.mxu0 %v612
    %887 = vmatpush1.bf16.msra.mxu0 %v611
    %888 = vmatprep.subr.bf16.mxu0 %v610
    %889 = vmatpush1.bf16.msra.mxu0 %v609
    %890 = vmatprep.subr.bf16.mxu0 %v640
    %891 = vmatpush2.bf16.msra.mxu0 %v639
    %892 = vmatprep.subr.bf16.mxu0 %v638
    %893 = vmatpush2.bf16.msra.mxu0 %v637
    %894 = vmatprep.subr.bf16.mxu0 %v636
    %895 = vmatpush2.bf16.msra.mxu0 %v635
    %896 = vmatprep.subr.bf16.mxu0 %v634
    %897 = vmatpush2.bf16.msra.mxu0 %v633
    %898 = vmatprep.subr.bf16.mxu0 %v632
    %899 = vmatpush2.bf16.msra.mxu0 %v631
    %900 = vmatprep.subr.bf16.mxu0 %v630
    %901 = vmatpush2.bf16.msra.mxu0 %v629
    %902 = vmatprep.subr.bf16.mxu0 %v628
    %903 = vmatpush2.bf16.msra.mxu0 %v627
    %904 = vmatprep.subr.bf16.mxu0 %v626
    %905 = vmatpush2.bf16.msra.mxu0 %v625
    %906 = vmatprep.mubr.bf16.mxu0 %v200
    %907 = vmatmul.mubr.bf16.gmra.mxu0 %v199
    %v908 = vpop.f32.mrf.mxu0
    %v909 = vadd.f32 %v856, %v908
    %v910 = vpop.f32.mrf.mxu0
    %v911 = vadd.f32 %v858, %v910
    %v912 = vpop.f32.mrf.mxu0
    %v913 = vadd.f32 %v860, %v912
    %v914 = vpop.f32.mrf.mxu0
    %v915 = vadd.f32 %v862, %v914
    %916 = vmatprep.mubr.bf16.mxu0 %v207
    %917 = vmatmul.mubr.bf16.gmra.mxu0 %v206
    %v918 = vpop.f32.mrf.mxu0
    %v919 = vadd.f32 %v866, %v918
    %v920 = vpop.f32.mrf.mxu0
    %v921 = vadd.f32 %v868, %v920
    %v922 = vpop.f32.mrf.mxu0
    %v923 = vadd.f32 %v870, %v922
    %v924 = vpop.f32.mrf.mxu0
    %v925 = vadd.f32 %v872, %v924
    %926 = vdwg.mxu0
    %927 = vmatprep.subr.bf16.mxu0 0
    %928 = vmatpush1.bf16.msra.mxu0 0
    %929 = vmatprep.subr.bf16.mxu0 0
    %930 = vmatpush1.bf16.msra.mxu0 0
    %931 = vmatprep.subr.bf16.mxu0 %v652
    %932 = vmatpush1.bf16.msra.mxu0 %v651
    %933 = vmatprep.subr.bf16.mxu0 %v650
    %934 = vmatpush1.bf16.msra.mxu0 %v649
    %935 = vmatprep.subr.bf16.mxu0 %v648
    %936 = vmatpush1.bf16.msra.mxu0 %v647
    %937 = vmatprep.subr.bf16.mxu0 %v646
    %938 = vmatpush1.bf16.msra.mxu0 %v645
    %939 = vmatprep.subr.bf16.mxu0 %v644
    %940 = vmatpush1.bf16.msra.mxu0 %v643
    %941 = vmatprep.subr.bf16.mxu0 %v642
    %942 = vmatpush1.bf16.msra.mxu0 %v641
    %943 = vmatprep.subr.bf16.mxu0 0
    %944 = vmatpush2.bf16.msra.mxu0 0
    %945 = vmatprep.subr.bf16.mxu0 0
    %946 = vmatpush2.bf16.msra.mxu0 0
    %947 = vmatprep.subr.bf16.mxu0 0
    %948 = vmatpush2.bf16.msra.mxu0 0
    %949 = vmatprep.subr.bf16.mxu0 0
    %950 = vmatpush2.bf16.msra.mxu0 0
    %951 = vmatprep.subr.bf16.mxu0 0
    %952 = vmatpush2.bf16.msra.mxu0 0
    %953 = vmatprep.subr.bf16.mxu0 0
    %954 = vmatpush2.bf16.msra.mxu0 0
    %955 = vmatprep.subr.bf16.mxu0 0
    %956 = vmatpush2.bf16.msra.mxu0 0
    %957 = vmatprep.subr.bf16.mxu0 0
    %958 = vmatpush2.bf16.msra.mxu0 0
    %959 = vmatprep.mubr.bf16.mxu0 0
    %960 = vmatmul.mubr.bf16.gmra.mxu0 %v763
    %v961 = vpop.f32.mrf.mxu0
    %v962 = vadd.f32 %v909, %v961
    %v963 = vpop.f32.mrf.mxu0
    %v964 = vadd.f32 %v911, %v963
    %v965 = vpop.f32.mrf.mxu0
    %v966 = vadd.f32 %v913, %v965
    %v967 = vpop.f32.mrf.mxu0
    %v968 = vadd.f32 %v915, %v967
    %969 = vmatprep.mubr.bf16.mxu0 0
    %970 = vmatmul.mubr.bf16.gmra.mxu0 %v766
    %v971 = vpop.f32.mrf.mxu0
    %v972 = vadd.f32 %v919, %v971
    %v973 = vpop.f32.mrf.mxu0
    %v974 = vadd.f32 %v921, %v973
    %v975 = vpop.f32.mrf.mxu0
    %v976 = vadd.f32 %v923, %v975
    %v977 = vpop.f32.mrf.mxu0
    %v978 = vadd.f32 %v925, %v977
    %979 = vdwg.mxu0
    %s980 = scalar_lea.vmem %s1, 864
    %v981 = vld [vmem:[%s980] sm:$0xff]
    %v982 = vld [vmem:[%s980 + $0x8] sm:$0xff]
    %v983 = vld [vmem:[%s980 + $0x10] sm:$0xff]
    %v984 = vld [vmem:[%s980 + $0x18] sm:$0xff]
    %v985 = vld [vmem:[%s980 + $0x20] sm:$0xff]
    %v986 = vld [vmem:[%s980 + $0x28] sm:$0xff]
    %v987 = vld [vmem:[%s980 + $0x30] sm:$0xff]
    %v988 = vld [vmem:[%s980 + $0x38] sm:$0xff]
    %v989 = vld [vmem:[%s980 + $0x40] sm:$0xff]
    %v990 = vld [vmem:[%s980 + $0x48] sm:$0xff]
    %v991 = vld [vmem:[%s980 + $0x50] sm:$0xff]
    %v992 = vld [vmem:[%s980 + $0x58] sm:$0xff]
    %v993 = vld [vmem:[%s980 + $0x60] sm:$0xff]
    %v994 = vld [vmem:[%s980 + $0x68] sm:$0xff]
    %v995 = vld [vmem:[%s980 + $0x70] sm:$0xff]
    %v996 = vld [vmem:[%s980 + $0x78] sm:$0xff]
    %v997 = vld [vmem:[%s980 + $0x80] sm:$0xff]
    %v998 = vld [vmem:[%s980 + $0x88] sm:$0xff]
    %v999 = vld [vmem:[%s980 + $0x90] sm:$0xff]
    %v1000 = vld [vmem:[%s980 + $0x98] sm:$0xff]
    %v1001 = vld [vmem:[%s980 + $0xa0] sm:$0xff]
    %v1002 = vld [vmem:[%s980 + $0xa8] sm:$0xff]
    %v1003 = vld [vmem:[%s980 + $0xb0] sm:$0xff]
    %v1004 = vld [vmem:[%s980 + $0xb8] sm:$0xff]
    %v1005 = vld [vmem:[%s980 + $0xc0] sm:$0xff]
    %v1006 = vld [vmem:[%s980 + $0xc8] sm:$0xff]
    %v1007 = vld [vmem:[%s980 + $0xd0] sm:$0xff]
    %v1008 = vld [vmem:[%s980 + $0xd8] sm:$0xff]
    %v1009 = vld [vmem:[%s980 + $0xe0] sm:$0xff]
    %v1010 = vld [vmem:[%s980 + $0xe8] sm:$0xff]
    %v1011 = vld [vmem:[%s980 + $0xf0] sm:$0xff]
    %v1012 = vld [vmem:[%s980 + $0xf8] sm:$0xff]
    %v1013 = vld [vmem:[%s980 + $0x100] sm:$0xff]
    %v1014 = vld [vmem:[%s980 + $0x108] sm:$0xff]
    %v1015 = vld [vmem:[%s980 + $0x110] sm:$0xff]
    %v1016 = vld [vmem:[%s980 + $0x118] sm:$0xff]
    %v1017 = vld [vmem:[%s980 + $0x120] sm:$0xff]
    %v1018 = vld [vmem:[%s980 + $0x128] sm:$0xff]
    %v1019 = vld [vmem:[%s980 + $0x130] sm:$0xff]
    %v1020 = vld [vmem:[%s980 + $0x138] sm:$0xff]
    %v1021 = vld [vmem:[%s980 + $0x140] sm:$0xff]
    %v1022 = vld [vmem:[%s980 + $0x148] sm:$0xff]
    %v1023 = vld [vmem:[%s980 + $0x150] sm:$0xff]
    %v1024 = vld [vmem:[%s980 + $0x158] sm:$0xff]
    %v1025 = vld [vmem:[%s980 + $0x160] sm:$0xff]
    %v1026 = vld [vmem:[%s980 + $0x168] sm:$0xff]
    %v1027 = vld [vmem:[%s980 + $0x170] sm:$0xff]
    %v1028 = vld [vmem:[%s980 + $0x178] sm:$0xff]
    %v1029 = vld [vmem:[%s980 + $0x180] sm:$0xff]
    %v1030 = vld [vmem:[%s980 + $0x188] sm:$0xff]
    %v1031 = vld [vmem:[%s980 + $0x190] sm:$0xff]
    %v1032 = vld [vmem:[%s980 + $0x198] sm:$0xff]
    %v1033 = vld [vmem:[%s980 + $0x1a0] sm:$0xff]
    %v1034 = vld [vmem:[%s980 + $0x1a8] sm:$0xff]
    %v1035 = vld [vmem:[%s980 + $0x1b0] sm:$0xff]
    %v1036 = vld [vmem:[%s980 + $0x1b8] sm:$0xff]
    %v1037 = vld [vmem:[%s980 + $0x1c0] sm:$0xff]
    %v1038 = vld [vmem:[%s980 + $0x1c8] sm:$0xff]
    %v1039 = vld [vmem:[%s980 + $0x1d0] sm:$0xff]
    %v1040 = vld [vmem:[%s980 + $0x1d8] sm:$0xff]
    %v1041 = vld [vmem:[%s980 + $0x1e0] sm:$0xff]
    %v1042 = vld [vmem:[%s980 + $0x1e8] sm:$0xff]
    %v1043 = vld [vmem:[%s980 + $0x1f0] sm:$0xff]
    %v1044 = vld [vmem:[%s980 + $0x1f8] sm:$0xff]
    %v1045 = vld [vmem:[%s980 + $0x200] sm:$0xff]
    %v1046 = vld [vmem:[%s980 + $0x208] sm:$0xff]
    %v1047 = vld [vmem:[%s980 + $0x210] sm:$0xff]
    %v1048 = vld [vmem:[%s980 + $0x218] sm:$0xff]
    %v1049 = vld [vmem:[%s980 + $0x220] sm:$0xff]
    %v1050 = vld [vmem:[%s980 + $0x228] sm:$0xff]
    %v1051 = vld [vmem:[%s980 + $0x230] sm:$0xff]
    %v1052 = vld [vmem:[%s980 + $0x238] sm:$0xff]
    %v1053 = vld [vmem:[%s980 + $0x240] sm:$0xff]
    %v1054 = vld [vmem:[%s980 + $0x248] sm:$0xff]
    %v1055 = vld [vmem:[%s980 + $0x250] sm:$0xff]
    %v1056 = vld [vmem:[%s980 + $0x258] sm:$0xff]
    %v1057 = vld [vmem:[%s980 + $0x260] sm:$0xff]
    %v1058 = vld [vmem:[%s980 + $0x268] sm:$0xff]
    %v1059 = vld [vmem:[%s980 + $0x270] sm:$0xff]
    %v1060 = vld [vmem:[%s980 + $0x278] sm:$0xff]
    %v1061 = vld [vmem:[%s980 + $0x280] sm:$0xff]
    %v1062 = vld [vmem:[%s980 + $0x288] sm:$0xff]
    %v1063 = vld [vmem:[%s980 + $0x290] sm:$0xff]
    %v1064 = vld [vmem:[%s980 + $0x298] sm:$0xff]
    %v1065 = vld [vmem:[%s980 + $0x2a0] sm:$0xff]
    %v1066 = vld [vmem:[%s980 + $0x2a8] sm:$0xff]
    %v1067 = vld [vmem:[%s980 + $0x2b0] sm:$0xff]
    %v1068 = vld [vmem:[%s980 + $0x2b8] sm:$0xff]
    %v1069 = vld [vmem:[%s980 + $0x2c0] sm:$0xff]
    %v1070 = vld [vmem:[%s980 + $0x2c8] sm:$0xff]
    %v1071 = vld [vmem:[%s980 + $0x2d0] sm:$0xff]
    %v1072 = vld [vmem:[%s980 + $0x2d8] sm:$0xff]
    %v1073 = vld [vmem:[%s980 + $0x2e0] sm:$0xff]
    %v1074 = vld [vmem:[%s980 + $0x2e8] sm:$0xff]
    %v1075 = vld [vmem:[%s980 + $0x2f0] sm:$0xff]
    %v1076 = vld [vmem:[%s980 + $0x2f8] sm:$0xff]
    %v1077 = vld [vmem:[%s980 + $0x300] sm:$0xff]
    %v1078 = vld [vmem:[%s980 + $0x308] sm:$0xff]
    %v1079 = vld [vmem:[%s980 + $0x310] sm:$0xff]
    %v1080 = vld [vmem:[%s980 + $0x318] sm:$0xff]
    %v1081 = vld [vmem:[%s980 + $0x320] sm:$0xff]
    %v1082 = vld [vmem:[%s980 + $0x328] sm:$0xff]
    %v1083 = vld [vmem:[%s980 + $0x330] sm:$0xff]
    %v1084 = vld [vmem:[%s980 + $0x338] sm:$0xff]
    %v1085 = vld [vmem:[%s980 + $0x340] sm:$0xff]
    %v1086 = vld [vmem:[%s980 + $0x348] sm:$0xff]
    %v1087 = vld [vmem:[%s980 + $0x350] sm:$0xff]
    %v1088 = vld [vmem:[%s980 + $0x358] sm:$0xff]
    %v1197 = vunpack.c.l.b16 %v981
    %v1198 = vunpack.c.h.b16 %v981
    %v1199 = vunpack.c.l.b16 %v982
    %v1200 = vunpack.c.h.b16 %v982
    %v1201 = vunpack.c.l.b16 %v983
    %v1202 = vunpack.c.h.b16 %v983
    %v1203 = vunpack.c.l.b16 %v984
    %v1204 = vunpack.c.h.b16 %v984
    %v1205 = vunpack.c.l.b16 %v985
    %v1206 = vunpack.c.h.b16 %v985
    %v1207 = vunpack.c.l.b16 %v986
    %v1208 = vunpack.c.h.b16 %v986
    %v1209 = vunpack.c.l.b16 %v987
    %v1210 = vunpack.c.h.b16 %v987
    %v1211 = vunpack.c.l.b16 %v988
    %v1212 = vunpack.c.h.b16 %v988
    %v1213 = vunpack.c.l.b16 %v989
    %v1214 = vunpack.c.h.b16 %v989
    %v1215 = vunpack.c.l.b16 %v990
    %v1216 = vunpack.c.h.b16 %v990
    %v1217 = vunpack.c.l.b16 %v991
    %v1218 = vunpack.c.h.b16 %v991
    %v1219 = vunpack.c.l.b16 %v992
    %v1220 = vunpack.c.h.b16 %v992
    %v1221 = vunpack.c.l.b16 %v993
    %v1222 = vunpack.c.h.b16 %v993
    %v1223 = vunpack.c.l.b16 %v994
    %v1224 = vunpack.c.h.b16 %v994
    %v1225 = vunpack.c.l.b16 %v995
    %v1226 = vunpack.c.h.b16 %v995
    %v1227 = vunpack.c.l.b16 %v996
    %v1228 = vunpack.c.h.b16 %v996
    %v1229 = vunpack.c.l.b16 %v997
    %v1230 = vunpack.c.h.b16 %v997
    %v1231 = vunpack.c.l.b16 %v998
    %v1232 = vunpack.c.h.b16 %v998
    %v1233 = vunpack.c.l.b16 %v999
    %v1234 = vunpack.c.h.b16 %v999
    %v1235 = vunpack.c.l.b16 %v1000
    %v1236 = vunpack.c.h.b16 %v1000
    %v1237 = vunpack.c.l.b16 %v1001
    %v1238 = vunpack.c.h.b16 %v1001
    %v1239 = vunpack.c.l.b16 %v1002
    %v1240 = vunpack.c.h.b16 %v1002
    %v1241 = vunpack.c.l.b16 %v1003
    %v1242 = vunpack.c.h.b16 %v1003
    %v1243 = vunpack.c.l.b16 %v1004
    %v1244 = vunpack.c.h.b16 %v1004
    %v1245 = vunpack.c.l.b16 %v1005
    %v1246 = vunpack.c.h.b16 %v1005
    %v1247 = vunpack.c.l.b16 %v1006
    %v1248 = vunpack.c.h.b16 %v1006
    %v1249 = vunpack.c.l.b16 %v1007
    %v1250 = vunpack.c.h.b16 %v1007
    %v1251 = vunpack.c.l.b16 %v1008
    %v1252 = vunpack.c.h.b16 %v1008
    %v1253 = vunpack.c.l.b16 %v1009
    %v1254 = vunpack.c.h.b16 %v1009
    %v1255 = vunpack.c.l.b16 %v1010
    %v1256 = vunpack.c.h.b16 %v1010
    %v1257 = vunpack.c.l.b16 %v1011
    %v1258 = vunpack.c.h.b16 %v1011
    %v1259 = vunpack.c.l.b16 %v1012
    %v1260 = vunpack.c.h.b16 %v1012
    %v1261 = vunpack.c.l.b16 %v1013
    %v1262 = vunpack.c.h.b16 %v1013
    %v1263 = vunpack.c.l.b16 %v1014
    %v1264 = vunpack.c.h.b16 %v1014
    %v1265 = vunpack.c.l.b16 %v1015
    %v1266 = vunpack.c.h.b16 %v1015
    %v1267 = vunpack.c.l.b16 %v1016
    %v1268 = vunpack.c.h.b16 %v1016
    %v1269 = vunpack.c.l.b16 %v1017
    %v1270 = vunpack.c.h.b16 %v1017
    %v1271 = vunpack.c.l.b16 %v1018
    %v1272 = vunpack.c.h.b16 %v1018
    %v1273 = vunpack.c.l.b16 %v1019
    %v1274 = vunpack.c.h.b16 %v1019
    %v1275 = vunpack.c.l.b16 %v1020
    %v1276 = vunpack.c.h.b16 %v1020
    %v1277 = vunpack.c.l.b16 %v1021
    %v1278 = vunpack.c.h.b16 %v1021
    %v1279 = vunpack.c.l.b16 %v1022
    %v1280 = vunpack.c.h.b16 %v1022
    %v1281 = vunpack.c.l.b16 %v1023
    %v1282 = vunpack.c.h.b16 %v1023
    %v1283 = vunpack.c.l.b16 %v1024
    %v1284 = vunpack.c.h.b16 %v1024
    %v1285 = vunpack.c.l.b16 %v1025
    %v1286 = vunpack.c.h.b16 %v1025
    %v1287 = vunpack.c.l.b16 %v1026
    %v1288 = vunpack.c.h.b16 %v1026
    %v1289 = vunpack.c.l.b16 %v1027
    %v1290 = vunpack.c.h.b16 %v1027
    %v1291 = vunpack.c.l.b16 %v1028
    %v1292 = vunpack.c.h.b16 %v1028
    %v1293 = vunpack.c.l.b16 %v1029
    %v1294 = vunpack.c.h.b16 %v1029
    %v1295 = vunpack.c.l.b16 %v1030
    %v1296 = vunpack.c.h.b16 %v1030
    %v1297 = vunpack.c.l.b16 %v1031
    %v1298 = vunpack.c.h.b16 %v1031
    %v1299 = vunpack.c.l.b16 %v1032
    %v1300 = vunpack.c.h.b16 %v1032
    %v1301 = vunpack.c.l.b16 %v1033
    %v1302 = vunpack.c.h.b16 %v1033
    %v1303 = vunpack.c.l.b16 %v1034
    %v1304 = vunpack.c.h.b16 %v1034
    %v1305 = vunpack.c.l.b16 %v1035
    %v1306 = vunpack.c.h.b16 %v1035
    %v1307 = vunpack.c.l.b16 %v1036
    %v1308 = vunpack.c.h.b16 %v1036
    %v1309 = vunpack.c.l.b16 %v1037
    %v1310 = vunpack.c.h.b16 %v1037
    %v1311 = vunpack.c.l.b16 %v1038
    %v1312 = vunpack.c.h.b16 %v1038
    %v1313 = vunpack.c.l.b16 %v1039
    %v1314 = vunpack.c.h.b16 %v1039
    %v1315 = vunpack.c.l.b16 %v1040
    %v1316 = vunpack.c.h.b16 %v1040
    %v1317 = vunpack.c.l.b16 %v1041
    %v1318 = vunpack.c.h.b16 %v1041
    %v1319 = vunpack.c.l.b16 %v1042
    %v1320 = vunpack.c.h.b16 %v1042
    %v1321 = vunpack.c.l.b16 %v1043
    %v1322 = vunpack.c.h.b16 %v1043
    %v1323 = vunpack.c.l.b16 %v1044
    %v1324 = vunpack.c.h.b16 %v1044
    %v1325 = vunpack.c.l.b16 %v1045
    %v1326 = vunpack.c.h.b16 %v1045
    %v1327 = vunpack.c.l.b16 %v1046
    %v1328 = vunpack.c.h.b16 %v1046
    %v1329 = vunpack.c.l.b16 %v1047
    %v1330 = vunpack.c.h.b16 %v1047
    %v1331 = vunpack.c.l.b16 %v1048
    %v1332 = vunpack.c.h.b16 %v1048
    %v1333 = vunpack.c.l.b16 %v1049
    %v1334 = vunpack.c.h.b16 %v1049
    %v1335 = vunpack.c.l.b16 %v1050
    %v1336 = vunpack.c.h.b16 %v1050
    %v1337 = vunpack.c.l.b16 %v1051
    %v1338 = vunpack.c.h.b16 %v1051
    %v1339 = vunpack.c.l.b16 %v1052
    %v1340 = vunpack.c.h.b16 %v1052
    %v1341 = vunpack.c.l.b16 %v1053
    %v1342 = vunpack.c.h.b16 %v1053
    %v1343 = vunpack.c.l.b16 %v1054
    %v1344 = vunpack.c.h.b16 %v1054
    %v1345 = vunpack.c.l.b16 %v1055
    %v1346 = vunpack.c.h.b16 %v1055
    %v1347 = vunpack.c.l.b16 %v1056
    %v1348 = vunpack.c.h.b16 %v1056
    %v1349 = vunpack.c.l.b16 %v1057
    %v1350 = vunpack.c.h.b16 %v1057
    %v1351 = vunpack.c.l.b16 %v1058
    %v1352 = vunpack.c.h.b16 %v1058
    %v1353 = vunpack.c.l.b16 %v1059
    %v1354 = vunpack.c.h.b16 %v1059
    %v1355 = vunpack.c.l.b16 %v1060
    %v1356 = vunpack.c.h.b16 %v1060
    %v1357 = vunpack.c.l.b16 %v1061
    %v1358 = vunpack.c.h.b16 %v1061
    %v1359 = vunpack.c.l.b16 %v1062
    %v1360 = vunpack.c.h.b16 %v1062
    %v1361 = vunpack.c.l.b16 %v1063
    %v1362 = vunpack.c.h.b16 %v1063
    %v1363 = vunpack.c.l.b16 %v1064
    %v1364 = vunpack.c.h.b16 %v1064
    %v1365 = vunpack.c.l.b16 %v1065
    %v1366 = vunpack.c.h.b16 %v1065
    %v1367 = vunpack.c.l.b16 %v1066
    %v1368 = vunpack.c.h.b16 %v1066
    %v1369 = vunpack.c.l.b16 %v1067
    %v1370 = vunpack.c.h.b16 %v1067
    %v1371 = vunpack.c.l.b16 %v1068
    %v1372 = vunpack.c.h.b16 %v1068
    %v1373 = vunpack.c.l.b16 %v1069
    %v1374 = vunpack.c.h.b16 %v1069
    %v1375 = vunpack.c.l.b16 %v1070
    %v1376 = vunpack.c.h.b16 %v1070
    %v1377 = vunpack.c.l.b16 %v1071
    %v1378 = vunpack.c.h.b16 %v1071
    %v1379 = vunpack.c.l.b16 %v1072
    %v1380 = vunpack.c.h.b16 %v1072
    %v1381 = vunpack.c.l.b16 %v1073
    %v1382 = vunpack.c.h.b16 %v1073
    %v1383 = vunpack.c.l.b16 %v1074
    %v1384 = vunpack.c.h.b16 %v1074
    %v1385 = vunpack.c.l.b16 %v1075
    %v1386 = vunpack.c.h.b16 %v1075
    %v1387 = vunpack.c.l.b16 %v1076
    %v1388 = vunpack.c.h.b16 %v1076
    %v1389 = vunpack.c.l.b16 %v1077
    %v1390 = vunpack.c.h.b16 %v1077
    %v1391 = vunpack.c.l.b16 %v1078
    %v1392 = vunpack.c.h.b16 %v1078
    %v1393 = vunpack.c.l.b16 %v1079
    %v1394 = vunpack.c.h.b16 %v1079
    %v1395 = vunpack.c.l.b16 %v1080
    %v1396 = vunpack.c.h.b16 %v1080
    %v1397 = vunpack.c.l.b16 %v1081
    %v1398 = vunpack.c.h.b16 %v1081
    %v1399 = vunpack.c.l.b16 %v1082
    %v1400 = vunpack.c.h.b16 %v1082
    %v1401 = vunpack.c.l.b16 %v1083
    %v1402 = vunpack.c.h.b16 %v1083
    %v1403 = vunpack.c.l.b16 %v1084
    %v1404 = vunpack.c.h.b16 %v1084
    %v1405 = vunpack.c.l.b16 %v1085
    %v1406 = vunpack.c.h.b16 %v1085
    %v1407 = vunpack.c.l.b16 %v1086
    %v1408 = vunpack.c.h.b16 %v1086
    %v1409 = vunpack.c.l.b16 %v1087
    %v1410 = vunpack.c.h.b16 %v1087
    %v1411 = vunpack.c.l.b16 %v1088
    %v1412 = vunpack.c.h.b16 %v1088
    %v1413 = vpack.c.b16 %v1199, %v1197
    %v1414 = vpack.c.b16 %v1200, %v1198
    %v1415 = vpack.c.b16 %v1203, %v1201
    %v1416 = vpack.c.b16 %v1204, %v1202
    %v1417 = vpack.c.b16 %v1207, %v1205
    %v1418 = vpack.c.b16 %v1208, %v1206
    %v1419 = vpack.c.b16 %v1211, %v1209
    %v1420 = vpack.c.b16 %v1212, %v1210
    %v1421 = vpack.c.b16 %v1215, %v1213
    %v1422 = vpack.c.b16 %v1216, %v1214
    %v1423 = vpack.c.b16 %v1219, %v1217
    %v1424 = vpack.c.b16 %v1220, %v1218
    %v1425 = vpack.c.b16 %v1223, %v1221
    %v1426 = vpack.c.b16 %v1224, %v1222
    %v1427 = vpack.c.b16 %v1227, %v1225
    %v1428 = vpack.c.b16 %v1228, %v1226
    %v1429 = vpack.c.b16 %v1231, %v1229
    %v1430 = vpack.c.b16 %v1232, %v1230
    %v1431 = vpack.c.b16 %v1235, %v1233
    %v1432 = vpack.c.b16 %v1236, %v1234
    %v1433 = vpack.c.b16 %v1239, %v1237
    %v1434 = vpack.c.b16 %v1240, %v1238
    %v1435 = vpack.c.b16 %v1243, %v1241
    %v1436 = vpack.c.b16 %v1244, %v1242
    %v1437 = vpack.c.b16 %v1247, %v1245
    %v1438 = vpack.c.b16 %v1248, %v1246
    %v1439 = vpack.c.b16 %v1251, %v1249
    %v1440 = vpack.c.b16 %v1252, %v1250
    %v1441 = vpack.c.b16 %v1255, %v1253
    %v1442 = vpack.c.b16 %v1256, %v1254
    %v1443 = vpack.c.b16 %v1259, %v1257
    %v1444 = vpack.c.b16 %v1260, %v1258
    %v1445 = vpack.c.b16 %v1263, %v1261
    %v1446 = vpack.c.b16 %v1264, %v1262
    %v1447 = vpack.c.b16 %v1267, %v1265
    %v1448 = vpack.c.b16 %v1268, %v1266
    %v1449 = vpack.c.b16 %v1271, %v1269
    %v1450 = vpack.c.b16 %v1272, %v1270
    %v1451 = vpack.c.b16 %v1275, %v1273
    %v1452 = vpack.c.b16 %v1276, %v1274
    %v1453 = vpack.c.b16 %v1279, %v1277
    %v1454 = vpack.c.b16 %v1280, %v1278
    %v1455 = vpack.c.b16 %v1283, %v1281
    %v1456 = vpack.c.b16 %v1284, %v1282
    %v1457 = vpack.c.b16 %v1287, %v1285
    %v1458 = vpack.c.b16 %v1288, %v1286
    %v1459 = vpack.c.b16 %v1291, %v1289
    %v1460 = vpack.c.b16 %v1292, %v1290
    %v1461 = vpack.c.b16 %v1295, %v1293
    %v1462 = vpack.c.b16 %v1296, %v1294
    %v1463 = vpack.c.b16 %v1299, %v1297
    %v1464 = vpack.c.b16 %v1300, %v1298
    %v1465 = vpack.c.b16 %v1303, %v1301
    %v1466 = vpack.c.b16 %v1304, %v1302
    %v1467 = vpack.c.b16 %v1307, %v1305
    %v1468 = vpack.c.b16 %v1308, %v1306
    %v1469 = vpack.c.b16 %v1311, %v1309
    %v1470 = vpack.c.b16 %v1312, %v1310
    %v1471 = vpack.c.b16 %v1315, %v1313
    %v1472 = vpack.c.b16 %v1316, %v1314
    %v1473 = vpack.c.b16 %v1319, %v1317
    %v1474 = vpack.c.b16 %v1320, %v1318
    %v1475 = vpack.c.b16 %v1323, %v1321
    %v1476 = vpack.c.b16 %v1324, %v1322
    %v1477 = vpack.c.b16 %v1327, %v1325
    %v1478 = vpack.c.b16 %v1328, %v1326
    %v1479 = vpack.c.b16 %v1331, %v1329
    %v1480 = vpack.c.b16 %v1332, %v1330
    %v1481 = vpack.c.b16 %v1335, %v1333
    %v1482 = vpack.c.b16 %v1336, %v1334
    %v1483 = vpack.c.b16 %v1339, %v1337
    %v1484 = vpack.c.b16 %v1340, %v1338
    %v1485 = vpack.c.b16 %v1343, %v1341
    %v1486 = vpack.c.b16 %v1344, %v1342
    %v1487 = vpack.c.b16 %v1347, %v1345
    %v1488 = vpack.c.b16 %v1348, %v1346
    %v1489 = vpack.c.b16 %v1351, %v1349
    %v1490 = vpack.c.b16 %v1352, %v1350
    %v1491 = vpack.c.b16 %v1355, %v1353
    %v1492 = vpack.c.b16 %v1356, %v1354
    %v1493 = vpack.c.b16 %v1359, %v1357
    %v1494 = vpack.c.b16 %v1360, %v1358
    %v1495 = vpack.c.b16 %v1363, %v1361
    %v1496 = vpack.c.b16 %v1364, %v1362
    %v1497 = vpack.c.b16 %v1367, %v1365
    %v1498 = vpack.c.b16 %v1368, %v1366
    %v1499 = vpack.c.b16 %v1371, %v1369
    %v1500 = vpack.c.b16 %v1372, %v1370
    %v1501 = vpack.c.b16 %v1375, %v1373
    %v1502 = vpack.c.b16 %v1376, %v1374
    %v1503 = vpack.c.b16 %v1379, %v1377
    %v1504 = vpack.c.b16 %v1380, %v1378
    %v1505 = vpack.c.b16 %v1383, %v1381
    %v1506 = vpack.c.b16 %v1384, %v1382
    %v1507 = vpack.c.b16 %v1387, %v1385
    %v1508 = vpack.c.b16 %v1388, %v1386
    %v1509 = vpack.c.b16 %v1391, %v1389
    %v1510 = vpack.c.b16 %v1392, %v1390
    %v1511 = vpack.c.b16 %v1395, %v1393
    %v1512 = vpack.c.b16 %v1396, %v1394
    %v1513 = vpack.c.b16 %v1399, %v1397
    %v1514 = vpack.c.b16 %v1400, %v1398
    %v1515 = vpack.c.b16 %v1403, %v1401
    %v1516 = vpack.c.b16 %v1404, %v1402
    %v1517 = vpack.c.b16 %v1407, %v1405
    %v1518 = vpack.c.b16 %v1408, %v1406
    %v1519 = vpack.c.b16 %v1411, %v1409
    %v1520 = vpack.c.b16 %v1412, %v1410
    %1629 = vmatprep.subr.bf16.mxu0 %v1428
    %1630 = vmatpush1.bf16.msra.mxu0 %v1427
    %1631 = vmatprep.subr.bf16.mxu0 %v1426
    %1632 = vmatpush1.bf16.msra.mxu0 %v1425
    %1633 = vmatprep.subr.bf16.mxu0 %v1424
    %1634 = vmatpush1.bf16.msra.mxu0 %v1423
    %1635 = vmatprep.subr.bf16.mxu0 %v1422
    %1636 = vmatpush1.bf16.msra.mxu0 %v1421
    %1637 = vmatprep.subr.bf16.mxu0 %v1420
    %1638 = vmatpush1.bf16.msra.mxu0 %v1419
    %1639 = vmatprep.subr.bf16.mxu0 %v1418
    %1640 = vmatpush1.bf16.msra.mxu0 %v1417
    %1641 = vmatprep.subr.bf16.mxu0 %v1416
    %1642 = vmatpush1.bf16.msra.mxu0 %v1415
    %1643 = vmatprep.subr.bf16.mxu0 %v1414
    %1644 = vmatpush1.bf16.msra.mxu0 %v1413
    %1645 = vmatprep.subr.bf16.mxu0 %v1444
    %1646 = vmatpush2.bf16.msra.mxu0 %v1443
    %1647 = vmatprep.subr.bf16.mxu0 %v1442
    %1648 = vmatpush2.bf16.msra.mxu0 %v1441
    %1649 = vmatprep.subr.bf16.mxu0 %v1440
    %1650 = vmatpush2.bf16.msra.mxu0 %v1439
    %1651 = vmatprep.subr.bf16.mxu0 %v1438
    %1652 = vmatpush2.bf16.msra.mxu0 %v1437
    %1653 = vmatprep.subr.bf16.mxu0 %v1436
    %1654 = vmatpush2.bf16.msra.mxu0 %v1435
    %1655 = vmatprep.subr.bf16.mxu0 %v1434
    %1656 = vmatpush2.bf16.msra.mxu0 %v1433
    %1657 = vmatprep.subr.bf16.mxu0 %v1432
    %1658 = vmatpush2.bf16.msra.mxu0 %v1431
    %1659 = vmatprep.subr.bf16.mxu0 %v1430
    %1660 = vmatpush2.bf16.msra.mxu0 %v1429
    %1661 = vmatprep.mubr.bf16.mxu0 %v196
    %1662 = vmatmul.mubr.bf16.gmra.mxu0 %v195
    %v1663 = vpop.f32.mrf.mxu0
    %v1664 = vadd.f32 0.0, %v1663
    %v1665 = vpop.f32.mrf.mxu0
    %v1666 = vadd.f32 0.0, %v1665
    %v1667 = vpop.f32.mrf.mxu0
    %v1668 = vadd.f32 0.0, %v1667
    %v1669 = vpop.f32.mrf.mxu0
    %v1670 = vadd.f32 0.0, %v1669
    %1671 = vmatprep.mubr.bf16.mxu0 %v203
    %1672 = vmatmul.mubr.bf16.gmra.mxu0 %v202
    %v1673 = vpop.f32.mrf.mxu0
    %v1674 = vadd.f32 0.0, %v1673
    %v1675 = vpop.f32.mrf.mxu0
    %v1676 = vadd.f32 0.0, %v1675
    %v1677 = vpop.f32.mrf.mxu0
    %v1678 = vadd.f32 0.0, %v1677
    %v1679 = vpop.f32.mrf.mxu0
    %v1680 = vadd.f32 0.0, %v1679
    %1681 = vdwg.mxu0
    %1682 = vmatprep.subr.bf16.mxu0 %v1460
    %1683 = vmatpush1.bf16.msra.mxu0 %v1459
    %1684 = vmatprep.subr.bf16.mxu0 %v1458
    %1685 = vmatpush1.bf16.msra.mxu0 %v1457
    %1686 = vmatprep.subr.bf16.mxu0 %v1456
    %1687 = vmatpush1.bf16.msra.mxu0 %v1455
    %1688 = vmatprep.subr.bf16.mxu0 %v1454
    %1689 = vmatpush1.bf16.msra.mxu0 %v1453
    %1690 = vmatprep.subr.bf16.mxu0 %v1452
    %1691 = vmatpush1.bf16.msra.mxu0 %v1451
    %1692 = vmatprep.subr.bf16.mxu0 %v1450
    %1693 = vmatpush1.bf16.msra.mxu0 %v1449
    %1694 = vmatprep.subr.bf16.mxu0 %v1448
    %1695 = vmatpush1.bf16.msra.mxu0 %v1447
    %1696 = vmatprep.subr.bf16.mxu0 %v1446
    %1697 = vmatpush1.bf16.msra.mxu0 %v1445
    %1698 = vmatprep.subr.bf16.mxu0 %v1476
    %1699 = vmatpush2.bf16.msra.mxu0 %v1475
    %1700 = vmatprep.subr.bf16.mxu0 %v1474
    %1701 = vmatpush2.bf16.msra.mxu0 %v1473
    %1702 = vmatprep.subr.bf16.mxu0 %v1472
    %1703 = vmatpush2.bf16.msra.mxu0 %v1471
    %1704 = vmatprep.subr.bf16.mxu0 %v1470
    %1705 = vmatpush2.bf16.msra.mxu0 %v1469
    %1706 = vmatprep.subr.bf16.mxu0 %v1468
    %1707 = vmatpush2.bf16.msra.mxu0 %v1467
    %1708 = vmatprep.subr.bf16.mxu0 %v1466
    %1709 = vmatpush2.bf16.msra.mxu0 %v1465
    %1710 = vmatprep.subr.bf16.mxu0 %v1464
    %1711 = vmatpush2.bf16.msra.mxu0 %v1463
    %1712 = vmatprep.subr.bf16.mxu0 %v1462
    %1713 = vmatpush2.bf16.msra.mxu0 %v1461
    %1714 = vmatprep.mubr.bf16.mxu0 %v198
    %1715 = vmatmul.mubr.bf16.gmra.mxu0 %v197
    %v1716 = vpop.f32.mrf.mxu0
    %v1717 = vadd.f32 %v1664, %v1716
    %v1718 = vpop.f32.mrf.mxu0
    %v1719 = vadd.f32 %v1666, %v1718
    %v1720 = vpop.f32.mrf.mxu0
    %v1721 = vadd.f32 %v1668, %v1720
    %v1722 = vpop.f32.mrf.mxu0
    %v1723 = vadd.f32 %v1670, %v1722
    %1724 = vmatprep.mubr.bf16.mxu0 %v205
    %1725 = vmatmul.mubr.bf16.gmra.mxu0 %v204
    %v1726 = vpop.f32.mrf.mxu0
    %v1727 = vadd.f32 %v1674, %v1726
    %v1728 = vpop.f32.mrf.mxu0
    %v1729 = vadd.f32 %v1676, %v1728
    %v1730 = vpop.f32.mrf.mxu0
    %v1731 = vadd.f32 %v1678, %v1730
    %v1732 = vpop.f32.mrf.mxu0
    %v1733 = vadd.f32 %v1680, %v1732
    %1734 = vdwg.mxu0
    %1735 = vmatprep.subr.bf16.mxu0 %v1492
    %1736 = vmatpush1.bf16.msra.mxu0 %v1491
    %1737 = vmatprep.subr.bf16.mxu0 %v1490
    %1738 = vmatpush1.bf16.msra.mxu0 %v1489
    %1739 = vmatprep.subr.bf16.mxu0 %v1488
    %1740 = vmatpush1.bf16.msra.mxu0 %v1487
    %1741 = vmatprep.subr.bf16.mxu0 %v1486
    %1742 = vmatpush1.bf16.msra.mxu0 %v1485
    %1743 = vmatprep.subr.bf16.mxu0 %v1484
    %1744 = vmatpush1.bf16.msra.mxu0 %v1483
    %1745 = vmatprep.subr.bf16.mxu0 %v1482
    %1746 = vmatpush1.bf16.msra.mxu0 %v1481
    %1747 = vmatprep.subr.bf16.mxu0 %v1480
    %1748 = vmatpush1.bf16.msra.mxu0 %v1479
    %1749 = vmatprep.subr.bf16.mxu0 %v1478
    %1750 = vmatpush1.bf16.msra.mxu0 %v1477
    %1751 = vmatprep.subr.bf16.mxu0 %v1508
    %1752 = vmatpush2.bf16.msra.mxu0 %v1507
    %1753 = vmatprep.subr.bf16.mxu0 %v1506
    %1754 = vmatpush2.bf16.msra.mxu0 %v1505
    %1755 = vmatprep.subr.bf16.mxu0 %v1504
    %1756 = vmatpush2.bf16.msra.mxu0 %v1503
    %1757 = vmatprep.subr.bf16.mxu0 %v1502
    %1758 = vmatpush2.bf16.msra.mxu0 %v1501
    %1759 = vmatprep.subr.bf16.mxu0 %v1500
    %1760 = vmatpush2.bf16.msra.mxu0 %v1499
    %1761 = vmatprep.subr.bf16.mxu0 %v1498
    %1762 = vmatpush2.bf16.msra.mxu0 %v1497
    %1763 = vmatprep.subr.bf16.mxu0 %v1496
    %1764 = vmatpush2.bf16.msra.mxu0 %v1495
    %1765 = vmatprep.subr.bf16.mxu0 %v1494
    %1766 = vmatpush2.bf16.msra.mxu0 %v1493
    %1767 = vmatprep.mubr.bf16.mxu0 %v200
    %1768 = vmatmul.mubr.bf16.gmra.mxu0 %v199
    %v1769 = vpop.f32.mrf.mxu0
    %v1770 = vadd.f32 %v1717, %v1769
    %v1771 = vpop.f32.mrf.mxu0
    %v1772 = vadd.f32 %v1719, %v1771
    %v1773 = vpop.f32.mrf.mxu0
    %v1774 = vadd.f32 %v1721, %v1773
    %v1775 = vpop.f32.mrf.mxu0
    %v1776 = vadd.f32 %v1723, %v1775
    %1777 = vmatprep.mubr.bf16.mxu0 %v207
    %1778 = vmatmul.mubr.bf16.gmra.mxu0 %v206
    %v1779 = vpop.f32.mrf.mxu0
    %v1780 = vadd.f32 %v1727, %v1779
    %v1781 = vpop.f32.mrf.mxu0
    %v1782 = vadd.f32 %v1729, %v1781
    %v1783 = vpop.f32.mrf.mxu0
    %v1784 = vadd.f32 %v1731, %v1783
    %v1785 = vpop.f32.mrf.mxu0
    %v1786 = vadd.f32 %v1733, %v1785
    %1787 = vdwg.mxu0
    %1788 = vmatprep.subr.bf16.mxu0 0
    %1789 = vmatpush1.bf16.msra.mxu0 0
    %1790 = vmatprep.subr.bf16.mxu0 0
    %1791 = vmatpush1.bf16.msra.mxu0 0
    %1792 = vmatprep.subr.bf16.mxu0 %v1520
    %1793 = vmatpush1.bf16.msra.mxu0 %v1519
    %1794 = vmatprep.subr.bf16.mxu0 %v1518
    %1795 = vmatpush1.bf16.msra.mxu0 %v1517
    %1796 = vmatprep.subr.bf16.mxu0 %v1516
    %1797 = vmatpush1.bf16.msra.mxu0 %v1515
    %1798 = vmatprep.subr.bf16.mxu0 %v1514
    %1799 = vmatpush1.bf16.msra.mxu0 %v1513
    %1800 = vmatprep.subr.bf16.mxu0 %v1512
    %1801 = vmatpush1.bf16.msra.mxu0 %v1511
    %1802 = vmatprep.subr.bf16.mxu0 %v1510
    %1803 = vmatpush1.bf16.msra.mxu0 %v1509
    %1804 = vmatprep.subr.bf16.mxu0 0
    %1805 = vmatpush2.bf16.msra.mxu0 0
    %1806 = vmatprep.subr.bf16.mxu0 0
    %1807 = vmatpush2.bf16.msra.mxu0 0
    %1808 = vmatprep.subr.bf16.mxu0 0
    %1809 = vmatpush2.bf16.msra.mxu0 0
    %1810 = vmatprep.subr.bf16.mxu0 0
    %1811 = vmatpush2.bf16.msra.mxu0 0
    %1812 = vmatprep.subr.bf16.mxu0 0
    %1813 = vmatpush2.bf16.msra.mxu0 0
    %1814 = vmatprep.subr.bf16.mxu0 0
    %1815 = vmatpush2.bf16.msra.mxu0 0
    %1816 = vmatprep.subr.bf16.mxu0 0
    %1817 = vmatpush2.bf16.msra.mxu0 0
    %1818 = vmatprep.subr.bf16.mxu0 0
    %1819 = vmatpush2.bf16.msra.mxu0 0
    %1820 = vmatprep.mubr.bf16.mxu0 0
    %1821 = vmatmul.mubr.bf16.gmra.mxu0 %v763
    %v1822 = vpop.f32.mrf.mxu0
    %v1823 = vadd.f32 %v1770, %v1822
    %v1824 = vpop.f32.mrf.mxu0
    %v1825 = vadd.f32 %v1772, %v1824
    %v1826 = vpop.f32.mrf.mxu0
    %v1827 = vadd.f32 %v1774, %v1826
    %v1828 = vpop.f32.mrf.mxu0
    %v1829 = vadd.f32 %v1776, %v1828
    %1830 = vmatprep.mubr.bf16.mxu0 0
    %1831 = vmatmul.mubr.bf16.gmra.mxu0 %v766
    %v1832 = vpop.f32.mrf.mxu0
    %v1833 = vadd.f32 %v1780, %v1832
    %v1834 = vpop.f32.mrf.mxu0
    %v1835 = vadd.f32 %v1782, %v1834
    %v1836 = vpop.f32.mrf.mxu0
    %v1837 = vadd.f32 %v1784, %v1836
    %v1838 = vpop.f32.mrf.mxu0
    %v1839 = vadd.f32 %v1786, %v1838
    %1840 = vdwg.mxu0
    %v1841 = vmax.f32 %v962, %v1823
    %v1842 = vmax.f32 %v964, %v1825
    %v1843 = vmax.f32 %v966, %v1827
    %v1844 = vmax.f32 %v968, %v1829
    %v1845 = vmax.f32 %v972, %v1833
    %v1846 = vmax.f32 %v974, %v1835
    %v1847 = vmax.f32 %v976, %v1837
    %v1848 = vmax.f32 %v978, %v1839
    %s1849 = scalar_lea.vmem %s1, 1728
    %v1850 = vld [vmem:[%s1849] sm:$0xff]
    %v1851 = vld [vmem:[%s1849 + $0x8] sm:$0xff]
    %v1852 = vld [vmem:[%s1849 + $0x10] sm:$0xff]
    %v1853 = vld [vmem:[%s1849 + $0x18] sm:$0xff]
    %v1854 = vld [vmem:[%s1849 + $0x20] sm:$0xff]
    %v1855 = vld [vmem:[%s1849 + $0x28] sm:$0xff]
    %v1856 = vld [vmem:[%s1849 + $0x30] sm:$0xff]
    %v1857 = vld [vmem:[%s1849 + $0x38] sm:$0xff]
    %v1858 = vld [vmem:[%s1849 + $0x40] sm:$0xff]
    %v1859 = vld [vmem:[%s1849 + $0x48] sm:$0xff]
    %v1860 = vld [vmem:[%s1849 + $0x50] sm:$0xff]
    %v1861 = vld [vmem:[%s1849 + $0x58] sm:$0xff]
    %v1862 = vld [vmem:[%s1849 + $0x60] sm:$0xff]
    %v1863 = vld [vmem:[%s1849 + $0x68] sm:$0xff]
    %v1864 = vld [vmem:[%s1849 + $0x70] sm:$0xff]
    %v1865 = vld [vmem:[%s1849 + $0x78] sm:$0xff]
    %v1866 = vld [vmem:[%s1849 + $0x80] sm:$0xff]
    %v1867 = vld [vmem:[%s1849 + $0x88] sm:$0xff]
    %v1868 = vld [vmem:[%s1849 + $0x90] sm:$0xff]
    %v1869 = vld [vmem:[%s1849 + $0x98] sm:$0xff]
    %v1870 = vld [vmem:[%s1849 + $0xa0] sm:$0xff]
    %v1871 = vld [vmem:[%s1849 + $0xa8] sm:$0xff]
    %v1872 = vld [vmem:[%s1849 + $0xb0] sm:$0xff]
    %v1873 = vld [vmem:[%s1849 + $0xb8] sm:$0xff]
    %v1874 = vld [vmem:[%s1849 + $0xc0] sm:$0xff]
    %v1875 = vld [vmem:[%s1849 + $0xc8] sm:$0xff]
    %v1876 = vld [vmem:[%s1849 + $0xd0] sm:$0xff]
    %v1877 = vld [vmem:[%s1849 + $0xd8] sm:$0xff]
    %v1878 = vld [vmem:[%s1849 + $0xe0] sm:$0xff]
    %v1879 = vld [vmem:[%s1849 + $0xe8] sm:$0xff]
    %v1880 = vld [vmem:[%s1849 + $0xf0] sm:$0xff]
    %v1881 = vld [vmem:[%s1849 + $0xf8] sm:$0xff]
    %v1882 = vld [vmem:[%s1849 + $0x100] sm:$0xff]
    %v1883 = vld [vmem:[%s1849 + $0x108] sm:$0xff]
    %v1884 = vld [vmem:[%s1849 + $0x110] sm:$0xff]
    %v1885 = vld [vmem:[%s1849 + $0x118] sm:$0xff]
    %v1886 = vld [vmem:[%s1849 + $0x120] sm:$0xff]
    %v1887 = vld [vmem:[%s1849 + $0x128] sm:$0xff]
    %v1888 = vld [vmem:[%s1849 + $0x130] sm:$0xff]
    %v1889 = vld [vmem:[%s1849 + $0x138] sm:$0xff]
    %v1890 = vld [vmem:[%s1849 + $0x140] sm:$0xff]
    %v1891 = vld [vmem:[%s1849 + $0x148] sm:$0xff]
    %v1892 = vld [vmem:[%s1849 + $0x150] sm:$0xff]
    %v1893 = vld [vmem:[%s1849 + $0x158] sm:$0xff]
    %v1894 = vld [vmem:[%s1849 + $0x160] sm:$0xff]
    %v1895 = vld [vmem:[%s1849 + $0x168] sm:$0xff]
    %v1896 = vld [vmem:[%s1849 + $0x170] sm:$0xff]
    %v1897 = vld [vmem:[%s1849 + $0x178] sm:$0xff]
    %v1898 = vld [vmem:[%s1849 + $0x180] sm:$0xff]
    %v1899 = vld [vmem:[%s1849 + $0x188] sm:$0xff]
    %v1900 = vld [vmem:[%s1849 + $0x190] sm:$0xff]
    %v1901 = vld [vmem:[%s1849 + $0x198] sm:$0xff]
    %v1902 = vld [vmem:[%s1849 + $0x1a0] sm:$0xff]
    %v1903 = vld [vmem:[%s1849 + $0x1a8] sm:$0xff]
    %v1904 = vld [vmem:[%s1849 + $0x1b0] sm:$0xff]
    %v1905 = vld [vmem:[%s1849 + $0x1b8] sm:$0xff]
    %v1906 = vld [vmem:[%s1849 + $0x1c0] sm:$0xff]
    %v1907 = vld [vmem:[%s1849 + $0x1c8] sm:$0xff]
    %v1908 = vld [vmem:[%s1849 + $0x1d0] sm:$0xff]
    %v1909 = vld [vmem:[%s1849 + $0x1d8] sm:$0xff]
    %v1910 = vld [vmem:[%s1849 + $0x1e0] sm:$0xff]
    %v1911 = vld [vmem:[%s1849 + $0x1e8] sm:$0xff]
    %v1912 = vld [vmem:[%s1849 + $0x1f0] sm:$0xff]
    %v1913 = vld [vmem:[%s1849 + $0x1f8] sm:$0xff]
    %v1914 = vld [vmem:[%s1849 + $0x200] sm:$0xff]
    %v1915 = vld [vmem:[%s1849 + $0x208] sm:$0xff]
    %v1916 = vld [vmem:[%s1849 + $0x210] sm:$0xff]
    %v1917 = vld [vmem:[%s1849 + $0x218] sm:$0xff]
    %v1918 = vld [vmem:[%s1849 + $0x220] sm:$0xff]
    %v1919 = vld [vmem:[%s1849 + $0x228] sm:$0xff]
    %v1920 = vld [vmem:[%s1849 + $0x230] sm:$0xff]
    %v1921 = vld [vmem:[%s1849 + $0x238] sm:$0xff]
    %v1922 = vld [vmem:[%s1849 + $0x240] sm:$0xff]
    %v1923 = vld [vmem:[%s1849 + $0x248] sm:$0xff]
    %v1924 = vld [vmem:[%s1849 + $0x250] sm:$0xff]
    %v1925 = vld [vmem:[%s1849 + $0x258] sm:$0xff]
    %v1926 = vld [vmem:[%s1849 + $0x260] sm:$0xff]
    %v1927 = vld [vmem:[%s1849 + $0x268] sm:$0xff]
    %v1928 = vld [vmem:[%s1849 + $0x270] sm:$0xff]
    %v1929 = vld [vmem:[%s1849 + $0x278] sm:$0xff]
    %v1930 = vld [vmem:[%s1849 + $0x280] sm:$0xff]
    %v1931 = vld [vmem:[%s1849 + $0x288] sm:$0xff]
    %v1932 = vld [vmem:[%s1849 + $0x290] sm:$0xff]
    %v1933 = vld [vmem:[%s1849 + $0x298] sm:$0xff]
    %v1934 = vld [vmem:[%s1849 + $0x2a0] sm:$0xff]
    %v1935 = vld [vmem:[%s1849 + $0x2a8] sm:$0xff]
    %v1936 = vld [vmem:[%s1849 + $0x2b0] sm:$0xff]
    %v1937 = vld [vmem:[%s1849 + $0x2b8] sm:$0xff]
    %v1938 = vld [vmem:[%s1849 + $0x2c0] sm:$0xff]
    %v1939 = vld [vmem:[%s1849 + $0x2c8] sm:$0xff]
    %v1940 = vld [vmem:[%s1849 + $0x2d0] sm:$0xff]
    %v1941 = vld [vmem:[%s1849 + $0x2d8] sm:$0xff]
    %v1942 = vld [vmem:[%s1849 + $0x2e0] sm:$0xff]
    %v1943 = vld [vmem:[%s1849 + $0x2e8] sm:$0xff]
    %v1944 = vld [vmem:[%s1849 + $0x2f0] sm:$0xff]
    %v1945 = vld [vmem:[%s1849 + $0x2f8] sm:$0xff]
    %v1946 = vld [vmem:[%s1849 + $0x300] sm:$0xff]
    %v1947 = vld [vmem:[%s1849 + $0x308] sm:$0xff]
    %v1948 = vld [vmem:[%s1849 + $0x310] sm:$0xff]
    %v1949 = vld [vmem:[%s1849 + $0x318] sm:$0xff]
    %v1950 = vld [vmem:[%s1849 + $0x320] sm:$0xff]
    %v1951 = vld [vmem:[%s1849 + $0x328] sm:$0xff]
    %v1952 = vld [vmem:[%s1849 + $0x330] sm:$0xff]
    %v1953 = vld [vmem:[%s1849 + $0x338] sm:$0xff]
    %v1954 = vld [vmem:[%s1849 + $0x340] sm:$0xff]
    %v1955 = vld [vmem:[%s1849 + $0x348] sm:$0xff]
    %v1956 = vld [vmem:[%s1849 + $0x350] sm:$0xff]
    %v1957 = vld [vmem:[%s1849 + $0x358] sm:$0xff]
    %v2066 = vunpack.c.l.b16 %v1850
    %v2067 = vunpack.c.h.b16 %v1850
    %v2068 = vunpack.c.l.b16 %v1851
    %v2069 = vunpack.c.h.b16 %v1851
    %v2070 = vunpack.c.l.b16 %v1852
    %v2071 = vunpack.c.h.b16 %v1852
    %v2072 = vunpack.c.l.b16 %v1853
    %v2073 = vunpack.c.h.b16 %v1853
    %v2074 = vunpack.c.l.b16 %v1854
    %v2075 = vunpack.c.h.b16 %v1854
    %v2076 = vunpack.c.l.b16 %v1855
    %v2077 = vunpack.c.h.b16 %v1855
    %v2078 = vunpack.c.l.b16 %v1856
    %v2079 = vunpack.c.h.b16 %v1856
    %v2080 = vunpack.c.l.b16 %v1857
    %v2081 = vunpack.c.h.b16 %v1857
    %v2082 = vunpack.c.l.b16 %v1858
    %v2083 = vunpack.c.h.b16 %v1858
    %v2084 = vunpack.c.l.b16 %v1859
    %v2085 = vunpack.c.h.b16 %v1859
    %v2086 = vunpack.c.l.b16 %v1860
    %v2087 = vunpack.c.h.b16 %v1860
    %v2088 = vunpack.c.l.b16 %v1861
    %v2089 = vunpack.c.h.b16 %v1861
    %v2090 = vunpack.c.l.b16 %v1862
    %v2091 = vunpack.c.h.b16 %v1862
    %v2092 = vunpack.c.l.b16 %v1863
    %v2093 = vunpack.c.h.b16 %v1863
    %v2094 = vunpack.c.l.b16 %v1864
    %v2095 = vunpack.c.h.b16 %v1864
    %v2096 = vunpack.c.l.b16 %v1865
    %v2097 = vunpack.c.h.b16 %v1865
    %v2098 = vunpack.c.l.b16 %v1866
    %v2099 = vunpack.c.h.b16 %v1866
    %v2100 = vunpack.c.l.b16 %v1867
    %v2101 = vunpack.c.h.b16 %v1867
    %v2102 = vunpack.c.l.b16 %v1868
    %v2103 = vunpack.c.h.b16 %v1868
    %v2104 = vunpack.c.l.b16 %v1869
    %v2105 = vunpack.c.h.b16 %v1869
    %v2106 = vunpack.c.l.b16 %v1870
    %v2107 = vunpack.c.h.b16 %v1870
    %v2108 = vunpack.c.l.b16 %v1871
    %v2109 = vunpack.c.h.b16 %v1871
    %v2110 = vunpack.c.l.b16 %v1872
    %v2111 = vunpack.c.h.b16 %v1872
    %v2112 = vunpack.c.l.b16 %v1873
    %v2113 = vunpack.c.h.b16 %v1873
    %v2114 = vunpack.c.l.b16 %v1874
    %v2115 = vunpack.c.h.b16 %v1874
    %v2116 = vunpack.c.l.b16 %v1875
    %v2117 = vunpack.c.h.b16 %v1875
    %v2118 = vunpack.c.l.b16 %v1876
    %v2119 = vunpack.c.h.b16 %v1876
    %v2120 = vunpack.c.l.b16 %v1877
    %v2121 = vunpack.c.h.b16 %v1877
    %v2122 = vunpack.c.l.b16 %v1878
    %v2123 = vunpack.c.h.b16 %v1878
    %v2124 = vunpack.c.l.b16 %v1879
    %v2125 = vunpack.c.h.b16 %v1879
    %v2126 = vunpack.c.l.b16 %v1880
    %v2127 = vunpack.c.h.b16 %v1880
    %v2128 = vunpack.c.l.b16 %v1881
    %v2129 = vunpack.c.h.b16 %v1881
    %v2130 = vunpack.c.l.b16 %v1882
    %v2131 = vunpack.c.h.b16 %v1882
    %v2132 = vunpack.c.l.b16 %v1883
    %v2133 = vunpack.c.h.b16 %v1883
    %v2134 = vunpack.c.l.b16 %v1884
    %v2135 = vunpack.c.h.b16 %v1884
    %v2136 = vunpack.c.l.b16 %v1885
    %v2137 = vunpack.c.h.b16 %v1885
    %v2138 = vunpack.c.l.b16 %v1886
    %v2139 = vunpack.c.h.b16 %v1886
    %v2140 = vunpack.c.l.b16 %v1887
    %v2141 = vunpack.c.h.b16 %v1887
    %v2142 = vunpack.c.l.b16 %v1888
    %v2143 = vunpack.c.h.b16 %v1888
    %v2144 = vunpack.c.l.b16 %v1889
    %v2145 = vunpack.c.h.b16 %v1889
    %v2146 = vunpack.c.l.b16 %v1890
    %v2147 = vunpack.c.h.b16 %v1890
    %v2148 = vunpack.c.l.b16 %v1891
    %v2149 = vunpack.c.h.b16 %v1891
    %v2150 = vunpack.c.l.b16 %v1892
    %v2151 = vunpack.c.h.b16 %v1892
    %v2152 = vunpack.c.l.b16 %v1893
    %v2153 = vunpack.c.h.b16 %v1893
    %v2154 = vunpack.c.l.b16 %v1894
    %v2155 = vunpack.c.h.b16 %v1894
    %v2156 = vunpack.c.l.b16 %v1895
    %v2157 = vunpack.c.h.b16 %v1895
    %v2158 = vunpack.c.l.b16 %v1896
    %v2159 = vunpack.c.h.b16 %v1896
    %v2160 = vunpack.c.l.b16 %v1897
    %v2161 = vunpack.c.h.b16 %v1897
    %v2162 = vunpack.c.l.b16 %v1898
    %v2163 = vunpack.c.h.b16 %v1898
    %v2164 = vunpack.c.l.b16 %v1899
    %v2165 = vunpack.c.h.b16 %v1899
    %v2166 = vunpack.c.l.b16 %v1900
    %v2167 = vunpack.c.h.b16 %v1900
    %v2168 = vunpack.c.l.b16 %v1901
    %v2169 = vunpack.c.h.b16 %v1901
    %v2170 = vunpack.c.l.b16 %v1902
    %v2171 = vunpack.c.h.b16 %v1902
    %v2172 = vunpack.c.l.b16 %v1903
    %v2173 = vunpack.c.h.b16 %v1903
    %v2174 = vunpack.c.l.b16 %v1904
    %v2175 = vunpack.c.h.b16 %v1904
    %v2176 = vunpack.c.l.b16 %v1905
    %v2177 = vunpack.c.h.b16 %v1905
    %v2178 = vunpack.c.l.b16 %v1906
    %v2179 = vunpack.c.h.b16 %v1906
    %v2180 = vunpack.c.l.b16 %v1907
    %v2181 = vunpack.c.h.b16 %v1907
    %v2182 = vunpack.c.l.b16 %v1908
    %v2183 = vunpack.c.h.b16 %v1908
    %v2184 = vunpack.c.l.b16 %v1909
    %v2185 = vunpack.c.h.b16 %v1909
    %v2186 = vunpack.c.l.b16 %v1910
    %v2187 = vunpack.c.h.b16 %v1910
    %v2188 = vunpack.c.l.b16 %v1911
    %v2189 = vunpack.c.h.b16 %v1911
    %v2190 = vunpack.c.l.b16 %v1912
    %v2191 = vunpack.c.h.b16 %v1912
    %v2192 = vunpack.c.l.b16 %v1913
    %v2193 = vunpack.c.h.b16 %v1913
    %v2194 = vunpack.c.l.b16 %v1914
    %v2195 = vunpack.c.h.b16 %v1914
    %v2196 = vunpack.c.l.b16 %v1915
    %v2197 = vunpack.c.h.b16 %v1915
    %v2198 = vunpack.c.l.b16 %v1916
    %v2199 = vunpack.c.h.b16 %v1916
    %v2200 = vunpack.c.l.b16 %v1917
    %v2201 = vunpack.c.h.b16 %v1917
    %v2202 = vunpack.c.l.b16 %v1918
    %v2203 = vunpack.c.h.b16 %v1918
    %v2204 = vunpack.c.l.b16 %v1919
    %v2205 = vunpack.c.h.b16 %v1919
    %v2206 = vunpack.c.l.b16 %v1920
    %v2207 = vunpack.c.h.b16 %v1920
    %v2208 = vunpack.c.l.b16 %v1921
    %v2209 = vunpack.c.h.b16 %v1921
    %v2210 = vunpack.c.l.b16 %v1922
    %v2211 = vunpack.c.h.b16 %v1922
    %v2212 = vunpack.c.l.b16 %v1923
    %v2213 = vunpack.c.h.b16 %v1923
    %v2214 = vunpack.c.l.b16 %v1924
    %v2215 = vunpack.c.h.b16 %v1924
    %v2216 = vunpack.c.l.b16 %v1925
    %v2217 = vunpack.c.h.b16 %v1925
    %v2218 = vunpack.c.l.b16 %v1926
    %v2219 = vunpack.c.h.b16 %v1926
    %v2220 = vunpack.c.l.b16 %v1927
    %v2221 = vunpack.c.h.b16 %v1927
    %v2222 = vunpack.c.l.b16 %v1928
    %v2223 = vunpack.c.h.b16 %v1928
    %v2224 = vunpack.c.l.b16 %v1929
    %v2225 = vunpack.c.h.b16 %v1929
    %v2226 = vunpack.c.l.b16 %v1930
    %v2227 = vunpack.c.h.b16 %v1930
    %v2228 = vunpack.c.l.b16 %v1931
    %v2229 = vunpack.c.h.b16 %v1931
    %v2230 = vunpack.c.l.b16 %v1932
    %v2231 = vunpack.c.h.b16 %v1932
    %v2232 = vunpack.c.l.b16 %v1933
    %v2233 = vunpack.c.h.b16 %v1933
    %v2234 = vunpack.c.l.b16 %v1934
    %v2235 = vunpack.c.h.b16 %v1934
    %v2236 = vunpack.c.l.b16 %v1935
    %v2237 = vunpack.c.h.b16 %v1935
    %v2238 = vunpack.c.l.b16 %v1936
    %v2239 = vunpack.c.h.b16 %v1936
    %v2240 = vunpack.c.l.b16 %v1937
    %v2241 = vunpack.c.h.b16 %v1937
    %v2242 = vunpack.c.l.b16 %v1938
    %v2243 = vunpack.c.h.b16 %v1938
    %v2244 = vunpack.c.l.b16 %v1939
    %v2245 = vunpack.c.h.b16 %v1939
    %v2246 = vunpack.c.l.b16 %v1940
    %v2247 = vunpack.c.h.b16 %v1940
    %v2248 = vunpack.c.l.b16 %v1941
    %v2249 = vunpack.c.h.b16 %v1941
    %v2250 = vunpack.c.l.b16 %v1942
    %v2251 = vunpack.c.h.b16 %v1942
    %v2252 = vunpack.c.l.b16 %v1943
    %v2253 = vunpack.c.h.b16 %v1943
    %v2254 = vunpack.c.l.b16 %v1944
    %v2255 = vunpack.c.h.b16 %v1944
    %v2256 = vunpack.c.l.b16 %v1945
    %v2257 = vunpack.c.h.b16 %v1945
    %v2258 = vunpack.c.l.b16 %v1946
    %v2259 = vunpack.c.h.b16 %v1946
    %v2260 = vunpack.c.l.b16 %v1947
    %v2261 = vunpack.c.h.b16 %v1947
    %v2262 = vunpack.c.l.b16 %v1948
    %v2263 = vunpack.c.h.b16 %v1948
    %v2264 = vunpack.c.l.b16 %v1949
    %v2265 = vunpack.c.h.b16 %v1949
    %v2266 = vunpack.c.l.b16 %v1950
    %v2267 = vunpack.c.h.b16 %v1950
    %v2268 = vunpack.c.l.b16 %v1951
    %v2269 = vunpack.c.h.b16 %v1951
    %v2270 = vunpack.c.l.b16 %v1952
    %v2271 = vunpack.c.h.b16 %v1952
    %v2272 = vunpack.c.l.b16 %v1953
    %v2273 = vunpack.c.h.b16 %v1953
    %v2274 = vunpack.c.l.b16 %v1954
    %v2275 = vunpack.c.h.b16 %v1954
    %v2276 = vunpack.c.l.b16 %v1955
    %v2277 = vunpack.c.h.b16 %v1955
    %v2278 = vunpack.c.l.b16 %v1956
    %v2279 = vunpack.c.h.b16 %v1956
    %v2280 = vunpack.c.l.b16 %v1957
    %v2281 = vunpack.c.h.b16 %v1957
    %v2282 = vpack.c.b16 %v2068, %v2066
    %v2283 = vpack.c.b16 %v2069, %v2067
    %v2284 = vpack.c.b16 %v2072, %v2070
    %v2285 = vpack.c.b16 %v2073, %v2071
    %v2286 = vpack.c.b16 %v2076, %v2074
    %v2287 = vpack.c.b16 %v2077, %v2075
    %v2288 = vpack.c.b16 %v2080, %v2078
    %v2289 = vpack.c.b16 %v2081, %v2079
    %v2290 = vpack.c.b16 %v2084, %v2082
    %v2291 = vpack.c.b16 %v2085, %v2083
    %v2292 = vpack.c.b16 %v2088, %v2086
    %v2293 = vpack.c.b16 %v2089, %v2087
    %v2294 = vpack.c.b16 %v2092, %v2090
    %v2295 = vpack.c.b16 %v2093, %v2091
    %v2296 = vpack.c.b16 %v2096, %v2094
    %v2297 = vpack.c.b16 %v2097, %v2095
    %v2298 = vpack.c.b16 %v2100, %v2098
    %v2299 = vpack.c.b16 %v2101, %v2099
    %v2300 = vpack.c.b16 %v2104, %v2102
    %v2301 = vpack.c.b16 %v2105, %v2103
    %v2302 = vpack.c.b16 %v2108, %v2106
    %v2303 = vpack.c.b16 %v2109, %v2107
    %v2304 = vpack.c.b16 %v2112, %v2110
    %v2305 = vpack.c.b16 %v2113, %v2111
    %v2306 = vpack.c.b16 %v2116, %v2114
    %v2307 = vpack.c.b16 %v2117, %v2115
    %v2308 = vpack.c.b16 %v2120, %v2118
    %v2309 = vpack.c.b16 %v2121, %v2119
    %v2310 = vpack.c.b16 %v2124, %v2122
    %v2311 = vpack.c.b16 %v2125, %v2123
    %v2312 = vpack.c.b16 %v2128, %v2126
    %v2313 = vpack.c.b16 %v2129, %v2127
    %v2314 = vpack.c.b16 %v2132, %v2130
    %v2315 = vpack.c.b16 %v2133, %v2131
    %v2316 = vpack.c.b16 %v2136, %v2134
    %v2317 = vpack.c.b16 %v2137, %v2135
    %v2318 = vpack.c.b16 %v2140, %v2138
    %v2319 = vpack.c.b16 %v2141, %v2139
    %v2320 = vpack.c.b16 %v2144, %v2142
    %v2321 = vpack.c.b16 %v2145, %v2143
    %v2322 = vpack.c.b16 %v2148, %v2146
    %v2323 = vpack.c.b16 %v2149, %v2147
    %v2324 = vpack.c.b16 %v2152, %v2150
    %v2325 = vpack.c.b16 %v2153, %v2151
    %v2326 = vpack.c.b16 %v2156, %v2154
    %v2327 = vpack.c.b16 %v2157, %v2155
    %v2328 = vpack.c.b16 %v2160, %v2158
    %v2329 = vpack.c.b16 %v2161, %v2159
    %v2330 = vpack.c.b16 %v2164, %v2162
    %v2331 = vpack.c.b16 %v2165, %v2163
    %v2332 = vpack.c.b16 %v2168, %v2166
    %v2333 = vpack.c.b16 %v2169, %v2167
    %v2334 = vpack.c.b16 %v2172, %v2170
    %v2335 = vpack.c.b16 %v2173, %v2171
    %v2336 = vpack.c.b16 %v2176, %v2174
    %v2337 = vpack.c.b16 %v2177, %v2175
    %v2338 = vpack.c.b16 %v2180, %v2178
    %v2339 = vpack.c.b16 %v2181, %v2179
    %v2340 = vpack.c.b16 %v2184, %v2182
    %v2341 = vpack.c.b16 %v2185, %v2183
    %v2342 = vpack.c.b16 %v2188, %v2186
    %v2343 = vpack.c.b16 %v2189, %v2187
    %v2344 = vpack.c.b16 %v2192, %v2190
    %v2345 = vpack.c.b16 %v2193, %v2191
    %v2346 = vpack.c.b16 %v2196, %v2194
    %v2347 = vpack.c.b16 %v2197, %v2195
    %v2348 = vpack.c.b16 %v2200, %v2198
    %v2349 = vpack.c.b16 %v2201, %v2199
    %v2350 = vpack.c.b16 %v2204, %v2202
    %v2351 = vpack.c.b16 %v2205, %v2203
    %v2352 = vpack.c.b16 %v2208, %v2206
    %v2353 = vpack.c.b16 %v2209, %v2207
    %v2354 = vpack.c.b16 %v2212, %v2210
    %v2355 = vpack.c.b16 %v2213, %v2211
    %v2356 = vpack.c.b16 %v2216, %v2214
    %v2357 = vpack.c.b16 %v2217, %v2215
    %v2358 = vpack.c.b16 %v2220, %v2218
    %v2359 = vpack.c.b16 %v2221, %v2219
    %v2360 = vpack.c.b16 %v2224, %v2222
    %v2361 = vpack.c.b16 %v2225, %v2223
    %v2362 = vpack.c.b16 %v2228, %v2226
    %v2363 = vpack.c.b16 %v2229, %v2227
    %v2364 = vpack.c.b16 %v2232, %v2230
    %v2365 = vpack.c.b16 %v2233, %v2231
    %v2366 = vpack.c.b16 %v2236, %v2234
    %v2367 = vpack.c.b16 %v2237, %v2235
    %v2368 = vpack.c.b16 %v2240, %v2238
    %v2369 = vpack.c.b16 %v2241, %v2239
    %v2370 = vpack.c.b16 %v2244, %v2242
    %v2371 = vpack.c.b16 %v2245, %v2243
    %v2372 = vpack.c.b16 %v2248, %v2246
    %v2373 = vpack.c.b16 %v2249, %v2247
    %v2374 = vpack.c.b16 %v2252, %v2250
    %v2375 = vpack.c.b16 %v2253, %v2251
    %v2376 = vpack.c.b16 %v2256, %v2254
    %v2377 = vpack.c.b16 %v2257, %v2255
    %v2378 = vpack.c.b16 %v2260, %v2258
    %v2379 = vpack.c.b16 %v2261, %v2259
    %v2380 = vpack.c.b16 %v2264, %v2262
    %v2381 = vpack.c.b16 %v2265, %v2263
    %v2382 = vpack.c.b16 %v2268, %v2266
    %v2383 = vpack.c.b16 %v2269, %v2267
    %v2384 = vpack.c.b16 %v2272, %v2270
    %v2385 = vpack.c.b16 %v2273, %v2271
    %v2386 = vpack.c.b16 %v2276, %v2274
    %v2387 = vpack.c.b16 %v2277, %v2275
    %v2388 = vpack.c.b16 %v2280, %v2278
    %v2389 = vpack.c.b16 %v2281, %v2279
    %2498 = vmatprep.subr.bf16.mxu0 %v2297
    %2499 = vmatpush1.bf16.msra.mxu0 %v2296
    %2500 = vmatprep.subr.bf16.mxu0 %v2295
    %2501 = vmatpush1.bf16.msra.mxu0 %v2294
    %2502 = vmatprep.subr.bf16.mxu0 %v2293
    %2503 = vmatpush1.bf16.msra.mxu0 %v2292
    %2504 = vmatprep.subr.bf16.mxu0 %v2291
    %2505 = vmatpush1.bf16.msra.mxu0 %v2290
    %2506 = vmatprep.subr.bf16.mxu0 %v2289
    %2507 = vmatpush1.bf16.msra.mxu0 %v2288
    %2508 = vmatprep.subr.bf16.mxu0 %v2287
    %2509 = vmatpush1.bf16.msra.mxu0 %v2286
    %2510 = vmatprep.subr.bf16.mxu0 %v2285
    %2511 = vmatpush1.bf16.msra.mxu0 %v2284
    %2512 = vmatprep.subr.bf16.mxu0 %v2283
    %2513 = vmatpush1.bf16.msra.mxu0 %v2282
    %2514 = vmatprep.subr.bf16.mxu0 %v2313
    %2515 = vmatpush2.bf16.msra.mxu0 %v2312
    %2516 = vmatprep.subr.bf16.mxu0 %v2311
    %2517 = vmatpush2.bf16.msra.mxu0 %v2310
    %2518 = vmatprep.subr.bf16.mxu0 %v2309
    %2519 = vmatpush2.bf16.msra.mxu0 %v2308
    %2520 = vmatprep.subr.bf16.mxu0 %v2307
    %2521 = vmatpush2.bf16.msra.mxu0 %v2306
    %2522 = vmatprep.subr.bf16.mxu0 %v2305
    %2523 = vmatpush2.bf16.msra.mxu0 %v2304
    %2524 = vmatprep.subr.bf16.mxu0 %v2303
    %2525 = vmatpush2.bf16.msra.mxu0 %v2302
    %2526 = vmatprep.subr.bf16.mxu0 %v2301
    %2527 = vmatpush2.bf16.msra.mxu0 %v2300
    %2528 = vmatprep.subr.bf16.mxu0 %v2299
    %2529 = vmatpush2.bf16.msra.mxu0 %v2298
    %2530 = vmatprep.mubr.bf16.mxu0 %v196
    %2531 = vmatmul.mubr.bf16.gmra.mxu0 %v195
    %v2532 = vpop.f32.mrf.mxu0
    %v2533 = vadd.f32 0.0, %v2532
    %v2534 = vpop.f32.mrf.mxu0
    %v2535 = vadd.f32 0.0, %v2534
    %v2536 = vpop.f32.mrf.mxu0
    %v2537 = vadd.f32 0.0, %v2536
    %v2538 = vpop.f32.mrf.mxu0
    %v2539 = vadd.f32 0.0, %v2538
    %2540 = vmatprep.mubr.bf16.mxu0 %v203
    %2541 = vmatmul.mubr.bf16.gmra.mxu0 %v202
    %v2542 = vpop.f32.mrf.mxu0
    %v2543 = vadd.f32 0.0, %v2542
    %v2544 = vpop.f32.mrf.mxu0
    %v2545 = vadd.f32 0.0, %v2544
    %v2546 = vpop.f32.mrf.mxu0
    %v2547 = vadd.f32 0.0, %v2546
    %v2548 = vpop.f32.mrf.mxu0
    %v2549 = vadd.f32 0.0, %v2548
    %2550 = vdwg.mxu0
    %2551 = vmatprep.subr.bf16.mxu0 %v2329
    %2552 = vmatpush1.bf16.msra.mxu0 %v2328
    %2553 = vmatprep.subr.bf16.mxu0 %v2327
    %2554 = vmatpush1.bf16.msra.mxu0 %v2326
    %2555 = vmatprep.subr.bf16.mxu0 %v2325
    %2556 = vmatpush1.bf16.msra.mxu0 %v2324
    %2557 = vmatprep.subr.bf16.mxu0 %v2323
    %2558 = vmatpush1.bf16.msra.mxu0 %v2322
    %2559 = vmatprep.subr.bf16.mxu0 %v2321
    %2560 = vmatpush1.bf16.msra.mxu0 %v2320
    %2561 = vmatprep.subr.bf16.mxu0 %v2319
    %2562 = vmatpush1.bf16.msra.mxu0 %v2318
    %2563 = vmatprep.subr.bf16.mxu0 %v2317
    %2564 = vmatpush1.bf16.msra.mxu0 %v2316
    %2565 = vmatprep.subr.bf16.mxu0 %v2315
    %2566 = vmatpush1.bf16.msra.mxu0 %v2314
    %2567 = vmatprep.subr.bf16.mxu0 %v2345
    %2568 = vmatpush2.bf16.msra.mxu0 %v2344
    %2569 = vmatprep.subr.bf16.mxu0 %v2343
    %2570 = vmatpush2.bf16.msra.mxu0 %v2342
    %2571 = vmatprep.subr.bf16.mxu0 %v2341
    %2572 = vmatpush2.bf16.msra.mxu0 %v2340
    %2573 = vmatprep.subr.bf16.mxu0 %v2339
    %2574 = vmatpush2.bf16.msra.mxu0 %v2338
    %2575 = vmatprep.subr.bf16.mxu0 %v2337
    %2576 = vmatpush2.bf16.msra.mxu0 %v2336
    %2577 = vmatprep.subr.bf16.mxu0 %v2335
    %2578 = vmatpush2.bf16.msra.mxu0 %v2334
    %2579 = vmatprep.subr.bf16.mxu0 %v2333
    %2580 = vmatpush2.bf16.msra.mxu0 %v2332
    %2581 = vmatprep.subr.bf16.mxu0 %v2331
    %2582 = vmatpush2.bf16.msra.mxu0 %v2330
    %2583 = vmatprep.mubr.bf16.mxu0 %v198
    %2584 = vmatmul.mubr.bf16.gmra.mxu0 %v197
    %v2585 = vpop.f32.mrf.mxu0
    %v2586 = vadd.f32 %v2533, %v2585
    %v2587 = vpop.f32.mrf.mxu0
    %v2588 = vadd.f32 %v2535, %v2587
    %v2589 = vpop.f32.mrf.mxu0
    %v2590 = vadd.f32 %v2537, %v2589
    %v2591 = vpop.f32.mrf.mxu0
    %v2592 = vadd.f32 %v2539, %v2591
    %2593 = vmatprep.mubr.bf16.mxu0 %v205
    %2594 = vmatmul.mubr.bf16.gmra.mxu0 %v204
    %v2595 = vpop.f32.mrf.mxu0
    %v2596 = vadd.f32 %v2543, %v2595
    %v2597 = vpop.f32.mrf.mxu0
    %v2598 = vadd.f32 %v2545, %v2597
    %v2599 = vpop.f32.mrf.mxu0
    %v2600 = vadd.f32 %v2547, %v2599
    %v2601 = vpop.f32.mrf.mxu0
    %v2602 = vadd.f32 %v2549, %v2601
    %2603 = vdwg.mxu0
    %2604 = vmatprep.subr.bf16.mxu0 %v2361
    %2605 = vmatpush1.bf16.msra.mxu0 %v2360
    %2606 = vmatprep.subr.bf16.mxu0 %v2359
    %2607 = vmatpush1.bf16.msra.mxu0 %v2358
    %2608 = vmatprep.subr.bf16.mxu0 %v2357
    %2609 = vmatpush1.bf16.msra.mxu0 %v2356
    %2610 = vmatprep.subr.bf16.mxu0 %v2355
    %2611 = vmatpush1.bf16.msra.mxu0 %v2354
    %2612 = vmatprep.subr.bf16.mxu0 %v2353
    %2613 = vmatpush1.bf16.msra.mxu0 %v2352
    %2614 = vmatprep.subr.bf16.mxu0 %v2351
    %2615 = vmatpush1.bf16.msra.mxu0 %v2350
    %2616 = vmatprep.subr.bf16.mxu0 %v2349
    %2617 = vmatpush1.bf16.msra.mxu0 %v2348
    %2618 = vmatprep.subr.bf16.mxu0 %v2347
    %2619 = vmatpush1.bf16.msra.mxu0 %v2346
    %2620 = vmatprep.subr.bf16.mxu0 %v2377
    %2621 = vmatpush2.bf16.msra.mxu0 %v2376
    %2622 = vmatprep.subr.bf16.mxu0 %v2375
    %2623 = vmatpush2.bf16.msra.mxu0 %v2374
    %2624 = vmatprep.subr.bf16.mxu0 %v2373
    %2625 = vmatpush2.bf16.msra.mxu0 %v2372
    %2626 = vmatprep.subr.bf16.mxu0 %v2371
    %2627 = vmatpush2.bf16.msra.mxu0 %v2370
    %2628 = vmatprep.subr.bf16.mxu0 %v2369
    %2629 = vmatpush2.bf16.msra.mxu0 %v2368
    %2630 = vmatprep.subr.bf16.mxu0 %v2367
    %2631 = vmatpush2.bf16.msra.mxu0 %v2366
    %2632 = vmatprep.subr.bf16.mxu0 %v2365
    %2633 = vmatpush2.bf16.msra.mxu0 %v2364
    %2634 = vmatprep.subr.bf16.mxu0 %v2363
    %2635 = vmatpush2.bf16.msra.mxu0 %v2362
    %2636 = vmatprep.mubr.bf16.mxu0 %v200
    %2637 = vmatmul.mubr.bf16.gmra.mxu0 %v199
    %v2638 = vpop.f32.mrf.mxu0
    %v2639 = vadd.f32 %v2586, %v2638
    %v2640 = vpop.f32.mrf.mxu0
    %v2641 = vadd.f32 %v2588, %v2640
    %v2642 = vpop.f32.mrf.mxu0
    %v2643 = vadd.f32 %v2590, %v2642
    %v2644 = vpop.f32.mrf.mxu0
    %v2645 = vadd.f32 %v2592, %v2644
    %2646 = vmatprep.mubr.bf16.mxu0 %v207
    %2647 = vmatmul.mubr.bf16.gmra.mxu0 %v206
    %v2648 = vpop.f32.mrf.mxu0
    %v2649 = vadd.f32 %v2596, %v2648
    %v2650 = vpop.f32.mrf.mxu0
    %v2651 = vadd.f32 %v2598, %v2650
    %v2652 = vpop.f32.mrf.mxu0
    %v2653 = vadd.f32 %v2600, %v2652
    %v2654 = vpop.f32.mrf.mxu0
    %v2655 = vadd.f32 %v2602, %v2654
    %2656 = vdwg.mxu0
    %2657 = vmatprep.subr.bf16.mxu0 0
    %2658 = vmatpush1.bf16.msra.mxu0 0
    %2659 = vmatprep.subr.bf16.mxu0 0
    %2660 = vmatpush1.bf16.msra.mxu0 0
    %2661 = vmatprep.subr.bf16.mxu0 %v2389
    %2662 = vmatpush1.bf16.msra.mxu0 %v2388
    %2663 = vmatprep.subr.bf16.mxu0 %v2387
    %2664 = vmatpush1.bf16.msra.mxu0 %v2386
    %2665 = vmatprep.subr.bf16.mxu0 %v2385
    %2666 = vmatpush1.bf16.msra.mxu0 %v2384
    %2667 = vmatprep.subr.bf16.mxu0 %v2383
    %2668 = vmatpush1.bf16.msra.mxu0 %v2382
    %2669 = vmatprep.subr.bf16.mxu0 %v2381
    %2670 = vmatpush1.bf16.msra.mxu0 %v2380
    %2671 = vmatprep.subr.bf16.mxu0 %v2379
    %2672 = vmatpush1.bf16.msra.mxu0 %v2378
    %2673 = vmatprep.subr.bf16.mxu0 0
    %2674 = vmatpush2.bf16.msra.mxu0 0
    %2675 = vmatprep.subr.bf16.mxu0 0
    %2676 = vmatpush2.bf16.msra.mxu0 0
    %2677 = vmatprep.subr.bf16.mxu0 0
    %2678 = vmatpush2.bf16.msra.mxu0 0
    %2679 = vmatprep.subr.bf16.mxu0 0
    %2680 = vmatpush2.bf16.msra.mxu0 0
    %2681 = vmatprep.subr.bf16.mxu0 0
    %2682 = vmatpush2.bf16.msra.mxu0 0
    %2683 = vmatprep.subr.bf16.mxu0 0
    %2684 = vmatpush2.bf16.msra.mxu0 0
    %2685 = vmatprep.subr.bf16.mxu0 0
    %2686 = vmatpush2.bf16.msra.mxu0 0
    %2687 = vmatprep.subr.bf16.mxu0 0
    %2688 = vmatpush2.bf16.msra.mxu0 0
    %2689 = vmatprep.mubr.bf16.mxu0 0
    %2690 = vmatmul.mubr.bf16.gmra.mxu0 %v763
    %v2691 = vpop.f32.mrf.mxu0
    %v2692 = vadd.f32 %v2639, %v2691
    %v2693 = vpop.f32.mrf.mxu0
    %v2694 = vadd.f32 %v2641, %v2693
    %v2695 = vpop.f32.mrf.mxu0
    %v2696 = vadd.f32 %v2643, %v2695
    %v2697 = vpop.f32.mrf.mxu0
    %v2698 = vadd.f32 %v2645, %v2697
    %2699 = vmatprep.mubr.bf16.mxu0 0
    %2700 = vmatmul.mubr.bf16.gmra.mxu0 %v766
    %v2701 = vpop.f32.mrf.mxu0
    %v2702 = vadd.f32 %v2649, %v2701
    %v2703 = vpop.f32.mrf.mxu0
    %v2704 = vadd.f32 %v2651, %v2703
    %v2705 = vpop.f32.mrf.mxu0
    %v2706 = vadd.f32 %v2653, %v2705
    %v2707 = vpop.f32.mrf.mxu0
    %v2708 = vadd.f32 %v2655, %v2707
    %2709 = vdwg.mxu0
    %v2710 = vmax.f32 %v1841, %v2692
    %v2711 = vmax.f32 %v1842, %v2694
    %v2712 = vmax.f32 %v1843, %v2696
    %v2713 = vmax.f32 %v1844, %v2698
    %v2714 = vmax.f32 %v1845, %v2702
    %v2715 = vmax.f32 %v1846, %v2704
    %v2716 = vmax.f32 %v1847, %v2706
    %v2717 = vmax.f32 %v1848, %v2708
    %s2718 = scalar_lea.vmem %s1, 2592
    %v2719 = vld [vmem:[%s2718] sm:$0xff]
    %v2720 = vld [vmem:[%s2718 + $0x8] sm:$0xff]
    %v2721 = vld [vmem:[%s2718 + $0x10] sm:$0xff]
    %v2722 = vld [vmem:[%s2718 + $0x18] sm:$0xff]
    %v2723 = vld [vmem:[%s2718 + $0x20] sm:$0xff]
    %v2724 = vld [vmem:[%s2718 + $0x28] sm:$0xff]
    %v2725 = vld [vmem:[%s2718 + $0x30] sm:$0xff]
    %v2726 = vld [vmem:[%s2718 + $0x38] sm:$0xff]
    %v2727 = vld [vmem:[%s2718 + $0x40] sm:$0xff]
    %v2728 = vld [vmem:[%s2718 + $0x48] sm:$0xff]
    %v2729 = vld [vmem:[%s2718 + $0x50] sm:$0xff]
    %v2730 = vld [vmem:[%s2718 + $0x58] sm:$0xff]
    %v2731 = vld [vmem:[%s2718 + $0x60] sm:$0xff]
    %v2732 = vld [vmem:[%s2718 + $0x68] sm:$0xff]
    %v2733 = vld [vmem:[%s2718 + $0x70] sm:$0xff]
    %v2734 = vld [vmem:[%s2718 + $0x78] sm:$0xff]
    %v2735 = vld [vmem:[%s2718 + $0x80] sm:$0xff]
    %v2736 = vld [vmem:[%s2718 + $0x88] sm:$0xff]
    %v2737 = vld [vmem:[%s2718 + $0x90] sm:$0xff]
    %v2738 = vld [vmem:[%s2718 + $0x98] sm:$0xff]
    %v2739 = vld [vmem:[%s2718 + $0xa0] sm:$0xff]
    %v2740 = vld [vmem:[%s2718 + $0xa8] sm:$0xff]
    %v2741 = vld [vmem:[%s2718 + $0xb0] sm:$0xff]
    %v2742 = vld [vmem:[%s2718 + $0xb8] sm:$0xff]
    %v2743 = vld [vmem:[%s2718 + $0xc0] sm:$0xff]
    %v2744 = vld [vmem:[%s2718 + $0xc8] sm:$0xff]
    %v2745 = vld [vmem:[%s2718 + $0xd0] sm:$0xff]
    %v2746 = vld [vmem:[%s2718 + $0xd8] sm:$0xff]
    %v2747 = vld [vmem:[%s2718 + $0xe0] sm:$0xff]
    %v2748 = vld [vmem:[%s2718 + $0xe8] sm:$0xff]
    %v2749 = vld [vmem:[%s2718 + $0xf0] sm:$0xff]
    %v2750 = vld [vmem:[%s2718 + $0xf8] sm:$0xff]
    %v2751 = vld [vmem:[%s2718 + $0x100] sm:$0xff]
    %v2752 = vld [vmem:[%s2718 + $0x108] sm:$0xff]
    %v2753 = vld [vmem:[%s2718 + $0x110] sm:$0xff]
    %v2754 = vld [vmem:[%s2718 + $0x118] sm:$0xff]
    %v2755 = vld [vmem:[%s2718 + $0x120] sm:$0xff]
    %v2756 = vld [vmem:[%s2718 + $0x128] sm:$0xff]
    %v2757 = vld [vmem:[%s2718 + $0x130] sm:$0xff]
    %v2758 = vld [vmem:[%s2718 + $0x138] sm:$0xff]
    %v2759 = vld [vmem:[%s2718 + $0x140] sm:$0xff]
    %v2760 = vld [vmem:[%s2718 + $0x148] sm:$0xff]
    %v2761 = vld [vmem:[%s2718 + $0x150] sm:$0xff]
    %v2762 = vld [vmem:[%s2718 + $0x158] sm:$0xff]
    %v2763 = vld [vmem:[%s2718 + $0x160] sm:$0xff]
    %v2764 = vld [vmem:[%s2718 + $0x168] sm:$0xff]
    %v2765 = vld [vmem:[%s2718 + $0x170] sm:$0xff]
    %v2766 = vld [vmem:[%s2718 + $0x178] sm:$0xff]
    %v2767 = vld [vmem:[%s2718 + $0x180] sm:$0xff]
    %v2768 = vld [vmem:[%s2718 + $0x188] sm:$0xff]
    %v2769 = vld [vmem:[%s2718 + $0x190] sm:$0xff]
    %v2770 = vld [vmem:[%s2718 + $0x198] sm:$0xff]
    %v2771 = vld [vmem:[%s2718 + $0x1a0] sm:$0xff]
    %v2772 = vld [vmem:[%s2718 + $0x1a8] sm:$0xff]
    %v2773 = vld [vmem:[%s2718 + $0x1b0] sm:$0xff]
    %v2774 = vld [vmem:[%s2718 + $0x1b8] sm:$0xff]
    %v2775 = vld [vmem:[%s2718 + $0x1c0] sm:$0xff]
    %v2776 = vld [vmem:[%s2718 + $0x1c8] sm:$0xff]
    %v2777 = vld [vmem:[%s2718 + $0x1d0] sm:$0xff]
    %v2778 = vld [vmem:[%s2718 + $0x1d8] sm:$0xff]
    %v2779 = vld [vmem:[%s2718 + $0x1e0] sm:$0xff]
    %v2780 = vld [vmem:[%s2718 + $0x1e8] sm:$0xff]
    %v2781 = vld [vmem:[%s2718 + $0x1f0] sm:$0xff]
    %v2782 = vld [vmem:[%s2718 + $0x1f8] sm:$0xff]
    %v2783 = vld [vmem:[%s2718 + $0x200] sm:$0xff]
    %v2784 = vld [vmem:[%s2718 + $0x208] sm:$0xff]
    %v2785 = vld [vmem:[%s2718 + $0x210] sm:$0xff]
    %v2786 = vld [vmem:[%s2718 + $0x218] sm:$0xff]
    %v2787 = vld [vmem:[%s2718 + $0x220] sm:$0xff]
    %v2788 = vld [vmem:[%s2718 + $0x228] sm:$0xff]
    %v2789 = vld [vmem:[%s2718 + $0x230] sm:$0xff]
    %v2790 = vld [vmem:[%s2718 + $0x238] sm:$0xff]
    %v2791 = vld [vmem:[%s2718 + $0x240] sm:$0xff]
    %v2792 = vld [vmem:[%s2718 + $0x248] sm:$0xff]
    %v2793 = vld [vmem:[%s2718 + $0x250] sm:$0xff]
    %v2794 = vld [vmem:[%s2718 + $0x258] sm:$0xff]
    %v2795 = vld [vmem:[%s2718 + $0x260] sm:$0xff]
    %v2796 = vld [vmem:[%s2718 + $0x268] sm:$0xff]
    %v2797 = vld [vmem:[%s2718 + $0x270] sm:$0xff]
    %v2798 = vld [vmem:[%s2718 + $0x278] sm:$0xff]
    %v2799 = vld [vmem:[%s2718 + $0x280] sm:$0xff]
    %v2800 = vld [vmem:[%s2718 + $0x288] sm:$0xff]
    %v2801 = vld [vmem:[%s2718 + $0x290] sm:$0xff]
    %v2802 = vld [vmem:[%s2718 + $0x298] sm:$0xff]
    %v2803 = vld [vmem:[%s2718 + $0x2a0] sm:$0xff]
    %v2804 = vld [vmem:[%s2718 + $0x2a8] sm:$0xff]
    %v2805 = vld [vmem:[%s2718 + $0x2b0] sm:$0xff]
    %v2806 = vld [vmem:[%s2718 + $0x2b8] sm:$0xff]
    %v2807 = vld [vmem:[%s2718 + $0x2c0] sm:$0xff]
    %v2808 = vld [vmem:[%s2718 + $0x2c8] sm:$0xff]
    %v2809 = vld [vmem:[%s2718 + $0x2d0] sm:$0xff]
    %v2810 = vld [vmem:[%s2718 + $0x2d8] sm:$0xff]
    %v2811 = vld [vmem:[%s2718 + $0x2e0] sm:$0xff]
    %v2812 = vld [vmem:[%s2718 + $0x2e8] sm:$0xff]
    %v2813 = vld [vmem:[%s2718 + $0x2f0] sm:$0xff]
    %v2814 = vld [vmem:[%s2718 + $0x2f8] sm:$0xff]
    %v2815 = vld [vmem:[%s2718 + $0x300] sm:$0xff]
    %v2816 = vld [vmem:[%s2718 + $0x308] sm:$0xff]
    %v2817 = vld [vmem:[%s2718 + $0x310] sm:$0xff]
    %v2818 = vld [vmem:[%s2718 + $0x318] sm:$0xff]
    %v2819 = vld [vmem:[%s2718 + $0x320] sm:$0xff]
    %v2820 = vld [vmem:[%s2718 + $0x328] sm:$0xff]
    %v2821 = vld [vmem:[%s2718 + $0x330] sm:$0xff]
    %v2822 = vld [vmem:[%s2718 + $0x338] sm:$0xff]
    %v2823 = vld [vmem:[%s2718 + $0x340] sm:$0xff]
    %v2824 = vld [vmem:[%s2718 + $0x348] sm:$0xff]
    %v2825 = vld [vmem:[%s2718 + $0x350] sm:$0xff]
    %v2826 = vld [vmem:[%s2718 + $0x358] sm:$0xff]
    %v2935 = vunpack.c.l.b16 %v2719
    %v2936 = vunpack.c.h.b16 %v2719
    %v2937 = vunpack.c.l.b16 %v2720
    %v2938 = vunpack.c.h.b16 %v2720
    %v2939 = vunpack.c.l.b16 %v2721
    %v2940 = vunpack.c.h.b16 %v2721
    %v2941 = vunpack.c.l.b16 %v2722
    %v2942 = vunpack.c.h.b16 %v2722
    %v2943 = vunpack.c.l.b16 %v2723
    %v2944 = vunpack.c.h.b16 %v2723
    %v2945 = vunpack.c.l.b16 %v2724
    %v2946 = vunpack.c.h.b16 %v2724
    %v2947 = vunpack.c.l.b16 %v2725
    %v2948 = vunpack.c.h.b16 %v2725
    %v2949 = vunpack.c.l.b16 %v2726
    %v2950 = vunpack.c.h.b16 %v2726
    %v2951 = vunpack.c.l.b16 %v2727
    %v2952 = vunpack.c.h.b16 %v2727
    %v2953 = vunpack.c.l.b16 %v2728
    %v2954 = vunpack.c.h.b16 %v2728
    %v2955 = vunpack.c.l.b16 %v2729
    %v2956 = vunpack.c.h.b16 %v2729
    %v2957 = vunpack.c.l.b16 %v2730
    %v2958 = vunpack.c.h.b16 %v2730
    %v2959 = vunpack.c.l.b16 %v2731
    %v2960 = vunpack.c.h.b16 %v2731
    %v2961 = vunpack.c.l.b16 %v2732
    %v2962 = vunpack.c.h.b16 %v2732
    %v2963 = vunpack.c.l.b16 %v2733
    %v2964 = vunpack.c.h.b16 %v2733
    %v2965 = vunpack.c.l.b16 %v2734
    %v2966 = vunpack.c.h.b16 %v2734
    %v2967 = vunpack.c.l.b16 %v2735
    %v2968 = vunpack.c.h.b16 %v2735
    %v2969 = vunpack.c.l.b16 %v2736
    %v2970 = vunpack.c.h.b16 %v2736
    %v2971 = vunpack.c.l.b16 %v2737
    %v2972 = vunpack.c.h.b16 %v2737
    %v2973 = vunpack.c.l.b16 %v2738
    %v2974 = vunpack.c.h.b16 %v2738
    %v2975 = vunpack.c.l.b16 %v2739
    %v2976 = vunpack.c.h.b16 %v2739
    %v2977 = vunpack.c.l.b16 %v2740
    %v2978 = vunpack.c.h.b16 %v2740
    %v2979 = vunpack.c.l.b16 %v2741
    %v2980 = vunpack.c.h.b16 %v2741
    %v2981 = vunpack.c.l.b16 %v2742
    %v2982 = vunpack.c.h.b16 %v2742
    %v2983 = vunpack.c.l.b16 %v2743
    %v2984 = vunpack.c.h.b16 %v2743
    %v2985 = vunpack.c.l.b16 %v2744
    %v2986 = vunpack.c.h.b16 %v2744
    %v2987 = vunpack.c.l.b16 %v2745
    %v2988 = vunpack.c.h.b16 %v2745
    %v2989 = vunpack.c.l.b16 %v2746
    %v2990 = vunpack.c.h.b16 %v2746
    %v2991 = vunpack.c.l.b16 %v2747
    %v2992 = vunpack.c.h.b16 %v2747
    %v2993 = vunpack.c.l.b16 %v2748
    %v2994 = vunpack.c.h.b16 %v2748
    %v2995 = vunpack.c.l.b16 %v2749
    %v2996 = vunpack.c.h.b16 %v2749
    %v2997 = vunpack.c.l.b16 %v2750
    %v2998 = vunpack.c.h.b16 %v2750
    %v2999 = vunpack.c.l.b16 %v2751
    %v3000 = vunpack.c.h.b16 %v2751
    %v3001 = vunpack.c.l.b16 %v2752
    %v3002 = vunpack.c.h.b16 %v2752
    %v3003 = vunpack.c.l.b16 %v2753
    %v3004 = vunpack.c.h.b16 %v2753
    %v3005 = vunpack.c.l.b16 %v2754
    %v3006 = vunpack.c.h.b16 %v2754
    %v3007 = vunpack.c.l.b16 %v2755
    %v3008 = vunpack.c.h.b16 %v2755
    %v3009 = vunpack.c.l.b16 %v2756
    %v3010 = vunpack.c.h.b16 %v2756
    %v3011 = vunpack.c.l.b16 %v2757
    %v3012 = vunpack.c.h.b16 %v2757
    %v3013 = vunpack.c.l.b16 %v2758
    %v3014 = vunpack.c.h.b16 %v2758
    %v3015 = vunpack.c.l.b16 %v2759
    %v3016 = vunpack.c.h.b16 %v2759
    %v3017 = vunpack.c.l.b16 %v2760
    %v3018 = vunpack.c.h.b16 %v2760
    %v3019 = vunpack.c.l.b16 %v2761
    %v3020 = vunpack.c.h.b16 %v2761
    %v3021 = vunpack.c.l.b16 %v2762
    %v3022 = vunpack.c.h.b16 %v2762
    %v3023 = vunpack.c.l.b16 %v2763
    %v3024 = vunpack.c.h.b16 %v2763
    %v3025 = vunpack.c.l.b16 %v2764
    %v3026 = vunpack.c.h.b16 %v2764
    %v3027 = vunpack.c.l.b16 %v2765
    %v3028 = vunpack.c.h.b16 %v2765
    %v3029 = vunpack.c.l.b16 %v2766
    %v3030 = vunpack.c.h.b16 %v2766
    %v3031 = vunpack.c.l.b16 %v2767
    %v3032 = vunpack.c.h.b16 %v2767
    %v3033 = vunpack.c.l.b16 %v2768
    %v3034 = vunpack.c.h.b16 %v2768
    %v3035 = vunpack.c.l.b16 %v2769
    %v3036 = vunpack.c.h.b16 %v2769
    %v3037 = vunpack.c.l.b16 %v2770
    %v3038 = vunpack.c.h.b16 %v2770
    %v3039 = vunpack.c.l.b16 %v2771
    %v3040 = vunpack.c.h.b16 %v2771
    %v3041 = vunpack.c.l.b16 %v2772
    %v3042 = vunpack.c.h.b16 %v2772
    %v3043 = vunpack.c.l.b16 %v2773
    %v3044 = vunpack.c.h.b16 %v2773
    %v3045 = vunpack.c.l.b16 %v2774
    %v3046 = vunpack.c.h.b16 %v2774
    %v3047 = vunpack.c.l.b16 %v2775
    %v3048 = vunpack.c.h.b16 %v2775
    %v3049 = vunpack.c.l.b16 %v2776
    %v3050 = vunpack.c.h.b16 %v2776
    %v3051 = vunpack.c.l.b16 %v2777
    %v3052 = vunpack.c.h.b16 %v2777
    %v3053 = vunpack.c.l.b16 %v2778
    %v3054 = vunpack.c.h.b16 %v2778
    %v3055 = vunpack.c.l.b16 %v2779
    %v3056 = vunpack.c.h.b16 %v2779
    %v3057 = vunpack.c.l.b16 %v2780
    %v3058 = vunpack.c.h.b16 %v2780
    %v3059 = vunpack.c.l.b16 %v2781
    %v3060 = vunpack.c.h.b16 %v2781
    %v3061 = vunpack.c.l.b16 %v2782
    %v3062 = vunpack.c.h.b16 %v2782
    %v3063 = vunpack.c.l.b16 %v2783
    %v3064 = vunpack.c.h.b16 %v2783
    %v3065 = vunpack.c.l.b16 %v2784
    %v3066 = vunpack.c.h.b16 %v2784
    %v3067 = vunpack.c.l.b16 %v2785
    %v3068 = vunpack.c.h.b16 %v2785
    %v3069 = vunpack.c.l.b16 %v2786
    %v3070 = vunpack.c.h.b16 %v2786
    %v3071 = vunpack.c.l.b16 %v2787
    %v3072 = vunpack.c.h.b16 %v2787
    %v3073 = vunpack.c.l.b16 %v2788
    %v3074 = vunpack.c.h.b16 %v2788
    %v3075 = vunpack.c.l.b16 %v2789
    %v3076 = vunpack.c.h.b16 %v2789
    %v3077 = vunpack.c.l.b16 %v2790
    %v3078 = vunpack.c.h.b16 %v2790
    %v3079 = vunpack.c.l.b16 %v2791
    %v3080 = vunpack.c.h.b16 %v2791
    %v3081 = vunpack.c.l.b16 %v2792
    %v3082 = vunpack.c.h.b16 %v2792
    %v3083 = vunpack.c.l.b16 %v2793
    %v3084 = vunpack.c.h.b16 %v2793
    %v3085 = vunpack.c.l.b16 %v2794
    %v3086 = vunpack.c.h.b16 %v2794
    %v3087 = vunpack.c.l.b16 %v2795
    %v3088 = vunpack.c.h.b16 %v2795
    %v3089 = vunpack.c.l.b16 %v2796
    %v3090 = vunpack.c.h.b16 %v2796
    %v3091 = vunpack.c.l.b16 %v2797
    %v3092 = vunpack.c.h.b16 %v2797
    %v3093 = vunpack.c.l.b16 %v2798
    %v3094 = vunpack.c.h.b16 %v2798
    %v3095 = vunpack.c.l.b16 %v2799
    %v3096 = vunpack.c.h.b16 %v2799
    %v3097 = vunpack.c.l.b16 %v2800
    %v3098 = vunpack.c.h.b16 %v2800
    %v3099 = vunpack.c.l.b16 %v2801
    %v3100 = vunpack.c.h.b16 %v2801
    %v3101 = vunpack.c.l.b16 %v2802
    %v3102 = vunpack.c.h.b16 %v2802
    %v3103 = vunpack.c.l.b16 %v2803
    %v3104 = vunpack.c.h.b16 %v2803
    %v3105 = vunpack.c.l.b16 %v2804
    %v3106 = vunpack.c.h.b16 %v2804
    %v3107 = vunpack.c.l.b16 %v2805
    %v3108 = vunpack.c.h.b16 %v2805
    %v3109 = vunpack.c.l.b16 %v2806
    %v3110 = vunpack.c.h.b16 %v2806
    %v3111 = vunpack.c.l.b16 %v2807
    %v3112 = vunpack.c.h.b16 %v2807
    %v3113 = vunpack.c.l.b16 %v2808
    %v3114 = vunpack.c.h.b16 %v2808
    %v3115 = vunpack.c.l.b16 %v2809
    %v3116 = vunpack.c.h.b16 %v2809
    %v3117 = vunpack.c.l.b16 %v2810
    %v3118 = vunpack.c.h.b16 %v2810
    %v3119 = vunpack.c.l.b16 %v2811
    %v3120 = vunpack.c.h.b16 %v2811
    %v3121 = vunpack.c.l.b16 %v2812
    %v3122 = vunpack.c.h.b16 %v2812
    %v3123 = vunpack.c.l.b16 %v2813
    %v3124 = vunpack.c.h.b16 %v2813
    %v3125 = vunpack.c.l.b16 %v2814
    %v3126 = vunpack.c.h.b16 %v2814
    %v3127 = vunpack.c.l.b16 %v2815
    %v3128 = vunpack.c.h.b16 %v2815
    %v3129 = vunpack.c.l.b16 %v2816
    %v3130 = vunpack.c.h.b16 %v2816
    %v3131 = vunpack.c.l.b16 %v2817
    %v3132 = vunpack.c.h.b16 %v2817
    %v3133 = vunpack.c.l.b16 %v2818
    %v3134 = vunpack.c.h.b16 %v2818
    %v3135 = vunpack.c.l.b16 %v2819
    %v3136 = vunpack.c.h.b16 %v2819
    %v3137 = vunpack.c.l.b16 %v2820
    %v3138 = vunpack.c.h.b16 %v2820
    %v3139 = vunpack.c.l.b16 %v2821
    %v3140 = vunpack.c.h.b16 %v2821
    %v3141 = vunpack.c.l.b16 %v2822
    %v3142 = vunpack.c.h.b16 %v2822
    %v3143 = vunpack.c.l.b16 %v2823
    %v3144 = vunpack.c.h.b16 %v2823
    %v3145 = vunpack.c.l.b16 %v2824
    %v3146 = vunpack.c.h.b16 %v2824
    %v3147 = vunpack.c.l.b16 %v2825
    %v3148 = vunpack.c.h.b16 %v2825
    %v3149 = vunpack.c.l.b16 %v2826
    %v3150 = vunpack.c.h.b16 %v2826
    %v3151 = vpack.c.b16 %v2937, %v2935
    %v3152 = vpack.c.b16 %v2938, %v2936
    %v3153 = vpack.c.b16 %v2941, %v2939
    %v3154 = vpack.c.b16 %v2942, %v2940
    %v3155 = vpack.c.b16 %v2945, %v2943
    %v3156 = vpack.c.b16 %v2946, %v2944
    %v3157 = vpack.c.b16 %v2949, %v2947
    %v3158 = vpack.c.b16 %v2950, %v2948
    %v3159 = vpack.c.b16 %v2953, %v2951
    %v3160 = vpack.c.b16 %v2954, %v2952
    %v3161 = vpack.c.b16 %v2957, %v2955
    %v3162 = vpack.c.b16 %v2958, %v2956
    %v3163 = vpack.c.b16 %v2961, %v2959
    %v3164 = vpack.c.b16 %v2962, %v2960
    %v3165 = vpack.c.b16 %v2965, %v2963
    %v3166 = vpack.c.b16 %v2966, %v2964
    %v3167 = vpack.c.b16 %v2969, %v2967
    %v3168 = vpack.c.b16 %v2970, %v2968
    %v3169 = vpack.c.b16 %v2973, %v2971
    %v3170 = vpack.c.b16 %v2974, %v2972
    %v3171 = vpack.c.b16 %v2977, %v2975
    %v3172 = vpack.c.b16 %v2978, %v2976
    %v3173 = vpack.c.b16 %v2981, %v2979
    %v3174 = vpack.c.b16 %v2982, %v2980
    %v3175 = vpack.c.b16 %v2985, %v2983
    %v3176 = vpack.c.b16 %v2986, %v2984
    %v3177 = vpack.c.b16 %v2989, %v2987
    %v3178 = vpack.c.b16 %v2990, %v2988
    %v3179 = vpack.c.b16 %v2993, %v2991
    %v3180 = vpack.c.b16 %v2994, %v2992
    %v3181 = vpack.c.b16 %v2997, %v2995
    %v3182 = vpack.c.b16 %v2998, %v2996
    %v3183 = vpack.c.b16 %v3001, %v2999
    %v3184 = vpack.c.b16 %v3002, %v3000
    %v3185 = vpack.c.b16 %v3005, %v3003
    %v3186 = vpack.c.b16 %v3006, %v3004
    %v3187 = vpack.c.b16 %v3009, %v3007
    %v3188 = vpack.c.b16 %v3010, %v3008
    %v3189 = vpack.c.b16 %v3013, %v3011
    %v3190 = vpack.c.b16 %v3014, %v3012
    %v3191 = vpack.c.b16 %v3017, %v3015
    %v3192 = vpack.c.b16 %v3018, %v3016
    %v3193 = vpack.c.b16 %v3021, %v3019
    %v3194 = vpack.c.b16 %v3022, %v3020
    %v3195 = vpack.c.b16 %v3025, %v3023
    %v3196 = vpack.c.b16 %v3026, %v3024
    %v3197 = vpack.c.b16 %v3029, %v3027
    %v3198 = vpack.c.b16 %v3030, %v3028
    %v3199 = vpack.c.b16 %v3033, %v3031
    %v3200 = vpack.c.b16 %v3034, %v3032
    %v3201 = vpack.c.b16 %v3037, %v3035
    %v3202 = vpack.c.b16 %v3038, %v3036
    %v3203 = vpack.c.b16 %v3041, %v3039
    %v3204 = vpack.c.b16 %v3042, %v3040
    %v3205 = vpack.c.b16 %v3045, %v3043
    %v3206 = vpack.c.b16 %v3046, %v3044
    %v3207 = vpack.c.b16 %v3049, %v3047
    %v3208 = vpack.c.b16 %v3050, %v3048
    %v3209 = vpack.c.b16 %v3053, %v3051
    %v3210 = vpack.c.b16 %v3054, %v3052
    %v3211 = vpack.c.b16 %v3057, %v3055
    %v3212 = vpack.c.b16 %v3058, %v3056
    %v3213 = vpack.c.b16 %v3061, %v3059
    %v3214 = vpack.c.b16 %v3062, %v3060
    %v3215 = vpack.c.b16 %v3065, %v3063
    %v3216 = vpack.c.b16 %v3066, %v3064
    %v3217 = vpack.c.b16 %v3069, %v3067
    %v3218 = vpack.c.b16 %v3070, %v3068
    %v3219 = vpack.c.b16 %v3073, %v3071
    %v3220 = vpack.c.b16 %v3074, %v3072
    %v3221 = vpack.c.b16 %v3077, %v3075
    %v3222 = vpack.c.b16 %v3078, %v3076
    %v3223 = vpack.c.b16 %v3081, %v3079
    %v3224 = vpack.c.b16 %v3082, %v3080
    %v3225 = vpack.c.b16 %v3085, %v3083
    %v3226 = vpack.c.b16 %v3086, %v3084
    %v3227 = vpack.c.b16 %v3089, %v3087
    %v3228 = vpack.c.b16 %v3090, %v3088
    %v3229 = vpack.c.b16 %v3093, %v3091
    %v3230 = vpack.c.b16 %v3094, %v3092
    %v3231 = vpack.c.b16 %v3097, %v3095
    %v3232 = vpack.c.b16 %v3098, %v3096
    %v3233 = vpack.c.b16 %v3101, %v3099
    %v3234 = vpack.c.b16 %v3102, %v3100
    %v3235 = vpack.c.b16 %v3105, %v3103
    %v3236 = vpack.c.b16 %v3106, %v3104
    %v3237 = vpack.c.b16 %v3109, %v3107
    %v3238 = vpack.c.b16 %v3110, %v3108
    %v3239 = vpack.c.b16 %v3113, %v3111
    %v3240 = vpack.c.b16 %v3114, %v3112
    %v3241 = vpack.c.b16 %v3117, %v3115
    %v3242 = vpack.c.b16 %v3118, %v3116
    %v3243 = vpack.c.b16 %v3121, %v3119
    %v3244 = vpack.c.b16 %v3122, %v3120
    %v3245 = vpack.c.b16 %v3125, %v3123
    %v3246 = vpack.c.b16 %v3126, %v3124
    %v3247 = vpack.c.b16 %v3129, %v3127
    %v3248 = vpack.c.b16 %v3130, %v3128
    %v3249 = vpack.c.b16 %v3133, %v3131
    %v3250 = vpack.c.b16 %v3134, %v3132
    %v3251 = vpack.c.b16 %v3137, %v3135
    %v3252 = vpack.c.b16 %v3138, %v3136
    %v3253 = vpack.c.b16 %v3141, %v3139
    %v3254 = vpack.c.b16 %v3142, %v3140
    %v3255 = vpack.c.b16 %v3145, %v3143
    %v3256 = vpack.c.b16 %v3146, %v3144
    %v3257 = vpack.c.b16 %v3149, %v3147
    %v3258 = vpack.c.b16 %v3150, %v3148
    %3367 = vmatprep.subr.bf16.mxu0 %v3166
    %3368 = vmatpush1.bf16.msra.mxu0 %v3165
    %3369 = vmatprep.subr.bf16.mxu0 %v3164
    %3370 = vmatpush1.bf16.msra.mxu0 %v3163
    %3371 = vmatprep.subr.bf16.mxu0 %v3162
    %3372 = vmatpush1.bf16.msra.mxu0 %v3161
    %3373 = vmatprep.subr.bf16.mxu0 %v3160
    %3374 = vmatpush1.bf16.msra.mxu0 %v3159
    %3375 = vmatprep.subr.bf16.mxu0 %v3158
    %3376 = vmatpush1.bf16.msra.mxu0 %v3157
    %3377 = vmatprep.subr.bf16.mxu0 %v3156
    %3378 = vmatpush1.bf16.msra.mxu0 %v3155
    %3379 = vmatprep.subr.bf16.mxu0 %v3154
    %3380 = vmatpush1.bf16.msra.mxu0 %v3153
    %3381 = vmatprep.subr.bf16.mxu0 %v3152
    %3382 = vmatpush1.bf16.msra.mxu0 %v3151
    %3383 = vmatprep.subr.bf16.mxu0 %v3182
    %3384 = vmatpush2.bf16.msra.mxu0 %v3181
    %3385 = vmatprep.subr.bf16.mxu0 %v3180
    %3386 = vmatpush2.bf16.msra.mxu0 %v3179
    %3387 = vmatprep.subr.bf16.mxu0 %v3178
    %3388 = vmatpush2.bf16.msra.mxu0 %v3177
    %3389 = vmatprep.subr.bf16.mxu0 %v3176
    %3390 = vmatpush2.bf16.msra.mxu0 %v3175
    %3391 = vmatprep.subr.bf16.mxu0 %v3174
    %3392 = vmatpush2.bf16.msra.mxu0 %v3173
    %3393 = vmatprep.subr.bf16.mxu0 %v3172
    %3394 = vmatpush2.bf16.msra.mxu0 %v3171
    %3395 = vmatprep.subr.bf16.mxu0 %v3170
    %3396 = vmatpush2.bf16.msra.mxu0 %v3169
    %3397 = vmatprep.subr.bf16.mxu0 %v3168
    %3398 = vmatpush2.bf16.msra.mxu0 %v3167
    %3399 = vmatprep.mubr.bf16.mxu0 %v196
    %3400 = vmatmul.mubr.bf16.gmra.mxu0 %v195
    %v3401 = vpop.f32.mrf.mxu0
    %v3402 = vadd.f32 0.0, %v3401
    %v3403 = vpop.f32.mrf.mxu0
    %v3404 = vadd.f32 0.0, %v3403
    %v3405 = vpop.f32.mrf.mxu0
    %v3406 = vadd.f32 0.0, %v3405
    %v3407 = vpop.f32.mrf.mxu0
    %v3408 = vadd.f32 0.0, %v3407
    %3409 = vmatprep.mubr.bf16.mxu0 %v203
    %3410 = vmatmul.mubr.bf16.gmra.mxu0 %v202
    %v3411 = vpop.f32.mrf.mxu0
    %v3412 = vadd.f32 0.0, %v3411
    %v3413 = vpop.f32.mrf.mxu0
    %v3414 = vadd.f32 0.0, %v3413
    %v3415 = vpop.f32.mrf.mxu0
    %v3416 = vadd.f32 0.0, %v3415
    %v3417 = vpop.f32.mrf.mxu0
    %v3418 = vadd.f32 0.0, %v3417
    %3419 = vdwg.mxu0
    %3420 = vmatprep.subr.bf16.mxu0 %v3198
    %3421 = vmatpush1.bf16.msra.mxu0 %v3197
    %3422 = vmatprep.subr.bf16.mxu0 %v3196
    %3423 = vmatpush1.bf16.msra.mxu0 %v3195
    %3424 = vmatprep.subr.bf16.mxu0 %v3194
    %3425 = vmatpush1.bf16.msra.mxu0 %v3193
    %3426 = vmatprep.subr.bf16.mxu0 %v3192
    %3427 = vmatpush1.bf16.msra.mxu0 %v3191
    %3428 = vmatprep.subr.bf16.mxu0 %v3190
    %3429 = vmatpush1.bf16.msra.mxu0 %v3189
    %3430 = vmatprep.subr.bf16.mxu0 %v3188
    %3431 = vmatpush1.bf16.msra.mxu0 %v3187
    %3432 = vmatprep.subr.bf16.mxu0 %v3186
    %3433 = vmatpush1.bf16.msra.mxu0 %v3185
    %3434 = vmatprep.subr.bf16.mxu0 %v3184
    %3435 = vmatpush1.bf16.msra.mxu0 %v3183
    %3436 = vmatprep.subr.bf16.mxu0 %v3214
    %3437 = vmatpush2.bf16.msra.mxu0 %v3213
    %3438 = vmatprep.subr.bf16.mxu0 %v3212
    %3439 = vmatpush2.bf16.msra.mxu0 %v3211
    %3440 = vmatprep.subr.bf16.mxu0 %v3210
    %3441 = vmatpush2.bf16.msra.mxu0 %v3209
    %3442 = vmatprep.subr.bf16.mxu0 %v3208
    %3443 = vmatpush2.bf16.msra.mxu0 %v3207
    %3444 = vmatprep.subr.bf16.mxu0 %v3206
    %3445 = vmatpush2.bf16.msra.mxu0 %v3205
    %3446 = vmatprep.subr.bf16.mxu0 %v3204
    %3447 = vmatpush2.bf16.msra.mxu0 %v3203
    %3448 = vmatprep.subr.bf16.mxu0 %v3202
    %3449 = vmatpush2.bf16.msra.mxu0 %v3201
    %3450 = vmatprep.subr.bf16.mxu0 %v3200
    %3451 = vmatpush2.bf16.msra.mxu0 %v3199
    %3452 = vmatprep.mubr.bf16.mxu0 %v198
    %3453 = vmatmul.mubr.bf16.gmra.mxu0 %v197
    %v3454 = vpop.f32.mrf.mxu0
    %v3455 = vadd.f32 %v3402, %v3454
    %v3456 = vpop.f32.mrf.mxu0
    %v3457 = vadd.f32 %v3404, %v3456
    %v3458 = vpop.f32.mrf.mxu0
    %v3459 = vadd.f32 %v3406, %v3458
    %v3460 = vpop.f32.mrf.mxu0
    %v3461 = vadd.f32 %v3408, %v3460
    %3462 = vmatprep.mubr.bf16.mxu0 %v205
    %3463 = vmatmul.mubr.bf16.gmra.mxu0 %v204
    %v3464 = vpop.f32.mrf.mxu0
    %v3465 = vadd.f32 %v3412, %v3464
    %v3466 = vpop.f32.mrf.mxu0
    %v3467 = vadd.f32 %v3414, %v3466
    %v3468 = vpop.f32.mrf.mxu0
    %v3469 = vadd.f32 %v3416, %v3468
    %v3470 = vpop.f32.mrf.mxu0
    %v3471 = vadd.f32 %v3418, %v3470
    %3472 = vdwg.mxu0
    %3473 = vmatprep.subr.bf16.mxu0 %v3230
    %3474 = vmatpush1.bf16.msra.mxu0 %v3229
    %3475 = vmatprep.subr.bf16.mxu0 %v3228
    %3476 = vmatpush1.bf16.msra.mxu0 %v3227
    %3477 = vmatprep.subr.bf16.mxu0 %v3226
    %3478 = vmatpush1.bf16.msra.mxu0 %v3225
    %3479 = vmatprep.subr.bf16.mxu0 %v3224
    %3480 = vmatpush1.bf16.msra.mxu0 %v3223
    %3481 = vmatprep.subr.bf16.mxu0 %v3222
    %3482 = vmatpush1.bf16.msra.mxu0 %v3221
    %3483 = vmatprep.subr.bf16.mxu0 %v3220
    %3484 = vmatpush1.bf16.msra.mxu0 %v3219
    %3485 = vmatprep.subr.bf16.mxu0 %v3218
    %3486 = vmatpush1.bf16.msra.mxu0 %v3217
    %3487 = vmatprep.subr.bf16.mxu0 %v3216
    %3488 = vmatpush1.bf16.msra.mxu0 %v3215
    %3489 = vmatprep.subr.bf16.mxu0 %v3246
    %3490 = vmatpush2.bf16.msra.mxu0 %v3245
    %3491 = vmatprep.subr.bf16.mxu0 %v3244
    %3492 = vmatpush2.bf16.msra.mxu0 %v3243
    %3493 = vmatprep.subr.bf16.mxu0 %v3242
    %3494 = vmatpush2.bf16.msra.mxu0 %v3241
    %3495 = vmatprep.subr.bf16.mxu0 %v3240
    %3496 = vmatpush2.bf16.msra.mxu0 %v3239
    %3497 = vmatprep.subr.bf16.mxu0 %v3238
    %3498 = vmatpush2.bf16.msra.mxu0 %v3237
    %3499 = vmatprep.subr.bf16.mxu0 %v3236
    %3500 = vmatpush2.bf16.msra.mxu0 %v3235
    %3501 = vmatprep.subr.bf16.mxu0 %v3234
    %3502 = vmatpush2.bf16.msra.mxu0 %v3233
    %3503 = vmatprep.subr.bf16.mxu0 %v3232
    %3504 = vmatpush2.bf16.msra.mxu0 %v3231
    %3505 = vmatprep.mubr.bf16.mxu0 %v200
    %3506 = vmatmul.mubr.bf16.gmra.mxu0 %v199
    %v3507 = vpop.f32.mrf.mxu0
    %v3508 = vadd.f32 %v3455, %v3507
    %v3509 = vpop.f32.mrf.mxu0
    %v3510 = vadd.f32 %v3457, %v3509
    %v3511 = vpop.f32.mrf.mxu0
    %v3512 = vadd.f32 %v3459, %v3511
    %v3513 = vpop.f32.mrf.mxu0
    %v3514 = vadd.f32 %v3461, %v3513
    %3515 = vmatprep.mubr.bf16.mxu0 %v207
    %3516 = vmatmul.mubr.bf16.gmra.mxu0 %v206
    %v3517 = vpop.f32.mrf.mxu0
    %v3518 = vadd.f32 %v3465, %v3517
    %v3519 = vpop.f32.mrf.mxu0
    %v3520 = vadd.f32 %v3467, %v3519
    %v3521 = vpop.f32.mrf.mxu0
    %v3522 = vadd.f32 %v3469, %v3521
    %v3523 = vpop.f32.mrf.mxu0
    %v3524 = vadd.f32 %v3471, %v3523
    %3525 = vdwg.mxu0
    %3526 = vmatprep.subr.bf16.mxu0 0
    %3527 = vmatpush1.bf16.msra.mxu0 0
    %3528 = vmatprep.subr.bf16.mxu0 0
    %3529 = vmatpush1.bf16.msra.mxu0 0
    %3530 = vmatprep.subr.bf16.mxu0 %v3258
    %3531 = vmatpush1.bf16.msra.mxu0 %v3257
    %3532 = vmatprep.subr.bf16.mxu0 %v3256
    %3533 = vmatpush1.bf16.msra.mxu0 %v3255
    %3534 = vmatprep.subr.bf16.mxu0 %v3254
    %3535 = vmatpush1.bf16.msra.mxu0 %v3253
    %3536 = vmatprep.subr.bf16.mxu0 %v3252
    %3537 = vmatpush1.bf16.msra.mxu0 %v3251
    %3538 = vmatprep.subr.bf16.mxu0 %v3250
    %3539 = vmatpush1.bf16.msra.mxu0 %v3249
    %3540 = vmatprep.subr.bf16.mxu0 %v3248
    %3541 = vmatpush1.bf16.msra.mxu0 %v3247
    %3542 = vmatprep.subr.bf16.mxu0 0
    %3543 = vmatpush2.bf16.msra.mxu0 0
    %3544 = vmatprep.subr.bf16.mxu0 0
    %3545 = vmatpush2.bf16.msra.mxu0 0
    %3546 = vmatprep.subr.bf16.mxu0 0
    %3547 = vmatpush2.bf16.msra.mxu0 0
    %3548 = vmatprep.subr.bf16.mxu0 0
    %3549 = vmatpush2.bf16.msra.mxu0 0
    %3550 = vmatprep.subr.bf16.mxu0 0
    %3551 = vmatpush2.bf16.msra.mxu0 0
    %3552 = vmatprep.subr.bf16.mxu0 0
    %3553 = vmatpush2.bf16.msra.mxu0 0
    %3554 = vmatprep.subr.bf16.mxu0 0
    %3555 = vmatpush2.bf16.msra.mxu0 0
    %3556 = vmatprep.subr.bf16.mxu0 0
    %3557 = vmatpush2.bf16.msra.mxu0 0
    %3558 = vmatprep.mubr.bf16.mxu0 0
    %3559 = vmatmul.mubr.bf16.gmra.mxu0 %v763
    %v3560 = vpop.f32.mrf.mxu0
    %v3561 = vadd.f32 %v3508, %v3560
    %v3562 = vpop.f32.mrf.mxu0
    %v3563 = vadd.f32 %v3510, %v3562
    %v3564 = vpop.f32.mrf.mxu0
    %v3565 = vadd.f32 %v3512, %v3564
    %v3566 = vpop.f32.mrf.mxu0
    %v3567 = vadd.f32 %v3514, %v3566
    %3568 = vmatprep.mubr.bf16.mxu0 0
    %3569 = vmatmul.mubr.bf16.gmra.mxu0 %v766
    %v3570 = vpop.f32.mrf.mxu0
    %v3571 = vadd.f32 %v3518, %v3570
    %v3572 = vpop.f32.mrf.mxu0
    %v3573 = vadd.f32 %v3520, %v3572
    %v3574 = vpop.f32.mrf.mxu0
    %v3575 = vadd.f32 %v3522, %v3574
    %v3576 = vpop.f32.mrf.mxu0
    %v3577 = vadd.f32 %v3524, %v3576
    %3578 = vdwg.mxu0
    %v3579 = vmax.f32 %v2710, %v3561
    %v3580 = vmax.f32 %v2711, %v3563
    %v3581 = vmax.f32 %v2712, %v3565
    %v3582 = vmax.f32 %v2713, %v3567
    %v3583 = vmax.f32 %v2714, %v3571
    %v3584 = vmax.f32 %v2715, %v3573
    %v3585 = vmax.f32 %v2716, %v3575
    %v3586 = vmax.f32 %v2717, %v3577
    %v3587 = vld [vmem:[#allocation2] sm:$0x3]
    %v3589 = vlaneseq
    %v3590 = vshrl.u32 %v3589, 7
    %v3591 = vsub.s32 0, %v3590
    %v3592 = vrot.slane %v3587, %v3591
    %v3593 = vlaneseq
    %v3594 = vshrl.u32 %v3593, 7
    %v3595 = vsub.s32 1, %v3594
    %v3596 = vrot.slane %v3587, %v3595
    %v3599 = vadd.f32 %v3579, %v3592
    %v3600 = vadd.f32 %v3580, %v3596
    %v3601 = vadd.f32 %v3581, %v3592
    %v3602 = vadd.f32 %v3582, %v3596
    %v3603 = vadd.f32 %v3583, %v3592
    %v3604 = vadd.f32 %v3584, %v3596
    %v3605 = vadd.f32 %v3585, %v3592
    %v3606 = vadd.f32 %v3586, %v3596
    %v3607 = vmax.f32 %v3599, 0.0
    %v3608 = vmax.f32 %v3600, 0.0
    %v3609 = vmax.f32 %v3601, 0.0
    %v3610 = vmax.f32 %v3602, 0.0
    %v3611 = vmax.f32 %v3603, 0.0
    %v3612 = vmax.f32 %v3604, 0.0
    %v3613 = vmax.f32 %v3605, 0.0
    %v3614 = vmax.f32 %v3606, 0.0
    %v3615 = vpack.c.bf16 %v3609, %v3607
    %v3616 = vpack.c.bf16 %v3610, %v3608
    %v3617 = vpack.c.bf16 %v3613, %v3611
    %v3618 = vpack.c.bf16 %v3614, %v3612
    %v3623 = vunpack.c.l.b16 %v3615
    %v3624 = vunpack.c.l.b16 %v3616
    %v3625 = vunpack.c.h.b16 %v3615
    %v3626 = vunpack.c.h.b16 %v3616
    %v3627 = vunpack.c.l.b16 %v3617
    %v3628 = vunpack.c.l.b16 %v3618
    %v3629 = vunpack.c.h.b16 %v3617
    %v3630 = vunpack.c.h.b16 %v3618
    %v3631 = vpack.c.b16 %v3624, %v3623
    %v3632 = vpack.c.b16 %v3626, %v3625
    %v3633 = vpack.c.b16 %v3628, %v3627
    %v3634 = vpack.c.b16 %v3630, %v3629
    %3639 = vst [vmem:[%s3] sm:$0xff] %v3631
    %3640 = vst [vmem:[%s3 + $0x8] sm:$0xff] %v3632
    %3641 = vst [vmem:[%s3 + $0x10] sm:$0xff] %v3633
    %3642 = vst [vmem:[%s3 + $0x18] sm:$0xff] %v3634
    // Predicated region
    $region18: #{joint_embedding_forward.3} parent=1 // pred_check
      _
    $region19: #{joint_embedding_forward.3} parent=1 // pred_check_branch
      %3644 = sbr.rel (0) target = $region21
    $region20: #{joint_embedding_forward.3} parent=1 // pred_region
      _
    $region21: #{joint_embedding_forward.3} parent=1 // pred_fallthru
      _
    // Predicated region
    $region22: #{joint_embedding_forward.3} parent=1 // pred_check
      _
    $region23: #{joint_embedding_forward.3} parent=1 // pred_check_branch
      %3646 = sbr.rel (0) target = $region25
    $region24: #{joint_embedding_forward.3} parent=1 // pred_region
      _
    $region25: #{joint_embedding_forward.3} parent=1 // pred_fallthru
      _
    %3647 = vsyncpa [#allocation3], 1

// kernel: joint_embedding_forward.5
$region0: #{joint_embedding_forward.5}
  #allocation0 [shape = 'u32[]', space=smem, size = 0x4, offset = 0x4, fixed_abs, tag = 'smem constant byte address 0x4 - core index']
  #allocation1 [shape = 'u32[144,128]{1,0:T(1,128)}', space=vmem, size = 0x12000, scoped, tag = 'internal scratch']
  %s0 = inlined_call_operand.vmem [shape: bf16[2,2048], index: 0, kind: input, shape index: {}]
  %s1 = inlined_call_operand.vmem [shape: s32[2,1], index: 1, kind: input, shape index: {}]
  %s2 = inlined_call_operand.vmem [shape: f32[11,32], index: 2, kind: input, shape index: {}]
  %s3 = inlined_call_operand.vmem [shape: bf16[2048,32], index: 3, kind: input, shape index: {}]
  %s4 = inlined_call_operand.vmem [shape: f32[1,32], index: 4, kind: input, shape index: {}]
  %s5 = inlined_call_operand.vmem [shape: f32[32,32], index: 5, kind: input, shape index: {}]
  %s6 = inlined_call_operand.vmem [shape: f32[1,32], index: 6, kind: input, shape index: {}]
  %s7 = inlined_call_operand.vmem [shape: f32[32,32], index: 7, kind: input, shape index: {}]
  %s8 = inlined_call_operand.vmem [shape: f32[1,32], index: 8, kind: input, shape index: {}]
  %s9 = inlined_call_operand.vmem [shape: f32[32,32], index: 9, kind: input, shape index: {}]
  %s10 = inlined_call_operand.vmem [shape: f32[32,32], index: 10, kind: input, shape index: {}]
  %s11 = inlined_call_operand.vmem [shape: f32[1,32], index: 11, kind: input, shape index: {}]
  %s12 = inlined_call_operand.vmem [shape: f32[32,32], index: 12, kind: input, shape index: {}]
  %s13 = inlined_call_operand.vmem [shape: f32[1,32], index: 13, kind: input, shape index: {}]
  %s14 = inlined_call_operand.hbm [shape: f32[2,32], index: 14, kind: output, shape index: {}]
  %s15 = sld [smem:[#allocation0]]
  $region66: #{joint_embedding_forward.5} parent=0
    _
  %s17 = ssub.s32 1, %s15
  %s18 = scalar_select 0, %s17, %s15
  $region1: #{joint_embedding_forward.5} parent=0
    #allocation2 [shape = 'u8[1024]{0}', space=vmem, size = 0x400, scoped, tag = 'output window, operand 0, single buffered']
    #allocation3 [shape = 's32[1]{0}', space=sflag, size = 0x4, scoped, tag = 'scoped memory for joint_embedding_forward.5']
    %19 = vsyncpa [#allocation3], 0
    // Predicated region
    $region2: #{joint_embedding_forward.5} parent=1 // pred_check
      _
    $region3: #{joint_embedding_forward.5} parent=1 // pred_check_branch
      %21 = sbr.rel (0) target = $region5
    $region4: #{joint_embedding_forward.5} parent=1 // pred_region
      _
    $region5: #{joint_embedding_forward.5} parent=1 // pred_fallthru
      _
    // Predicated region
    $region6: #{joint_embedding_forward.5} parent=1 // pred_check
      _
    $region7: #{joint_embedding_forward.5} parent=1 // pred_check_branch
      %23 = sbr.rel (0) target = $region9
    $region8: #{joint_embedding_forward.5} parent=1 // pred_region
      _
    $region9: #{joint_embedding_forward.5} parent=1 // pred_fallthru
      _
    // Predicated region
    $region10: #{joint_embedding_forward.5} parent=1 // pred_check
      _
    $region11: #{joint_embedding_forward.5} parent=1 // pred_check_branch
      %25 = sbr.rel (0) target = $region13
    $region12: #{joint_embedding_forward.5} parent=1 // pred_region
      _
    $region13: #{joint_embedding_forward.5} parent=1 // pred_fallthru
      _
    // Predicated region
    $region14: #{joint_embedding_forward.5} parent=1 // pred_check
      _
    $region15: #{joint_embedding_forward.5} parent=1 // pred_check_branch
      %27 = sbr.rel (0) target = $region17
    $region16: #{joint_embedding_forward.5} parent=1 // pred_region
      _
    $region17: #{joint_embedding_forward.5} parent=1 // pred_fallthru
      _
    // Predicated region
    $region18: #{joint_embedding_forward.5} parent=1 // pred_check
      _
    $region19: #{joint_embedding_forward.5} parent=1 // pred_check_branch
      %29 = sbr.rel (0) target = $region21
    $region20: #{joint_embedding_forward.5} parent=1 // pred_region
      _
    $region21: #{joint_embedding_forward.5} parent=1 // pred_fallthru
      _
    // Predicated region
    $region22: #{joint_embedding_forward.5} parent=1 // pred_check
      _
    $region23: #{joint_embedding_forward.5} parent=1 // pred_check_branch
      %31 = sbr.rel (0) target = $region25
    $region24: #{joint_embedding_forward.5} parent=1 // pred_region
      _
    $region25: #{joint_embedding_forward.5} parent=1 // pred_fallthru
      _
    // Predicated region
    $region26: #{joint_embedding_forward.5} parent=1 // pred_check
      _
    $region27: #{joint_embedding_forward.5} parent=1 // pred_check_branch
      %33 = sbr.rel (0) target = $region29
    $region28: #{joint_embedding_forward.5} parent=1 // pred_region
      _
    $region29: #{joint_embedding_forward.5} parent=1 // pred_fallthru
      _
    // Predicated region
    $region30: #{joint_embedding_forward.5} parent=1 // pred_check
      _
    $region31: #{joint_embedding_forward.5} parent=1 // pred_check_branch
      %35 = sbr.rel (0) target = $region33
    $region32: #{joint_embedding_forward.5} parent=1 // pred_region
      _
    $region33: #{joint_embedding_forward.5} parent=1 // pred_fallthru
      _
    // Predicated region
    $region34: #{joint_embedding_forward.5} parent=1 // pred_check
      _
    $region35: #{joint_embedding_forward.5} parent=1 // pred_check_branch
      %37 = sbr.rel (0) target = $region37
    $region36: #{joint_embedding_forward.5} parent=1 // pred_region
      _
    $region37: #{joint_embedding_forward.5} parent=1 // pred_fallthru
      _
    // Predicated region
    $region38: #{joint_embedding_forward.5} parent=1 // pred_check
      _
    $region39: #{joint_embedding_forward.5} parent=1 // pred_check_branch
      %39 = sbr.rel (0) target = $region41
    $region40: #{joint_embedding_forward.5} parent=1 // pred_region
      _
    $region41: #{joint_embedding_forward.5} parent=1 // pred_fallthru
      _
    // Predicated region
    $region42: #{joint_embedding_forward.5} parent=1 // pred_check
      _
    $region43: #{joint_embedding_forward.5} parent=1 // pred_check_branch
      %41 = sbr.rel (0) target = $region45
    $region44: #{joint_embedding_forward.5} parent=1 // pred_region
      _
    $region45: #{joint_embedding_forward.5} parent=1 // pred_fallthru
      _
    // Predicated region
    $region46: #{joint_embedding_forward.5} parent=1 // pred_check
      _
    $region47: #{joint_embedding_forward.5} parent=1 // pred_check_branch
      %43 = sbr.rel (0) target = $region49
    $region48: #{joint_embedding_forward.5} parent=1 // pred_region
      _
    $region49: #{joint_embedding_forward.5} parent=1 // pred_fallthru
      _
    // Predicated region
    $region50: #{joint_embedding_forward.5} parent=1 // pred_check
      _
    $region51: #{joint_embedding_forward.5} parent=1 // pred_check_branch
      %45 = sbr.rel (0) target = $region53
    $region52: #{joint_embedding_forward.5} parent=1 // pred_region
      _
    $region53: #{joint_embedding_forward.5} parent=1 // pred_fallthru
      _
    // Predicated region
    $region54: #{joint_embedding_forward.5} parent=1 // pred_check
      _
    $region55: #{joint_embedding_forward.5} parent=1 // pred_check_branch
      %47 = sbr.rel (0) target = $region57
    $region56: #{joint_embedding_forward.5} parent=1 // pred_region
      _
    $region57: #{joint_embedding_forward.5} parent=1 // pred_fallthru
      _
    %v49 = vld [vmem:[%s0] sm:$0xff]
    %v50 = vld [vmem:[%s0 + $0x8] sm:$0xff]
    %v51 = vld [vmem:[%s3] sm:$0xf]
    %v52 = vld [vmem:[%s3 + $0x4] sm:$0xf]
    %v53 = vld [vmem:[%s3 + $0x8] sm:$0xf]
    %v54 = vld [vmem:[%s3 + $0xc] sm:$0xf]
    %v55 = vld [vmem:[%s3 + $0x10] sm:$0xf]
    %v56 = vld [vmem:[%s3 + $0x14] sm:$0xf]
    %v57 = vld [vmem:[%s3 + $0x18] sm:$0xf]
    %v58 = vld [vmem:[%s3 + $0x1c] sm:$0xf]
    %v59 = vld [vmem:[%s3 + $0x20] sm:$0xf]
    %v60 = vld [vmem:[%s3 + $0x24] sm:$0xf]
    %v61 = vld [vmem:[%s3 + $0x28] sm:$0xf]
    %v62 = vld [vmem:[%s3 + $0x2c] sm:$0xf]
    %v63 = vld [vmem:[%s3 + $0x30] sm:$0xf]
    %v64 = vld [vmem:[%s3 + $0x34] sm:$0xf]
    %v65 = vld [vmem:[%s3 + $0x38] sm:$0xf]
    %v66 = vld [vmem:[%s3 + $0x3c] sm:$0xf]
    %v67 = vld [vmem:[%s3 + $0x40] sm:$0xf]
    %v68 = vld [vmem:[%s3 + $0x44] sm:$0xf]
    %v69 = vld [vmem:[%s3 + $0x48] sm:$0xf]
    %v70 = vld [vmem:[%s3 + $0x4c] sm:$0xf]
    %v71 = vld [vmem:[%s3 + $0x50] sm:$0xf]
    %v72 = vld [vmem:[%s3 + $0x54] sm:$0xf]
    %v73 = vld [vmem:[%s3 + $0x58] sm:$0xf]
    %v74 = vld [vmem:[%s3 + $0x5c] sm:$0xf]
    %v75 = vld [vmem:[%s3 + $0x60] sm:$0xf]
    %v76 = vld [vmem:[%s3 + $0x64] sm:$0xf]
    %v77 = vld [vmem:[%s3 + $0x68] sm:$0xf]
    %v78 = vld [vmem:[%s3 + $0x6c] sm:$0xf]
    %v79 = vld [vmem:[%s3 + $0x70] sm:$0xf]
    %v80 = vld [vmem:[%s3 + $0x74] sm:$0xf]
    %v81 = vld [vmem:[%s3 + $0x78] sm:$0xf]
    %v82 = vld [vmem:[%s3 + $0x7c] sm:$0xf]
    %v83 = vld [vmem:[%s3 + $0x80] sm:$0xf]
    %v84 = vld [vmem:[%s3 + $0x84] sm:$0xf]
    %v85 = vld [vmem:[%s3 + $0x88] sm:$0xf]
    %v86 = vld [vmem:[%s3 + $0x8c] sm:$0xf]
    %v87 = vld [vmem:[%s3 + $0x90] sm:$0xf]
    %v88 = vld [vmem:[%s3 + $0x94] sm:$0xf]
    %v89 = vld [vmem:[%s3 + $0x98] sm:$0xf]
    %v90 = vld [vmem:[%s3 + $0x9c] sm:$0xf]
    %v91 = vld [vmem:[%s3 + $0xa0] sm:$0xf]
    %v92 = vld [vmem:[%s3 + $0xa4] sm:$0xf]
    %v93 = vld [vmem:[%s3 + $0xa8] sm:$0xf]
    %v94 = vld [vmem:[%s3 + $0xac] sm:$0xf]
    %v95 = vld [vmem:[%s3 + $0xb0] sm:$0xf]
    %v96 = vld [vmem:[%s3 + $0xb4] sm:$0xf]
    %v97 = vld [vmem:[%s3 + $0xb8] sm:$0xf]
    %v98 = vld [vmem:[%s3 + $0xbc] sm:$0xf]
    %v99 = vld [vmem:[%s3 + $0xc0] sm:$0xf]
    %v100 = vld [vmem:[%s3 + $0xc4] sm:$0xf]
    %v101 = vld [vmem:[%s3 + $0xc8] sm:$0xf]
    %v102 = vld [vmem:[%s3 + $0xcc] sm:$0xf]
    %v103 = vld [vmem:[%s3 + $0xd0] sm:$0xf]
    %v104 = vld [vmem:[%s3 + $0xd4] sm:$0xf]
    %v105 = vld [vmem:[%s3 + $0xd8] sm:$0xf]
    %v106 = vld [vmem:[%s3 + $0xdc] sm:$0xf]
    %v107 = vld [vmem:[%s3 + $0xe0] sm:$0xf]
    %v108 = vld [vmem:[%s3 + $0xe4] sm:$0xf]
    %v109 = vld [vmem:[%s3 + $0xe8] sm:$0xf]
    %v110 = vld [vmem:[%s3 + $0xec] sm:$0xf]
    %v111 = vld [vmem:[%s3 + $0xf0] sm:$0xf]
    %v112 = vld [vmem:[%s3 + $0xf4] sm:$0xf]
    %v113 = vld [vmem:[%s3 + $0xf8] sm:$0xf]
    %v114 = vld [vmem:[%s3 + $0xfc] sm:$0xf]
    %v115 = vld [vmem:[%s3 + $0x100] sm:$0xf]
    %v116 = vld [vmem:[%s3 + $0x104] sm:$0xf]
    %v117 = vld [vmem:[%s3 + $0x108] sm:$0xf]
    %v118 = vld [vmem:[%s3 + $0x10c] sm:$0xf]
    %v119 = vld [vmem:[%s3 + $0x110] sm:$0xf]
    %v120 = vld [vmem:[%s3 + $0x114] sm:$0xf]
    %v121 = vld [vmem:[%s3 + $0x118] sm:$0xf]
    %v122 = vld [vmem:[%s3 + $0x11c] sm:$0xf]
    %v123 = vld [vmem:[%s3 + $0x120] sm:$0xf]
    %v124 = vld [vmem:[%s3 + $0x124] sm:$0xf]
    %v125 = vld [vmem:[%s3 + $0x128] sm:$0xf]
    %v126 = vld [vmem:[%s3 + $0x12c] sm:$0xf]
    %v127 = vld [vmem:[%s3 + $0x130] sm:$0xf]
    %v128 = vld [vmem:[%s3 + $0x134] sm:$0xf]
    %v129 = vld [vmem:[%s3 + $0x138] sm:$0xf]
    %v130 = vld [vmem:[%s3 + $0x13c] sm:$0xf]
    %v131 = vld [vmem:[%s3 + $0x140] sm:$0xf]
    %v132 = vld [vmem:[%s3 + $0x144] sm:$0xf]
    %v133 = vld [vmem:[%s3 + $0x148] sm:$0xf]
    %v134 = vld [vmem:[%s3 + $0x14c] sm:$0xf]
    %v135 = vld [vmem:[%s3 + $0x150] sm:$0xf]
    %v136 = vld [vmem:[%s3 + $0x154] sm:$0xf]
    %v137 = vld [vmem:[%s3 + $0x158] sm:$0xf]
    %v138 = vld [vmem:[%s3 + $0x15c] sm:$0xf]
    %v139 = vld [vmem:[%s3 + $0x160] sm:$0xf]
    %v140 = vld [vmem:[%s3 + $0x164] sm:$0xf]
    %v141 = vld [vmem:[%s3 + $0x168] sm:$0xf]
    %v142 = vld [vmem:[%s3 + $0x16c] sm:$0xf]
    %v143 = vld [vmem:[%s3 + $0x170] sm:$0xf]
    %v144 = vld [vmem:[%s3 + $0x174] sm:$0xf]
    %v145 = vld [vmem:[%s3 + $0x178] sm:$0xf]
    %v146 = vld [vmem:[%s3 + $0x17c] sm:$0xf]
    %v147 = vld [vmem:[%s3 + $0x180] sm:$0xf]
    %v148 = vld [vmem:[%s3 + $0x184] sm:$0xf]
    %v149 = vld [vmem:[%s3 + $0x188] sm:$0xf]
    %v150 = vld [vmem:[%s3 + $0x18c] sm:$0xf]
    %v151 = vld [vmem:[%s3 + $0x190] sm:$0xf]
    %v152 = vld [vmem:[%s3 + $0x194] sm:$0xf]
    %v153 = vld [vmem:[%s3 + $0x198] sm:$0xf]
    %v154 = vld [vmem:[%s3 + $0x19c] sm:$0xf]
    %v155 = vld [vmem:[%s3 + $0x1a0] sm:$0xf]
    %v156 = vld [vmem:[%s3 + $0x1a4] sm:$0xf]
    %v157 = vld [vmem:[%s3 + $0x1a8] sm:$0xf]
    %v158 = vld [vmem:[%s3 + $0x1ac] sm:$0xf]
    %v159 = vld [vmem:[%s3 + $0x1b0] sm:$0xf]
    %v160 = vld [vmem:[%s3 + $0x1b4] sm:$0xf]
    %v161 = vld [vmem:[%s3 + $0x1b8] sm:$0xf]
    %v162 = vld [vmem:[%s3 + $0x1bc] sm:$0xf]
    %v163 = vld [vmem:[%s3 + $0x1c0] sm:$0xf]
    %v164 = vld [vmem:[%s3 + $0x1c4] sm:$0xf]
    %v165 = vld [vmem:[%s3 + $0x1c8] sm:$0xf]
    %v166 = vld [vmem:[%s3 + $0x1cc] sm:$0xf]
    %v167 = vld [vmem:[%s3 + $0x1d0] sm:$0xf]
    %v168 = vld [vmem:[%s3 + $0x1d4] sm:$0xf]
    %v169 = vld [vmem:[%s3 + $0x1d8] sm:$0xf]
    %v170 = vld [vmem:[%s3 + $0x1dc] sm:$0xf]
    %v171 = vld [vmem:[%s3 + $0x1e0] sm:$0xf]
    %v172 = vld [vmem:[%s3 + $0x1e4] sm:$0xf]
    %v173 = vld [vmem:[%s3 + $0x1e8] sm:$0xf]
    %v174 = vld [vmem:[%s3 + $0x1ec] sm:$0xf]
    %v175 = vld [vmem:[%s3 + $0x1f0] sm:$0xf]
    %v176 = vld [vmem:[%s3 + $0x1f4] sm:$0xf]
    %v177 = vld [vmem:[%s3 + $0x1f8] sm:$0xf]
    %v178 = vld [vmem:[%s3 + $0x1fc] sm:$0xf]
    %v179 = vld [vmem:[%s3 + $0x200] sm:$0xf]
    %v180 = vld [vmem:[%s3 + $0x204] sm:$0xf]
    %v181 = vld [vmem:[%s3 + $0x208] sm:$0xf]
    %v182 = vld [vmem:[%s3 + $0x20c] sm:$0xf]
    %v183 = vld [vmem:[%s3 + $0x210] sm:$0xf]
    %v184 = vld [vmem:[%s3 + $0x214] sm:$0xf]
    %v185 = vld [vmem:[%s3 + $0x218] sm:$0xf]
    %v186 = vld [vmem:[%s3 + $0x21c] sm:$0xf]
    %v187 = vld [vmem:[%s3 + $0x220] sm:$0xf]
    %v188 = vld [vmem:[%s3 + $0x224] sm:$0xf]
    %v189 = vld [vmem:[%s3 + $0x228] sm:$0xf]
    %v190 = vld [vmem:[%s3 + $0x22c] sm:$0xf]
    %v191 = vld [vmem:[%s3 + $0x230] sm:$0xf]
    %v192 = vld [vmem:[%s3 + $0x234] sm:$0xf]
    %v193 = vld [vmem:[%s3 + $0x238] sm:$0xf]
    %v194 = vld [vmem:[%s3 + $0x23c] sm:$0xf]
    %v195 = vld [vmem:[%s3 + $0x240] sm:$0xf]
    %v196 = vld [vmem:[%s3 + $0x244] sm:$0xf]
    %v197 = vld [vmem:[%s3 + $0x248] sm:$0xf]
    %v198 = vld [vmem:[%s3 + $0x24c] sm:$0xf]
    %v199 = vld [vmem:[%s3 + $0x250] sm:$0xf]
    %v200 = vld [vmem:[%s3 + $0x254] sm:$0xf]
    %v201 = vld [vmem:[%s3 + $0x258] sm:$0xf]
    %v202 = vld [vmem:[%s3 + $0x25c] sm:$0xf]
    %v203 = vld [vmem:[%s3 + $0x260] sm:$0xf]
    %v204 = vld [vmem:[%s3 + $0x264] sm:$0xf]
    %v205 = vld [vmem:[%s3 + $0x268] sm:$0xf]
    %v206 = vld [vmem:[%s3 + $0x26c] sm:$0xf]
    %v207 = vld [vmem:[%s3 + $0x270] sm:$0xf]
    %v208 = vld [vmem:[%s3 + $0x274] sm:$0xf]
    %v209 = vld [vmem:[%s3 + $0x278] sm:$0xf]
    %v210 = vld [vmem:[%s3 + $0x27c] sm:$0xf]
    %v211 = vld [vmem:[%s3 + $0x280] sm:$0xf]
    %v212 = vld [vmem:[%s3 + $0x284] sm:$0xf]
    %v213 = vld [vmem:[%s3 + $0x288] sm:$0xf]
    %v214 = vld [vmem:[%s3 + $0x28c] sm:$0xf]
    %v215 = vld [vmem:[%s3 + $0x290] sm:$0xf]
    %v216 = vld [vmem:[%s3 + $0x294] sm:$0xf]
    %v217 = vld [vmem:[%s3 + $0x298] sm:$0xf]
    %v218 = vld [vmem:[%s3 + $0x29c] sm:$0xf]
    %v219 = vld [vmem:[%s3 + $0x2a0] sm:$0xf]
    %v220 = vld [vmem:[%s3 + $0x2a4] sm:$0xf]
    %v221 = vld [vmem:[%s3 + $0x2a8] sm:$0xf]
    %v222 = vld [vmem:[%s3 + $0x2ac] sm:$0xf]
    %v223 = vld [vmem:[%s3 + $0x2b0] sm:$0xf]
    %v224 = vld [vmem:[%s3 + $0x2b4] sm:$0xf]
    %v225 = vld [vmem:[%s3 + $0x2b8] sm:$0xf]
    %v226 = vld [vmem:[%s3 + $0x2bc] sm:$0xf]
    %v227 = vld [vmem:[%s3 + $0x2c0] sm:$0xf]
    %v228 = vld [vmem:[%s3 + $0x2c4] sm:$0xf]
    %v229 = vld [vmem:[%s3 + $0x2c8] sm:$0xf]
    %v230 = vld [vmem:[%s3 + $0x2cc] sm:$0xf]
    %v231 = vld [vmem:[%s3 + $0x2d0] sm:$0xf]
    %v232 = vld [vmem:[%s3 + $0x2d4] sm:$0xf]
    %v233 = vld [vmem:[%s3 + $0x2d8] sm:$0xf]
    %v234 = vld [vmem:[%s3 + $0x2dc] sm:$0xf]
    %v235 = vld [vmem:[%s3 + $0x2e0] sm:$0xf]
    %v236 = vld [vmem:[%s3 + $0x2e4] sm:$0xf]
    %v237 = vld [vmem:[%s3 + $0x2e8] sm:$0xf]
    %v238 = vld [vmem:[%s3 + $0x2ec] sm:$0xf]
    %v239 = vld [vmem:[%s3 + $0x2f0] sm:$0xf]
    %v240 = vld [vmem:[%s3 + $0x2f4] sm:$0xf]
    %v241 = vld [vmem:[%s3 + $0x2f8] sm:$0xf]
    %v242 = vld [vmem:[%s3 + $0x2fc] sm:$0xf]
    %v243 = vld [vmem:[%s3 + $0x300] sm:$0xf]
    %v244 = vld [vmem:[%s3 + $0x304] sm:$0xf]
    %v245 = vld [vmem:[%s3 + $0x308] sm:$0xf]
    %v246 = vld [vmem:[%s3 + $0x30c] sm:$0xf]
    %v247 = vld [vmem:[%s3 + $0x310] sm:$0xf]
    %v248 = vld [vmem:[%s3 + $0x314] sm:$0xf]
    %v249 = vld [vmem:[%s3 + $0x318] sm:$0xf]
    %v250 = vld [vmem:[%s3 + $0x31c] sm:$0xf]
    %v251 = vld [vmem:[%s3 + $0x320] sm:$0xf]
    %v252 = vld [vmem:[%s3 + $0x324] sm:$0xf]
    %v253 = vld [vmem:[%s3 + $0x328] sm:$0xf]
    %v254 = vld [vmem:[%s3 + $0x32c] sm:$0xf]
    %v255 = vld [vmem:[%s3 + $0x330] sm:$0xf]
    %v256 = vld [vmem:[%s3 + $0x334] sm:$0xf]
    %v257 = vld [vmem:[%s3 + $0x338] sm:$0xf]
    %v258 = vld [vmem:[%s3 + $0x33c] sm:$0xf]
    %v259 = vld [vmem:[%s3 + $0x340] sm:$0xf]
    %v260 = vld [vmem:[%s3 + $0x344] sm:$0xf]
    %v261 = vld [vmem:[%s3 + $0x348] sm:$0xf]
    %v262 = vld [vmem:[%s3 + $0x34c] sm:$0xf]
    %v263 = vld [vmem:[%s3 + $0x350] sm:$0xf]
    %v264 = vld [vmem:[%s3 + $0x354] sm:$0xf]
    %v265 = vld [vmem:[%s3 + $0x358] sm:$0xf]
    %v266 = vld [vmem:[%s3 + $0x35c] sm:$0xf]
    %v267 = vld [vmem:[%s3 + $0x360] sm:$0xf]
    %v268 = vld [vmem:[%s3 + $0x364] sm:$0xf]
    %v269 = vld [vmem:[%s3 + $0x368] sm:$0xf]
    %v270 = vld [vmem:[%s3 + $0x36c] sm:$0xf]
    %v271 = vld [vmem:[%s3 + $0x370] sm:$0xf]
    %v272 = vld [vmem:[%s3 + $0x374] sm:$0xf]
    %v273 = vld [vmem:[%s3 + $0x378] sm:$0xf]
    %v274 = vld [vmem:[%s3 + $0x37c] sm:$0xf]
    %v275 = vld [vmem:[%s3 + $0x380] sm:$0xf]
    %v276 = vld [vmem:[%s3 + $0x384] sm:$0xf]
    %v277 = vld [vmem:[%s3 + $0x388] sm:$0xf]
    %v278 = vld [vmem:[%s3 + $0x38c] sm:$0xf]
    %v279 = vld [vmem:[%s3 + $0x390] sm:$0xf]
    %v280 = vld [vmem:[%s3 + $0x394] sm:$0xf]
    %v281 = vld [vmem:[%s3 + $0x398] sm:$0xf]
    %v282 = vld [vmem:[%s3 + $0x39c] sm:$0xf]
    %v283 = vld [vmem:[%s3 + $0x3a0] sm:$0xf]
    %v284 = vld [vmem:[%s3 + $0x3a4] sm:$0xf]
    %v285 = vld [vmem:[%s3 + $0x3a8] sm:$0xf]
    %v286 = vld [vmem:[%s3 + $0x3ac] sm:$0xf]
    %v287 = vld [vmem:[%s3 + $0x3b0] sm:$0xf]
    %v288 = vld [vmem:[%s3 + $0x3b4] sm:$0xf]
    %v289 = vld [vmem:[%s3 + $0x3b8] sm:$0xf]
    %v290 = vld [vmem:[%s3 + $0x3bc] sm:$0xf]
    %v291 = vld [vmem:[%s3 + $0x3c0] sm:$0xf]
    %v292 = vld [vmem:[%s3 + $0x3c4] sm:$0xf]
    %v293 = vld [vmem:[%s3 + $0x3c8] sm:$0xf]
    %v294 = vld [vmem:[%s3 + $0x3cc] sm:$0xf]
    %v295 = vld [vmem:[%s3 + $0x3d0] sm:$0xf]
    %v296 = vld [vmem:[%s3 + $0x3d4] sm:$0xf]
    %v297 = vld [vmem:[%s3 + $0x3d8] sm:$0xf]
    %v298 = vld [vmem:[%s3 + $0x3dc] sm:$0xf]
    %v299 = vld [vmem:[%s3 + $0x3e0] sm:$0xf]
    %v300 = vld [vmem:[%s3 + $0x3e4] sm:$0xf]
    %v301 = vld [vmem:[%s3 + $0x3e8] sm:$0xf]
    %v302 = vld [vmem:[%s3 + $0x3ec] sm:$0xf]
    %v303 = vld [vmem:[%s3 + $0x3f0] sm:$0xf]
    %v304 = vld [vmem:[%s3 + $0x3f4] sm:$0xf]
    %v305 = vld [vmem:[%s3 + $0x3f8] sm:$0xf]
    %v306 = vld [vmem:[%s3 + $0x3fc] sm:$0xf]
    %v307 = vld [vmem:[%s4] sm:$0x1]
    %v309 = vlaneseq
    %v310 = vshrl.u32 %v309, 7
    %v311 = vsub.s32 0, %v310
    %v312 = vrot.slane %v307, %v311
    %v316 = vcombine.high %v49, %v49
    %v318 = vunpack.c.l.s4 1966171168
    %v319 = vunpack.c.0.s8 %v318
    %v320 = vlaneseq
    %v321 = vshrl.u32 %v320, 7
    %v322 = vsub.s32 %v319, %v321
    %v323 = vrot.slane %v49, %v322
    %v325 = vunpack.c.l.s4 1966171168
    %v326 = vunpack.c.0.s8 %v325
    %v327 = vlaneseq
    %v328 = vshrl.u32 %v327, 7
    %v329 = vsub.s32 %v326, %v328
    %v330 = vrot.slane %v316, %v329
    %v331 = vcombine.high %v323, %v323
    %v332 = vcombine.high %v330, %v330
    %v334 = vunpack.c.l.s4 1966171168
    %v335 = vunpack.c.0.s8 %v334
    %v336 = vlaneseq
    %v337 = vshrl.u32 %v336, 7
    %v338 = vsub.s32 %v335, %v337
    %v339 = vrot.slane %v323, %v338
    %v341 = vunpack.c.l.s4 1966171168
    %v342 = vunpack.c.0.s8 %v341
    %v343 = vlaneseq
    %v344 = vshrl.u32 %v343, 7
    %v345 = vsub.s32 %v342, %v344
    %v346 = vrot.slane %v330, %v345
    %v348 = vunpack.c.l.s4 1966171168
    %v349 = vunpack.c.0.s8 %v348
    %v350 = vlaneseq
    %v351 = vshrl.u32 %v350, 7
    %v352 = vsub.s32 %v349, %v351
    %v353 = vrot.slane %v331, %v352
    %v355 = vunpack.c.l.s4 1966171168
    %v356 = vunpack.c.0.s8 %v355
    %v357 = vlaneseq
    %v358 = vshrl.u32 %v357, 7
    %v359 = vsub.s32 %v356, %v358
    %v360 = vrot.slane %v332, %v359
    %v361 = vcombine.high %v339, %v339
    %v362 = vcombine.high %v346, %v346
    %v363 = vcombine.high %v353, %v353
    %v364 = vcombine.high %v360, %v360
    %v365 = vcombine.high %v50, %v50
    %v367 = vunpack.c.l.s4 1966171168
    %v368 = vunpack.c.0.s8 %v367
    %v369 = vlaneseq
    %v370 = vshrl.u32 %v369, 7
    %v371 = vsub.s32 %v368, %v370
    %v372 = vrot.slane %v50, %v371
    %v374 = vunpack.c.l.s4 1966171168
    %v375 = vunpack.c.0.s8 %v374
    %v376 = vlaneseq
    %v377 = vshrl.u32 %v376, 7
    %v378 = vsub.s32 %v375, %v377
    %v379 = vrot.slane %v365, %v378
    %v380 = vcombine.high %v372, %v372
    %v381 = vcombine.high %v379, %v379
    %v383 = vunpack.c.l.s4 1966171168
    %v384 = vunpack.c.0.s8 %v383
    %v385 = vlaneseq
    %v386 = vshrl.u32 %v385, 7
    %v387 = vsub.s32 %v384, %v386
    %v388 = vrot.slane %v372, %v387
    %v390 = vunpack.c.l.s4 1966171168
    %v391 = vunpack.c.0.s8 %v390
    %v392 = vlaneseq
    %v393 = vshrl.u32 %v392, 7
    %v394 = vsub.s32 %v391, %v393
    %v395 = vrot.slane %v379, %v394
    %v397 = vunpack.c.l.s4 1966171168
    %v398 = vunpack.c.0.s8 %v397
    %v399 = vlaneseq
    %v400 = vshrl.u32 %v399, 7
    %v401 = vsub.s32 %v398, %v400
    %v402 = vrot.slane %v380, %v401
    %v404 = vunpack.c.l.s4 1966171168
    %v405 = vunpack.c.0.s8 %v404
    %v406 = vlaneseq
    %v407 = vshrl.u32 %v406, 7
    %v408 = vsub.s32 %v405, %v407
    %v409 = vrot.slane %v381, %v408
    %v410 = vcombine.high %v388, %v388
    %v411 = vcombine.high %v395, %v395
    %v412 = vcombine.high %v402, %v402
    %v413 = vcombine.high %v409, %v409
    %v686 = vunpack.c.l.b16 %v51
    %v687 = vunpack.c.l.b16 %v52
    %v688 = vunpack.c.l.b16 %v53
    %v689 = vunpack.c.l.b16 %v54
    %v690 = vunpack.c.l.b16 %v55
    %v691 = vunpack.c.l.b16 %v56
    %v692 = vunpack.c.l.b16 %v57
    %v693 = vunpack.c.l.b16 %v58
    %v694 = vunpack.c.l.b16 %v59
    %v695 = vunpack.c.l.b16 %v60
    %v696 = vunpack.c.l.b16 %v61
    %v697 = vunpack.c.l.b16 %v62
    %v698 = vunpack.c.l.b16 %v63
    %v699 = vunpack.c.l.b16 %v64
    %v700 = vunpack.c.l.b16 %v65
    %v701 = vunpack.c.l.b16 %v66
    %v702 = vunpack.c.l.b16 %v67
    %v703 = vunpack.c.l.b16 %v68
    %v704 = vunpack.c.l.b16 %v69
    %v705 = vunpack.c.l.b16 %v70
    %v706 = vunpack.c.l.b16 %v71
    %v707 = vunpack.c.l.b16 %v72
    %v708 = vunpack.c.l.b16 %v73
    %v709 = vunpack.c.l.b16 %v74
    %v710 = vunpack.c.l.b16 %v75
    %v711 = vunpack.c.l.b16 %v76
    %v712 = vunpack.c.l.b16 %v77
    %v713 = vunpack.c.l.b16 %v78
    %v714 = vunpack.c.l.b16 %v79
    %v715 = vunpack.c.l.b16 %v80
    %v716 = vunpack.c.l.b16 %v81
    %v717 = vunpack.c.l.b16 %v82
    %v718 = vunpack.c.l.b16 %v83
    %v719 = vunpack.c.l.b16 %v84
    %v720 = vunpack.c.l.b16 %v85
    %v721 = vunpack.c.l.b16 %v86
    %v722 = vunpack.c.l.b16 %v87
    %v723 = vunpack.c.l.b16 %v88
    %v724 = vunpack.c.l.b16 %v89
    %v725 = vunpack.c.l.b16 %v90
    %v726 = vunpack.c.l.b16 %v91
    %v727 = vunpack.c.l.b16 %v92
    %v728 = vunpack.c.l.b16 %v93
    %v729 = vunpack.c.l.b16 %v94
    %v730 = vunpack.c.l.b16 %v95
    %v731 = vunpack.c.l.b16 %v96
    %v732 = vunpack.c.l.b16 %v97
    %v733 = vunpack.c.l.b16 %v98
    %v734 = vunpack.c.l.b16 %v99
    %v735 = vunpack.c.l.b16 %v100
    %v736 = vunpack.c.l.b16 %v101
    %v737 = vunpack.c.l.b16 %v102
    %v738 = vunpack.c.l.b16 %v103
    %v739 = vunpack.c.l.b16 %v104
    %v740 = vunpack.c.l.b16 %v105
    %v741 = vunpack.c.l.b16 %v106
    %v742 = vunpack.c.l.b16 %v107
    %v743 = vunpack.c.l.b16 %v108
    %v744 = vunpack.c.l.b16 %v109
    %v745 = vunpack.c.l.b16 %v110
    %v746 = vunpack.c.l.b16 %v111
    %v747 = vunpack.c.l.b16 %v112
    %v748 = vunpack.c.l.b16 %v113
    %v749 = vunpack.c.l.b16 %v114
    %v750 = vunpack.c.l.b16 %v115
    %v751 = vunpack.c.l.b16 %v116
    %v752 = vunpack.c.l.b16 %v117
    %v753 = vunpack.c.l.b16 %v118
    %v754 = vunpack.c.l.b16 %v119
    %v755 = vunpack.c.l.b16 %v120
    %v756 = vunpack.c.l.b16 %v121
    %v757 = vunpack.c.l.b16 %v122
    %v758 = vunpack.c.l.b16 %v123
    %v759 = vunpack.c.l.b16 %v124
    %v760 = vunpack.c.l.b16 %v125
    %v761 = vunpack.c.l.b16 %v126
    %v762 = vunpack.c.l.b16 %v127
    %v763 = vunpack.c.l.b16 %v128
    %v764 = vunpack.c.l.b16 %v129
    %v765 = vunpack.c.l.b16 %v130
    %v766 = vunpack.c.l.b16 %v131
    %v767 = vunpack.c.l.b16 %v132
    %v768 = vunpack.c.l.b16 %v133
    %v769 = vunpack.c.l.b16 %v134
    %v770 = vunpack.c.l.b16 %v135
    %v771 = vunpack.c.l.b16 %v136
    %v772 = vunpack.c.l.b16 %v137
    %v773 = vunpack.c.l.b16 %v138
    %v774 = vunpack.c.l.b16 %v139
    %v775 = vunpack.c.l.b16 %v140
    %v776 = vunpack.c.l.b16 %v141
    %v777 = vunpack.c.l.b16 %v142
    %v778 = vunpack.c.l.b16 %v143
    %v779 = vunpack.c.l.b16 %v144
    %v780 = vunpack.c.l.b16 %v145
    %v781 = vunpack.c.l.b16 %v146
    %v782 = vunpack.c.l.b16 %v147
    %v783 = vunpack.c.l.b16 %v148
    %v784 = vunpack.c.l.b16 %v149
    %v785 = vunpack.c.l.b16 %v150
    %v786 = vunpack.c.l.b16 %v151
    %v787 = vunpack.c.l.b16 %v152
    %v788 = vunpack.c.l.b16 %v153
    %v789 = vunpack.c.l.b16 %v154
    %v790 = vunpack.c.l.b16 %v155
    %v791 = vunpack.c.l.b16 %v156
    %v792 = vunpack.c.l.b16 %v157
    %v793 = vunpack.c.l.b16 %v158
    %v794 = vunpack.c.l.b16 %v159
    %v795 = vunpack.c.l.b16 %v160
    %v796 = vunpack.c.l.b16 %v161
    %v797 = vunpack.c.l.b16 %v162
    %v798 = vunpack.c.l.b16 %v163
    %v799 = vunpack.c.l.b16 %v164
    %v800 = vunpack.c.l.b16 %v165
    %v801 = vunpack.c.l.b16 %v166
    %v802 = vunpack.c.l.b16 %v167
    %v803 = vunpack.c.l.b16 %v168
    %v804 = vunpack.c.l.b16 %v169
    %v805 = vunpack.c.l.b16 %v170
    %v806 = vunpack.c.l.b16 %v171
    %v807 = vunpack.c.l.b16 %v172
    %v808 = vunpack.c.l.b16 %v173
    %v809 = vunpack.c.l.b16 %v174
    %v810 = vunpack.c.l.b16 %v175
    %v811 = vunpack.c.l.b16 %v176
    %v812 = vunpack.c.l.b16 %v177
    %v813 = vunpack.c.l.b16 %v178
    %v814 = vunpack.c.l.b16 %v179
    %v815 = vunpack.c.l.b16 %v180
    %v816 = vunpack.c.l.b16 %v181
    %v817 = vunpack.c.l.b16 %v182
    %v818 = vunpack.c.l.b16 %v183
    %v819 = vunpack.c.l.b16 %v184
    %v820 = vunpack.c.l.b16 %v185
    %v821 = vunpack.c.l.b16 %v186
    %v822 = vunpack.c.l.b16 %v187
    %v823 = vunpack.c.l.b16 %v188
    %v824 = vunpack.c.l.b16 %v189
    %v825 = vunpack.c.l.b16 %v190
    %v826 = vunpack.c.l.b16 %v191
    %v827 = vunpack.c.l.b16 %v192
    %v828 = vunpack.c.l.b16 %v193
    %v829 = vunpack.c.l.b16 %v194
    %v830 = vunpack.c.l.b16 %v195
    %v831 = vunpack.c.l.b16 %v196
    %v832 = vunpack.c.l.b16 %v197
    %v833 = vunpack.c.l.b16 %v198
    %v834 = vunpack.c.l.b16 %v199
    %v835 = vunpack.c.l.b16 %v200
    %v836 = vunpack.c.l.b16 %v201
    %v837 = vunpack.c.l.b16 %v202
    %v838 = vunpack.c.l.b16 %v203
    %v839 = vunpack.c.l.b16 %v204
    %v840 = vunpack.c.l.b16 %v205
    %v841 = vunpack.c.l.b16 %v206
    %v842 = vunpack.c.l.b16 %v207
    %v843 = vunpack.c.l.b16 %v208
    %v844 = vunpack.c.l.b16 %v209
    %v845 = vunpack.c.l.b16 %v210
    %v846 = vunpack.c.l.b16 %v211
    %v847 = vunpack.c.l.b16 %v212
    %v848 = vunpack.c.l.b16 %v213
    %v849 = vunpack.c.l.b16 %v214
    %v850 = vunpack.c.l.b16 %v215
    %v851 = vunpack.c.l.b16 %v216
    %v852 = vunpack.c.l.b16 %v217
    %v853 = vunpack.c.l.b16 %v218
    %v854 = vunpack.c.l.b16 %v219
    %v855 = vunpack.c.l.b16 %v220
    %v856 = vunpack.c.l.b16 %v221
    %v857 = vunpack.c.l.b16 %v222
    %v858 = vunpack.c.l.b16 %v223
    %v859 = vunpack.c.l.b16 %v224
    %v860 = vunpack.c.l.b16 %v225
    %v861 = vunpack.c.l.b16 %v226
    %v862 = vunpack.c.l.b16 %v227
    %v863 = vunpack.c.l.b16 %v228
    %v864 = vunpack.c.l.b16 %v229
    %v865 = vunpack.c.l.b16 %v230
    %v866 = vunpack.c.l.b16 %v231
    %v867 = vunpack.c.l.b16 %v232
    %v868 = vunpack.c.l.b16 %v233
    %v869 = vunpack.c.l.b16 %v234
    %v870 = vunpack.c.l.b16 %v235
    %v871 = vunpack.c.l.b16 %v236
    %v872 = vunpack.c.l.b16 %v237
    %v873 = vunpack.c.l.b16 %v238
    %v874 = vunpack.c.l.b16 %v239
    %v875 = vunpack.c.l.b16 %v240
    %v876 = vunpack.c.l.b16 %v241
    %v877 = vunpack.c.l.b16 %v242
    %v878 = vunpack.c.l.b16 %v243
    %v879 = vunpack.c.l.b16 %v244
    %v880 = vunpack.c.l.b16 %v245
    %v881 = vunpack.c.l.b16 %v246
    %v882 = vunpack.c.l.b16 %v247
    %v883 = vunpack.c.l.b16 %v248
    %v884 = vunpack.c.l.b16 %v249
    %v885 = vunpack.c.l.b16 %v250
    %v886 = vunpack.c.l.b16 %v251
    %v887 = vunpack.c.l.b16 %v252
    %v888 = vunpack.c.l.b16 %v253
    %v889 = vunpack.c.l.b16 %v254
    %v890 = vunpack.c.l.b16 %v255
    %v891 = vunpack.c.l.b16 %v256
    %v892 = vunpack.c.l.b16 %v257
    %v893 = vunpack.c.l.b16 %v258
    %v894 = vunpack.c.l.b16 %v259
    %v895 = vunpack.c.l.b16 %v260
    %v896 = vunpack.c.l.b16 %v261
    %v897 = vunpack.c.l.b16 %v262
    %v898 = vunpack.c.l.b16 %v263
    %v899 = vunpack.c.l.b16 %v264
    %v900 = vunpack.c.l.b16 %v265
    %v901 = vunpack.c.l.b16 %v266
    %v902 = vunpack.c.l.b16 %v267
    %v903 = vunpack.c.l.b16 %v268
    %v904 = vunpack.c.l.b16 %v269
    %v905 = vunpack.c.l.b16 %v270
    %v906 = vunpack.c.l.b16 %v271
    %v907 = vunpack.c.l.b16 %v272
    %v908 = vunpack.c.l.b16 %v273
    %v909 = vunpack.c.l.b16 %v274
    %v910 = vunpack.c.l.b16 %v275
    %v911 = vunpack.c.l.b16 %v276
    %v912 = vunpack.c.l.b16 %v277
    %v913 = vunpack.c.l.b16 %v278
    %v914 = vunpack.c.l.b16 %v279
    %v915 = vunpack.c.l.b16 %v280
    %v916 = vunpack.c.l.b16 %v281
    %v917 = vunpack.c.l.b16 %v282
    %v918 = vunpack.c.l.b16 %v283
    %v919 = vunpack.c.l.b16 %v284
    %v920 = vunpack.c.l.b16 %v285
    %v921 = vunpack.c.l.b16 %v286
    %v922 = vunpack.c.l.b16 %v287
    %v923 = vunpack.c.l.b16 %v288
    %v924 = vunpack.c.l.b16 %v289
    %v925 = vunpack.c.l.b16 %v290
    %v926 = vunpack.c.l.b16 %v291
    %v927 = vunpack.c.l.b16 %v292
    %v928 = vunpack.c.l.b16 %v293
    %v929 = vunpack.c.l.b16 %v294
    %v930 = vunpack.c.l.b16 %v295
    %v931 = vunpack.c.l.b16 %v296
    %v932 = vunpack.c.l.b16 %v297
    %v933 = vunpack.c.l.b16 %v298
    %v934 = vunpack.c.l.b16 %v299
    %v935 = vunpack.c.l.b16 %v300
    %v936 = vunpack.c.l.b16 %v301
    %v937 = vunpack.c.l.b16 %v302
    %v938 = vunpack.c.l.b16 %v303
    %v939 = vunpack.c.l.b16 %v304
    %v940 = vunpack.c.l.b16 %v305
    %v941 = vunpack.c.l.b16 %v306
    %v942 = vpack.c.b16 %v687, %v686
    %v943 = vpack.c.b16 %v689, %v688
    %v944 = vpack.c.b16 %v691, %v690
    %v945 = vpack.c.b16 %v693, %v692
    %v946 = vpack.c.b16 %v695, %v694
    %v947 = vpack.c.b16 %v697, %v696
    %v948 = vpack.c.b16 %v699, %v698
    %v949 = vpack.c.b16 %v701, %v700
    %v950 = vpack.c.b16 %v703, %v702
    %v951 = vpack.c.b16 %v705, %v704
    %v952 = vpack.c.b16 %v707, %v706
    %v953 = vpack.c.b16 %v709, %v708
    %v954 = vpack.c.b16 %v711, %v710
    %v955 = vpack.c.b16 %v713, %v712
    %v956 = vpack.c.b16 %v715, %v714
    %v957 = vpack.c.b16 %v717, %v716
    %v958 = vpack.c.b16 %v719, %v718
    %v959 = vpack.c.b16 %v721, %v720
    %v960 = vpack.c.b16 %v723, %v722
    %v961 = vpack.c.b16 %v725, %v724
    %v962 = vpack.c.b16 %v727, %v726
    %v963 = vpack.c.b16 %v729, %v728
    %v964 = vpack.c.b16 %v731, %v730
    %v965 = vpack.c.b16 %v733, %v732
    %v966 = vpack.c.b16 %v735, %v734
    %v967 = vpack.c.b16 %v737, %v736
    %v968 = vpack.c.b16 %v739, %v738
    %v969 = vpack.c.b16 %v741, %v740
    %v970 = vpack.c.b16 %v743, %v742
    %v971 = vpack.c.b16 %v745, %v744
    %v972 = vpack.c.b16 %v747, %v746
    %v973 = vpack.c.b16 %v749, %v748
    %v974 = vpack.c.b16 %v751, %v750
    %v975 = vpack.c.b16 %v753, %v752
    %v976 = vpack.c.b16 %v755, %v754
    %v977 = vpack.c.b16 %v757, %v756
    %v978 = vpack.c.b16 %v759, %v758
    %v979 = vpack.c.b16 %v761, %v760
    %v980 = vpack.c.b16 %v763, %v762
    %v981 = vpack.c.b16 %v765, %v764
    %v982 = vpack.c.b16 %v767, %v766
    %v983 = vpack.c.b16 %v769, %v768
    %v984 = vpack.c.b16 %v771, %v770
    %v985 = vpack.c.b16 %v773, %v772
    %v986 = vpack.c.b16 %v775, %v774
    %v987 = vpack.c.b16 %v777, %v776
    %v988 = vpack.c.b16 %v779, %v778
    %v989 = vpack.c.b16 %v781, %v780
    %v990 = vpack.c.b16 %v783, %v782
    %v991 = vpack.c.b16 %v785, %v784
    %v992 = vpack.c.b16 %v787, %v786
    %v993 = vpack.c.b16 %v789, %v788
    %v994 = vpack.c.b16 %v791, %v790
    %v995 = vpack.c.b16 %v793, %v792
    %v996 = vpack.c.b16 %v795, %v794
    %v997 = vpack.c.b16 %v797, %v796
    %v998 = vpack.c.b16 %v799, %v798
    %v999 = vpack.c.b16 %v801, %v800
    %v1000 = vpack.c.b16 %v803, %v802
    %v1001 = vpack.c.b16 %v805, %v804
    %v1002 = vpack.c.b16 %v807, %v806
    %v1003 = vpack.c.b16 %v809, %v808
    %v1004 = vpack.c.b16 %v811, %v810
    %v1005 = vpack.c.b16 %v813, %v812
    %v1006 = vpack.c.b16 %v815, %v814
    %v1007 = vpack.c.b16 %v817, %v816
    %v1008 = vpack.c.b16 %v819, %v818
    %v1009 = vpack.c.b16 %v821, %v820
    %v1010 = vpack.c.b16 %v823, %v822
    %v1011 = vpack.c.b16 %v825, %v824
    %v1012 = vpack.c.b16 %v827, %v826
    %v1013 = vpack.c.b16 %v829, %v828
    %v1014 = vpack.c.b16 %v831, %v830
    %v1015 = vpack.c.b16 %v833, %v832
    %v1016 = vpack.c.b16 %v835, %v834
    %v1017 = vpack.c.b16 %v837, %v836
    %v1018 = vpack.c.b16 %v839, %v838
    %v1019 = vpack.c.b16 %v841, %v840
    %v1020 = vpack.c.b16 %v843, %v842
    %v1021 = vpack.c.b16 %v845, %v844
    %v1022 = vpack.c.b16 %v847, %v846
    %v1023 = vpack.c.b16 %v849, %v848
    %v1024 = vpack.c.b16 %v851, %v850
    %v1025 = vpack.c.b16 %v853, %v852
    %v1026 = vpack.c.b16 %v855, %v854
    %v1027 = vpack.c.b16 %v857, %v856
    %v1028 = vpack.c.b16 %v859, %v858
    %v1029 = vpack.c.b16 %v861, %v860
    %v1030 = vpack.c.b16 %v863, %v862
    %v1031 = vpack.c.b16 %v865, %v864
    %v1032 = vpack.c.b16 %v867, %v866
    %v1033 = vpack.c.b16 %v869, %v868
    %v1034 = vpack.c.b16 %v871, %v870
    %v1035 = vpack.c.b16 %v873, %v872
    %v1036 = vpack.c.b16 %v875, %v874
    %v1037 = vpack.c.b16 %v877, %v876
    %v1038 = vpack.c.b16 %v879, %v878
    %v1039 = vpack.c.b16 %v881, %v880
    %v1040 = vpack.c.b16 %v883, %v882
    %v1041 = vpack.c.b16 %v885, %v884
    %v1042 = vpack.c.b16 %v887, %v886
    %v1043 = vpack.c.b16 %v889, %v888
    %v1044 = vpack.c.b16 %v891, %v890
    %v1045 = vpack.c.b16 %v893, %v892
    %v1046 = vpack.c.b16 %v895, %v894
    %v1047 = vpack.c.b16 %v897, %v896
    %v1048 = vpack.c.b16 %v899, %v898
    %v1049 = vpack.c.b16 %v901, %v900
    %v1050 = vpack.c.b16 %v903, %v902
    %v1051 = vpack.c.b16 %v905, %v904
    %v1052 = vpack.c.b16 %v907, %v906
    %v1053 = vpack.c.b16 %v909, %v908
    %v1054 = vpack.c.b16 %v911, %v910
    %v1055 = vpack.c.b16 %v913, %v912
    %v1056 = vpack.c.b16 %v915, %v914
    %v1057 = vpack.c.b16 %v917, %v916
    %v1058 = vpack.c.b16 %v919, %v918
    %v1059 = vpack.c.b16 %v921, %v920
    %v1060 = vpack.c.b16 %v923, %v922
    %v1061 = vpack.c.b16 %v925, %v924
    %v1062 = vpack.c.b16 %v927, %v926
    %v1063 = vpack.c.b16 %v929, %v928
    %v1064 = vpack.c.b16 %v931, %v930
    %v1065 = vpack.c.b16 %v933, %v932
    %v1066 = vpack.c.b16 %v935, %v934
    %v1067 = vpack.c.b16 %v937, %v936
    %v1068 = vpack.c.b16 %v939, %v938
    %v1069 = vpack.c.b16 %v941, %v940
    %1198 = vmatprep.subr.bf16.mxu0 0
    %1199 = vmatpush1.bf16.msra.mxu0 %v949
    %1200 = vmatprep.subr.bf16.mxu0 0
    %1201 = vmatpush1.bf16.msra.mxu0 %v948
    %1202 = vmatprep.subr.bf16.mxu0 0
    %1203 = vmatpush1.bf16.msra.mxu0 %v947
    %1204 = vmatprep.subr.bf16.mxu0 0
    %1205 = vmatpush1.bf16.msra.mxu0 %v946
    %1206 = vmatprep.subr.bf16.mxu0 0
    %1207 = vmatpush1.bf16.msra.mxu0 %v945
    %1208 = vmatprep.subr.bf16.mxu0 0
    %1209 = vmatpush1.bf16.msra.mxu0 %v944
    %1210 = vmatprep.subr.bf16.mxu0 0
    %1211 = vmatpush1.bf16.msra.mxu0 %v943
    %1212 = vmatprep.subr.bf16.mxu0 0
    %1213 = vmatpush1.bf16.msra.mxu0 %v942
    %1214 = vmatprep.subr.bf16.mxu0 0
    %1215 = vmatpush2.bf16.msra.mxu0 %v957
    %1216 = vmatprep.subr.bf16.mxu0 0
    %1217 = vmatpush2.bf16.msra.mxu0 %v956
    %1218 = vmatprep.subr.bf16.mxu0 0
    %1219 = vmatpush2.bf16.msra.mxu0 %v955
    %1220 = vmatprep.subr.bf16.mxu0 0
    %1221 = vmatpush2.bf16.msra.mxu0 %v954
    %1222 = vmatprep.subr.bf16.mxu0 0
    %1223 = vmatpush2.bf16.msra.mxu0 %v953
    %1224 = vmatprep.subr.bf16.mxu0 0
    %1225 = vmatpush2.bf16.msra.mxu0 %v952
    %1226 = vmatprep.subr.bf16.mxu0 0
    %1227 = vmatpush2.bf16.msra.mxu0 %v951
    %1228 = vmatprep.subr.bf16.mxu0 0
    %1229 = vmatpush2.bf16.msra.mxu0 %v950
    %1230 = vmatprep.mubr.bf16.mxu0 %v353
    %1231 = vmatmul.mubr.bf16.gmra.mxu0 %v339
    %v1232 = vpop.f32.mrf.mxu0
    %v1233 = vadd.f32 %v312, %v1232
    %v1234 = vpop.f32.mrf.mxu0
    %v1235 = vpop.f32.mrf.mxu0
    %v1236 = vpop.f32.mrf.mxu0
    %1237 = vdwg.mxu0
    %1238 = vmatprep.subr.bf16.mxu0 0
    %1239 = vmatpush1.bf16.msra.mxu0 %v965
    %1240 = vmatprep.subr.bf16.mxu0 0
    %1241 = vmatpush1.bf16.msra.mxu0 %v964
    %1242 = vmatprep.subr.bf16.mxu0 0
    %1243 = vmatpush1.bf16.msra.mxu0 %v963
    %1244 = vmatprep.subr.bf16.mxu0 0
    %1245 = vmatpush1.bf16.msra.mxu0 %v962
    %1246 = vmatprep.subr.bf16.mxu0 0
    %1247 = vmatpush1.bf16.msra.mxu0 %v961
    %1248 = vmatprep.subr.bf16.mxu0 0
    %1249 = vmatpush1.bf16.msra.mxu0 %v960
    %1250 = vmatprep.subr.bf16.mxu0 0
    %1251 = vmatpush1.bf16.msra.mxu0 %v959
    %1252 = vmatprep.subr.bf16.mxu0 0
    %1253 = vmatpush1.bf16.msra.mxu0 %v958
    %1254 = vmatprep.subr.bf16.mxu0 0
    %1255 = vmatpush2.bf16.msra.mxu0 %v973
    %1256 = vmatprep.subr.bf16.mxu0 0
    %1257 = vmatpush2.bf16.msra.mxu0 %v972
    %1258 = vmatprep.subr.bf16.mxu0 0
    %1259 = vmatpush2.bf16.msra.mxu0 %v971
    %1260 = vmatprep.subr.bf16.mxu0 0
    %1261 = vmatpush2.bf16.msra.mxu0 %v970
    %1262 = vmatprep.subr.bf16.mxu0 0
    %1263 = vmatpush2.bf16.msra.mxu0 %v969
    %1264 = vmatprep.subr.bf16.mxu0 0
    %1265 = vmatpush2.bf16.msra.mxu0 %v968
    %1266 = vmatprep.subr.bf16.mxu0 0
    %1267 = vmatpush2.bf16.msra.mxu0 %v967
    %1268 = vmatprep.subr.bf16.mxu0 0
    %1269 = vmatpush2.bf16.msra.mxu0 %v966
    %1270 = vmatprep.mubr.bf16.mxu0 %v363
    %1271 = vmatmul.mubr.bf16.gmra.mxu0 %v361
    %v1272 = vpop.f32.mrf.mxu0
    %v1273 = vadd.f32 %v1233, %v1272
    %v1274 = vpop.f32.mrf.mxu0
    %v1275 = vpop.f32.mrf.mxu0
    %v1276 = vpop.f32.mrf.mxu0
    %1277 = vdwg.mxu0
    %1278 = vmatprep.subr.bf16.mxu0 0
    %1279 = vmatpush1.bf16.msra.mxu0 %v981
    %1280 = vmatprep.subr.bf16.mxu0 0
    %1281 = vmatpush1.bf16.msra.mxu0 %v980
    %1282 = vmatprep.subr.bf16.mxu0 0
    %1283 = vmatpush1.bf16.msra.mxu0 %v979
    %1284 = vmatprep.subr.bf16.mxu0 0
    %1285 = vmatpush1.bf16.msra.mxu0 %v978
    %1286 = vmatprep.subr.bf16.mxu0 0
    %1287 = vmatpush1.bf16.msra.mxu0 %v977
    %1288 = vmatprep.subr.bf16.mxu0 0
    %1289 = vmatpush1.bf16.msra.mxu0 %v976
    %1290 = vmatprep.subr.bf16.mxu0 0
    %1291 = vmatpush1.bf16.msra.mxu0 %v975
    %1292 = vmatprep.subr.bf16.mxu0 0
    %1293 = vmatpush1.bf16.msra.mxu0 %v974
    %1294 = vmatprep.subr.bf16.mxu0 0
    %1295 = vmatpush2.bf16.msra.mxu0 %v989
    %1296 = vmatprep.subr.bf16.mxu0 0
    %1297 = vmatpush2.bf16.msra.mxu0 %v988
    %1298 = vmatprep.subr.bf16.mxu0 0
    %1299 = vmatpush2.bf16.msra.mxu0 %v987
    %1300 = vmatprep.subr.bf16.mxu0 0
    %1301 = vmatpush2.bf16.msra.mxu0 %v986
    %1302 = vmatprep.subr.bf16.mxu0 0
    %1303 = vmatpush2.bf16.msra.mxu0 %v985
    %1304 = vmatprep.subr.bf16.mxu0 0
    %1305 = vmatpush2.bf16.msra.mxu0 %v984
    %1306 = vmatprep.subr.bf16.mxu0 0
    %1307 = vmatpush2.bf16.msra.mxu0 %v983
    %1308 = vmatprep.subr.bf16.mxu0 0
    %1309 = vmatpush2.bf16.msra.mxu0 %v982
    %1310 = vmatprep.mubr.bf16.mxu0 %v360
    %1311 = vmatmul.mubr.bf16.gmra.mxu0 %v346
    %v1312 = vpop.f32.mrf.mxu0
    %v1313 = vadd.f32 %v1273, %v1312
    %v1314 = vpop.f32.mrf.mxu0
    %v1315 = vpop.f32.mrf.mxu0
    %v1316 = vpop.f32.mrf.mxu0
    %1317 = vdwg.mxu0
    %1318 = vmatprep.subr.bf16.mxu0 0
    %1319 = vmatpush1.bf16.msra.mxu0 %v997
    %1320 = vmatprep.subr.bf16.mxu0 0
    %1321 = vmatpush1.bf16.msra.mxu0 %v996
    %1322 = vmatprep.subr.bf16.mxu0 0
    %1323 = vmatpush1.bf16.msra.mxu0 %v995
    %1324 = vmatprep.subr.bf16.mxu0 0
    %1325 = vmatpush1.bf16.msra.mxu0 %v994
    %1326 = vmatprep.subr.bf16.mxu0 0
    %1327 = vmatpush1.bf16.msra.mxu0 %v993
    %1328 = vmatprep.subr.bf16.mxu0 0
    %1329 = vmatpush1.bf16.msra.mxu0 %v992
    %1330 = vmatprep.subr.bf16.mxu0 0
    %1331 = vmatpush1.bf16.msra.mxu0 %v991
    %1332 = vmatprep.subr.bf16.mxu0 0
    %1333 = vmatpush1.bf16.msra.mxu0 %v990
    %1334 = vmatprep.subr.bf16.mxu0 0
    %1335 = vmatpush2.bf16.msra.mxu0 %v1005
    %1336 = vmatprep.subr.bf16.mxu0 0
    %1337 = vmatpush2.bf16.msra.mxu0 %v1004
    %1338 = vmatprep.subr.bf16.mxu0 0
    %1339 = vmatpush2.bf16.msra.mxu0 %v1003
    %1340 = vmatprep.subr.bf16.mxu0 0
    %1341 = vmatpush2.bf16.msra.mxu0 %v1002
    %1342 = vmatprep.subr.bf16.mxu0 0
    %1343 = vmatpush2.bf16.msra.mxu0 %v1001
    %1344 = vmatprep.subr.bf16.mxu0 0
    %1345 = vmatpush2.bf16.msra.mxu0 %v1000
    %1346 = vmatprep.subr.bf16.mxu0 0
    %1347 = vmatpush2.bf16.msra.mxu0 %v999
    %1348 = vmatprep.subr.bf16.mxu0 0
    %1349 = vmatpush2.bf16.msra.mxu0 %v998
    %1350 = vmatprep.mubr.bf16.mxu0 %v364
    %1351 = vmatmul.mubr.bf16.gmra.mxu0 %v362
    %v1352 = vpop.f32.mrf.mxu0
    %v1353 = vadd.f32 %v1313, %v1352
    %v1354 = vpop.f32.mrf.mxu0
    %v1355 = vpop.f32.mrf.mxu0
    %v1356 = vpop.f32.mrf.mxu0
    %1357 = vdwg.mxu0
    %1358 = vmatprep.subr.bf16.mxu0 0
    %1359 = vmatpush1.bf16.msra.mxu0 %v1013
    %1360 = vmatprep.subr.bf16.mxu0 0
    %1361 = vmatpush1.bf16.msra.mxu0 %v1012
    %1362 = vmatprep.subr.bf16.mxu0 0
    %1363 = vmatpush1.bf16.msra.mxu0 %v1011
    %1364 = vmatprep.subr.bf16.mxu0 0
    %1365 = vmatpush1.bf16.msra.mxu0 %v1010
    %1366 = vmatprep.subr.bf16.mxu0 0
    %1367 = vmatpush1.bf16.msra.mxu0 %v1009
    %1368 = vmatprep.subr.bf16.mxu0 0
    %1369 = vmatpush1.bf16.msra.mxu0 %v1008
    %1370 = vmatprep.subr.bf16.mxu0 0
    %1371 = vmatpush1.bf16.msra.mxu0 %v1007
    %1372 = vmatprep.subr.bf16.mxu0 0
    %1373 = vmatpush1.bf16.msra.mxu0 %v1006
    %1374 = vmatprep.subr.bf16.mxu0 0
    %1375 = vmatpush2.bf16.msra.mxu0 %v1021
    %1376 = vmatprep.subr.bf16.mxu0 0
    %1377 = vmatpush2.bf16.msra.mxu0 %v1020
    %1378 = vmatprep.subr.bf16.mxu0 0
    %1379 = vmatpush2.bf16.msra.mxu0 %v1019
    %1380 = vmatprep.subr.bf16.mxu0 0
    %1381 = vmatpush2.bf16.msra.mxu0 %v1018
    %1382 = vmatprep.subr.bf16.mxu0 0
    %1383 = vmatpush2.bf16.msra.mxu0 %v1017
    %1384 = vmatprep.subr.bf16.mxu0 0
    %1385 = vmatpush2.bf16.msra.mxu0 %v1016
    %1386 = vmatprep.subr.bf16.mxu0 0
    %1387 = vmatpush2.bf16.msra.mxu0 %v1015
    %1388 = vmatprep.subr.bf16.mxu0 0
    %1389 = vmatpush2.bf16.msra.mxu0 %v1014
    %1390 = vmatprep.mubr.bf16.mxu0 %v402
    %1391 = vmatmul.mubr.bf16.gmra.mxu0 %v388
    %v1392 = vpop.f32.mrf.mxu0
    %v1393 = vadd.f32 %v1353, %v1392
    %v1394 = vpop.f32.mrf.mxu0
    %v1395 = vpop.f32.mrf.mxu0
    %v1396 = vpop.f32.mrf.mxu0
    %1397 = vdwg.mxu0
    %1398 = vmatprep.subr.bf16.mxu0 0
    %1399 = vmatpush1.bf16.msra.mxu0 %v1029
    %1400 = vmatprep.subr.bf16.mxu0 0
    %1401 = vmatpush1.bf16.msra.mxu0 %v1028
    %1402 = vmatprep.subr.bf16.mxu0 0
    %1403 = vmatpush1.bf16.msra.mxu0 %v1027
    %1404 = vmatprep.subr.bf16.mxu0 0
    %1405 = vmatpush1.bf16.msra.mxu0 %v1026
    %1406 = vmatprep.subr.bf16.mxu0 0
    %1407 = vmatpush1.bf16.msra.mxu0 %v1025
    %1408 = vmatprep.subr.bf16.mxu0 0
    %1409 = vmatpush1.bf16.msra.mxu0 %v1024
    %1410 = vmatprep.subr.bf16.mxu0 0
    %1411 = vmatpush1.bf16.msra.mxu0 %v1023
    %1412 = vmatprep.subr.bf16.mxu0 0
    %1413 = vmatpush1.bf16.msra.mxu0 %v1022
    %1414 = vmatprep.subr.bf16.mxu0 0
    %1415 = vmatpush2.bf16.msra.mxu0 %v1037
    %1416 = vmatprep.subr.bf16.mxu0 0
    %1417 = vmatpush2.bf16.msra.mxu0 %v1036
    %1418 = vmatprep.subr.bf16.mxu0 0
    %1419 = vmatpush2.bf16.msra.mxu0 %v1035
    %1420 = vmatprep.subr.bf16.mxu0 0
    %1421 = vmatpush2.bf16.msra.mxu0 %v1034
    %1422 = vmatprep.subr.bf16.mxu0 0
    %1423 = vmatpush2.bf16.msra.mxu0 %v1033
    %1424 = vmatprep.subr.bf16.mxu0 0
    %1425 = vmatpush2.bf16.msra.mxu0 %v1032
    %1426 = vmatprep.subr.bf16.mxu0 0
    %1427 = vmatpush2.bf16.msra.mxu0 %v1031
    %1428 = vmatprep.subr.bf16.mxu0 0
    %1429 = vmatpush2.bf16.msra.mxu0 %v1030
    %1430 = vmatprep.mubr.bf16.mxu0 %v412
    %1431 = vmatmul.mubr.bf16.gmra.mxu0 %v410
    %v1432 = vpop.f32.mrf.mxu0
    %v1433 = vadd.f32 %v1393, %v1432
    %v1434 = vpop.f32.mrf.mxu0
    %v1435 = vpop.f32.mrf.mxu0
    %v1436 = vpop.f32.mrf.mxu0
    %1437 = vdwg.mxu0
    %1438 = vmatprep.subr.bf16.mxu0 0
    %1439 = vmatpush1.bf16.msra.mxu0 %v1045
    %1440 = vmatprep.subr.bf16.mxu0 0
    %1441 = vmatpush1.bf16.msra.mxu0 %v1044
    %1442 = vmatprep.subr.bf16.mxu0 0
    %1443 = vmatpush1.bf16.msra.mxu0 %v1043
    %1444 = vmatprep.subr.bf16.mxu0 0
    %1445 = vmatpush1.bf16.msra.mxu0 %v1042
    %1446 = vmatprep.subr.bf16.mxu0 0
    %1447 = vmatpush1.bf16.msra.mxu0 %v1041
    %1448 = vmatprep.subr.bf16.mxu0 0
    %1449 = vmatpush1.bf16.msra.mxu0 %v1040
    %1450 = vmatprep.subr.bf16.mxu0 0
    %1451 = vmatpush1.bf16.msra.mxu0 %v1039
    %1452 = vmatprep.subr.bf16.mxu0 0
    %1453 = vmatpush1.bf16.msra.mxu0 %v1038
    %1454 = vmatprep.subr.bf16.mxu0 0
    %1455 = vmatpush2.bf16.msra.mxu0 %v1053
    %1456 = vmatprep.subr.bf16.mxu0 0
    %1457 = vmatpush2.bf16.msra.mxu0 %v1052
    %1458 = vmatprep.subr.bf16.mxu0 0
    %1459 = vmatpush2.bf16.msra.mxu0 %v1051
    %1460 = vmatprep.subr.bf16.mxu0 0
    %1461 = vmatpush2.bf16.msra.mxu0 %v1050
    %1462 = vmatprep.subr.bf16.mxu0 0
    %1463 = vmatpush2.bf16.msra.mxu0 %v1049
    %1464 = vmatprep.subr.bf16.mxu0 0
    %1465 = vmatpush2.bf16.msra.mxu0 %v1048
    %1466 = vmatprep.subr.bf16.mxu0 0
    %1467 = vmatpush2.bf16.msra.mxu0 %v1047
    %1468 = vmatprep.subr.bf16.mxu0 0
    %1469 = vmatpush2.bf16.msra.mxu0 %v1046
    %1470 = vmatprep.mubr.bf16.mxu0 %v409
    %1471 = vmatmul.mubr.bf16.gmra.mxu0 %v395
    %v1472 = vpop.f32.mrf.mxu0
    %v1473 = vadd.f32 %v1433, %v1472
    %v1474 = vpop.f32.mrf.mxu0
    %v1475 = vpop.f32.mrf.mxu0
    %v1476 = vpop.f32.mrf.mxu0
    %1477 = vdwg.mxu0
    %1478 = vmatprep.subr.bf16.mxu0 0
    %1479 = vmatpush1.bf16.msra.mxu0 %v1061
    %1480 = vmatprep.subr.bf16.mxu0 0
    %1481 = vmatpush1.bf16.msra.mxu0 %v1060
    %1482 = vmatprep.subr.bf16.mxu0 0
    %1483 = vmatpush1.bf16.msra.mxu0 %v1059
    %1484 = vmatprep.subr.bf16.mxu0 0
    %1485 = vmatpush1.bf16.msra.mxu0 %v1058
    %1486 = vmatprep.subr.bf16.mxu0 0
    %1487 = vmatpush1.bf16.msra.mxu0 %v1057
    %1488 = vmatprep.subr.bf16.mxu0 0
    %1489 = vmatpush1.bf16.msra.mxu0 %v1056
    %1490 = vmatprep.subr.bf16.mxu0 0
    %1491 = vmatpush1.bf16.msra.mxu0 %v1055
    %1492 = vmatprep.subr.bf16.mxu0 0
    %1493 = vmatpush1.bf16.msra.mxu0 %v1054
    %1494 = vmatprep.subr.bf16.mxu0 0
    %1495 = vmatpush2.bf16.msra.mxu0 %v1069
    %1496 = vmatprep.subr.bf16.mxu0 0
    %1497 = vmatpush2.bf16.msra.mxu0 %v1068
    %1498 = vmatprep.subr.bf16.mxu0 0
    %1499 = vmatpush2.bf16.msra.mxu0 %v1067
    %1500 = vmatprep.subr.bf16.mxu0 0
    %1501 = vmatpush2.bf16.msra.mxu0 %v1066
    %1502 = vmatprep.subr.bf16.mxu0 0
    %1503 = vmatpush2.bf16.msra.mxu0 %v1065
    %1504 = vmatprep.subr.bf16.mxu0 0
    %1505 = vmatpush2.bf16.msra.mxu0 %v1064
    %1506 = vmatprep.subr.bf16.mxu0 0
    %1507 = vmatpush2.bf16.msra.mxu0 %v1063
    %1508 = vmatprep.subr.bf16.mxu0 0
    %1509 = vmatpush2.bf16.msra.mxu0 %v1062
    %1510 = vmatprep.mubr.bf16.mxu0 %v413
    %1511 = vmatmul.mubr.bf16.gmra.mxu0 %v411
    %v1512 = vpop.f32.mrf.mxu0
    %v1513 = vadd.f32 %v1473, %v1512
    %v1514 = vpop.f32.mrf.mxu0
    %v1515 = vpop.f32.mrf.mxu0
    %v1516 = vpop.f32.mrf.mxu0
    %1517 = vdwg.mxu0
    %v1518 = vlaneseq
    %v1519 = vand.u32 %v1518, 127
    %v1520 = vld [vmem:[%s1] sm:$0x3]
    %1521 = vset.pattern.permute.xlu0 0
    %1522 = vperm.xlu0 %1521, %v1520
    %v1523 = vpop.permute.xlu0 %1522
    %vm1524 = vcmp.eq.s32.totalorder %v1519, %v1523
    %v1525 = vsel %vm1524, 1, 0
    %v1526 = vcvt.s32.f32 %v1525
    %v1527 = vld [vmem:[%s2] sm:$0xff]
    %v1528 = vld [vmem:[%s2 + $0x8] sm:$0x7]
    %vm1529 = vcmask 89088
    %v1531 = vsel %vm1529, %v1526, 0
    %vm1533 = vcmask 1042432
    %v1535 = vsel %vm1533, %v1528, 0
    %1537 = vmatprep.subr.mxu0 0.0
    %1538 = vmatpush1.msra.mxu0 0.0
    %1539 = vmatprep.subr.mxu0 0.0
    %1540 = vmatpush1.msra.mxu0 0.0
    %1541 = vmatprep.subr.mxu0 0.0
    %1542 = vmatpush1.msra.mxu0 0.0
    %1543 = vmatprep.subr.mxu0 0.0
    %1544 = vmatpush1.msra.mxu0 0.0
    %1545 = vmatprep.subr.mxu0 0.0
    %1546 = vmatpush1.msra.mxu0 0.0
    %1547 = vmatprep.subr.mxu0 0.0
    %1548 = vmatpush1.msra.mxu0 0.0
    %1549 = vmatprep.subr.mxu0 0.0
    %1550 = vmatpush1.msra.mxu0 0.0
    %1551 = vmatprep.subr.mxu0 0.0
    %1552 = vmatpush1.msra.mxu0 0.0
    %1553 = vmatprep.subr.mxu0 0.0
    %1554 = vmatpush1.msra.mxu0 0.0
    %1555 = vmatprep.subr.mxu0 0.0
    %1556 = vmatpush1.msra.mxu0 0.0
    %1557 = vmatprep.subr.mxu0 0.0
    %1558 = vmatpush1.msra.mxu0 0.0
    %1559 = vmatprep.subr.mxu0 0.0
    %1560 = vmatpush1.msra.mxu0 0.0
    %1561 = vmatprep.subr.mxu0 0.0
    %1562 = vmatpush1.msra.mxu0 0.0
    %1563 = vmatprep.subr.mxu0 0.0
    %1564 = vmatpush1.msra.mxu0 0.0
    %1565 = vmatprep.subr.mxu0 0.0
    %1566 = vmatpush1.msra.mxu0 %v1535
    %1567 = vmatprep.subr.mxu0 0.0
    %1568 = vmatpush1.msra.mxu0 %v1527
    %1569 = vmatprep.subr.mxu0 0.0
    %1570 = vmatpush2.msra.mxu0 0.0
    %1571 = vmatprep.subr.mxu0 0.0
    %1572 = vmatpush2.msra.mxu0 0.0
    %1573 = vmatprep.subr.mxu0 0.0
    %1574 = vmatpush2.msra.mxu0 0.0
    %1575 = vmatprep.subr.mxu0 0.0
    %1576 = vmatpush2.msra.mxu0 0.0
    %1577 = vmatprep.subr.mxu0 0.0
    %1578 = vmatpush2.msra.mxu0 0.0
    %1579 = vmatprep.subr.mxu0 0.0
    %1580 = vmatpush2.msra.mxu0 0.0
    %1581 = vmatprep.subr.mxu0 0.0
    %1582 = vmatpush2.msra.mxu0 0.0
    %1583 = vmatprep.subr.mxu0 0.0
    %1584 = vmatpush2.msra.mxu0 0.0
    %1585 = vmatprep.subr.mxu0 0.0
    %1586 = vmatpush2.msra.mxu0 0.0
    %1587 = vmatprep.subr.mxu0 0.0
    %1588 = vmatpush2.msra.mxu0 0.0
    %1589 = vmatprep.subr.mxu0 0.0
    %1590 = vmatpush2.msra.mxu0 0.0
    %1591 = vmatprep.subr.mxu0 0.0
    %1592 = vmatpush2.msra.mxu0 0.0
    %1593 = vmatprep.subr.mxu0 0.0
    %1594 = vmatpush2.msra.mxu0 0.0
    %1595 = vmatprep.subr.mxu0 0.0
    %1596 = vmatpush2.msra.mxu0 0.0
    %1597 = vmatprep.subr.mxu0 0.0
    %1598 = vmatpush2.msra.mxu0 0.0
    %1599 = vmatprep.subr.mxu0 0.0
    %1600 = vmatpush2.msra.mxu0 0.0
    %1601 = vmatprep.mubr.f32.mxu0 0.0
    %1602 = vmatmul.mubr.f32.gmra.mxu0 %v1531
    %v1603 = vpop.f32.mrf.mxu0
    %v1604 = vadd.f32 0.0, %v1603
    %v1605 = vpop.f32.mrf.mxu0
    %1606 = vdwg.mxu0
    %v1607 = vld [vmem:[%s5] sm:$0xff]
    %v1608 = vld [vmem:[%s5 + $0x8] sm:$0xff]
    %v1609 = vld [vmem:[%s5 + $0x10] sm:$0xff]
    %v1610 = vld [vmem:[%s5 + $0x18] sm:$0xff]
    %v1611 = vld [vmem:[%s6] sm:$0x1]
    %v1613 = vlaneseq
    %v1614 = vshrl.u32 %v1613, 7
    %v1615 = vsub.s32 0, %v1614
    %v1616 = vrot.slane %v1611, %v1615
    %vm1618 = vcmask 261120
    %v1620 = vsel %vm1618, %v1604, 0
    %1622 = vmatprep.subr.mxu0 0.0
    %1623 = vmatpush1.msra.mxu0 0.0
    %1624 = vmatprep.subr.mxu0 0.0
    %1625 = vmatpush1.msra.mxu0 0.0
    %1626 = vmatprep.subr.mxu0 0.0
    %1627 = vmatpush1.msra.mxu0 0.0
    %1628 = vmatprep.subr.mxu0 0.0
    %1629 = vmatpush1.msra.mxu0 0.0
    %1630 = vmatprep.subr.mxu0 0.0
    %1631 = vmatpush1.msra.mxu0 0.0
    %1632 = vmatprep.subr.mxu0 0.0
    %1633 = vmatpush1.msra.mxu0 0.0
    %1634 = vmatprep.subr.mxu0 0.0
    %1635 = vmatpush1.msra.mxu0 0.0
    %1636 = vmatprep.subr.mxu0 0.0
    %1637 = vmatpush1.msra.mxu0 0.0
    %1638 = vmatprep.subr.mxu0 0.0
    %1639 = vmatpush1.msra.mxu0 0.0
    %1640 = vmatprep.subr.mxu0 0.0
    %1641 = vmatpush1.msra.mxu0 0.0
    %1642 = vmatprep.subr.mxu0 0.0
    %1643 = vmatpush1.msra.mxu0 0.0
    %1644 = vmatprep.subr.mxu0 0.0
    %1645 = vmatpush1.msra.mxu0 0.0
    %1646 = vmatprep.subr.mxu0 0.0
    %1647 = vmatpush1.msra.mxu0 %v1610
    %1648 = vmatprep.subr.mxu0 0.0
    %1649 = vmatpush1.msra.mxu0 %v1609
    %1650 = vmatprep.subr.mxu0 0.0
    %1651 = vmatpush1.msra.mxu0 %v1608
    %1652 = vmatprep.subr.mxu0 0.0
    %1653 = vmatpush1.msra.mxu0 %v1607
    %1654 = vmatprep.subr.mxu0 0.0
    %1655 = vmatpush2.msra.mxu0 0.0
    %1656 = vmatprep.subr.mxu0 0.0
    %1657 = vmatpush2.msra.mxu0 0.0
    %1658 = vmatprep.subr.mxu0 0.0
    %1659 = vmatpush2.msra.mxu0 0.0
    %1660 = vmatprep.subr.mxu0 0.0
    %1661 = vmatpush2.msra.mxu0 0.0
    %1662 = vmatprep.subr.mxu0 0.0
    %1663 = vmatpush2.msra.mxu0 0.0
    %1664 = vmatprep.subr.mxu0 0.0
    %1665 = vmatpush2.msra.mxu0 0.0
    %1666 = vmatprep.subr.mxu0 0.0
    %1667 = vmatpush2.msra.mxu0 0.0
    %1668 = vmatprep.subr.mxu0 0.0
    %1669 = vmatpush2.msra.mxu0 0.0
    %1670 = vmatprep.subr.mxu0 0.0
    %1671 = vmatpush2.msra.mxu0 0.0
    %1672 = vmatprep.subr.mxu0 0.0
    %1673 = vmatpush2.msra.mxu0 0.0
    %1674 = vmatprep.subr.mxu0 0.0
    %1675 = vmatpush2.msra.mxu0 0.0
    %1676 = vmatprep.subr.mxu0 0.0
    %1677 = vmatpush2.msra.mxu0 0.0
    %1678 = vmatprep.subr.mxu0 0.0
    %1679 = vmatpush2.msra.mxu0 0.0
    %1680 = vmatprep.subr.mxu0 0.0
    %1681 = vmatpush2.msra.mxu0 0.0
    %1682 = vmatprep.subr.mxu0 0.0
    %1683 = vmatpush2.msra.mxu0 0.0
    %1684 = vmatprep.subr.mxu0 0.0
    %1685 = vmatpush2.msra.mxu0 0.0
    %1686 = vmatprep.mubr.f32.mxu0 0.0
    %1687 = vmatmul.mubr.f32.gmra.mxu0 %v1620
    %v1688 = vpop.f32.mrf.mxu0
    %v1689 = vadd.f32 %v1616, %v1688
    %v1690 = vpop.f32.mrf.mxu0
    %1691 = vdwg.mxu0
    %v1692 = vxor.u32 %v1689, 2147483648
    %v1693 = vmul.f32 %v1692, 1.442695
    %v1694 = vpow.pop %v1693
    %v1695 = vadd.f32 %v1694, 1.0
    %v1696 = vrcp.pop %v1695
    %v1697 = vmul.f32 1.0, %v1696
    %v1698 = vmul.f32 %v1689, %v1697
    %v1699 = vld [vmem:[%s7] sm:$0xff]
    %v1700 = vld [vmem:[%s7 + $0x8] sm:$0xff]
    %v1701 = vld [vmem:[%s7 + $0x10] sm:$0xff]
    %v1702 = vld [vmem:[%s7 + $0x18] sm:$0xff]
    %v1703 = vld [vmem:[%s8] sm:$0x1]
    %v1705 = vlaneseq
    %v1706 = vshrl.u32 %v1705, 7
    %v1707 = vsub.s32 0, %v1706
    %v1708 = vrot.slane %v1703, %v1707
    %v1711 = vsel %vm1618, %v1698, 0
    %1713 = vmatprep.subr.mxu0 0.0
    %1714 = vmatpush1.msra.mxu0 0.0
    %1715 = vmatprep.subr.mxu0 0.0
    %1716 = vmatpush1.msra.mxu0 0.0
    %1717 = vmatprep.subr.mxu0 0.0
    %1718 = vmatpush1.msra.mxu0 0.0
    %1719 = vmatprep.subr.mxu0 0.0
    %1720 = vmatpush1.msra.mxu0 0.0
    %1721 = vmatprep.subr.mxu0 0.0
    %1722 = vmatpush1.msra.mxu0 0.0
    %1723 = vmatprep.subr.mxu0 0.0
    %1724 = vmatpush1.msra.mxu0 0.0
    %1725 = vmatprep.subr.mxu0 0.0
    %1726 = vmatpush1.msra.mxu0 0.0
    %1727 = vmatprep.subr.mxu0 0.0
    %1728 = vmatpush1.msra.mxu0 0.0
    %1729 = vmatprep.subr.mxu0 0.0
    %1730 = vmatpush1.msra.mxu0 0.0
    %1731 = vmatprep.subr.mxu0 0.0
    %1732 = vmatpush1.msra.mxu0 0.0
    %1733 = vmatprep.subr.mxu0 0.0
    %1734 = vmatpush1.msra.mxu0 0.0
    %1735 = vmatprep.subr.mxu0 0.0
    %1736 = vmatpush1.msra.mxu0 0.0
    %1737 = vmatprep.subr.mxu0 0.0
    %1738 = vmatpush1.msra.mxu0 %v1702
    %1739 = vmatprep.subr.mxu0 0.0
    %1740 = vmatpush1.msra.mxu0 %v1701
    %1741 = vmatprep.subr.mxu0 0.0
    %1742 = vmatpush1.msra.mxu0 %v1700
    %1743 = vmatprep.subr.mxu0 0.0
    %1744 = vmatpush1.msra.mxu0 %v1699
    %1745 = vmatprep.subr.mxu0 0.0
    %1746 = vmatpush2.msra.mxu0 0.0
    %1747 = vmatprep.subr.mxu0 0.0
    %1748 = vmatpush2.msra.mxu0 0.0
    %1749 = vmatprep.subr.mxu0 0.0
    %1750 = vmatpush2.msra.mxu0 0.0
    %1751 = vmatprep.subr.mxu0 0.0
    %1752 = vmatpush2.msra.mxu0 0.0
    %1753 = vmatprep.subr.mxu0 0.0
    %1754 = vmatpush2.msra.mxu0 0.0
    %1755 = vmatprep.subr.mxu0 0.0
    %1756 = vmatpush2.msra.mxu0 0.0
    %1757 = vmatprep.subr.mxu0 0.0
    %1758 = vmatpush2.msra.mxu0 0.0
    %1759 = vmatprep.subr.mxu0 0.0
    %1760 = vmatpush2.msra.mxu0 0.0
    %1761 = vmatprep.subr.mxu0 0.0
    %1762 = vmatpush2.msra.mxu0 0.0
    %1763 = vmatprep.subr.mxu0 0.0
    %1764 = vmatpush2.msra.mxu0 0.0
    %1765 = vmatprep.subr.mxu0 0.0
    %1766 = vmatpush2.msra.mxu0 0.0
    %1767 = vmatprep.subr.mxu0 0.0
    %1768 = vmatpush2.msra.mxu0 0.0
    %1769 = vmatprep.subr.mxu0 0.0
    %1770 = vmatpush2.msra.mxu0 0.0
    %1771 = vmatprep.subr.mxu0 0.0
    %1772 = vmatpush2.msra.mxu0 0.0
    %1773 = vmatprep.subr.mxu0 0.0
    %1774 = vmatpush2.msra.mxu0 0.0
    %1775 = vmatprep.subr.mxu0 0.0
    %1776 = vmatpush2.msra.mxu0 0.0
    %1777 = vmatprep.mubr.f32.mxu0 0.0
    %1778 = vmatmul.mubr.f32.gmra.mxu0 %v1711
    %v1779 = vpop.f32.mrf.mxu0
    %v1780 = vadd.f32 %v1708, %v1779
    %v1781 = vpop.f32.mrf.mxu0
    %1782 = vdwg.mxu0
    %v1783 = vld [vmem:[%s9] sm:$0xff]
    %v1784 = vld [vmem:[%s9 + $0x8] sm:$0xff]
    %v1785 = vld [vmem:[%s9 + $0x10] sm:$0xff]
    %v1786 = vld [vmem:[%s9 + $0x18] sm:$0xff]
    %v1787 = vld [vmem:[%s10] sm:$0xff]
    %v1788 = vld [vmem:[%s10 + $0x8] sm:$0xff]
    %v1789 = vld [vmem:[%s10 + $0x10] sm:$0xff]
    %v1790 = vld [vmem:[%s10 + $0x18] sm:$0xff]
    %v1792 = vsel %vm1618, %v1780, 0
    %1794 = vmatprep.subr.mxu0 0.0
    %1795 = vmatpush1.msra.mxu0 0.0
    %1796 = vmatprep.subr.mxu0 0.0
    %1797 = vmatpush1.msra.mxu0 0.0
    %1798 = vmatprep.subr.mxu0 0.0
    %1799 = vmatpush1.msra.mxu0 0.0
    %1800 = vmatprep.subr.mxu0 0.0
    %1801 = vmatpush1.msra.mxu0 0.0
    %1802 = vmatprep.subr.mxu0 0.0
    %1803 = vmatpush1.msra.mxu0 0.0
    %1804 = vmatprep.subr.mxu0 0.0
    %1805 = vmatpush1.msra.mxu0 0.0
    %1806 = vmatprep.subr.mxu0 0.0
    %1807 = vmatpush1.msra.mxu0 0.0
    %1808 = vmatprep.subr.mxu0 0.0
    %1809 = vmatpush1.msra.mxu0 0.0
    %1810 = vmatprep.subr.mxu0 0.0
    %1811 = vmatpush1.msra.mxu0 0.0
    %1812 = vmatprep.subr.mxu0 0.0
    %1813 = vmatpush1.msra.mxu0 0.0
    %1814 = vmatprep.subr.mxu0 0.0
    %1815 = vmatpush1.msra.mxu0 0.0
    %1816 = vmatprep.subr.mxu0 0.0
    %1817 = vmatpush1.msra.mxu0 0.0
    %1818 = vmatprep.subr.mxu0 0.0
    %1819 = vmatpush1.msra.mxu0 %v1790
    %1820 = vmatprep.subr.mxu0 0.0
    %1821 = vmatpush1.msra.mxu0 %v1789
    %1822 = vmatprep.subr.mxu0 0.0
    %1823 = vmatpush1.msra.mxu0 %v1788
    %1824 = vmatprep.subr.mxu0 0.0
    %1825 = vmatpush1.msra.mxu0 %v1787
    %1826 = vmatprep.subr.mxu0 0.0
    %1827 = vmatpush2.msra.mxu0 0.0
    %1828 = vmatprep.subr.mxu0 0.0
    %1829 = vmatpush2.msra.mxu0 0.0
    %1830 = vmatprep.subr.mxu0 0.0
    %1831 = vmatpush2.msra.mxu0 0.0
    %1832 = vmatprep.subr.mxu0 0.0
    %1833 = vmatpush2.msra.mxu0 0.0
    %1834 = vmatprep.subr.mxu0 0.0
    %1835 = vmatpush2.msra.mxu0 0.0
    %1836 = vmatprep.subr.mxu0 0.0
    %1837 = vmatpush2.msra.mxu0 0.0
    %1838 = vmatprep.subr.mxu0 0.0
    %1839 = vmatpush2.msra.mxu0 0.0
    %1840 = vmatprep.subr.mxu0 0.0
    %1841 = vmatpush2.msra.mxu0 0.0
    %1842 = vmatprep.subr.mxu0 0.0
    %1843 = vmatpush2.msra.mxu0 0.0
    %1844 = vmatprep.subr.mxu0 0.0
    %1845 = vmatpush2.msra.mxu0 0.0
    %1846 = vmatprep.subr.mxu0 0.0
    %1847 = vmatpush2.msra.mxu0 0.0
    %1848 = vmatprep.subr.mxu0 0.0
    %1849 = vmatpush2.msra.mxu0 0.0
    %1850 = vmatprep.subr.mxu0 0.0
    %1851 = vmatpush2.msra.mxu0 0.0
    %1852 = vmatprep.subr.mxu0 0.0
    %1853 = vmatpush2.msra.mxu0 0.0
    %1854 = vmatprep.subr.mxu0 0.0
    %1855 = vmatpush2.msra.mxu0 0.0
    %1856 = vmatprep.subr.mxu0 0.0
    %1857 = vmatpush2.msra.mxu0 0.0
    %1858 = vmatprep.mubr.f32.mxu0 0.0
    %1859 = vmatmul.mubr.f32.gmra.mxu0 %v1792
    %v1860 = vpop.f32.mrf.mxu0
    %v1861 = vadd.f32 0.0, %v1860
    %v1862 = vpop.f32.mrf.mxu0
    %1863 = vdwg.mxu0
    %v1865 = vsel %vm1618, %v1513, 0
    %1867 = vmatprep.subr.mxu0 0.0
    %1868 = vmatpush1.msra.mxu0 0.0
    %1869 = vmatprep.subr.mxu0 0.0
    %1870 = vmatpush1.msra.mxu0 0.0
    %1871 = vmatprep.subr.mxu0 0.0
    %1872 = vmatpush1.msra.mxu0 0.0
    %1873 = vmatprep.subr.mxu0 0.0
    %1874 = vmatpush1.msra.mxu0 0.0
    %1875 = vmatprep.subr.mxu0 0.0
    %1876 = vmatpush1.msra.mxu0 0.0
    %1877 = vmatprep.subr.mxu0 0.0
    %1878 = vmatpush1.msra.mxu0 0.0
    %1879 = vmatprep.subr.mxu0 0.0
    %1880 = vmatpush1.msra.mxu0 0.0
    %1881 = vmatprep.subr.mxu0 0.0
    %1882 = vmatpush1.msra.mxu0 0.0
    %1883 = vmatprep.subr.mxu0 0.0
    %1884 = vmatpush1.msra.mxu0 0.0
    %1885 = vmatprep.subr.mxu0 0.0
    %1886 = vmatpush1.msra.mxu0 0.0
    %1887 = vmatprep.subr.mxu0 0.0
    %1888 = vmatpush1.msra.mxu0 0.0
    %1889 = vmatprep.subr.mxu0 0.0
    %1890 = vmatpush1.msra.mxu0 0.0
    %1891 = vmatprep.subr.mxu0 0.0
    %1892 = vmatpush1.msra.mxu0 %v1786
    %1893 = vmatprep.subr.mxu0 0.0
    %1894 = vmatpush1.msra.mxu0 %v1785
    %1895 = vmatprep.subr.mxu0 0.0
    %1896 = vmatpush1.msra.mxu0 %v1784
    %1897 = vmatprep.subr.mxu0 0.0
    %1898 = vmatpush1.msra.mxu0 %v1783
    %1899 = vmatprep.subr.mxu0 0.0
    %1900 = vmatpush2.msra.mxu0 0.0
    %1901 = vmatprep.subr.mxu0 0.0
    %1902 = vmatpush2.msra.mxu0 0.0
    %1903 = vmatprep.subr.mxu0 0.0
    %1904 = vmatpush2.msra.mxu0 0.0
    %1905 = vmatprep.subr.mxu0 0.0
    %1906 = vmatpush2.msra.mxu0 0.0
    %1907 = vmatprep.subr.mxu0 0.0
    %1908 = vmatpush2.msra.mxu0 0.0
    %1909 = vmatprep.subr.mxu0 0.0
    %1910 = vmatpush2.msra.mxu0 0.0
    %1911 = vmatprep.subr.mxu0 0.0
    %1912 = vmatpush2.msra.mxu0 0.0
    %1913 = vmatprep.subr.mxu0 0.0
    %1914 = vmatpush2.msra.mxu0 0.0
    %1915 = vmatprep.subr.mxu0 0.0
    %1916 = vmatpush2.msra.mxu0 0.0
    %1917 = vmatprep.subr.mxu0 0.0
    %1918 = vmatpush2.msra.mxu0 0.0
    %1919 = vmatprep.subr.mxu0 0.0
    %1920 = vmatpush2.msra.mxu0 0.0
    %1921 = vmatprep.subr.mxu0 0.0
    %1922 = vmatpush2.msra.mxu0 0.0
    %1923 = vmatprep.subr.mxu0 0.0
    %1924 = vmatpush2.msra.mxu0 0.0
    %1925 = vmatprep.subr.mxu0 0.0
    %1926 = vmatpush2.msra.mxu0 0.0
    %1927 = vmatprep.subr.mxu0 0.0
    %1928 = vmatpush2.msra.mxu0 0.0
    %1929 = vmatprep.subr.mxu0 0.0
    %1930 = vmatpush2.msra.mxu0 0.0
    %1931 = vmatprep.mubr.f32.mxu0 0.0
    %1932 = vmatmul.mubr.f32.gmra.mxu0 %v1865
    %v1933 = vpop.f32.mrf.mxu0
    %v1934 = vadd.f32 %v1861, %v1933
    %v1935 = vpop.f32.mrf.mxu0
    %1936 = vdwg.mxu0
    %v1937 = vld [vmem:[%s11] sm:$0x1]
    %v1939 = vlaneseq
    %v1940 = vshrl.u32 %v1939, 7
    %v1941 = vsub.s32 0, %v1940
    %v1942 = vrot.slane %v1937, %v1941
    %v1944 = vadd.f32 %v1934, %v1942
    %v1945 = vxor.u32 %v1944, 2147483648
    %v1946 = vmul.f32 %v1945, 1.442695
    %v1947 = vpow.pop %v1946
    %v1948 = vadd.f32 %v1947, 1.0
    %v1949 = vrcp.pop %v1948
    %v1950 = vmul.f32 1.0, %v1949
    %v1951 = vmul.f32 %v1944, %v1950
    %v1952 = vld [vmem:[%s12] sm:$0xff]
    %v1953 = vld [vmem:[%s12 + $0x8] sm:$0xff]
    %v1954 = vld [vmem:[%s12 + $0x10] sm:$0xff]
    %v1955 = vld [vmem:[%s12 + $0x18] sm:$0xff]
    %v1956 = vld [vmem:[%s13] sm:$0x1]
    %v1958 = vlaneseq
    %v1959 = vshrl.u32 %v1958, 7
    %v1960 = vsub.s32 0, %v1959
    %v1961 = vrot.slane %v1956, %v1960
    %v1964 = vsel %vm1618, %v1951, 0
    %1966 = vmatprep.subr.mxu0 0.0
    %1967 = vmatpush1.msra.mxu0 0.0
    %1968 = vmatprep.subr.mxu0 0.0
    %1969 = vmatpush1.msra.mxu0 0.0
    %1970 = vmatprep.subr.mxu0 0.0
    %1971 = vmatpush1.msra.mxu0 0.0
    %1972 = vmatprep.subr.mxu0 0.0
    %1973 = vmatpush1.msra.mxu0 0.0
    %1974 = vmatprep.subr.mxu0 0.0
    %1975 = vmatpush1.msra.mxu0 0.0
    %1976 = vmatprep.subr.mxu0 0.0
    %1977 = vmatpush1.msra.mxu0 0.0
    %1978 = vmatprep.subr.mxu0 0.0
    %1979 = vmatpush1.msra.mxu0 0.0
    %1980 = vmatprep.subr.mxu0 0.0
    %1981 = vmatpush1.msra.mxu0 0.0
    %1982 = vmatprep.subr.mxu0 0.0
    %1983 = vmatpush1.msra.mxu0 0.0
    %1984 = vmatprep.subr.mxu0 0.0
    %1985 = vmatpush1.msra.mxu0 0.0
    %1986 = vmatprep.subr.mxu0 0.0
    %1987 = vmatpush1.msra.mxu0 0.0
    %1988 = vmatprep.subr.mxu0 0.0
    %1989 = vmatpush1.msra.mxu0 0.0
    %1990 = vmatprep.subr.mxu0 0.0
    %1991 = vmatpush1.msra.mxu0 %v1955
    %1992 = vmatprep.subr.mxu0 0.0
    %1993 = vmatpush1.msra.mxu0 %v1954
    %1994 = vmatprep.subr.mxu0 0.0
    %1995 = vmatpush1.msra.mxu0 %v1953
    %1996 = vmatprep.subr.mxu0 0.0
    %1997 = vmatpush1.msra.mxu0 %v1952
    %1998 = vmatprep.subr.mxu0 0.0
    %1999 = vmatpush2.msra.mxu0 0.0
    %2000 = vmatprep.subr.mxu0 0.0
    %2001 = vmatpush2.msra.mxu0 0.0
    %2002 = vmatprep.subr.mxu0 0.0
    %2003 = vmatpush2.msra.mxu0 0.0
    %2004 = vmatprep.subr.mxu0 0.0
    %2005 = vmatpush2.msra.mxu0 0.0
    %2006 = vmatprep.subr.mxu0 0.0
    %2007 = vmatpush2.msra.mxu0 0.0
    %2008 = vmatprep.subr.mxu0 0.0
    %2009 = vmatpush2.msra.mxu0 0.0
    %2010 = vmatprep.subr.mxu0 0.0
    %2011 = vmatpush2.msra.mxu0 0.0
    %2012 = vmatprep.subr.mxu0 0.0
    %2013 = vmatpush2.msra.mxu0 0.0
    %2014 = vmatprep.subr.mxu0 0.0
    %2015 = vmatpush2.msra.mxu0 0.0
    %2016 = vmatprep.subr.mxu0 0.0
    %2017 = vmatpush2.msra.mxu0 0.0
    %2018 = vmatprep.subr.mxu0 0.0
    %2019 = vmatpush2.msra.mxu0 0.0
    %2020 = vmatprep.subr.mxu0 0.0
    %2021 = vmatpush2.msra.mxu0 0.0
    %2022 = vmatprep.subr.mxu0 0.0
    %2023 = vmatpush2.msra.mxu0 0.0
    %2024 = vmatprep.subr.mxu0 0.0
    %2025 = vmatpush2.msra.mxu0 0.0
    %2026 = vmatprep.subr.mxu0 0.0
    %2027 = vmatpush2.msra.mxu0 0.0
    %2028 = vmatprep.subr.mxu0 0.0
    %2029 = vmatpush2.msra.mxu0 0.0
    %2030 = vmatprep.mubr.f32.mxu0 0.0
    %2031 = vmatmul.mubr.f32.gmra.mxu0 %v1964
    %v2032 = vpop.f32.mrf.mxu0
    %v2033 = vadd.f32 %v1961, %v2032
    %v2034 = vpop.f32.mrf.mxu0
    %2035 = vdwg.mxu0
    %vm2036 = vcmask 254976
    %2037 = vst.msk [vmem:[#allocation2] sm:$0x3] %vm2036, %v2033
    // Predicated region
    $region58: #{joint_embedding_forward.5} parent=1 // pred_check
      _
    $region59: #{joint_embedding_forward.5} parent=1 // pred_check_branch
      %2039 = sbr.rel (0) target = $region61
    $region60: #{joint_embedding_forward.5} parent=1 // pred_region
      %s2041 = ssub.s32 32, 32
      %2042 = vsyncadd [#allocation3], %s2041
      %s2044 = sshll.u32 [#allocation2], 4
      %s2045 = int_to_ptr.vmem [resolvable:$true] %s2044
      %2047 = dma.vmem_to_hbm [thread:$0]  %s2045, 32, %s14, [#allocation3]
    $region61: #{joint_embedding_forward.5} parent=1 // pred_fallthru
      _
    // Predicated region
    $region62: #{joint_embedding_forward.5} parent=1 // pred_check
      _
    $region63: #{joint_embedding_forward.5} parent=1 // pred_check_branch
      %2049 = sbr.rel (0) target = $region65
    $region64: #{joint_embedding_forward.5} parent=1 // pred_region
      %2050 = dma.done [#allocation3], 32
    $region65: #{joint_embedding_forward.5} parent=1 // pred_fallthru
      _
    %2051 = vsyncpa [#allocation3], 1

// kernel: joint_embedding_forward.4
$region0: #{joint_embedding_forward.4}
  #allocation0 [shape = 'u32[]', space=smem, size = 0x4, offset = 0x4, fixed_abs, tag = 'smem constant byte address 0x4 - core index']
  #allocation1 [shape = 'u32[144,128]{1,0:T(1,128)}', space=vmem, size = 0x12000, scoped, tag = 'internal scratch']
  %s0 = inlined_call_operand.vmem [shape: bf16[16,1920], index: 0, kind: input, shape index: {}]
  %s1 = inlined_call_operand.vmem [shape: bf16[4,1920,256], index: 1, kind: input, shape index: {}]
  %s2 = inlined_call_operand.vmem [shape: f32[1,256], index: 2, kind: input, shape index: {}]
  %s3 = inlined_call_operand.vmem [shape: bf16[16,256], index: 3, kind: output, shape index: {}]
  %s4 = sld [smem:[#allocation0]]
  $region22: #{joint_embedding_forward.4} parent=0
    _
  %s6 = ssub.s32 1, %s4
  %s7 = scalar_select 0, %s6, %s4
  // Predicated region
  $region2: #{joint_embedding_forward.4} parent=0 // pred_check
    _
  $region3: #{joint_embedding_forward.4} parent=0 // pred_check_branch
    %9 = sbr.rel (0) target = $region5
  $region4: #{joint_embedding_forward.4} parent=0 // pred_region
    _
  $region5: #{joint_embedding_forward.4} parent=0 // pred_fallthru
    _
  // Predicated region
  $region6: #{joint_embedding_forward.4} parent=0 // pred_check
    _
  $region7: #{joint_embedding_forward.4} parent=0 // pred_check_branch
    %11 = sbr.rel (0) target = $region9
  $region8: #{joint_embedding_forward.4} parent=0 // pred_region
    _
  $region9: #{joint_embedding_forward.4} parent=0 // pred_fallthru
    _
  // Predicated region
  $region10: #{joint_embedding_forward.4} parent=0 // pred_check
    _
  $region11: #{joint_embedding_forward.4} parent=0 // pred_check_branch
    %13 = sbr.rel (0) target = $region13
  $region12: #{joint_embedding_forward.4} parent=0 // pred_region
    _
  $region13: #{joint_embedding_forward.4} parent=0 // pred_fallthru
    _
  %v15 = vld [vmem:[%s0] sm:$0xff]
  %v16 = vld [vmem:[%s0 + $0x8] sm:$0xff]
  %v17 = vld [vmem:[%s0 + $0x10] sm:$0xff]
  %v18 = vld [vmem:[%s0 + $0x18] sm:$0xff]
  %v19 = vld [vmem:[%s0 + $0x20] sm:$0xff]
  %v20 = vld [vmem:[%s0 + $0x28] sm:$0xff]
  %v21 = vld [vmem:[%s0 + $0x30] sm:$0xff]
  %v22 = vld [vmem:[%s0 + $0x38] sm:$0xf]
  %v23 = vld [vmem:[%s0 + $0x3c] sm:$0xff]
  %v24 = vld [vmem:[%s0 + $0x44] sm:$0xff]
  %v25 = vld [vmem:[%s0 + $0x4c] sm:$0xff]
  %v26 = vld [vmem:[%s0 + $0x54] sm:$0xff]
  %v27 = vld [vmem:[%s0 + $0x5c] sm:$0xff]
  %v28 = vld [vmem:[%s0 + $0x64] sm:$0xff]
  %v29 = vld [vmem:[%s0 + $0x6c] sm:$0xff]
  %v30 = vld [vmem:[%s0 + $0x74] sm:$0xf]
  %v31 = vld [vmem:[%s1] sm:$0xff]
  %v32 = vld [vmem:[%s1 + $0x8] sm:$0xff]
  %v33 = vld [vmem:[%s1 + $0x10] sm:$0xff]
  %v34 = vld [vmem:[%s1 + $0x18] sm:$0xff]
  %v35 = vld [vmem:[%s1 + $0x20] sm:$0xff]
  %v36 = vld [vmem:[%s1 + $0x28] sm:$0xff]
  %v37 = vld [vmem:[%s1 + $0x30] sm:$0xff]
  %v38 = vld [vmem:[%s1 + $0x38] sm:$0xff]
  %v39 = vld [vmem:[%s1 + $0x40] sm:$0xff]
  %v40 = vld [vmem:[%s1 + $0x48] sm:$0xff]
  %v41 = vld [vmem:[%s1 + $0x50] sm:$0xff]
  %v42 = vld [vmem:[%s1 + $0x58] sm:$0xff]
  %v43 = vld [vmem:[%s1 + $0x60] sm:$0xff]
  %v44 = vld [vmem:[%s1 + $0x68] sm:$0xff]
  %v45 = vld [vmem:[%s1 + $0x70] sm:$0xff]
  %v46 = vld [vmem:[%s1 + $0x78] sm:$0xff]
  %v47 = vld [vmem:[%s1 + $0x80] sm:$0xff]
  %v48 = vld [vmem:[%s1 + $0x88] sm:$0xff]
  %v49 = vld [vmem:[%s1 + $0x90] sm:$0xff]
  %v50 = vld [vmem:[%s1 + $0x98] sm:$0xff]
  %v51 = vld [vmem:[%s1 + $0xa0] sm:$0xff]
  %v52 = vld [vmem:[%s1 + $0xa8] sm:$0xff]
  %v53 = vld [vmem:[%s1 + $0xb0] sm:$0xff]
  %v54 = vld [vmem:[%s1 + $0xb8] sm:$0xff]
  %v55 = vld [vmem:[%s1 + $0xc0] sm:$0xff]
  %v56 = vld [vmem:[%s1 + $0xc8] sm:$0xff]
  %v57 = vld [vmem:[%s1 + $0xd0] sm:$0xff]
  %v58 = vld [vmem:[%s1 + $0xd8] sm:$0xff]
  %v59 = vld [vmem:[%s1 + $0xe0] sm:$0xff]
  %v60 = vld [vmem:[%s1 + $0xe8] sm:$0xff]
  %v61 = vld [vmem:[%s1 + $0xf0] sm:$0xff]
  %v62 = vld [vmem:[%s1 + $0xf8] sm:$0xff]
  %v63 = vld [vmem:[%s1 + $0x100] sm:$0xff]
  %v64 = vld [vmem:[%s1 + $0x108] sm:$0xff]
  %v65 = vld [vmem:[%s1 + $0x110] sm:$0xff]
  %v66 = vld [vmem:[%s1 + $0x118] sm:$0xff]
  %v67 = vld [vmem:[%s1 + $0x120] sm:$0xff]
  %v68 = vld [vmem:[%s1 + $0x128] sm:$0xff]
  %v69 = vld [vmem:[%s1 + $0x130] sm:$0xff]
  %v70 = vld [vmem:[%s1 + $0x138] sm:$0xff]
  %v71 = vld [vmem:[%s1 + $0x140] sm:$0xff]
  %v72 = vld [vmem:[%s1 + $0x148] sm:$0xff]
  %v73 = vld [vmem:[%s1 + $0x150] sm:$0xff]
  %v74 = vld [vmem:[%s1 + $0x158] sm:$0xff]
  %v75 = vld [vmem:[%s1 + $0x160] sm:$0xff]
  %v76 = vld [vmem:[%s1 + $0x168] sm:$0xff]
  %v77 = vld [vmem:[%s1 + $0x170] sm:$0xff]
  %v78 = vld [vmem:[%s1 + $0x178] sm:$0xff]
  %v79 = vld [vmem:[%s1 + $0x180] sm:$0xff]
  %v80 = vld [vmem:[%s1 + $0x188] sm:$0xff]
  %v81 = vld [vmem:[%s1 + $0x190] sm:$0xff]
  %v82 = vld [vmem:[%s1 + $0x198] sm:$0xff]
  %v83 = vld [vmem:[%s1 + $0x1a0] sm:$0xff]
  %v84 = vld [vmem:[%s1 + $0x1a8] sm:$0xff]
  %v85 = vld [vmem:[%s1 + $0x1b0] sm:$0xff]
  %v86 = vld [vmem:[%s1 + $0x1b8] sm:$0xff]
  %v87 = vld [vmem:[%s1 + $0x1c0] sm:$0xff]
  %v88 = vld [vmem:[%s1 + $0x1c8] sm:$0xff]
  %v89 = vld [vmem:[%s1 + $0x1d0] sm:$0xff]
  %v90 = vld [vmem:[%s1 + $0x1d8] sm:$0xff]
  %v91 = vld [vmem:[%s1 + $0x1e0] sm:$0xff]
  %v92 = vld [vmem:[%s1 + $0x1e8] sm:$0xff]
  %v93 = vld [vmem:[%s1 + $0x1f0] sm:$0xff]
  %v94 = vld [vmem:[%s1 + $0x1f8] sm:$0xff]
  %v95 = vld [vmem:[%s1 + $0x200] sm:$0xff]
  %v96 = vld [vmem:[%s1 + $0x208] sm:$0xff]
  %v97 = vld [vmem:[%s1 + $0x210] sm:$0xff]
  %v98 = vld [vmem:[%s1 + $0x218] sm:$0xff]
  %v99 = vld [vmem:[%s1 + $0x220] sm:$0xff]
  %v100 = vld [vmem:[%s1 + $0x228] sm:$0xff]
  %v101 = vld [vmem:[%s1 + $0x230] sm:$0xff]
  %v102 = vld [vmem:[%s1 + $0x238] sm:$0xff]
  %v103 = vld [vmem:[%s1 + $0x240] sm:$0xff]
  %v104 = vld [vmem:[%s1 + $0x248] sm:$0xff]
  %v105 = vld [vmem:[%s1 + $0x250] sm:$0xff]
  %v106 = vld [vmem:[%s1 + $0x258] sm:$0xff]
  %v107 = vld [vmem:[%s1 + $0x260] sm:$0xff]
  %v108 = vld [vmem:[%s1 + $0x268] sm:$0xff]
  %v109 = vld [vmem:[%s1 + $0x270] sm:$0xff]
  %v110 = vld [vmem:[%s1 + $0x278] sm:$0xff]
  %v111 = vld [vmem:[%s1 + $0x280] sm:$0xff]
  %v112 = vld [vmem:[%s1 + $0x288] sm:$0xff]
  %v113 = vld [vmem:[%s1 + $0x290] sm:$0xff]
  %v114 = vld [vmem:[%s1 + $0x298] sm:$0xff]
  %v115 = vld [vmem:[%s1 + $0x2a0] sm:$0xff]
  %v116 = vld [vmem:[%s1 + $0x2a8] sm:$0xff]
  %v117 = vld [vmem:[%s1 + $0x2b0] sm:$0xff]
  %v118 = vld [vmem:[%s1 + $0x2b8] sm:$0xff]
  %v119 = vld [vmem:[%s1 + $0x2c0] sm:$0xff]
  %v120 = vld [vmem:[%s1 + $0x2c8] sm:$0xff]
  %v121 = vld [vmem:[%s1 + $0x2d0] sm:$0xff]
  %v122 = vld [vmem:[%s1 + $0x2d8] sm:$0xff]
  %v123 = vld [vmem:[%s1 + $0x2e0] sm:$0xff]
  %v124 = vld [vmem:[%s1 + $0x2e8] sm:$0xff]
  %v125 = vld [vmem:[%s1 + $0x2f0] sm:$0xff]
  %v126 = vld [vmem:[%s1 + $0x2f8] sm:$0xff]
  %v127 = vld [vmem:[%s1 + $0x300] sm:$0xff]
  %v128 = vld [vmem:[%s1 + $0x308] sm:$0xff]
  %v129 = vld [vmem:[%s1 + $0x310] sm:$0xff]
  %v130 = vld [vmem:[%s1 + $0x318] sm:$0xff]
  %v131 = vld [vmem:[%s1 + $0x320] sm:$0xff]
  %v132 = vld [vmem:[%s1 + $0x328] sm:$0xff]
  %v133 = vld [vmem:[%s1 + $0x330] sm:$0xff]
  %v134 = vld [vmem:[%s1 + $0x338] sm:$0xff]
  %v135 = vld [vmem:[%s1 + $0x340] sm:$0xff]
  %v136 = vld [vmem:[%s1 + $0x348] sm:$0xff]
  %v137 = vld [vmem:[%s1 + $0x350] sm:$0xff]
  %v138 = vld [vmem:[%s1 + $0x358] sm:$0xff]
  %v139 = vld [vmem:[%s1 + $0x360] sm:$0xff]
  %v140 = vld [vmem:[%s1 + $0x368] sm:$0xff]
  %v141 = vld [vmem:[%s1 + $0x370] sm:$0xff]
  %v142 = vld [vmem:[%s1 + $0x378] sm:$0xff]
  %v143 = vld [vmem:[%s1 + $0x380] sm:$0xff]
  %v144 = vld [vmem:[%s1 + $0x388] sm:$0xff]
  %v145 = vld [vmem:[%s1 + $0x390] sm:$0xff]
  %v146 = vld [vmem:[%s1 + $0x398] sm:$0xff]
  %v147 = vld [vmem:[%s1 + $0x3a0] sm:$0xff]
  %v148 = vld [vmem:[%s1 + $0x3a8] sm:$0xff]
  %v149 = vld [vmem:[%s1 + $0x3b0] sm:$0xff]
  %v150 = vld [vmem:[%s1 + $0x3b8] sm:$0xff]
  %v151 = vld [vmem:[%s1 + $0x3c0] sm:$0xff]
  %v152 = vld [vmem:[%s1 + $0x3c8] sm:$0xff]
  %v153 = vld [vmem:[%s1 + $0x3d0] sm:$0xff]
  %v154 = vld [vmem:[%s1 + $0x3d8] sm:$0xff]
  %v155 = vld [vmem:[%s1 + $0x3e0] sm:$0xff]
  %v156 = vld [vmem:[%s1 + $0x3e8] sm:$0xff]
  %v157 = vld [vmem:[%s1 + $0x3f0] sm:$0xff]
  %v158 = vld [vmem:[%s1 + $0x3f8] sm:$0xff]
  %v159 = vld [vmem:[%s1 + $0x400] sm:$0xff]
  %v160 = vld [vmem:[%s1 + $0x408] sm:$0xff]
  %v161 = vld [vmem:[%s1 + $0x410] sm:$0xff]
  %v162 = vld [vmem:[%s1 + $0x418] sm:$0xff]
  %v163 = vld [vmem:[%s1 + $0x420] sm:$0xff]
  %v164 = vld [vmem:[%s1 + $0x428] sm:$0xff]
  %v165 = vld [vmem:[%s1 + $0x430] sm:$0xff]
  %v166 = vld [vmem:[%s1 + $0x438] sm:$0xff]
  %v167 = vld [vmem:[%s1 + $0x440] sm:$0xff]
  %v168 = vld [vmem:[%s1 + $0x448] sm:$0xff]
  %v169 = vld [vmem:[%s1 + $0x450] sm:$0xff]
  %v170 = vld [vmem:[%s1 + $0x458] sm:$0xff]
  %v171 = vld [vmem:[%s1 + $0x460] sm:$0xff]
  %v172 = vld [vmem:[%s1 + $0x468] sm:$0xff]
  %v173 = vld [vmem:[%s1 + $0x470] sm:$0xff]
  %v174 = vld [vmem:[%s1 + $0x478] sm:$0xff]
  %v175 = vld [vmem:[%s1 + $0x480] sm:$0xff]
  %v176 = vld [vmem:[%s1 + $0x488] sm:$0xff]
  %v177 = vld [vmem:[%s1 + $0x490] sm:$0xff]
  %v178 = vld [vmem:[%s1 + $0x498] sm:$0xff]
  %v179 = vld [vmem:[%s1 + $0x4a0] sm:$0xff]
  %v180 = vld [vmem:[%s1 + $0x4a8] sm:$0xff]
  %v181 = vld [vmem:[%s1 + $0x4b0] sm:$0xff]
  %v182 = vld [vmem:[%s1 + $0x4b8] sm:$0xff]
  %v183 = vld [vmem:[%s1 + $0x4c0] sm:$0xff]
  %v184 = vld [vmem:[%s1 + $0x4c8] sm:$0xff]
  %v185 = vld [vmem:[%s1 + $0x4d0] sm:$0xff]
  %v186 = vld [vmem:[%s1 + $0x4d8] sm:$0xff]
  %v187 = vld [vmem:[%s1 + $0x4e0] sm:$0xff]
  %v188 = vld [vmem:[%s1 + $0x4e8] sm:$0xff]
  %v189 = vld [vmem:[%s1 + $0x4f0] sm:$0xff]
  %v190 = vld [vmem:[%s1 + $0x4f8] sm:$0xff]
  %v191 = vld [vmem:[%s1 + $0x500] sm:$0xff]
  %v192 = vld [vmem:[%s1 + $0x508] sm:$0xff]
  %v193 = vld [vmem:[%s1 + $0x510] sm:$0xff]
  %v194 = vld [vmem:[%s1 + $0x518] sm:$0xff]
  %v195 = vld [vmem:[%s1 + $0x520] sm:$0xff]
  %v196 = vld [vmem:[%s1 + $0x528] sm:$0xff]
  %v197 = vld [vmem:[%s1 + $0x530] sm:$0xff]
  %v198 = vld [vmem:[%s1 + $0x538] sm:$0xff]
  %v199 = vld [vmem:[%s1 + $0x540] sm:$0xff]
  %v200 = vld [vmem:[%s1 + $0x548] sm:$0xff]
  %v201 = vld [vmem:[%s1 + $0x550] sm:$0xff]
  %v202 = vld [vmem:[%s1 + $0x558] sm:$0xff]
  %v203 = vld [vmem:[%s1 + $0x560] sm:$0xff]
  %v204 = vld [vmem:[%s1 + $0x568] sm:$0xff]
  %v205 = vld [vmem:[%s1 + $0x570] sm:$0xff]
  %v206 = vld [vmem:[%s1 + $0x578] sm:$0xff]
  %v207 = vld [vmem:[%s1 + $0x580] sm:$0xff]
  %v208 = vld [vmem:[%s1 + $0x588] sm:$0xff]
  %v209 = vld [vmem:[%s1 + $0x590] sm:$0xff]
  %v210 = vld [vmem:[%s1 + $0x598] sm:$0xff]
  %v211 = vld [vmem:[%s1 + $0x5a0] sm:$0xff]
  %v212 = vld [vmem:[%s1 + $0x5a8] sm:$0xff]
  %v213 = vld [vmem:[%s1 + $0x5b0] sm:$0xff]
  %v214 = vld [vmem:[%s1 + $0x5b8] sm:$0xff]
  %v215 = vld [vmem:[%s1 + $0x5c0] sm:$0xff]
  %v216 = vld [vmem:[%s1 + $0x5c8] sm:$0xff]
  %v217 = vld [vmem:[%s1 + $0x5d0] sm:$0xff]
  %v218 = vld [vmem:[%s1 + $0x5d8] sm:$0xff]
  %v219 = vld [vmem:[%s1 + $0x5e0] sm:$0xff]
  %v220 = vld [vmem:[%s1 + $0x5e8] sm:$0xff]
  %v221 = vld [vmem:[%s1 + $0x5f0] sm:$0xff]
  %v222 = vld [vmem:[%s1 + $0x5f8] sm:$0xff]
  %v223 = vld [vmem:[%s1 + $0x600] sm:$0xff]
  %v224 = vld [vmem:[%s1 + $0x608] sm:$0xff]
  %v225 = vld [vmem:[%s1 + $0x610] sm:$0xff]
  %v226 = vld [vmem:[%s1 + $0x618] sm:$0xff]
  %v227 = vld [vmem:[%s1 + $0x620] sm:$0xff]
  %v228 = vld [vmem:[%s1 + $0x628] sm:$0xff]
  %v229 = vld [vmem:[%s1 + $0x630] sm:$0xff]
  %v230 = vld [vmem:[%s1 + $0x638] sm:$0xff]
  %v231 = vld [vmem:[%s1 + $0x640] sm:$0xff]
  %v232 = vld [vmem:[%s1 + $0x648] sm:$0xff]
  %v233 = vld [vmem:[%s1 + $0x650] sm:$0xff]
  %v234 = vld [vmem:[%s1 + $0x658] sm:$0xff]
  %v235 = vld [vmem:[%s1 + $0x660] sm:$0xff]
  %v236 = vld [vmem:[%s1 + $0x668] sm:$0xff]
  %v237 = vld [vmem:[%s1 + $0x670] sm:$0xff]
  %v238 = vld [vmem:[%s1 + $0x678] sm:$0xff]
  %v239 = vld [vmem:[%s1 + $0x680] sm:$0xff]
  %v240 = vld [vmem:[%s1 + $0x688] sm:$0xff]
  %v241 = vld [vmem:[%s1 + $0x690] sm:$0xff]
  %v242 = vld [vmem:[%s1 + $0x698] sm:$0xff]
  %v243 = vld [vmem:[%s1 + $0x6a0] sm:$0xff]
  %v244 = vld [vmem:[%s1 + $0x6a8] sm:$0xff]
  %v245 = vld [vmem:[%s1 + $0x6b0] sm:$0xff]
  %v246 = vld [vmem:[%s1 + $0x6b8] sm:$0xff]
  %v247 = vld [vmem:[%s1 + $0x6c0] sm:$0xff]
  %v248 = vld [vmem:[%s1 + $0x6c8] sm:$0xff]
  %v249 = vld [vmem:[%s1 + $0x6d0] sm:$0xff]
  %v250 = vld [vmem:[%s1 + $0x6d8] sm:$0xff]
  %v251 = vld [vmem:[%s1 + $0x6e0] sm:$0xff]
  %v252 = vld [vmem:[%s1 + $0x6e8] sm:$0xff]
  %v253 = vld [vmem:[%s1 + $0x6f0] sm:$0xff]
  %v254 = vld [vmem:[%s1 + $0x6f8] sm:$0xff]
  %v255 = vld [vmem:[%s1 + $0x700] sm:$0xff]
  %v256 = vld [vmem:[%s1 + $0x708] sm:$0xff]
  %v257 = vld [vmem:[%s1 + $0x710] sm:$0xff]
  %v258 = vld [vmem:[%s1 + $0x718] sm:$0xff]
  %v259 = vld [vmem:[%s1 + $0x720] sm:$0xff]
  %v260 = vld [vmem:[%s1 + $0x728] sm:$0xff]
  %v261 = vld [vmem:[%s1 + $0x730] sm:$0xff]
  %v262 = vld [vmem:[%s1 + $0x738] sm:$0xff]
  %v263 = vld [vmem:[%s1 + $0x740] sm:$0xff]
  %v264 = vld [vmem:[%s1 + $0x748] sm:$0xff]
  %v265 = vld [vmem:[%s1 + $0x750] sm:$0xff]
  %v266 = vld [vmem:[%s1 + $0x758] sm:$0xff]
  %v267 = vld [vmem:[%s1 + $0x760] sm:$0xff]
  %v268 = vld [vmem:[%s1 + $0x768] sm:$0xff]
  %v269 = vld [vmem:[%s1 + $0x770] sm:$0xff]
  %v270 = vld [vmem:[%s1 + $0x778] sm:$0xff]
  %v287 = vunpack.c.l.b16 %v15
  %v288 = vunpack.c.h.b16 %v15
  %v289 = vunpack.c.l.b16 %v16
  %v290 = vunpack.c.h.b16 %v16
  %v291 = vunpack.c.l.b16 %v17
  %v292 = vunpack.c.h.b16 %v17
  %v293 = vunpack.c.l.b16 %v18
  %v294 = vunpack.c.h.b16 %v18
  %v295 = vunpack.c.l.b16 %v19
  %v296 = vunpack.c.h.b16 %v19
  %v297 = vunpack.c.l.b16 %v20
  %v298 = vunpack.c.h.b16 %v20
  %v299 = vunpack.c.l.b16 %v21
  %v300 = vunpack.c.h.b16 %v21
  %v301 = vunpack.c.l.b16 %v22
  %v302 = vunpack.c.l.b16 %v23
  %v303 = vunpack.c.h.b16 %v23
  %v304 = vunpack.c.l.b16 %v24
  %v305 = vunpack.c.h.b16 %v24
  %v306 = vunpack.c.l.b16 %v25
  %v307 = vunpack.c.h.b16 %v25
  %v308 = vunpack.c.l.b16 %v26
  %v309 = vunpack.c.h.b16 %v26
  %v310 = vunpack.c.l.b16 %v27
  %v311 = vunpack.c.h.b16 %v27
  %v312 = vunpack.c.l.b16 %v28
  %v313 = vunpack.c.h.b16 %v28
  %v314 = vunpack.c.l.b16 %v29
  %v315 = vunpack.c.h.b16 %v29
  %v316 = vunpack.c.l.b16 %v30
  %v317 = vpack.c.b16 %v302, %v287
  %v318 = vpack.c.b16 %v303, %v288
  %v319 = vpack.c.b16 %v304, %v289
  %v320 = vpack.c.b16 %v305, %v290
  %v321 = vpack.c.b16 %v306, %v291
  %v322 = vpack.c.b16 %v307, %v292
  %v323 = vpack.c.b16 %v308, %v293
  %v324 = vpack.c.b16 %v309, %v294
  %v325 = vpack.c.b16 %v310, %v295
  %v326 = vpack.c.b16 %v311, %v296
  %v327 = vpack.c.b16 %v312, %v297
  %v328 = vpack.c.b16 %v313, %v298
  %v329 = vpack.c.b16 %v314, %v299
  %v330 = vpack.c.b16 %v315, %v300
  %v331 = vpack.c.b16 %v316, %v301
  %v587 = vunpack.c.l.b16 %v31
  %v588 = vunpack.c.h.b16 %v31
  %v589 = vunpack.c.l.b16 %v32
  %v590 = vunpack.c.h.b16 %v32
  %v591 = vunpack.c.l.b16 %v33
  %v592 = vunpack.c.h.b16 %v33
  %v593 = vunpack.c.l.b16 %v34
  %v594 = vunpack.c.h.b16 %v34
  %v595 = vunpack.c.l.b16 %v35
  %v596 = vunpack.c.h.b16 %v35
  %v597 = vunpack.c.l.b16 %v36
  %v598 = vunpack.c.h.b16 %v36
  %v599 = vunpack.c.l.b16 %v37
  %v600 = vunpack.c.h.b16 %v37
  %v601 = vunpack.c.l.b16 %v38
  %v602 = vunpack.c.h.b16 %v38
  %v603 = vunpack.c.l.b16 %v39
  %v604 = vunpack.c.h.b16 %v39
  %v605 = vunpack.c.l.b16 %v40
  %v606 = vunpack.c.h.b16 %v40
  %v607 = vunpack.c.l.b16 %v41
  %v608 = vunpack.c.h.b16 %v41
  %v609 = vunpack.c.l.b16 %v42
  %v610 = vunpack.c.h.b16 %v42
  %v611 = vunpack.c.l.b16 %v43
  %v612 = vunpack.c.h.b16 %v43
  %v613 = vunpack.c.l.b16 %v44
  %v614 = vunpack.c.h.b16 %v44
  %v615 = vunpack.c.l.b16 %v45
  %v616 = vunpack.c.h.b16 %v45
  %v617 = vunpack.c.l.b16 %v46
  %v618 = vunpack.c.h.b16 %v46
  %v619 = vunpack.c.l.b16 %v47
  %v620 = vunpack.c.h.b16 %v47
  %v621 = vunpack.c.l.b16 %v48
  %v622 = vunpack.c.h.b16 %v48
  %v623 = vunpack.c.l.b16 %v49
  %v624 = vunpack.c.h.b16 %v49
  %v625 = vunpack.c.l.b16 %v50
  %v626 = vunpack.c.h.b16 %v50
  %v627 = vunpack.c.l.b16 %v51
  %v628 = vunpack.c.h.b16 %v51
  %v629 = vunpack.c.l.b16 %v52
  %v630 = vunpack.c.h.b16 %v52
  %v631 = vunpack.c.l.b16 %v53
  %v632 = vunpack.c.h.b16 %v53
  %v633 = vunpack.c.l.b16 %v54
  %v634 = vunpack.c.h.b16 %v54
  %v635 = vunpack.c.l.b16 %v55
  %v636 = vunpack.c.h.b16 %v55
  %v637 = vunpack.c.l.b16 %v56
  %v638 = vunpack.c.h.b16 %v56
  %v639 = vunpack.c.l.b16 %v57
  %v640 = vunpack.c.h.b16 %v57
  %v641 = vunpack.c.l.b16 %v58
  %v642 = vunpack.c.h.b16 %v58
  %v643 = vunpack.c.l.b16 %v59
  %v644 = vunpack.c.h.b16 %v59
  %v645 = vunpack.c.l.b16 %v60
  %v646 = vunpack.c.h.b16 %v60
  %v647 = vunpack.c.l.b16 %v61
  %v648 = vunpack.c.h.b16 %v61
  %v649 = vunpack.c.l.b16 %v62
  %v650 = vunpack.c.h.b16 %v62
  %v651 = vunpack.c.l.b16 %v63
  %v652 = vunpack.c.h.b16 %v63
  %v653 = vunpack.c.l.b16 %v64
  %v654 = vunpack.c.h.b16 %v64
  %v655 = vunpack.c.l.b16 %v65
  %v656 = vunpack.c.h.b16 %v65
  %v657 = vunpack.c.l.b16 %v66
  %v658 = vunpack.c.h.b16 %v66
  %v659 = vunpack.c.l.b16 %v67
  %v660 = vunpack.c.h.b16 %v67
  %v661 = vunpack.c.l.b16 %v68
  %v662 = vunpack.c.h.b16 %v68
  %v663 = vunpack.c.l.b16 %v69
  %v664 = vunpack.c.h.b16 %v69
  %v665 = vunpack.c.l.b16 %v70
  %v666 = vunpack.c.h.b16 %v70
  %v667 = vunpack.c.l.b16 %v71
  %v668 = vunpack.c.h.b16 %v71
  %v669 = vunpack.c.l.b16 %v72
  %v670 = vunpack.c.h.b16 %v72
  %v671 = vunpack.c.l.b16 %v73
  %v672 = vunpack.c.h.b16 %v73
  %v673 = vunpack.c.l.b16 %v74
  %v674 = vunpack.c.h.b16 %v74
  %v675 = vunpack.c.l.b16 %v75
  %v676 = vunpack.c.h.b16 %v75
  %v677 = vunpack.c.l.b16 %v76
  %v678 = vunpack.c.h.b16 %v76
  %v679 = vunpack.c.l.b16 %v77
  %v680 = vunpack.c.h.b16 %v77
  %v681 = vunpack.c.l.b16 %v78
  %v682 = vunpack.c.h.b16 %v78
  %v683 = vunpack.c.l.b16 %v79
  %v684 = vunpack.c.h.b16 %v79
  %v685 = vunpack.c.l.b16 %v80
  %v686 = vunpack.c.h.b16 %v80
  %v687 = vunpack.c.l.b16 %v81
  %v688 = vunpack.c.h.b16 %v81
  %v689 = vunpack.c.l.b16 %v82
  %v690 = vunpack.c.h.b16 %v82
  %v691 = vunpack.c.l.b16 %v83
  %v692 = vunpack.c.h.b16 %v83
  %v693 = vunpack.c.l.b16 %v84
  %v694 = vunpack.c.h.b16 %v84
  %v695 = vunpack.c.l.b16 %v85
  %v696 = vunpack.c.h.b16 %v85
  %v697 = vunpack.c.l.b16 %v86
  %v698 = vunpack.c.h.b16 %v86
  %v699 = vunpack.c.l.b16 %v87
  %v700 = vunpack.c.h.b16 %v87
  %v701 = vunpack.c.l.b16 %v88
  %v702 = vunpack.c.h.b16 %v88
  %v703 = vunpack.c.l.b16 %v89
  %v704 = vunpack.c.h.b16 %v89
  %v705 = vunpack.c.l.b16 %v90
  %v706 = vunpack.c.h.b16 %v90
  %v707 = vunpack.c.l.b16 %v91
  %v708 = vunpack.c.h.b16 %v91
  %v709 = vunpack.c.l.b16 %v92
  %v710 = vunpack.c.h.b16 %v92
  %v711 = vunpack.c.l.b16 %v93
  %v712 = vunpack.c.h.b16 %v93
  %v713 = vunpack.c.l.b16 %v94
  %v714 = vunpack.c.h.b16 %v94
  %v715 = vunpack.c.l.b16 %v95
  %v716 = vunpack.c.h.b16 %v95
  %v717 = vunpack.c.l.b16 %v96
  %v718 = vunpack.c.h.b16 %v96
  %v719 = vunpack.c.l.b16 %v97
  %v720 = vunpack.c.h.b16 %v97
  %v721 = vunpack.c.l.b16 %v98
  %v722 = vunpack.c.h.b16 %v98
  %v723 = vunpack.c.l.b16 %v99
  %v724 = vunpack.c.h.b16 %v99
  %v725 = vunpack.c.l.b16 %v100
  %v726 = vunpack.c.h.b16 %v100
  %v727 = vunpack.c.l.b16 %v101
  %v728 = vunpack.c.h.b16 %v101
  %v729 = vunpack.c.l.b16 %v102
  %v730 = vunpack.c.h.b16 %v102
  %v731 = vunpack.c.l.b16 %v103
  %v732 = vunpack.c.h.b16 %v103
  %v733 = vunpack.c.l.b16 %v104
  %v734 = vunpack.c.h.b16 %v104
  %v735 = vunpack.c.l.b16 %v105
  %v736 = vunpack.c.h.b16 %v105
  %v737 = vunpack.c.l.b16 %v106
  %v738 = vunpack.c.h.b16 %v106
  %v739 = vunpack.c.l.b16 %v107
  %v740 = vunpack.c.h.b16 %v107
  %v741 = vunpack.c.l.b16 %v108
  %v742 = vunpack.c.h.b16 %v108
  %v743 = vunpack.c.l.b16 %v109
  %v744 = vunpack.c.h.b16 %v109
  %v745 = vunpack.c.l.b16 %v110
  %v746 = vunpack.c.h.b16 %v110
  %v747 = vunpack.c.l.b16 %v111
  %v748 = vunpack.c.h.b16 %v111
  %v749 = vunpack.c.l.b16 %v112
  %v750 = vunpack.c.h.b16 %v112
  %v751 = vunpack.c.l.b16 %v113
  %v752 = vunpack.c.h.b16 %v113
  %v753 = vunpack.c.l.b16 %v114
  %v754 = vunpack.c.h.b16 %v114
  %v755 = vunpack.c.l.b16 %v115
  %v756 = vunpack.c.h.b16 %v115
  %v757 = vunpack.c.l.b16 %v116
  %v758 = vunpack.c.h.b16 %v116
  %v759 = vunpack.c.l.b16 %v117
  %v760 = vunpack.c.h.b16 %v117
  %v761 = vunpack.c.l.b16 %v118
  %v762 = vunpack.c.h.b16 %v118
  %v763 = vunpack.c.l.b16 %v119
  %v764 = vunpack.c.h.b16 %v119
  %v765 = vunpack.c.l.b16 %v120
  %v766 = vunpack.c.h.b16 %v120
  %v767 = vunpack.c.l.b16 %v121
  %v768 = vunpack.c.h.b16 %v121
  %v769 = vunpack.c.l.b16 %v122
  %v770 = vunpack.c.h.b16 %v122
  %v771 = vunpack.c.l.b16 %v123
  %v772 = vunpack.c.h.b16 %v123
  %v773 = vunpack.c.l.b16 %v124
  %v774 = vunpack.c.h.b16 %v124
  %v775 = vunpack.c.l.b16 %v125
  %v776 = vunpack.c.h.b16 %v125
  %v777 = vunpack.c.l.b16 %v126
  %v778 = vunpack.c.h.b16 %v126
  %v779 = vunpack.c.l.b16 %v127
  %v780 = vunpack.c.h.b16 %v127
  %v781 = vunpack.c.l.b16 %v128
  %v782 = vunpack.c.h.b16 %v128
  %v783 = vunpack.c.l.b16 %v129
  %v784 = vunpack.c.h.b16 %v129
  %v785 = vunpack.c.l.b16 %v130
  %v786 = vunpack.c.h.b16 %v130
  %v787 = vunpack.c.l.b16 %v131
  %v788 = vunpack.c.h.b16 %v131
  %v789 = vunpack.c.l.b16 %v132
  %v790 = vunpack.c.h.b16 %v132
  %v791 = vunpack.c.l.b16 %v133
  %v792 = vunpack.c.h.b16 %v133
  %v793 = vunpack.c.l.b16 %v134
  %v794 = vunpack.c.h.b16 %v134
  %v795 = vunpack.c.l.b16 %v135
  %v796 = vunpack.c.h.b16 %v135
  %v797 = vunpack.c.l.b16 %v136
  %v798 = vunpack.c.h.b16 %v136
  %v799 = vunpack.c.l.b16 %v137
  %v800 = vunpack.c.h.b16 %v137
  %v801 = vunpack.c.l.b16 %v138
  %v802 = vunpack.c.h.b16 %v138
  %v803 = vunpack.c.l.b16 %v139
  %v804 = vunpack.c.h.b16 %v139
  %v805 = vunpack.c.l.b16 %v140
  %v806 = vunpack.c.h.b16 %v140
  %v807 = vunpack.c.l.b16 %v141
  %v808 = vunpack.c.h.b16 %v141
  %v809 = vunpack.c.l.b16 %v142
  %v810 = vunpack.c.h.b16 %v142
  %v811 = vunpack.c.l.b16 %v143
  %v812 = vunpack.c.h.b16 %v143
  %v813 = vunpack.c.l.b16 %v144
  %v814 = vunpack.c.h.b16 %v144
  %v815 = vunpack.c.l.b16 %v145
  %v816 = vunpack.c.h.b16 %v145
  %v817 = vunpack.c.l.b16 %v146
  %v818 = vunpack.c.h.b16 %v146
  %v819 = vunpack.c.l.b16 %v147
  %v820 = vunpack.c.h.b16 %v147
  %v821 = vunpack.c.l.b16 %v148
  %v822 = vunpack.c.h.b16 %v148
  %v823 = vunpack.c.l.b16 %v149
  %v824 = vunpack.c.h.b16 %v149
  %v825 = vunpack.c.l.b16 %v150
  %v826 = vunpack.c.h.b16 %v150
  %v827 = vunpack.c.l.b16 %v151
  %v828 = vunpack.c.h.b16 %v151
  %v829 = vunpack.c.l.b16 %v152
  %v830 = vunpack.c.h.b16 %v152
  %v831 = vunpack.c.l.b16 %v153
  %v832 = vunpack.c.h.b16 %v153
  %v833 = vunpack.c.l.b16 %v154
  %v834 = vunpack.c.h.b16 %v154
  %v835 = vunpack.c.l.b16 %v155
  %v836 = vunpack.c.h.b16 %v155
  %v837 = vunpack.c.l.b16 %v156
  %v838 = vunpack.c.h.b16 %v156
  %v839 = vunpack.c.l.b16 %v157
  %v840 = vunpack.c.h.b16 %v157
  %v841 = vunpack.c.l.b16 %v158
  %v842 = vunpack.c.h.b16 %v158
  %v843 = vunpack.c.l.b16 %v159
  %v844 = vunpack.c.h.b16 %v159
  %v845 = vunpack.c.l.b16 %v160
  %v846 = vunpack.c.h.b16 %v160
  %v847 = vunpack.c.l.b16 %v161
  %v848 = vunpack.c.h.b16 %v161
  %v849 = vunpack.c.l.b16 %v162
  %v850 = vunpack.c.h.b16 %v162
  %v851 = vunpack.c.l.b16 %v163
  %v852 = vunpack.c.h.b16 %v163
  %v853 = vunpack.c.l.b16 %v164
  %v854 = vunpack.c.h.b16 %v164
  %v855 = vunpack.c.l.b16 %v165
  %v856 = vunpack.c.h.b16 %v165
  %v857 = vunpack.c.l.b16 %v166
  %v858 = vunpack.c.h.b16 %v166
  %v859 = vunpack.c.l.b16 %v167
  %v860 = vunpack.c.h.b16 %v167
  %v861 = vunpack.c.l.b16 %v168
  %v862 = vunpack.c.h.b16 %v168
  %v863 = vunpack.c.l.b16 %v169
  %v864 = vunpack.c.h.b16 %v169
  %v865 = vunpack.c.l.b16 %v170
  %v866 = vunpack.c.h.b16 %v170
  %v867 = vunpack.c.l.b16 %v171
  %v868 = vunpack.c.h.b16 %v171
  %v869 = vunpack.c.l.b16 %v172
  %v870 = vunpack.c.h.b16 %v172
  %v871 = vunpack.c.l.b16 %v173
  %v872 = vunpack.c.h.b16 %v173
  %v873 = vunpack.c.l.b16 %v174
  %v874 = vunpack.c.h.b16 %v174
  %v875 = vunpack.c.l.b16 %v175
  %v876 = vunpack.c.h.b16 %v175
  %v877 = vunpack.c.l.b16 %v176
  %v878 = vunpack.c.h.b16 %v176
  %v879 = vunpack.c.l.b16 %v177
  %v880 = vunpack.c.h.b16 %v177
  %v881 = vunpack.c.l.b16 %v178
  %v882 = vunpack.c.h.b16 %v178
  %v883 = vunpack.c.l.b16 %v179
  %v884 = vunpack.c.h.b16 %v179
  %v885 = vunpack.c.l.b16 %v180
  %v886 = vunpack.c.h.b16 %v180
  %v887 = vunpack.c.l.b16 %v181
  %v888 = vunpack.c.h.b16 %v181
  %v889 = vunpack.c.l.b16 %v182
  %v890 = vunpack.c.h.b16 %v182
  %v891 = vunpack.c.l.b16 %v183
  %v892 = vunpack.c.h.b16 %v183
  %v893 = vunpack.c.l.b16 %v184
  %v894 = vunpack.c.h.b16 %v184
  %v895 = vunpack.c.l.b16 %v185
  %v896 = vunpack.c.h.b16 %v185
  %v897 = vunpack.c.l.b16 %v186
  %v898 = vunpack.c.h.b16 %v186
  %v899 = vunpack.c.l.b16 %v187
  %v900 = vunpack.c.h.b16 %v187
  %v901 = vunpack.c.l.b16 %v188
  %v902 = vunpack.c.h.b16 %v188
  %v903 = vunpack.c.l.b16 %v189
  %v904 = vunpack.c.h.b16 %v189
  %v905 = vunpack.c.l.b16 %v190
  %v906 = vunpack.c.h.b16 %v190
  %v907 = vunpack.c.l.b16 %v191
  %v908 = vunpack.c.h.b16 %v191
  %v909 = vunpack.c.l.b16 %v192
  %v910 = vunpack.c.h.b16 %v192
  %v911 = vunpack.c.l.b16 %v193
  %v912 = vunpack.c.h.b16 %v193
  %v913 = vunpack.c.l.b16 %v194
  %v914 = vunpack.c.h.b16 %v194
  %v915 = vunpack.c.l.b16 %v195
  %v916 = vunpack.c.h.b16 %v195
  %v917 = vunpack.c.l.b16 %v196
  %v918 = vunpack.c.h.b16 %v196
  %v919 = vunpack.c.l.b16 %v197
  %v920 = vunpack.c.h.b16 %v197
  %v921 = vunpack.c.l.b16 %v198
  %v922 = vunpack.c.h.b16 %v198
  %v923 = vunpack.c.l.b16 %v199
  %v924 = vunpack.c.h.b16 %v199
  %v925 = vunpack.c.l.b16 %v200
  %v926 = vunpack.c.h.b16 %v200
  %v927 = vunpack.c.l.b16 %v201
  %v928 = vunpack.c.h.b16 %v201
  %v929 = vunpack.c.l.b16 %v202
  %v930 = vunpack.c.h.b16 %v202
  %v931 = vunpack.c.l.b16 %v203
  %v932 = vunpack.c.h.b16 %v203
  %v933 = vunpack.c.l.b16 %v204
  %v934 = vunpack.c.h.b16 %v204
  %v935 = vunpack.c.l.b16 %v205
  %v936 = vunpack.c.h.b16 %v205
  %v937 = vunpack.c.l.b16 %v206
  %v938 = vunpack.c.h.b16 %v206
  %v939 = vunpack.c.l.b16 %v207
  %v940 = vunpack.c.h.b16 %v207
  %v941 = vunpack.c.l.b16 %v208
  %v942 = vunpack.c.h.b16 %v208
  %v943 = vunpack.c.l.b16 %v209
  %v944 = vunpack.c.h.b16 %v209
  %v945 = vunpack.c.l.b16 %v210
  %v946 = vunpack.c.h.b16 %v210
  %v947 = vunpack.c.l.b16 %v211
  %v948 = vunpack.c.h.b16 %v211
  %v949 = vunpack.c.l.b16 %v212
  %v950 = vunpack.c.h.b16 %v212
  %v951 = vunpack.c.l.b16 %v213
  %v952 = vunpack.c.h.b16 %v213
  %v953 = vunpack.c.l.b16 %v214
  %v954 = vunpack.c.h.b16 %v214
  %v955 = vunpack.c.l.b16 %v215
  %v956 = vunpack.c.h.b16 %v215
  %v957 = vunpack.c.l.b16 %v216
  %v958 = vunpack.c.h.b16 %v216
  %v959 = vunpack.c.l.b16 %v217
  %v960 = vunpack.c.h.b16 %v217
  %v961 = vunpack.c.l.b16 %v218
  %v962 = vunpack.c.h.b16 %v218
  %v963 = vunpack.c.l.b16 %v219
  %v964 = vunpack.c.h.b16 %v219
  %v965 = vunpack.c.l.b16 %v220
  %v966 = vunpack.c.h.b16 %v220
  %v967 = vunpack.c.l.b16 %v221
  %v968 = vunpack.c.h.b16 %v221
  %v969 = vunpack.c.l.b16 %v222
  %v970 = vunpack.c.h.b16 %v222
  %v971 = vunpack.c.l.b16 %v223
  %v972 = vunpack.c.h.b16 %v223
  %v973 = vunpack.c.l.b16 %v224
  %v974 = vunpack.c.h.b16 %v224
  %v975 = vunpack.c.l.b16 %v225
  %v976 = vunpack.c.h.b16 %v225
  %v977 = vunpack.c.l.b16 %v226
  %v978 = vunpack.c.h.b16 %v226
  %v979 = vunpack.c.l.b16 %v227
  %v980 = vunpack.c.h.b16 %v227
  %v981 = vunpack.c.l.b16 %v228
  %v982 = vunpack.c.h.b16 %v228
  %v983 = vunpack.c.l.b16 %v229
  %v984 = vunpack.c.h.b16 %v229
  %v985 = vunpack.c.l.b16 %v230
  %v986 = vunpack.c.h.b16 %v230
  %v987 = vunpack.c.l.b16 %v231
  %v988 = vunpack.c.h.b16 %v231
  %v989 = vunpack.c.l.b16 %v232
  %v990 = vunpack.c.h.b16 %v232
  %v991 = vunpack.c.l.b16 %v233
  %v992 = vunpack.c.h.b16 %v233
  %v993 = vunpack.c.l.b16 %v234
  %v994 = vunpack.c.h.b16 %v234
  %v995 = vunpack.c.l.b16 %v235
  %v996 = vunpack.c.h.b16 %v235
  %v997 = vunpack.c.l.b16 %v236
  %v998 = vunpack.c.h.b16 %v236
  %v999 = vunpack.c.l.b16 %v237
  %v1000 = vunpack.c.h.b16 %v237
  %v1001 = vunpack.c.l.b16 %v238
  %v1002 = vunpack.c.h.b16 %v238
  %v1003 = vunpack.c.l.b16 %v239
  %v1004 = vunpack.c.h.b16 %v239
  %v1005 = vunpack.c.l.b16 %v240
  %v1006 = vunpack.c.h.b16 %v240
  %v1007 = vunpack.c.l.b16 %v241
  %v1008 = vunpack.c.h.b16 %v241
  %v1009 = vunpack.c.l.b16 %v242
  %v1010 = vunpack.c.h.b16 %v242
  %v1011 = vunpack.c.l.b16 %v243
  %v1012 = vunpack.c.h.b16 %v243
  %v1013 = vunpack.c.l.b16 %v244
  %v1014 = vunpack.c.h.b16 %v244
  %v1015 = vunpack.c.l.b16 %v245
  %v1016 = vunpack.c.h.b16 %v245
  %v1017 = vunpack.c.l.b16 %v246
  %v1018 = vunpack.c.h.b16 %v246
  %v1019 = vunpack.c.l.b16 %v247
  %v1020 = vunpack.c.h.b16 %v247
  %v1021 = vunpack.c.l.b16 %v248
  %v1022 = vunpack.c.h.b16 %v248
  %v1023 = vunpack.c.l.b16 %v249
  %v1024 = vunpack.c.h.b16 %v249
  %v1025 = vunpack.c.l.b16 %v250
  %v1026 = vunpack.c.h.b16 %v250
  %v1027 = vunpack.c.l.b16 %v251
  %v1028 = vunpack.c.h.b16 %v251
  %v1029 = vunpack.c.l.b16 %v252
  %v1030 = vunpack.c.h.b16 %v252
  %v1031 = vunpack.c.l.b16 %v253
  %v1032 = vunpack.c.h.b16 %v253
  %v1033 = vunpack.c.l.b16 %v254
  %v1034 = vunpack.c.h.b16 %v254
  %v1035 = vunpack.c.l.b16 %v255
  %v1036 = vunpack.c.h.b16 %v255
  %v1037 = vunpack.c.l.b16 %v256
  %v1038 = vunpack.c.h.b16 %v256
  %v1039 = vunpack.c.l.b16 %v257
  %v1040 = vunpack.c.h.b16 %v257
  %v1041 = vunpack.c.l.b16 %v258
  %v1042 = vunpack.c.h.b16 %v258
  %v1043 = vunpack.c.l.b16 %v259
  %v1044 = vunpack.c.h.b16 %v259
  %v1045 = vunpack.c.l.b16 %v260
  %v1046 = vunpack.c.h.b16 %v260
  %v1047 = vunpack.c.l.b16 %v261
  %v1048 = vunpack.c.h.b16 %v261
  %v1049 = vunpack.c.l.b16 %v262
  %v1050 = vunpack.c.h.b16 %v262
  %v1051 = vunpack.c.l.b16 %v263
  %v1052 = vunpack.c.h.b16 %v263
  %v1053 = vunpack.c.l.b16 %v264
  %v1054 = vunpack.c.h.b16 %v264
  %v1055 = vunpack.c.l.b16 %v265
  %v1056 = vunpack.c.h.b16 %v265
  %v1057 = vunpack.c.l.b16 %v266
  %v1058 = vunpack.c.h.b16 %v266
  %v1059 = vunpack.c.l.b16 %v267
  %v1060 = vunpack.c.h.b16 %v267
  %v1061 = vunpack.c.l.b16 %v268
  %v1062 = vunpack.c.h.b16 %v268
  %v1063 = vunpack.c.l.b16 %v269
  %v1064 = vunpack.c.h.b16 %v269
  %v1065 = vunpack.c.l.b16 %v270
  %v1066 = vunpack.c.h.b16 %v270
  %v1067 = vpack.c.b16 %v589, %v587
  %v1068 = vpack.c.b16 %v590, %v588
  %v1069 = vpack.c.b16 %v593, %v591
  %v1070 = vpack.c.b16 %v594, %v592
  %v1071 = vpack.c.b16 %v597, %v595
  %v1072 = vpack.c.b16 %v598, %v596
  %v1073 = vpack.c.b16 %v601, %v599
  %v1074 = vpack.c.b16 %v602, %v600
  %v1075 = vpack.c.b16 %v605, %v603
  %v1076 = vpack.c.b16 %v606, %v604
  %v1077 = vpack.c.b16 %v609, %v607
  %v1078 = vpack.c.b16 %v610, %v608
  %v1079 = vpack.c.b16 %v613, %v611
  %v1080 = vpack.c.b16 %v614, %v612
  %v1081 = vpack.c.b16 %v617, %v615
  %v1082 = vpack.c.b16 %v618, %v616
  %v1083 = vpack.c.b16 %v621, %v619
  %v1084 = vpack.c.b16 %v622, %v620
  %v1085 = vpack.c.b16 %v625, %v623
  %v1086 = vpack.c.b16 %v626, %v624
  %v1087 = vpack.c.b16 %v629, %v627
  %v1088 = vpack.c.b16 %v630, %v628
  %v1089 = vpack.c.b16 %v633, %v631
  %v1090 = vpack.c.b16 %v634, %v632
  %v1091 = vpack.c.b16 %v637, %v635
  %v1092 = vpack.c.b16 %v638, %v636
  %v1093 = vpack.c.b16 %v641, %v639
  %v1094 = vpack.c.b16 %v642, %v640
  %v1095 = vpack.c.b16 %v645, %v643
  %v1096 = vpack.c.b16 %v646, %v644
  %v1097 = vpack.c.b16 %v649, %v647
  %v1098 = vpack.c.b16 %v650, %v648
  %v1099 = vpack.c.b16 %v653, %v651
  %v1100 = vpack.c.b16 %v654, %v652
  %v1101 = vpack.c.b16 %v657, %v655
  %v1102 = vpack.c.b16 %v658, %v656
  %v1103 = vpack.c.b16 %v661, %v659
  %v1104 = vpack.c.b16 %v662, %v660
  %v1105 = vpack.c.b16 %v665, %v663
  %v1106 = vpack.c.b16 %v666, %v664
  %v1107 = vpack.c.b16 %v669, %v667
  %v1108 = vpack.c.b16 %v670, %v668
  %v1109 = vpack.c.b16 %v673, %v671
  %v1110 = vpack.c.b16 %v674, %v672
  %v1111 = vpack.c.b16 %v677, %v675
  %v1112 = vpack.c.b16 %v678, %v676
  %v1113 = vpack.c.b16 %v681, %v679
  %v1114 = vpack.c.b16 %v682, %v680
  %v1115 = vpack.c.b16 %v685, %v683
  %v1116 = vpack.c.b16 %v686, %v684
  %v1117 = vpack.c.b16 %v689, %v687
  %v1118 = vpack.c.b16 %v690, %v688
  %v1119 = vpack.c.b16 %v693, %v691
  %v1120 = vpack.c.b16 %v694, %v692
  %v1121 = vpack.c.b16 %v697, %v695
  %v1122 = vpack.c.b16 %v698, %v696
  %v1123 = vpack.c.b16 %v701, %v699
  %v1124 = vpack.c.b16 %v702, %v700
  %v1125 = vpack.c.b16 %v705, %v703
  %v1126 = vpack.c.b16 %v706, %v704
  %v1127 = vpack.c.b16 %v709, %v707
  %v1128 = vpack.c.b16 %v710, %v708
  %v1129 = vpack.c.b16 %v713, %v711
  %v1130 = vpack.c.b16 %v714, %v712
  %v1131 = vpack.c.b16 %v717, %v715
  %v1132 = vpack.c.b16 %v718, %v716
  %v1133 = vpack.c.b16 %v721, %v719
  %v1134 = vpack.c.b16 %v722, %v720
  %v1135 = vpack.c.b16 %v725, %v723
  %v1136 = vpack.c.b16 %v726, %v724
  %v1137 = vpack.c.b16 %v729, %v727
  %v1138 = vpack.c.b16 %v730, %v728
  %v1139 = vpack.c.b16 %v733, %v731
  %v1140 = vpack.c.b16 %v734, %v732
  %v1141 = vpack.c.b16 %v737, %v735
  %v1142 = vpack.c.b16 %v738, %v736
  %v1143 = vpack.c.b16 %v741, %v739
  %v1144 = vpack.c.b16 %v742, %v740
  %v1145 = vpack.c.b16 %v745, %v743
  %v1146 = vpack.c.b16 %v746, %v744
  %v1147 = vpack.c.b16 %v749, %v747
  %v1148 = vpack.c.b16 %v750, %v748
  %v1149 = vpack.c.b16 %v753, %v751
  %v1150 = vpack.c.b16 %v754, %v752
  %v1151 = vpack.c.b16 %v757, %v755
  %v1152 = vpack.c.b16 %v758, %v756
  %v1153 = vpack.c.b16 %v761, %v759
  %v1154 = vpack.c.b16 %v762, %v760
  %v1155 = vpack.c.b16 %v765, %v763
  %v1156 = vpack.c.b16 %v766, %v764
  %v1157 = vpack.c.b16 %v769, %v767
  %v1158 = vpack.c.b16 %v770, %v768
  %v1159 = vpack.c.b16 %v773, %v771
  %v1160 = vpack.c.b16 %v774, %v772
  %v1161 = vpack.c.b16 %v777, %v775
  %v1162 = vpack.c.b16 %v778, %v776
  %v1163 = vpack.c.b16 %v781, %v779
  %v1164 = vpack.c.b16 %v782, %v780
  %v1165 = vpack.c.b16 %v785, %v783
  %v1166 = vpack.c.b16 %v786, %v784
  %v1167 = vpack.c.b16 %v789, %v787
  %v1168 = vpack.c.b16 %v790, %v788
  %v1169 = vpack.c.b16 %v793, %v791
  %v1170 = vpack.c.b16 %v794, %v792
  %v1171 = vpack.c.b16 %v797, %v795
  %v1172 = vpack.c.b16 %v798, %v796
  %v1173 = vpack.c.b16 %v801, %v799
  %v1174 = vpack.c.b16 %v802, %v800
  %v1175 = vpack.c.b16 %v805, %v803
  %v1176 = vpack.c.b16 %v806, %v804
  %v1177 = vpack.c.b16 %v809, %v807
  %v1178 = vpack.c.b16 %v810, %v808
  %v1179 = vpack.c.b16 %v813, %v811
  %v1180 = vpack.c.b16 %v814, %v812
  %v1181 = vpack.c.b16 %v817, %v815
  %v1182 = vpack.c.b16 %v818, %v816
  %v1183 = vpack.c.b16 %v821, %v819
  %v1184 = vpack.c.b16 %v822, %v820
  %v1185 = vpack.c.b16 %v825, %v823
  %v1186 = vpack.c.b16 %v826, %v824
  %v1187 = vpack.c.b16 %v829, %v827
  %v1188 = vpack.c.b16 %v830, %v828
  %v1189 = vpack.c.b16 %v833, %v831
  %v1190 = vpack.c.b16 %v834, %v832
  %v1191 = vpack.c.b16 %v837, %v835
  %v1192 = vpack.c.b16 %v838, %v836
  %v1193 = vpack.c.b16 %v841, %v839
  %v1194 = vpack.c.b16 %v842, %v840
  %v1195 = vpack.c.b16 %v845, %v843
  %v1196 = vpack.c.b16 %v846, %v844
  %v1197 = vpack.c.b16 %v849, %v847
  %v1198 = vpack.c.b16 %v850, %v848
  %v1199 = vpack.c.b16 %v853, %v851
  %v1200 = vpack.c.b16 %v854, %v852
  %v1201 = vpack.c.b16 %v857, %v855
  %v1202 = vpack.c.b16 %v858, %v856
  %v1203 = vpack.c.b16 %v861, %v859
  %v1204 = vpack.c.b16 %v862, %v860
  %v1205 = vpack.c.b16 %v865, %v863
  %v1206 = vpack.c.b16 %v866, %v864
  %v1207 = vpack.c.b16 %v869, %v867
  %v1208 = vpack.c.b16 %v870, %v868
  %v1209 = vpack.c.b16 %v873, %v871
  %v1210 = vpack.c.b16 %v874, %v872
  %v1211 = vpack.c.b16 %v877, %v875
  %v1212 = vpack.c.b16 %v878, %v876
  %v1213 = vpack.c.b16 %v881, %v879
  %v1214 = vpack.c.b16 %v882, %v880
  %v1215 = vpack.c.b16 %v885, %v883
  %v1216 = vpack.c.b16 %v886, %v884
  %v1217 = vpack.c.b16 %v889, %v887
  %v1218 = vpack.c.b16 %v890, %v888
  %v1219 = vpack.c.b16 %v893, %v891
  %v1220 = vpack.c.b16 %v894, %v892
  %v1221 = vpack.c.b16 %v897, %v895
  %v1222 = vpack.c.b16 %v898, %v896
  %v1223 = vpack.c.b16 %v901, %v899
  %v1224 = vpack.c.b16 %v902, %v900
  %v1225 = vpack.c.b16 %v905, %v903
  %v1226 = vpack.c.b16 %v906, %v904
  %v1227 = vpack.c.b16 %v909, %v907
  %v1228 = vpack.c.b16 %v910, %v908
  %v1229 = vpack.c.b16 %v913, %v911
  %v1230 = vpack.c.b16 %v914, %v912
  %v1231 = vpack.c.b16 %v917, %v915
  %v1232 = vpack.c.b16 %v918, %v916
  %v1233 = vpack.c.b16 %v921, %v919
  %v1234 = vpack.c.b16 %v922, %v920
  %v1235 = vpack.c.b16 %v925, %v923
  %v1236 = vpack.c.b16 %v926, %v924
  %v1237 = vpack.c.b16 %v929, %v927
  %v1238 = vpack.c.b16 %v930, %v928
  %v1239 = vpack.c.b16 %v933, %v931
  %v1240 = vpack.c.b16 %v934, %v932
  %v1241 = vpack.c.b16 %v937, %v935
  %v1242 = vpack.c.b16 %v938, %v936
  %v1243 = vpack.c.b16 %v941, %v939
  %v1244 = vpack.c.b16 %v942, %v940
  %v1245 = vpack.c.b16 %v945, %v943
  %v1246 = vpack.c.b16 %v946, %v944
  %v1247 = vpack.c.b16 %v949, %v947
  %v1248 = vpack.c.b16 %v950, %v948
  %v1249 = vpack.c.b16 %v953, %v951
  %v1250 = vpack.c.b16 %v954, %v952
  %v1251 = vpack.c.b16 %v957, %v955
  %v1252 = vpack.c.b16 %v958, %v956
  %v1253 = vpack.c.b16 %v961, %v959
  %v1254 = vpack.c.b16 %v962, %v960
  %v1255 = vpack.c.b16 %v965, %v963
  %v1256 = vpack.c.b16 %v966, %v964
  %v1257 = vpack.c.b16 %v969, %v967
  %v1258 = vpack.c.b16 %v970, %v968
  %v1259 = vpack.c.b16 %v973, %v971
  %v1260 = vpack.c.b16 %v974, %v972
  %v1261 = vpack.c.b16 %v977, %v975
  %v1262 = vpack.c.b16 %v978, %v976
  %v1263 = vpack.c.b16 %v981, %v979
  %v1264 = vpack.c.b16 %v982, %v980
  %v1265 = vpack.c.b16 %v985, %v983
  %v1266 = vpack.c.b16 %v986, %v984
  %v1267 = vpack.c.b16 %v989, %v987
  %v1268 = vpack.c.b16 %v990, %v988
  %v1269 = vpack.c.b16 %v993, %v991
  %v1270 = vpack.c.b16 %v994, %v992
  %v1271 = vpack.c.b16 %v997, %v995
  %v1272 = vpack.c.b16 %v998, %v996
  %v1273 = vpack.c.b16 %v1001, %v999
  %v1274 = vpack.c.b16 %v1002, %v1000
  %v1275 = vpack.c.b16 %v1005, %v1003
  %v1276 = vpack.c.b16 %v1006, %v1004
  %v1277 = vpack.c.b16 %v1009, %v1007
  %v1278 = vpack.c.b16 %v1010, %v1008
  %v1279 = vpack.c.b16 %v1013, %v1011
  %v1280 = vpack.c.b16 %v1014, %v1012
  %v1281 = vpack.c.b16 %v1017, %v1015
  %v1282 = vpack.c.b16 %v1018, %v1016
  %v1283 = vpack.c.b16 %v1021, %v1019
  %v1284 = vpack.c.b16 %v1022, %v1020
  %v1285 = vpack.c.b16 %v1025, %v1023
  %v1286 = vpack.c.b16 %v1026, %v1024
  %v1287 = vpack.c.b16 %v1029, %v1027
  %v1288 = vpack.c.b16 %v1030, %v1028
  %v1289 = vpack.c.b16 %v1033, %v1031
  %v1290 = vpack.c.b16 %v1034, %v1032
  %v1291 = vpack.c.b16 %v1037, %v1035
  %v1292 = vpack.c.b16 %v1038, %v1036
  %v1293 = vpack.c.b16 %v1041, %v1039
  %v1294 = vpack.c.b16 %v1042, %v1040
  %v1295 = vpack.c.b16 %v1045, %v1043
  %v1296 = vpack.c.b16 %v1046, %v1044
  %v1297 = vpack.c.b16 %v1049, %v1047
  %v1298 = vpack.c.b16 %v1050, %v1048
  %v1299 = vpack.c.b16 %v1053, %v1051
  %v1300 = vpack.c.b16 %v1054, %v1052
  %v1301 = vpack.c.b16 %v1057, %v1055
  %v1302 = vpack.c.b16 %v1058, %v1056
  %v1303 = vpack.c.b16 %v1061, %v1059
  %v1304 = vpack.c.b16 %v1062, %v1060
  %v1305 = vpack.c.b16 %v1065, %v1063
  %v1306 = vpack.c.b16 %v1066, %v1064
  %1547 = vmatprep.subr.bf16.mxu0 %v1082
  %1548 = vmatpush1.bf16.msra.mxu0 %v1081
  %1549 = vmatprep.subr.bf16.mxu0 %v1080
  %1550 = vmatpush1.bf16.msra.mxu0 %v1079
  %1551 = vmatprep.subr.bf16.mxu0 %v1078
  %1552 = vmatpush1.bf16.msra.mxu0 %v1077
  %1553 = vmatprep.subr.bf16.mxu0 %v1076
  %1554 = vmatpush1.bf16.msra.mxu0 %v1075
  %1555 = vmatprep.subr.bf16.mxu0 %v1074
  %1556 = vmatpush1.bf16.msra.mxu0 %v1073
  %1557 = vmatprep.subr.bf16.mxu0 %v1072
  %1558 = vmatpush1.bf16.msra.mxu0 %v1071
  %1559 = vmatprep.subr.bf16.mxu0 %v1070
  %1560 = vmatpush1.bf16.msra.mxu0 %v1069
  %1561 = vmatprep.subr.bf16.mxu0 %v1068
  %1562 = vmatpush1.bf16.msra.mxu0 %v1067
  %1563 = vmatprep.subr.bf16.mxu0 %v1098
  %1564 = vmatpush2.bf16.msra.mxu0 %v1097
  %1565 = vmatprep.subr.bf16.mxu0 %v1096
  %1566 = vmatpush2.bf16.msra.mxu0 %v1095
  %1567 = vmatprep.subr.bf16.mxu0 %v1094
  %1568 = vmatpush2.bf16.msra.mxu0 %v1093
  %1569 = vmatprep.subr.bf16.mxu0 %v1092
  %1570 = vmatpush2.bf16.msra.mxu0 %v1091
  %1571 = vmatprep.subr.bf16.mxu0 %v1090
  %1572 = vmatpush2.bf16.msra.mxu0 %v1089
  %1573 = vmatprep.subr.bf16.mxu0 %v1088
  %1574 = vmatpush2.bf16.msra.mxu0 %v1087
  %1575 = vmatprep.subr.bf16.mxu0 %v1086
  %1576 = vmatpush2.bf16.msra.mxu0 %v1085
  %1577 = vmatprep.subr.bf16.mxu0 %v1084
  %1578 = vmatpush2.bf16.msra.mxu0 %v1083
  %1579 = vmatprep.mubr.bf16.mxu0 %v318
  %1580 = vmatmul.mubr.bf16.gmra.mxu0 %v317
  %v1581 = vpop.f32.mrf.mxu0
  %v1582 = vadd.f32 0.0, %v1581
  %v1583 = vpop.f32.mrf.mxu0
  %v1584 = vadd.f32 0.0, %v1583
  %v1585 = vpop.f32.mrf.mxu0
  %v1586 = vadd.f32 0.0, %v1585
  %v1587 = vpop.f32.mrf.mxu0
  %v1588 = vadd.f32 0.0, %v1587
  %1589 = vdwg.mxu0
  %1590 = vmatprep.subr.bf16.mxu0 %v1114
  %1591 = vmatpush1.bf16.msra.mxu0 %v1113
  %1592 = vmatprep.subr.bf16.mxu0 %v1112
  %1593 = vmatpush1.bf16.msra.mxu0 %v1111
  %1594 = vmatprep.subr.bf16.mxu0 %v1110
  %1595 = vmatpush1.bf16.msra.mxu0 %v1109
  %1596 = vmatprep.subr.bf16.mxu0 %v1108
  %1597 = vmatpush1.bf16.msra.mxu0 %v1107
  %1598 = vmatprep.subr.bf16.mxu0 %v1106
  %1599 = vmatpush1.bf16.msra.mxu0 %v1105
  %1600 = vmatprep.subr.bf16.mxu0 %v1104
  %1601 = vmatpush1.bf16.msra.mxu0 %v1103
  %1602 = vmatprep.subr.bf16.mxu0 %v1102
  %1603 = vmatpush1.bf16.msra.mxu0 %v1101
  %1604 = vmatprep.subr.bf16.mxu0 %v1100
  %1605 = vmatpush1.bf16.msra.mxu0 %v1099
  %1606 = vmatprep.subr.bf16.mxu0 %v1130
  %1607 = vmatpush2.bf16.msra.mxu0 %v1129
  %1608 = vmatprep.subr.bf16.mxu0 %v1128
  %1609 = vmatpush2.bf16.msra.mxu0 %v1127
  %1610 = vmatprep.subr.bf16.mxu0 %v1126
  %1611 = vmatpush2.bf16.msra.mxu0 %v1125
  %1612 = vmatprep.subr.bf16.mxu0 %v1124
  %1613 = vmatpush2.bf16.msra.mxu0 %v1123
  %1614 = vmatprep.subr.bf16.mxu0 %v1122
  %1615 = vmatpush2.bf16.msra.mxu0 %v1121
  %1616 = vmatprep.subr.bf16.mxu0 %v1120
  %1617 = vmatpush2.bf16.msra.mxu0 %v1119
  %1618 = vmatprep.subr.bf16.mxu0 %v1118
  %1619 = vmatpush2.bf16.msra.mxu0 %v1117
  %1620 = vmatprep.subr.bf16.mxu0 %v1116
  %1621 = vmatpush2.bf16.msra.mxu0 %v1115
  %1622 = vmatprep.mubr.bf16.mxu0 %v320
  %1623 = vmatmul.mubr.bf16.gmra.mxu0 %v319
  %v1624 = vpop.f32.mrf.mxu0
  %v1625 = vadd.f32 %v1582, %v1624
  %v1626 = vpop.f32.mrf.mxu0
  %v1627 = vadd.f32 %v1584, %v1626
  %v1628 = vpop.f32.mrf.mxu0
  %v1629 = vadd.f32 %v1586, %v1628
  %v1630 = vpop.f32.mrf.mxu0
  %v1631 = vadd.f32 %v1588, %v1630
  %1632 = vdwg.mxu0
  %1633 = vmatprep.subr.bf16.mxu0 %v1146
  %1634 = vmatpush1.bf16.msra.mxu0 %v1145
  %1635 = vmatprep.subr.bf16.mxu0 %v1144
  %1636 = vmatpush1.bf16.msra.mxu0 %v1143
  %1637 = vmatprep.subr.bf16.mxu0 %v1142
  %1638 = vmatpush1.bf16.msra.mxu0 %v1141
  %1639 = vmatprep.subr.bf16.mxu0 %v1140
  %1640 = vmatpush1.bf16.msra.mxu0 %v1139
  %1641 = vmatprep.subr.bf16.mxu0 %v1138
  %1642 = vmatpush1.bf16.msra.mxu0 %v1137
  %1643 = vmatprep.subr.bf16.mxu0 %v1136
  %1644 = vmatpush1.bf16.msra.mxu0 %v1135
  %1645 = vmatprep.subr.bf16.mxu0 %v1134
  %1646 = vmatpush1.bf16.msra.mxu0 %v1133
  %1647 = vmatprep.subr.bf16.mxu0 %v1132
  %1648 = vmatpush1.bf16.msra.mxu0 %v1131
  %1649 = vmatprep.subr.bf16.mxu0 %v1162
  %1650 = vmatpush2.bf16.msra.mxu0 %v1161
  %1651 = vmatprep.subr.bf16.mxu0 %v1160
  %1652 = vmatpush2.bf16.msra.mxu0 %v1159
  %1653 = vmatprep.subr.bf16.mxu0 %v1158
  %1654 = vmatpush2.bf16.msra.mxu0 %v1157
  %1655 = vmatprep.subr.bf16.mxu0 %v1156
  %1656 = vmatpush2.bf16.msra.mxu0 %v1155
  %1657 = vmatprep.subr.bf16.mxu0 %v1154
  %1658 = vmatpush2.bf16.msra.mxu0 %v1153
  %1659 = vmatprep.subr.bf16.mxu0 %v1152
  %1660 = vmatpush2.bf16.msra.mxu0 %v1151
  %1661 = vmatprep.subr.bf16.mxu0 %v1150
  %1662 = vmatpush2.bf16.msra.mxu0 %v1149
  %1663 = vmatprep.subr.bf16.mxu0 %v1148
  %1664 = vmatpush2.bf16.msra.mxu0 %v1147
  %1665 = vmatprep.mubr.bf16.mxu0 %v322
  %1666 = vmatmul.mubr.bf16.gmra.mxu0 %v321
  %v1667 = vpop.f32.mrf.mxu0
  %v1668 = vadd.f32 %v1625, %v1667
  %v1669 = vpop.f32.mrf.mxu0
  %v1670 = vadd.f32 %v1627, %v1669
  %v1671 = vpop.f32.mrf.mxu0
  %v1672 = vadd.f32 %v1629, %v1671
  %v1673 = vpop.f32.mrf.mxu0
  %v1674 = vadd.f32 %v1631, %v1673
  %1675 = vdwg.mxu0
  %1676 = vmatprep.subr.bf16.mxu0 %v1178
  %1677 = vmatpush1.bf16.msra.mxu0 %v1177
  %1678 = vmatprep.subr.bf16.mxu0 %v1176
  %1679 = vmatpush1.bf16.msra.mxu0 %v1175
  %1680 = vmatprep.subr.bf16.mxu0 %v1174
  %1681 = vmatpush1.bf16.msra.mxu0 %v1173
  %1682 = vmatprep.subr.bf16.mxu0 %v1172
  %1683 = vmatpush1.bf16.msra.mxu0 %v1171
  %1684 = vmatprep.subr.bf16.mxu0 %v1170
  %1685 = vmatpush1.bf16.msra.mxu0 %v1169
  %1686 = vmatprep.subr.bf16.mxu0 %v1168
  %1687 = vmatpush1.bf16.msra.mxu0 %v1167
  %1688 = vmatprep.subr.bf16.mxu0 %v1166
  %1689 = vmatpush1.bf16.msra.mxu0 %v1165
  %1690 = vmatprep.subr.bf16.mxu0 %v1164
  %1691 = vmatpush1.bf16.msra.mxu0 %v1163
  %1692 = vmatprep.subr.bf16.mxu0 %v1194
  %1693 = vmatpush2.bf16.msra.mxu0 %v1193
  %1694 = vmatprep.subr.bf16.mxu0 %v1192
  %1695 = vmatpush2.bf16.msra.mxu0 %v1191
  %1696 = vmatprep.subr.bf16.mxu0 %v1190
  %1697 = vmatpush2.bf16.msra.mxu0 %v1189
  %1698 = vmatprep.subr.bf16.mxu0 %v1188
  %1699 = vmatpush2.bf16.msra.mxu0 %v1187
  %1700 = vmatprep.subr.bf16.mxu0 %v1186
  %1701 = vmatpush2.bf16.msra.mxu0 %v1185
  %1702 = vmatprep.subr.bf16.mxu0 %v1184
  %1703 = vmatpush2.bf16.msra.mxu0 %v1183
  %1704 = vmatprep.subr.bf16.mxu0 %v1182
  %1705 = vmatpush2.bf16.msra.mxu0 %v1181
  %1706 = vmatprep.subr.bf16.mxu0 %v1180
  %1707 = vmatpush2.bf16.msra.mxu0 %v1179
  %1708 = vmatprep.mubr.bf16.mxu0 %v324
  %1709 = vmatmul.mubr.bf16.gmra.mxu0 %v323
  %v1710 = vpop.f32.mrf.mxu0
  %v1711 = vadd.f32 %v1668, %v1710
  %v1712 = vpop.f32.mrf.mxu0
  %v1713 = vadd.f32 %v1670, %v1712
  %v1714 = vpop.f32.mrf.mxu0
  %v1715 = vadd.f32 %v1672, %v1714
  %v1716 = vpop.f32.mrf.mxu0
  %v1717 = vadd.f32 %v1674, %v1716
  %1718 = vdwg.mxu0
  %1719 = vmatprep.subr.bf16.mxu0 %v1210
  %1720 = vmatpush1.bf16.msra.mxu0 %v1209
  %1721 = vmatprep.subr.bf16.mxu0 %v1208
  %1722 = vmatpush1.bf16.msra.mxu0 %v1207
  %1723 = vmatprep.subr.bf16.mxu0 %v1206
  %1724 = vmatpush1.bf16.msra.mxu0 %v1205
  %1725 = vmatprep.subr.bf16.mxu0 %v1204
  %1726 = vmatpush1.bf16.msra.mxu0 %v1203
  %1727 = vmatprep.subr.bf16.mxu0 %v1202
  %1728 = vmatpush1.bf16.msra.mxu0 %v1201
  %1729 = vmatprep.subr.bf16.mxu0 %v1200
  %1730 = vmatpush1.bf16.msra.mxu0 %v1199
  %1731 = vmatprep.subr.bf16.mxu0 %v1198
  %1732 = vmatpush1.bf16.msra.mxu0 %v1197
  %1733 = vmatprep.subr.bf16.mxu0 %v1196
  %1734 = vmatpush1.bf16.msra.mxu0 %v1195
  %1735 = vmatprep.subr.bf16.mxu0 %v1226
  %1736 = vmatpush2.bf16.msra.mxu0 %v1225
  %1737 = vmatprep.subr.bf16.mxu0 %v1224
  %1738 = vmatpush2.bf16.msra.mxu0 %v1223
  %1739 = vmatprep.subr.bf16.mxu0 %v1222
  %1740 = vmatpush2.bf16.msra.mxu0 %v1221
  %1741 = vmatprep.subr.bf16.mxu0 %v1220
  %1742 = vmatpush2.bf16.msra.mxu0 %v1219
  %1743 = vmatprep.subr.bf16.mxu0 %v1218
  %1744 = vmatpush2.bf16.msra.mxu0 %v1217
  %1745 = vmatprep.subr.bf16.mxu0 %v1216
  %1746 = vmatpush2.bf16.msra.mxu0 %v1215
  %1747 = vmatprep.subr.bf16.mxu0 %v1214
  %1748 = vmatpush2.bf16.msra.mxu0 %v1213
  %1749 = vmatprep.subr.bf16.mxu0 %v1212
  %1750 = vmatpush2.bf16.msra.mxu0 %v1211
  %1751 = vmatprep.mubr.bf16.mxu0 %v326
  %1752 = vmatmul.mubr.bf16.gmra.mxu0 %v325
  %v1753 = vpop.f32.mrf.mxu0
  %v1754 = vadd.f32 %v1711, %v1753
  %v1755 = vpop.f32.mrf.mxu0
  %v1756 = vadd.f32 %v1713, %v1755
  %v1757 = vpop.f32.mrf.mxu0
  %v1758 = vadd.f32 %v1715, %v1757
  %v1759 = vpop.f32.mrf.mxu0
  %v1760 = vadd.f32 %v1717, %v1759
  %1761 = vdwg.mxu0
  %1762 = vmatprep.subr.bf16.mxu0 %v1242
  %1763 = vmatpush1.bf16.msra.mxu0 %v1241
  %1764 = vmatprep.subr.bf16.mxu0 %v1240
  %1765 = vmatpush1.bf16.msra.mxu0 %v1239
  %1766 = vmatprep.subr.bf16.mxu0 %v1238
  %1767 = vmatpush1.bf16.msra.mxu0 %v1237
  %1768 = vmatprep.subr.bf16.mxu0 %v1236
  %1769 = vmatpush1.bf16.msra.mxu0 %v1235
  %1770 = vmatprep.subr.bf16.mxu0 %v1234
  %1771 = vmatpush1.bf16.msra.mxu0 %v1233
  %1772 = vmatprep.subr.bf16.mxu0 %v1232
  %1773 = vmatpush1.bf16.msra.mxu0 %v1231
  %1774 = vmatprep.subr.bf16.mxu0 %v1230
  %1775 = vmatpush1.bf16.msra.mxu0 %v1229
  %1776 = vmatprep.subr.bf16.mxu0 %v1228
  %1777 = vmatpush1.bf16.msra.mxu0 %v1227
  %1778 = vmatprep.subr.bf16.mxu0 %v1258
  %1779 = vmatpush2.bf16.msra.mxu0 %v1257
  %1780 = vmatprep.subr.bf16.mxu0 %v1256
  %1781 = vmatpush2.bf16.msra.mxu0 %v1255
  %1782 = vmatprep.subr.bf16.mxu0 %v1254
  %1783 = vmatpush2.bf16.msra.mxu0 %v1253
  %1784 = vmatprep.subr.bf16.mxu0 %v1252
  %1785 = vmatpush2.bf16.msra.mxu0 %v1251
  %1786 = vmatprep.subr.bf16.mxu0 %v1250
  %1787 = vmatpush2.bf16.msra.mxu0 %v1249
  %1788 = vmatprep.subr.bf16.mxu0 %v1248
  %1789 = vmatpush2.bf16.msra.mxu0 %v1247
  %1790 = vmatprep.subr.bf16.mxu0 %v1246
  %1791 = vmatpush2.bf16.msra.mxu0 %v1245
  %1792 = vmatprep.subr.bf16.mxu0 %v1244
  %1793 = vmatpush2.bf16.msra.mxu0 %v1243
  %1794 = vmatprep.mubr.bf16.mxu0 %v328
  %1795 = vmatmul.mubr.bf16.gmra.mxu0 %v327
  %v1796 = vpop.f32.mrf.mxu0
  %v1797 = vadd.f32 %v1754, %v1796
  %v1798 = vpop.f32.mrf.mxu0
  %v1799 = vadd.f32 %v1756, %v1798
  %v1800 = vpop.f32.mrf.mxu0
  %v1801 = vadd.f32 %v1758, %v1800
  %v1802 = vpop.f32.mrf.mxu0
  %v1803 = vadd.f32 %v1760, %v1802
  %1804 = vdwg.mxu0
  %1805 = vmatprep.subr.bf16.mxu0 %v1274
  %1806 = vmatpush1.bf16.msra.mxu0 %v1273
  %1807 = vmatprep.subr.bf16.mxu0 %v1272
  %1808 = vmatpush1.bf16.msra.mxu0 %v1271
  %1809 = vmatprep.subr.bf16.mxu0 %v1270
  %1810 = vmatpush1.bf16.msra.mxu0 %v1269
  %1811 = vmatprep.subr.bf16.mxu0 %v1268
  %1812 = vmatpush1.bf16.msra.mxu0 %v1267
  %1813 = vmatprep.subr.bf16.mxu0 %v1266
  %1814 = vmatpush1.bf16.msra.mxu0 %v1265
  %1815 = vmatprep.subr.bf16.mxu0 %v1264
  %1816 = vmatpush1.bf16.msra.mxu0 %v1263
  %1817 = vmatprep.subr.bf16.mxu0 %v1262
  %1818 = vmatpush1.bf16.msra.mxu0 %v1261
  %1819 = vmatprep.subr.bf16.mxu0 %v1260
  %1820 = vmatpush1.bf16.msra.mxu0 %v1259
  %1821 = vmatprep.subr.bf16.mxu0 %v1290
  %1822 = vmatpush2.bf16.msra.mxu0 %v1289
  %1823 = vmatprep.subr.bf16.mxu0 %v1288
  %1824 = vmatpush2.bf16.msra.mxu0 %v1287
  %1825 = vmatprep.subr.bf16.mxu0 %v1286
  %1826 = vmatpush2.bf16.msra.mxu0 %v1285
  %1827 = vmatprep.subr.bf16.mxu0 %v1284
  %1828 = vmatpush2.bf16.msra.mxu0 %v1283
  %1829 = vmatprep.subr.bf16.mxu0 %v1282
  %1830 = vmatpush2.bf16.msra.mxu0 %v1281
  %1831 = vmatprep.subr.bf16.mxu0 %v1280
  %1832 = vmatpush2.bf16.msra.mxu0 %v1279
  %1833 = vmatprep.subr.bf16.mxu0 %v1278
  %1834 = vmatpush2.bf16.msra.mxu0 %v1277
  %1835 = vmatprep.subr.bf16.mxu0 %v1276
  %1836 = vmatpush2.bf16.msra.mxu0 %v1275
  %1837 = vmatprep.mubr.bf16.mxu0 %v330
  %1838 = vmatmul.mubr.bf16.gmra.mxu0 %v329
  %v1839 = vpop.f32.mrf.mxu0
  %v1840 = vadd.f32 %v1797, %v1839
  %v1841 = vpop.f32.mrf.mxu0
  %v1842 = vadd.f32 %v1799, %v1841
  %v1843 = vpop.f32.mrf.mxu0
  %v1844 = vadd.f32 %v1801, %v1843
  %v1845 = vpop.f32.mrf.mxu0
  %v1846 = vadd.f32 %v1803, %v1845
  %1847 = vdwg.mxu0
  %1848 = vmatprep.subr.bf16.mxu0 %v1306
  %1849 = vmatpush1.bf16.msra.mxu0 %v1305
  %1850 = vmatprep.subr.bf16.mxu0 %v1304
  %1851 = vmatpush1.bf16.msra.mxu0 %v1303
  %1852 = vmatprep.subr.bf16.mxu0 %v1302
  %1853 = vmatpush1.bf16.msra.mxu0 %v1301
  %1854 = vmatprep.subr.bf16.mxu0 %v1300
  %1855 = vmatpush1.bf16.msra.mxu0 %v1299
  %1856 = vmatprep.subr.bf16.mxu0 %v1298
  %1857 = vmatpush1.bf16.msra.mxu0 %v1297
  %1858 = vmatprep.subr.bf16.mxu0 %v1296
  %1859 = vmatpush1.bf16.msra.mxu0 %v1295
  %1860 = vmatprep.subr.bf16.mxu0 %v1294
  %1861 = vmatpush1.bf16.msra.mxu0 %v1293
  %1862 = vmatprep.subr.bf16.mxu0 %v1292
  %1863 = vmatpush1.bf16.msra.mxu0 %v1291
  %1864 = vmatprep.subr.bf16.mxu0 0
  %1865 = vmatpush2.bf16.msra.mxu0 0
  %1866 = vmatprep.subr.bf16.mxu0 0
  %1867 = vmatpush2.bf16.msra.mxu0 0
  %1868 = vmatprep.subr.bf16.mxu0 0
  %1869 = vmatpush2.bf16.msra.mxu0 0
  %1870 = vmatprep.subr.bf16.mxu0 0
  %1871 = vmatpush2.bf16.msra.mxu0 0
  %1872 = vmatprep.subr.bf16.mxu0 0
  %1873 = vmatpush2.bf16.msra.mxu0 0
  %1874 = vmatprep.subr.bf16.mxu0 0
  %1875 = vmatpush2.bf16.msra.mxu0 0
  %1876 = vmatprep.subr.bf16.mxu0 0
  %1877 = vmatpush2.bf16.msra.mxu0 0
  %1878 = vmatprep.subr.bf16.mxu0 0
  %1879 = vmatpush2.bf16.msra.mxu0 0
  %1880 = vmatprep.mubr.bf16.mxu0 0
  %1881 = vmatmul.mubr.bf16.gmra.mxu0 %v331
  %v1882 = vpop.f32.mrf.mxu0
  %v1883 = vadd.f32 %v1840, %v1882
  %v1884 = vpop.f32.mrf.mxu0
  %v1885 = vadd.f32 %v1842, %v1884
  %v1886 = vpop.f32.mrf.mxu0
  %v1887 = vadd.f32 %v1844, %v1886
  %v1888 = vpop.f32.mrf.mxu0
  %v1889 = vadd.f32 %v1846, %v1888
  %1890 = vdwg.mxu0
  %s1891 = scalar_lea.vmem %s1, 1920
  %v1892 = vld [vmem:[%s1891] sm:$0xff]
  %v1893 = vld [vmem:[%s1891 + $0x8] sm:$0xff]
  %v1894 = vld [vmem:[%s1891 + $0x10] sm:$0xff]
  %v1895 = vld [vmem:[%s1891 + $0x18] sm:$0xff]
  %v1896 = vld [vmem:[%s1891 + $0x20] sm:$0xff]
  %v1897 = vld [vmem:[%s1891 + $0x28] sm:$0xff]
  %v1898 = vld [vmem:[%s1891 + $0x30] sm:$0xff]
  %v1899 = vld [vmem:[%s1891 + $0x38] sm:$0xff]
  %v1900 = vld [vmem:[%s1891 + $0x40] sm:$0xff]
  %v1901 = vld [vmem:[%s1891 + $0x48] sm:$0xff]
  %v1902 = vld [vmem:[%s1891 + $0x50] sm:$0xff]
  %v1903 = vld [vmem:[%s1891 + $0x58] sm:$0xff]
  %v1904 = vld [vmem:[%s1891 + $0x60] sm:$0xff]
  %v1905 = vld [vmem:[%s1891 + $0x68] sm:$0xff]
  %v1906 = vld [vmem:[%s1891 + $0x70] sm:$0xff]
  %v1907 = vld [vmem:[%s1891 + $0x78] sm:$0xff]
  %v1908 = vld [vmem:[%s1891 + $0x80] sm:$0xff]
  %v1909 = vld [vmem:[%s1891 + $0x88] sm:$0xff]
  %v1910 = vld [vmem:[%s1891 + $0x90] sm:$0xff]
  %v1911 = vld [vmem:[%s1891 + $0x98] sm:$0xff]
  %v1912 = vld [vmem:[%s1891 + $0xa0] sm:$0xff]
  %v1913 = vld [vmem:[%s1891 + $0xa8] sm:$0xff]
  %v1914 = vld [vmem:[%s1891 + $0xb0] sm:$0xff]
  %v1915 = vld [vmem:[%s1891 + $0xb8] sm:$0xff]
  %v1916 = vld [vmem:[%s1891 + $0xc0] sm:$0xff]
  %v1917 = vld [vmem:[%s1891 + $0xc8] sm:$0xff]
  %v1918 = vld [vmem:[%s1891 + $0xd0] sm:$0xff]
  %v1919 = vld [vmem:[%s1891 + $0xd8] sm:$0xff]
  %v1920 = vld [vmem:[%s1891 + $0xe0] sm:$0xff]
  %v1921 = vld [vmem:[%s1891 + $0xe8] sm:$0xff]
  %v1922 = vld [vmem:[%s1891 + $0xf0] sm:$0xff]
  %v1923 = vld [vmem:[%s1891 + $0xf8] sm:$0xff]
  %v1924 = vld [vmem:[%s1891 + $0x100] sm:$0xff]
  %v1925 = vld [vmem:[%s1891 + $0x108] sm:$0xff]
  %v1926 = vld [vmem:[%s1891 + $0x110] sm:$0xff]
  %v1927 = vld [vmem:[%s1891 + $0x118] sm:$0xff]
  %v1928 = vld [vmem:[%s1891 + $0x120] sm:$0xff]
  %v1929 = vld [vmem:[%s1891 + $0x128] sm:$0xff]
  %v1930 = vld [vmem:[%s1891 + $0x130] sm:$0xff]
  %v1931 = vld [vmem:[%s1891 + $0x138] sm:$0xff]
  %v1932 = vld [vmem:[%s1891 + $0x140] sm:$0xff]
  %v1933 = vld [vmem:[%s1891 + $0x148] sm:$0xff]
  %v1934 = vld [vmem:[%s1891 + $0x150] sm:$0xff]
  %v1935 = vld [vmem:[%s1891 + $0x158] sm:$0xff]
  %v1936 = vld [vmem:[%s1891 + $0x160] sm:$0xff]
  %v1937 = vld [vmem:[%s1891 + $0x168] sm:$0xff]
  %v1938 = vld [vmem:[%s1891 + $0x170] sm:$0xff]
  %v1939 = vld [vmem:[%s1891 + $0x178] sm:$0xff]
  %v1940 = vld [vmem:[%s1891 + $0x180] sm:$0xff]
  %v1941 = vld [vmem:[%s1891 + $0x188] sm:$0xff]
  %v1942 = vld [vmem:[%s1891 + $0x190] sm:$0xff]
  %v1943 = vld [vmem:[%s1891 + $0x198] sm:$0xff]
  %v1944 = vld [vmem:[%s1891 + $0x1a0] sm:$0xff]
  %v1945 = vld [vmem:[%s1891 + $0x1a8] sm:$0xff]
  %v1946 = vld [vmem:[%s1891 + $0x1b0] sm:$0xff]
  %v1947 = vld [vmem:[%s1891 + $0x1b8] sm:$0xff]
  %v1948 = vld [vmem:[%s1891 + $0x1c0] sm:$0xff]
  %v1949 = vld [vmem:[%s1891 + $0x1c8] sm:$0xff]
  %v1950 = vld [vmem:[%s1891 + $0x1d0] sm:$0xff]
  %v1951 = vld [vmem:[%s1891 + $0x1d8] sm:$0xff]
  %v1952 = vld [vmem:[%s1891 + $0x1e0] sm:$0xff]
  %v1953 = vld [vmem:[%s1891 + $0x1e8] sm:$0xff]
  %v1954 = vld [vmem:[%s1891 + $0x1f0] sm:$0xff]
  %v1955 = vld [vmem:[%s1891 + $0x1f8] sm:$0xff]
  %v1956 = vld [vmem:[%s1891 + $0x200] sm:$0xff]
  %v1957 = vld [vmem:[%s1891 + $0x208] sm:$0xff]
  %v1958 = vld [vmem:[%s1891 + $0x210] sm:$0xff]
  %v1959 = vld [vmem:[%s1891 + $0x218] sm:$0xff]
  %v1960 = vld [vmem:[%s1891 + $0x220] sm:$0xff]
  %v1961 = vld [vmem:[%s1891 + $0x228] sm:$0xff]
  %v1962 = vld [vmem:[%s1891 + $0x230] sm:$0xff]
  %v1963 = vld [vmem:[%s1891 + $0x238] sm:$0xff]
  %v1964 = vld [vmem:[%s1891 + $0x240] sm:$0xff]
  %v1965 = vld [vmem:[%s1891 + $0x248] sm:$0xff]
  %v1966 = vld [vmem:[%s1891 + $0x250] sm:$0xff]
  %v1967 = vld [vmem:[%s1891 + $0x258] sm:$0xff]
  %v1968 = vld [vmem:[%s1891 + $0x260] sm:$0xff]
  %v1969 = vld [vmem:[%s1891 + $0x268] sm:$0xff]
  %v1970 = vld [vmem:[%s1891 + $0x270] sm:$0xff]
  %v1971 = vld [vmem:[%s1891 + $0x278] sm:$0xff]
  %v1972 = vld [vmem:[%s1891 + $0x280] sm:$0xff]
  %v1973 = vld [vmem:[%s1891 + $0x288] sm:$0xff]
  %v1974 = vld [vmem:[%s1891 + $0x290] sm:$0xff]
  %v1975 = vld [vmem:[%s1891 + $0x298] sm:$0xff]
  %v1976 = vld [vmem:[%s1891 + $0x2a0] sm:$0xff]
  %v1977 = vld [vmem:[%s1891 + $0x2a8] sm:$0xff]
  %v1978 = vld [vmem:[%s1891 + $0x2b0] sm:$0xff]
  %v1979 = vld [vmem:[%s1891 + $0x2b8] sm:$0xff]
  %v1980 = vld [vmem:[%s1891 + $0x2c0] sm:$0xff]
  %v1981 = vld [vmem:[%s1891 + $0x2c8] sm:$0xff]
  %v1982 = vld [vmem:[%s1891 + $0x2d0] sm:$0xff]
  %v1983 = vld [vmem:[%s1891 + $0x2d8] sm:$0xff]
  %v1984 = vld [vmem:[%s1891 + $0x2e0] sm:$0xff]
  %v1985 = vld [vmem:[%s1891 + $0x2e8] sm:$0xff]
  %v1986 = vld [vmem:[%s1891 + $0x2f0] sm:$0xff]
  %v1987 = vld [vmem:[%s1891 + $0x2f8] sm:$0xff]
  %v1988 = vld [vmem:[%s1891 + $0x300] sm:$0xff]
  %v1989 = vld [vmem:[%s1891 + $0x308] sm:$0xff]
  %v1990 = vld [vmem:[%s1891 + $0x310] sm:$0xff]
  %v1991 = vld [vmem:[%s1891 + $0x318] sm:$0xff]
  %v1992 = vld [vmem:[%s1891 + $0x320] sm:$0xff]
  %v1993 = vld [vmem:[%s1891 + $0x328] sm:$0xff]
  %v1994 = vld [vmem:[%s1891 + $0x330] sm:$0xff]
  %v1995 = vld [vmem:[%s1891 + $0x338] sm:$0xff]
  %v1996 = vld [vmem:[%s1891 + $0x340] sm:$0xff]
  %v1997 = vld [vmem:[%s1891 + $0x348] sm:$0xff]
  %v1998 = vld [vmem:[%s1891 + $0x350] sm:$0xff]
  %v1999 = vld [vmem:[%s1891 + $0x358] sm:$0xff]
  %v2000 = vld [vmem:[%s1891 + $0x360] sm:$0xff]
  %v2001 = vld [vmem:[%s1891 + $0x368] sm:$0xff]
  %v2002 = vld [vmem:[%s1891 + $0x370] sm:$0xff]
  %v2003 = vld [vmem:[%s1891 + $0x378] sm:$0xff]
  %v2004 = vld [vmem:[%s1891 + $0x380] sm:$0xff]
  %v2005 = vld [vmem:[%s1891 + $0x388] sm:$0xff]
  %v2006 = vld [vmem:[%s1891 + $0x390] sm:$0xff]
  %v2007 = vld [vmem:[%s1891 + $0x398] sm:$0xff]
  %v2008 = vld [vmem:[%s1891 + $0x3a0] sm:$0xff]
  %v2009 = vld [vmem:[%s1891 + $0x3a8] sm:$0xff]
  %v2010 = vld [vmem:[%s1891 + $0x3b0] sm:$0xff]
  %v2011 = vld [vmem:[%s1891 + $0x3b8] sm:$0xff]
  %v2012 = vld [vmem:[%s1891 + $0x3c0] sm:$0xff]
  %v2013 = vld [vmem:[%s1891 + $0x3c8] sm:$0xff]
  %v2014 = vld [vmem:[%s1891 + $0x3d0] sm:$0xff]
  %v2015 = vld [vmem:[%s1891 + $0x3d8] sm:$0xff]
  %v2016 = vld [vmem:[%s1891 + $0x3e0] sm:$0xff]
  %v2017 = vld [vmem:[%s1891 + $0x3e8] sm:$0xff]
  %v2018 = vld [vmem:[%s1891 + $0x3f0] sm:$0xff]
  %v2019 = vld [vmem:[%s1891 + $0x3f8] sm:$0xff]
  %v2020 = vld [vmem:[%s1891 + $0x400] sm:$0xff]
  %v2021 = vld [vmem:[%s1891 + $0x408] sm:$0xff]
  %v2022 = vld [vmem:[%s1891 + $0x410] sm:$0xff]
  %v2023 = vld [vmem:[%s1891 + $0x418] sm:$0xff]
  %v2024 = vld [vmem:[%s1891 + $0x420] sm:$0xff]
  %v2025 = vld [vmem:[%s1891 + $0x428] sm:$0xff]
  %v2026 = vld [vmem:[%s1891 + $0x430] sm:$0xff]
  %v2027 = vld [vmem:[%s1891 + $0x438] sm:$0xff]
  %v2028 = vld [vmem:[%s1891 + $0x440] sm:$0xff]
  %v2029 = vld [vmem:[%s1891 + $0x448] sm:$0xff]
  %v2030 = vld [vmem:[%s1891 + $0x450] sm:$0xff]
  %v2031 = vld [vmem:[%s1891 + $0x458] sm:$0xff]
  %v2032 = vld [vmem:[%s1891 + $0x460] sm:$0xff]
  %v2033 = vld [vmem:[%s1891 + $0x468] sm:$0xff]
  %v2034 = vld [vmem:[%s1891 + $0x470] sm:$0xff]
  %v2035 = vld [vmem:[%s1891 + $0x478] sm:$0xff]
  %v2036 = vld [vmem:[%s1891 + $0x480] sm:$0xff]
  %v2037 = vld [vmem:[%s1891 + $0x488] sm:$0xff]
  %v2038 = vld [vmem:[%s1891 + $0x490] sm:$0xff]
  %v2039 = vld [vmem:[%s1891 + $0x498] sm:$0xff]
  %v2040 = vld [vmem:[%s1891 + $0x4a0] sm:$0xff]
  %v2041 = vld [vmem:[%s1891 + $0x4a8] sm:$0xff]
  %v2042 = vld [vmem:[%s1891 + $0x4b0] sm:$0xff]
  %v2043 = vld [vmem:[%s1891 + $0x4b8] sm:$0xff]
  %v2044 = vld [vmem:[%s1891 + $0x4c0] sm:$0xff]
  %v2045 = vld [vmem:[%s1891 + $0x4c8] sm:$0xff]
  %v2046 = vld [vmem:[%s1891 + $0x4d0] sm:$0xff]
  %v2047 = vld [vmem:[%s1891 + $0x4d8] sm:$0xff]
  %v2048 = vld [vmem:[%s1891 + $0x4e0] sm:$0xff]
  %v2049 = vld [vmem:[%s1891 + $0x4e8] sm:$0xff]
  %v2050 = vld [vmem:[%s1891 + $0x4f0] sm:$0xff]
  %v2051 = vld [vmem:[%s1891 + $0x4f8] sm:$0xff]
  %v2052 = vld [vmem:[%s1891 + $0x500] sm:$0xff]
  %v2053 = vld [vmem:[%s1891 + $0x508] sm:$0xff]
  %v2054 = vld [vmem:[%s1891 + $0x510] sm:$0xff]
  %v2055 = vld [vmem:[%s1891 + $0x518] sm:$0xff]
  %v2056 = vld [vmem:[%s1891 + $0x520] sm:$0xff]
  %v2057 = vld [vmem:[%s1891 + $0x528] sm:$0xff]
  %v2058 = vld [vmem:[%s1891 + $0x530] sm:$0xff]
  %v2059 = vld [vmem:[%s1891 + $0x538] sm:$0xff]
  %v2060 = vld [vmem:[%s1891 + $0x540] sm:$0xff]
  %v2061 = vld [vmem:[%s1891 + $0x548] sm:$0xff]
  %v2062 = vld [vmem:[%s1891 + $0x550] sm:$0xff]
  %v2063 = vld [vmem:[%s1891 + $0x558] sm:$0xff]
  %v2064 = vld [vmem:[%s1891 + $0x560] sm:$0xff]
  %v2065 = vld [vmem:[%s1891 + $0x568] sm:$0xff]
  %v2066 = vld [vmem:[%s1891 + $0x570] sm:$0xff]
  %v2067 = vld [vmem:[%s1891 + $0x578] sm:$0xff]
  %v2068 = vld [vmem:[%s1891 + $0x580] sm:$0xff]
  %v2069 = vld [vmem:[%s1891 + $0x588] sm:$0xff]
  %v2070 = vld [vmem:[%s1891 + $0x590] sm:$0xff]
  %v2071 = vld [vmem:[%s1891 + $0x598] sm:$0xff]
  %v2072 = vld [vmem:[%s1891 + $0x5a0] sm:$0xff]
  %v2073 = vld [vmem:[%s1891 + $0x5a8] sm:$0xff]
  %v2074 = vld [vmem:[%s1891 + $0x5b0] sm:$0xff]
  %v2075 = vld [vmem:[%s1891 + $0x5b8] sm:$0xff]
  %v2076 = vld [vmem:[%s1891 + $0x5c0] sm:$0xff]
  %v2077 = vld [vmem:[%s1891 + $0x5c8] sm:$0xff]
  %v2078 = vld [vmem:[%s1891 + $0x5d0] sm:$0xff]
  %v2079 = vld [vmem:[%s1891 + $0x5d8] sm:$0xff]
  %v2080 = vld [vmem:[%s1891 + $0x5e0] sm:$0xff]
  %v2081 = vld [vmem:[%s1891 + $0x5e8] sm:$0xff]
  %v2082 = vld [vmem:[%s1891 + $0x5f0] sm:$0xff]
  %v2083 = vld [vmem:[%s1891 + $0x5f8] sm:$0xff]
  %v2084 = vld [vmem:[%s1891 + $0x600] sm:$0xff]
  %v2085 = vld [vmem:[%s1891 + $0x608] sm:$0xff]
  %v2086 = vld [vmem:[%s1891 + $0x610] sm:$0xff]
  %v2087 = vld [vmem:[%s1891 + $0x618] sm:$0xff]
  %v2088 = vld [vmem:[%s1891 + $0x620] sm:$0xff]
  %v2089 = vld [vmem:[%s1891 + $0x628] sm:$0xff]
  %v2090 = vld [vmem:[%s1891 + $0x630] sm:$0xff]
  %v2091 = vld [vmem:[%s1891 + $0x638] sm:$0xff]
  %v2092 = vld [vmem:[%s1891 + $0x640] sm:$0xff]
  %v2093 = vld [vmem:[%s1891 + $0x648] sm:$0xff]
  %v2094 = vld [vmem:[%s1891 + $0x650] sm:$0xff]
  %v2095 = vld [vmem:[%s1891 + $0x658] sm:$0xff]
  %v2096 = vld [vmem:[%s1891 + $0x660] sm:$0xff]
  %v2097 = vld [vmem:[%s1891 + $0x668] sm:$0xff]
  %v2098 = vld [vmem:[%s1891 + $0x670] sm:$0xff]
  %v2099 = vld [vmem:[%s1891 + $0x678] sm:$0xff]
  %v2100 = vld [vmem:[%s1891 + $0x680] sm:$0xff]
  %v2101 = vld [vmem:[%s1891 + $0x688] sm:$0xff]
  %v2102 = vld [vmem:[%s1891 + $0x690] sm:$0xff]
  %v2103 = vld [vmem:[%s1891 + $0x698] sm:$0xff]
  %v2104 = vld [vmem:[%s1891 + $0x6a0] sm:$0xff]
  %v2105 = vld [vmem:[%s1891 + $0x6a8] sm:$0xff]
  %v2106 = vld [vmem:[%s1891 + $0x6b0] sm:$0xff]
  %v2107 = vld [vmem:[%s1891 + $0x6b8] sm:$0xff]
  %v2108 = vld [vmem:[%s1891 + $0x6c0] sm:$0xff]
  %v2109 = vld [vmem:[%s1891 + $0x6c8] sm:$0xff]
  %v2110 = vld [vmem:[%s1891 + $0x6d0] sm:$0xff]
  %v2111 = vld [vmem:[%s1891 + $0x6d8] sm:$0xff]
  %v2112 = vld [vmem:[%s1891 + $0x6e0] sm:$0xff]
  %v2113 = vld [vmem:[%s1891 + $0x6e8] sm:$0xff]
  %v2114 = vld [vmem:[%s1891 + $0x6f0] sm:$0xff]
  %v2115 = vld [vmem:[%s1891 + $0x6f8] sm:$0xff]
  %v2116 = vld [vmem:[%s1891 + $0x700] sm:$0xff]
  %v2117 = vld [vmem:[%s1891 + $0x708] sm:$0xff]
  %v2118 = vld [vmem:[%s1891 + $0x710] sm:$0xff]
  %v2119 = vld [vmem:[%s1891 + $0x718] sm:$0xff]
  %v2120 = vld [vmem:[%s1891 + $0x720] sm:$0xff]
  %v2121 = vld [vmem:[%s1891 + $0x728] sm:$0xff]
  %v2122 = vld [vmem:[%s1891 + $0x730] sm:$0xff]
  %v2123 = vld [vmem:[%s1891 + $0x738] sm:$0xff]
  %v2124 = vld [vmem:[%s1891 + $0x740] sm:$0xff]
  %v2125 = vld [vmem:[%s1891 + $0x748] sm:$0xff]
  %v2126 = vld [vmem:[%s1891 + $0x750] sm:$0xff]
  %v2127 = vld [vmem:[%s1891 + $0x758] sm:$0xff]
  %v2128 = vld [vmem:[%s1891 + $0x760] sm:$0xff]
  %v2129 = vld [vmem:[%s1891 + $0x768] sm:$0xff]
  %v2130 = vld [vmem:[%s1891 + $0x770] sm:$0xff]
  %v2131 = vld [vmem:[%s1891 + $0x778] sm:$0xff]
  %v2372 = vunpack.c.l.b16 %v1892
  %v2373 = vunpack.c.h.b16 %v1892
  %v2374 = vunpack.c.l.b16 %v1893
  %v2375 = vunpack.c.h.b16 %v1893
  %v2376 = vunpack.c.l.b16 %v1894
  %v2377 = vunpack.c.h.b16 %v1894
  %v2378 = vunpack.c.l.b16 %v1895
  %v2379 = vunpack.c.h.b16 %v1895
  %v2380 = vunpack.c.l.b16 %v1896
  %v2381 = vunpack.c.h.b16 %v1896
  %v2382 = vunpack.c.l.b16 %v1897
  %v2383 = vunpack.c.h.b16 %v1897
  %v2384 = vunpack.c.l.b16 %v1898
  %v2385 = vunpack.c.h.b16 %v1898
  %v2386 = vunpack.c.l.b16 %v1899
  %v2387 = vunpack.c.h.b16 %v1899
  %v2388 = vunpack.c.l.b16 %v1900
  %v2389 = vunpack.c.h.b16 %v1900
  %v2390 = vunpack.c.l.b16 %v1901
  %v2391 = vunpack.c.h.b16 %v1901
  %v2392 = vunpack.c.l.b16 %v1902
  %v2393 = vunpack.c.h.b16 %v1902
  %v2394 = vunpack.c.l.b16 %v1903
  %v2395 = vunpack.c.h.b16 %v1903
  %v2396 = vunpack.c.l.b16 %v1904
  %v2397 = vunpack.c.h.b16 %v1904
  %v2398 = vunpack.c.l.b16 %v1905
  %v2399 = vunpack.c.h.b16 %v1905
  %v2400 = vunpack.c.l.b16 %v1906
  %v2401 = vunpack.c.h.b16 %v1906
  %v2402 = vunpack.c.l.b16 %v1907
  %v2403 = vunpack.c.h.b16 %v1907
  %v2404 = vunpack.c.l.b16 %v1908
  %v2405 = vunpack.c.h.b16 %v1908
  %v2406 = vunpack.c.l.b16 %v1909
  %v2407 = vunpack.c.h.b16 %v1909
  %v2408 = vunpack.c.l.b16 %v1910
  %v2409 = vunpack.c.h.b16 %v1910
  %v2410 = vunpack.c.l.b16 %v1911
  %v2411 = vunpack.c.h.b16 %v1911
  %v2412 = vunpack.c.l.b16 %v1912
  %v2413 = vunpack.c.h.b16 %v1912
  %v2414 = vunpack.c.l.b16 %v1913
  %v2415 = vunpack.c.h.b16 %v1913
  %v2416 = vunpack.c.l.b16 %v1914
  %v2417 = vunpack.c.h.b16 %v1914
  %v2418 = vunpack.c.l.b16 %v1915
  %v2419 = vunpack.c.h.b16 %v1915
  %v2420 = vunpack.c.l.b16 %v1916
  %v2421 = vunpack.c.h.b16 %v1916
  %v2422 = vunpack.c.l.b16 %v1917
  %v2423 = vunpack.c.h.b16 %v1917
  %v2424 = vunpack.c.l.b16 %v1918
  %v2425 = vunpack.c.h.b16 %v1918
  %v2426 = vunpack.c.l.b16 %v1919
  %v2427 = vunpack.c.h.b16 %v1919
  %v2428 = vunpack.c.l.b16 %v1920
  %v2429 = vunpack.c.h.b16 %v1920
  %v2430 = vunpack.c.l.b16 %v1921
  %v2431 = vunpack.c.h.b16 %v1921
  %v2432 = vunpack.c.l.b16 %v1922
  %v2433 = vunpack.c.h.b16 %v1922
  %v2434 = vunpack.c.l.b16 %v1923
  %v2435 = vunpack.c.h.b16 %v1923
  %v2436 = vunpack.c.l.b16 %v1924
  %v2437 = vunpack.c.h.b16 %v1924
  %v2438 = vunpack.c.l.b16 %v1925
  %v2439 = vunpack.c.h.b16 %v1925
  %v2440 = vunpack.c.l.b16 %v1926
  %v2441 = vunpack.c.h.b16 %v1926
  %v2442 = vunpack.c.l.b16 %v1927
  %v2443 = vunpack.c.h.b16 %v1927
  %v2444 = vunpack.c.l.b16 %v1928
  %v2445 = vunpack.c.h.b16 %v1928
  %v2446 = vunpack.c.l.b16 %v1929
  %v2447 = vunpack.c.h.b16 %v1929
  %v2448 = vunpack.c.l.b16 %v1930
  %v2449 = vunpack.c.h.b16 %v1930
  %v2450 = vunpack.c.l.b16 %v1931
  %v2451 = vunpack.c.h.b16 %v1931
  %v2452 = vunpack.c.l.b16 %v1932
  %v2453 = vunpack.c.h.b16 %v1932
  %v2454 = vunpack.c.l.b16 %v1933
  %v2455 = vunpack.c.h.b16 %v1933
  %v2456 = vunpack.c.l.b16 %v1934
  %v2457 = vunpack.c.h.b16 %v1934
  %v2458 = vunpack.c.l.b16 %v1935
  %v2459 = vunpack.c.h.b16 %v1935
  %v2460 = vunpack.c.l.b16 %v1936
  %v2461 = vunpack.c.h.b16 %v1936
  %v2462 = vunpack.c.l.b16 %v1937
  %v2463 = vunpack.c.h.b16 %v1937
  %v2464 = vunpack.c.l.b16 %v1938
  %v2465 = vunpack.c.h.b16 %v1938
  %v2466 = vunpack.c.l.b16 %v1939
  %v2467 = vunpack.c.h.b16 %v1939
  %v2468 = vunpack.c.l.b16 %v1940
  %v2469 = vunpack.c.h.b16 %v1940
  %v2470 = vunpack.c.l.b16 %v1941
  %v2471 = vunpack.c.h.b16 %v1941
  %v2472 = vunpack.c.l.b16 %v1942
  %v2473 = vunpack.c.h.b16 %v1942
  %v2474 = vunpack.c.l.b16 %v1943
  %v2475 = vunpack.c.h.b16 %v1943
  %v2476 = vunpack.c.l.b16 %v1944
  %v2477 = vunpack.c.h.b16 %v1944
  %v2478 = vunpack.c.l.b16 %v1945
  %v2479 = vunpack.c.h.b16 %v1945
  %v2480 = vunpack.c.l.b16 %v1946
  %v2481 = vunpack.c.h.b16 %v1946
  %v2482 = vunpack.c.l.b16 %v1947
  %v2483 = vunpack.c.h.b16 %v1947
  %v2484 = vunpack.c.l.b16 %v1948
  %v2485 = vunpack.c.h.b16 %v1948
  %v2486 = vunpack.c.l.b16 %v1949
  %v2487 = vunpack.c.h.b16 %v1949
  %v2488 = vunpack.c.l.b16 %v1950
  %v2489 = vunpack.c.h.b16 %v1950
  %v2490 = vunpack.c.l.b16 %v1951
  %v2491 = vunpack.c.h.b16 %v1951
  %v2492 = vunpack.c.l.b16 %v1952
  %v2493 = vunpack.c.h.b16 %v1952
  %v2494 = vunpack.c.l.b16 %v1953
  %v2495 = vunpack.c.h.b16 %v1953
  %v2496 = vunpack.c.l.b16 %v1954
  %v2497 = vunpack.c.h.b16 %v1954
  %v2498 = vunpack.c.l.b16 %v1955
  %v2499 = vunpack.c.h.b16 %v1955
  %v2500 = vunpack.c.l.b16 %v1956
  %v2501 = vunpack.c.h.b16 %v1956
  %v2502 = vunpack.c.l.b16 %v1957
  %v2503 = vunpack.c.h.b16 %v1957
  %v2504 = vunpack.c.l.b16 %v1958
  %v2505 = vunpack.c.h.b16 %v1958
  %v2506 = vunpack.c.l.b16 %v1959
  %v2507 = vunpack.c.h.b16 %v1959
  %v2508 = vunpack.c.l.b16 %v1960
  %v2509 = vunpack.c.h.b16 %v1960
  %v2510 = vunpack.c.l.b16 %v1961
  %v2511 = vunpack.c.h.b16 %v1961
  %v2512 = vunpack.c.l.b16 %v1962
  %v2513 = vunpack.c.h.b16 %v1962
  %v2514 = vunpack.c.l.b16 %v1963
  %v2515 = vunpack.c.h.b16 %v1963
  %v2516 = vunpack.c.l.b16 %v1964
  %v2517 = vunpack.c.h.b16 %v1964
  %v2518 = vunpack.c.l.b16 %v1965
  %v2519 = vunpack.c.h.b16 %v1965
  %v2520 = vunpack.c.l.b16 %v1966
  %v2521 = vunpack.c.h.b16 %v1966
  %v2522 = vunpack.c.l.b16 %v1967
  %v2523 = vunpack.c.h.b16 %v1967
  %v2524 = vunpack.c.l.b16 %v1968
  %v2525 = vunpack.c.h.b16 %v1968
  %v2526 = vunpack.c.l.b16 %v1969
  %v2527 = vunpack.c.h.b16 %v1969
  %v2528 = vunpack.c.l.b16 %v1970
  %v2529 = vunpack.c.h.b16 %v1970
  %v2530 = vunpack.c.l.b16 %v1971
  %v2531 = vunpack.c.h.b16 %v1971
  %v2532 = vunpack.c.l.b16 %v1972
  %v2533 = vunpack.c.h.b16 %v1972
  %v2534 = vunpack.c.l.b16 %v1973
  %v2535 = vunpack.c.h.b16 %v1973
  %v2536 = vunpack.c.l.b16 %v1974
  %v2537 = vunpack.c.h.b16 %v1974
  %v2538 = vunpack.c.l.b16 %v1975
  %v2539 = vunpack.c.h.b16 %v1975
  %v2540 = vunpack.c.l.b16 %v1976
  %v2541 = vunpack.c.h.b16 %v1976
  %v2542 = vunpack.c.l.b16 %v1977
  %v2543 = vunpack.c.h.b16 %v1977
  %v2544 = vunpack.c.l.b16 %v1978
  %v2545 = vunpack.c.h.b16 %v1978
  %v2546 = vunpack.c.l.b16 %v1979
  %v2547 = vunpack.c.h.b16 %v1979
  %v2548 = vunpack.c.l.b16 %v1980
  %v2549 = vunpack.c.h.b16 %v1980
  %v2550 = vunpack.c.l.b16 %v1981
  %v2551 = vunpack.c.h.b16 %v1981
  %v2552 = vunpack.c.l.b16 %v1982
  %v2553 = vunpack.c.h.b16 %v1982
  %v2554 = vunpack.c.l.b16 %v1983
  %v2555 = vunpack.c.h.b16 %v1983
  %v2556 = vunpack.c.l.b16 %v1984
  %v2557 = vunpack.c.h.b16 %v1984
  %v2558 = vunpack.c.l.b16 %v1985
  %v2559 = vunpack.c.h.b16 %v1985
  %v2560 = vunpack.c.l.b16 %v1986
  %v2561 = vunpack.c.h.b16 %v1986
  %v2562 = vunpack.c.l.b16 %v1987
  %v2563 = vunpack.c.h.b16 %v1987
  %v2564 = vunpack.c.l.b16 %v1988
  %v2565 = vunpack.c.h.b16 %v1988
  %v2566 = vunpack.c.l.b16 %v1989
  %v2567 = vunpack.c.h.b16 %v1989
  %v2568 = vunpack.c.l.b16 %v1990
  %v2569 = vunpack.c.h.b16 %v1990
  %v2570 = vunpack.c.l.b16 %v1991
  %v2571 = vunpack.c.h.b16 %v1991
  %v2572 = vunpack.c.l.b16 %v1992
  %v2573 = vunpack.c.h.b16 %v1992
  %v2574 = vunpack.c.l.b16 %v1993
  %v2575 = vunpack.c.h.b16 %v1993
  %v2576 = vunpack.c.l.b16 %v1994
  %v2577 = vunpack.c.h.b16 %v1994
  %v2578 = vunpack.c.l.b16 %v1995
  %v2579 = vunpack.c.h.b16 %v1995
  %v2580 = vunpack.c.l.b16 %v1996
  %v2581 = vunpack.c.h.b16 %v1996
  %v2582 = vunpack.c.l.b16 %v1997
  %v2583 = vunpack.c.h.b16 %v1997
  %v2584 = vunpack.c.l.b16 %v1998
  %v2585 = vunpack.c.h.b16 %v1998
  %v2586 = vunpack.c.l.b16 %v1999
  %v2587 = vunpack.c.h.b16 %v1999
  %v2588 = vunpack.c.l.b16 %v2000
  %v2589 = vunpack.c.h.b16 %v2000
  %v2590 = vunpack.c.l.b16 %v2001
  %v2591 = vunpack.c.h.b16 %v2001
  %v2592 = vunpack.c.l.b16 %v2002
  %v2593 = vunpack.c.h.b16 %v2002
  %v2594 = vunpack.c.l.b16 %v2003
  %v2595 = vunpack.c.h.b16 %v2003
  %v2596 = vunpack.c.l.b16 %v2004
  %v2597 = vunpack.c.h.b16 %v2004
  %v2598 = vunpack.c.l.b16 %v2005
  %v2599 = vunpack.c.h.b16 %v2005
  %v2600 = vunpack.c.l.b16 %v2006
  %v2601 = vunpack.c.h.b16 %v2006
  %v2602 = vunpack.c.l.b16 %v2007
  %v2603 = vunpack.c.h.b16 %v2007
  %v2604 = vunpack.c.l.b16 %v2008
  %v2605 = vunpack.c.h.b16 %v2008
  %v2606 = vunpack.c.l.b16 %v2009
  %v2607 = vunpack.c.h.b16 %v2009
  %v2608 = vunpack.c.l.b16 %v2010
  %v2609 = vunpack.c.h.b16 %v2010
  %v2610 = vunpack.c.l.b16 %v2011
  %v2611 = vunpack.c.h.b16 %v2011
  %v2612 = vunpack.c.l.b16 %v2012
  %v2613 = vunpack.c.h.b16 %v2012
  %v2614 = vunpack.c.l.b16 %v2013
  %v2615 = vunpack.c.h.b16 %v2013
  %v2616 = vunpack.c.l.b16 %v2014
  %v2617 = vunpack.c.h.b16 %v2014
  %v2618 = vunpack.c.l.b16 %v2015
  %v2619 = vunpack.c.h.b16 %v2015
  %v2620 = vunpack.c.l.b16 %v2016
  %v2621 = vunpack.c.h.b16 %v2016
  %v2622 = vunpack.c.l.b16 %v2017
  %v2623 = vunpack.c.h.b16 %v2017
  %v2624 = vunpack.c.l.b16 %v2018
  %v2625 = vunpack.c.h.b16 %v2018
  %v2626 = vunpack.c.l.b16 %v2019
  %v2627 = vunpack.c.h.b16 %v2019
  %v2628 = vunpack.c.l.b16 %v2020
  %v2629 = vunpack.c.h.b16 %v2020
  %v2630 = vunpack.c.l.b16 %v2021
  %v2631 = vunpack.c.h.b16 %v2021
  %v2632 = vunpack.c.l.b16 %v2022
  %v2633 = vunpack.c.h.b16 %v2022
  %v2634 = vunpack.c.l.b16 %v2023
  %v2635 = vunpack.c.h.b16 %v2023
  %v2636 = vunpack.c.l.b16 %v2024
  %v2637 = vunpack.c.h.b16 %v2024
  %v2638 = vunpack.c.l.b16 %v2025
  %v2639 = vunpack.c.h.b16 %v2025
  %v2640 = vunpack.c.l.b16 %v2026
  %v2641 = vunpack.c.h.b16 %v2026
  %v2642 = vunpack.c.l.b16 %v2027
  %v2643 = vunpack.c.h.b16 %v2027
  %v2644 = vunpack.c.l.b16 %v2028
  %v2645 = vunpack.c.h.b16 %v2028
  %v2646 = vunpack.c.l.b16 %v2029
  %v2647 = vunpack.c.h.b16 %v2029
  %v2648 = vunpack.c.l.b16 %v2030
  %v2649 = vunpack.c.h.b16 %v2030
  %v2650 = vunpack.c.l.b16 %v2031
  %v2651 = vunpack.c.h.b16 %v2031
  %v2652 = vunpack.c.l.b16 %v2032
  %v2653 = vunpack.c.h.b16 %v2032
  %v2654 = vunpack.c.l.b16 %v2033
  %v2655 = vunpack.c.h.b16 %v2033
  %v2656 = vunpack.c.l.b16 %v2034
  %v2657 = vunpack.c.h.b16 %v2034
  %v2658 = vunpack.c.l.b16 %v2035
  %v2659 = vunpack.c.h.b16 %v2035
  %v2660 = vunpack.c.l.b16 %v2036
  %v2661 = vunpack.c.h.b16 %v2036
  %v2662 = vunpack.c.l.b16 %v2037
  %v2663 = vunpack.c.h.b16 %v2037
  %v2664 = vunpack.c.l.b16 %v2038
  %v2665 = vunpack.c.h.b16 %v2038
  %v2666 = vunpack.c.l.b16 %v2039
  %v2667 = vunpack.c.h.b16 %v2039
  %v2668 = vunpack.c.l.b16 %v2040
  %v2669 = vunpack.c.h.b16 %v2040
  %v2670 = vunpack.c.l.b16 %v2041
  %v2671 = vunpack.c.h.b16 %v2041
  %v2672 = vunpack.c.l.b16 %v2042
  %v2673 = vunpack.c.h.b16 %v2042
  %v2674 = vunpack.c.l.b16 %v2043
  %v2675 = vunpack.c.h.b16 %v2043
  %v2676 = vunpack.c.l.b16 %v2044
  %v2677 = vunpack.c.h.b16 %v2044
  %v2678 = vunpack.c.l.b16 %v2045
  %v2679 = vunpack.c.h.b16 %v2045
  %v2680 = vunpack.c.l.b16 %v2046
  %v2681 = vunpack.c.h.b16 %v2046
  %v2682 = vunpack.c.l.b16 %v2047
  %v2683 = vunpack.c.h.b16 %v2047
  %v2684 = vunpack.c.l.b16 %v2048
  %v2685 = vunpack.c.h.b16 %v2048
  %v2686 = vunpack.c.l.b16 %v2049
  %v2687 = vunpack.c.h.b16 %v2049
  %v2688 = vunpack.c.l.b16 %v2050
  %v2689 = vunpack.c.h.b16 %v2050
  %v2690 = vunpack.c.l.b16 %v2051
  %v2691 = vunpack.c.h.b16 %v2051
  %v2692 = vunpack.c.l.b16 %v2052
  %v2693 = vunpack.c.h.b16 %v2052
  %v2694 = vunpack.c.l.b16 %v2053
  %v2695 = vunpack.c.h.b16 %v2053
  %v2696 = vunpack.c.l.b16 %v2054
  %v2697 = vunpack.c.h.b16 %v2054
  %v2698 = vunpack.c.l.b16 %v2055
  %v2699 = vunpack.c.h.b16 %v2055
  %v2700 = vunpack.c.l.b16 %v2056
  %v2701 = vunpack.c.h.b16 %v2056
  %v2702 = vunpack.c.l.b16 %v2057
  %v2703 = vunpack.c.h.b16 %v2057
  %v2704 = vunpack.c.l.b16 %v2058
  %v2705 = vunpack.c.h.b16 %v2058
  %v2706 = vunpack.c.l.b16 %v2059
  %v2707 = vunpack.c.h.b16 %v2059
  %v2708 = vunpack.c.l.b16 %v2060
  %v2709 = vunpack.c.h.b16 %v2060
  %v2710 = vunpack.c.l.b16 %v2061
  %v2711 = vunpack.c.h.b16 %v2061
  %v2712 = vunpack.c.l.b16 %v2062
  %v2713 = vunpack.c.h.b16 %v2062
  %v2714 = vunpack.c.l.b16 %v2063
  %v2715 = vunpack.c.h.b16 %v2063
  %v2716 = vunpack.c.l.b16 %v2064
  %v2717 = vunpack.c.h.b16 %v2064
  %v2718 = vunpack.c.l.b16 %v2065
  %v2719 = vunpack.c.h.b16 %v2065
  %v2720 = vunpack.c.l.b16 %v2066
  %v2721 = vunpack.c.h.b16 %v2066
  %v2722 = vunpack.c.l.b16 %v2067
  %v2723 = vunpack.c.h.b16 %v2067
  %v2724 = vunpack.c.l.b16 %v2068
  %v2725 = vunpack.c.h.b16 %v2068
  %v2726 = vunpack.c.l.b16 %v2069
  %v2727 = vunpack.c.h.b16 %v2069
  %v2728 = vunpack.c.l.b16 %v2070
  %v2729 = vunpack.c.h.b16 %v2070
  %v2730 = vunpack.c.l.b16 %v2071
  %v2731 = vunpack.c.h.b16 %v2071
  %v2732 = vunpack.c.l.b16 %v2072
  %v2733 = vunpack.c.h.b16 %v2072
  %v2734 = vunpack.c.l.b16 %v2073
  %v2735 = vunpack.c.h.b16 %v2073
  %v2736 = vunpack.c.l.b16 %v2074
  %v2737 = vunpack.c.h.b16 %v2074
  %v2738 = vunpack.c.l.b16 %v2075
  %v2739 = vunpack.c.h.b16 %v2075
  %v2740 = vunpack.c.l.b16 %v2076
  %v2741 = vunpack.c.h.b16 %v2076
  %v2742 = vunpack.c.l.b16 %v2077
  %v2743 = vunpack.c.h.b16 %v2077
  %v2744 = vunpack.c.l.b16 %v2078
  %v2745 = vunpack.c.h.b16 %v2078
  %v2746 = vunpack.c.l.b16 %v2079
  %v2747 = vunpack.c.h.b16 %v2079
  %v2748 = vunpack.c.l.b16 %v2080
  %v2749 = vunpack.c.h.b16 %v2080
  %v2750 = vunpack.c.l.b16 %v2081
  %v2751 = vunpack.c.h.b16 %v2081
  %v2752 = vunpack.c.l.b16 %v2082
  %v2753 = vunpack.c.h.b16 %v2082
  %v2754 = vunpack.c.l.b16 %v2083
  %v2755 = vunpack.c.h.b16 %v2083
  %v2756 = vunpack.c.l.b16 %v2084
  %v2757 = vunpack.c.h.b16 %v2084
  %v2758 = vunpack.c.l.b16 %v2085
  %v2759 = vunpack.c.h.b16 %v2085
  %v2760 = vunpack.c.l.b16 %v2086
  %v2761 = vunpack.c.h.b16 %v2086
  %v2762 = vunpack.c.l.b16 %v2087
  %v2763 = vunpack.c.h.b16 %v2087
  %v2764 = vunpack.c.l.b16 %v2088
  %v2765 = vunpack.c.h.b16 %v2088
  %v2766 = vunpack.c.l.b16 %v2089
  %v2767 = vunpack.c.h.b16 %v2089
  %v2768 = vunpack.c.l.b16 %v2090
  %v2769 = vunpack.c.h.b16 %v2090
  %v2770 = vunpack.c.l.b16 %v2091
  %v2771 = vunpack.c.h.b16 %v2091
  %v2772 = vunpack.c.l.b16 %v2092
  %v2773 = vunpack.c.h.b16 %v2092
  %v2774 = vunpack.c.l.b16 %v2093
  %v2775 = vunpack.c.h.b16 %v2093
  %v2776 = vunpack.c.l.b16 %v2094
  %v2777 = vunpack.c.h.b16 %v2094
  %v2778 = vunpack.c.l.b16 %v2095
  %v2779 = vunpack.c.h.b16 %v2095
  %v2780 = vunpack.c.l.b16 %v2096
  %v2781 = vunpack.c.h.b16 %v2096
  %v2782 = vunpack.c.l.b16 %v2097
  %v2783 = vunpack.c.h.b16 %v2097
  %v2784 = vunpack.c.l.b16 %v2098
  %v2785 = vunpack.c.h.b16 %v2098
  %v2786 = vunpack.c.l.b16 %v2099
  %v2787 = vunpack.c.h.b16 %v2099
  %v2788 = vunpack.c.l.b16 %v2100
  %v2789 = vunpack.c.h.b16 %v2100
  %v2790 = vunpack.c.l.b16 %v2101
  %v2791 = vunpack.c.h.b16 %v2101
  %v2792 = vunpack.c.l.b16 %v2102
  %v2793 = vunpack.c.h.b16 %v2102
  %v2794 = vunpack.c.l.b16 %v2103
  %v2795 = vunpack.c.h.b16 %v2103
  %v2796 = vunpack.c.l.b16 %v2104
  %v2797 = vunpack.c.h.b16 %v2104
  %v2798 = vunpack.c.l.b16 %v2105
  %v2799 = vunpack.c.h.b16 %v2105
  %v2800 = vunpack.c.l.b16 %v2106
  %v2801 = vunpack.c.h.b16 %v2106
  %v2802 = vunpack.c.l.b16 %v2107
  %v2803 = vunpack.c.h.b16 %v2107
  %v2804 = vunpack.c.l.b16 %v2108
  %v2805 = vunpack.c.h.b16 %v2108
  %v2806 = vunpack.c.l.b16 %v2109
  %v2807 = vunpack.c.h.b16 %v2109
  %v2808 = vunpack.c.l.b16 %v2110
  %v2809 = vunpack.c.h.b16 %v2110
  %v2810 = vunpack.c.l.b16 %v2111
  %v2811 = vunpack.c.h.b16 %v2111
  %v2812 = vunpack.c.l.b16 %v2112
  %v2813 = vunpack.c.h.b16 %v2112
  %v2814 = vunpack.c.l.b16 %v2113
  %v2815 = vunpack.c.h.b16 %v2113
  %v2816 = vunpack.c.l.b16 %v2114
  %v2817 = vunpack.c.h.b16 %v2114
  %v2818 = vunpack.c.l.b16 %v2115
  %v2819 = vunpack.c.h.b16 %v2115
  %v2820 = vunpack.c.l.b16 %v2116
  %v2821 = vunpack.c.h.b16 %v2116
  %v2822 = vunpack.c.l.b16 %v2117
  %v2823 = vunpack.c.h.b16 %v2117
  %v2824 = vunpack.c.l.b16 %v2118
  %v2825 = vunpack.c.h.b16 %v2118
  %v2826 = vunpack.c.l.b16 %v2119
  %v2827 = vunpack.c.h.b16 %v2119
  %v2828 = vunpack.c.l.b16 %v2120
  %v2829 = vunpack.c.h.b16 %v2120
  %v2830 = vunpack.c.l.b16 %v2121
  %v2831 = vunpack.c.h.b16 %v2121
  %v2832 = vunpack.c.l.b16 %v2122
  %v2833 = vunpack.c.h.b16 %v2122
  %v2834 = vunpack.c.l.b16 %v2123
  %v2835 = vunpack.c.h.b16 %v2123
  %v2836 = vunpack.c.l.b16 %v2124
  %v2837 = vunpack.c.h.b16 %v2124
  %v2838 = vunpack.c.l.b16 %v2125
  %v2839 = vunpack.c.h.b16 %v2125
  %v2840 = vunpack.c.l.b16 %v2126
  %v2841 = vunpack.c.h.b16 %v2126
  %v2842 = vunpack.c.l.b16 %v2127
  %v2843 = vunpack.c.h.b16 %v2127
  %v2844 = vunpack.c.l.b16 %v2128
  %v2845 = vunpack.c.h.b16 %v2128
  %v2846 = vunpack.c.l.b16 %v2129
  %v2847 = vunpack.c.h.b16 %v2129
  %v2848 = vunpack.c.l.b16 %v2130
  %v2849 = vunpack.c.h.b16 %v2130
  %v2850 = vunpack.c.l.b16 %v2131
  %v2851 = vunpack.c.h.b16 %v2131
  %v2852 = vpack.c.b16 %v2374, %v2372
  %v2853 = vpack.c.b16 %v2375, %v2373
  %v2854 = vpack.c.b16 %v2378, %v2376
  %v2855 = vpack.c.b16 %v2379, %v2377
  %v2856 = vpack.c.b16 %v2382, %v2380
  %v2857 = vpack.c.b16 %v2383, %v2381
  %v2858 = vpack.c.b16 %v2386, %v2384
  %v2859 = vpack.c.b16 %v2387, %v2385
  %v2860 = vpack.c.b16 %v2390, %v2388
  %v2861 = vpack.c.b16 %v2391, %v2389
  %v2862 = vpack.c.b16 %v2394, %v2392
  %v2863 = vpack.c.b16 %v2395, %v2393
  %v2864 = vpack.c.b16 %v2398, %v2396
  %v2865 = vpack.c.b16 %v2399, %v2397
  %v2866 = vpack.c.b16 %v2402, %v2400
  %v2867 = vpack.c.b16 %v2403, %v2401
  %v2868 = vpack.c.b16 %v2406, %v2404
  %v2869 = vpack.c.b16 %v2407, %v2405
  %v2870 = vpack.c.b16 %v2410, %v2408
  %v2871 = vpack.c.b16 %v2411, %v2409
  %v2872 = vpack.c.b16 %v2414, %v2412
  %v2873 = vpack.c.b16 %v2415, %v2413
  %v2874 = vpack.c.b16 %v2418, %v2416
  %v2875 = vpack.c.b16 %v2419, %v2417
  %v2876 = vpack.c.b16 %v2422, %v2420
  %v2877 = vpack.c.b16 %v2423, %v2421
  %v2878 = vpack.c.b16 %v2426, %v2424
  %v2879 = vpack.c.b16 %v2427, %v2425
  %v2880 = vpack.c.b16 %v2430, %v2428
  %v2881 = vpack.c.b16 %v2431, %v2429
  %v2882 = vpack.c.b16 %v2434, %v2432
  %v2883 = vpack.c.b16 %v2435, %v2433
  %v2884 = vpack.c.b16 %v2438, %v2436
  %v2885 = vpack.c.b16 %v2439, %v2437
  %v2886 = vpack.c.b16 %v2442, %v2440
  %v2887 = vpack.c.b16 %v2443, %v2441
  %v2888 = vpack.c.b16 %v2446, %v2444
  %v2889 = vpack.c.b16 %v2447, %v2445
  %v2890 = vpack.c.b16 %v2450, %v2448
  %v2891 = vpack.c.b16 %v2451, %v2449
  %v2892 = vpack.c.b16 %v2454, %v2452
  %v2893 = vpack.c.b16 %v2455, %v2453
  %v2894 = vpack.c.b16 %v2458, %v2456
  %v2895 = vpack.c.b16 %v2459, %v2457
  %v2896 = vpack.c.b16 %v2462, %v2460
  %v2897 = vpack.c.b16 %v2463, %v2461
  %v2898 = vpack.c.b16 %v2466, %v2464
  %v2899 = vpack.c.b16 %v2467, %v2465
  %v2900 = vpack.c.b16 %v2470, %v2468
  %v2901 = vpack.c.b16 %v2471, %v2469
  %v2902 = vpack.c.b16 %v2474, %v2472
  %v2903 = vpack.c.b16 %v2475, %v2473
  %v2904 = vpack.c.b16 %v2478, %v2476
  %v2905 = vpack.c.b16 %v2479, %v2477
  %v2906 = vpack.c.b16 %v2482, %v2480
  %v2907 = vpack.c.b16 %v2483, %v2481
  %v2908 = vpack.c.b16 %v2486, %v2484
  %v2909 = vpack.c.b16 %v2487, %v2485
  %v2910 = vpack.c.b16 %v2490, %v2488
  %v2911 = vpack.c.b16 %v2491, %v2489
  %v2912 = vpack.c.b16 %v2494, %v2492
  %v2913 = vpack.c.b16 %v2495, %v2493
  %v2914 = vpack.c.b16 %v2498, %v2496
  %v2915 = vpack.c.b16 %v2499, %v2497
  %v2916 = vpack.c.b16 %v2502, %v2500
  %v2917 = vpack.c.b16 %v2503, %v2501
  %v2918 = vpack.c.b16 %v2506, %v2504
  %v2919 = vpack.c.b16 %v2507, %v2505
  %v2920 = vpack.c.b16 %v2510, %v2508
  %v2921 = vpack.c.b16 %v2511, %v2509
  %v2922 = vpack.c.b16 %v2514, %v2512
  %v2923 = vpack.c.b16 %v2515, %v2513
  %v2924 = vpack.c.b16 %v2518, %v2516
  %v2925 = vpack.c.b16 %v2519, %v2517
  %v2926 = vpack.c.b16 %v2522, %v2520
  %v2927 = vpack.c.b16 %v2523, %v2521
  %v2928 = vpack.c.b16 %v2526, %v2524
  %v2929 = vpack.c.b16 %v2527, %v2525
  %v2930 = vpack.c.b16 %v2530, %v2528
  %v2931 = vpack.c.b16 %v2531, %v2529
  %v2932 = vpack.c.b16 %v2534, %v2532
  %v2933 = vpack.c.b16 %v2535, %v2533
  %v2934 = vpack.c.b16 %v2538, %v2536
  %v2935 = vpack.c.b16 %v2539, %v2537
  %v2936 = vpack.c.b16 %v2542, %v2540
  %v2937 = vpack.c.b16 %v2543, %v2541
  %v2938 = vpack.c.b16 %v2546, %v2544
  %v2939 = vpack.c.b16 %v2547, %v2545
  %v2940 = vpack.c.b16 %v2550, %v2548
  %v2941 = vpack.c.b16 %v2551, %v2549
  %v2942 = vpack.c.b16 %v2554, %v2552
  %v2943 = vpack.c.b16 %v2555, %v2553
  %v2944 = vpack.c.b16 %v2558, %v2556
  %v2945 = vpack.c.b16 %v2559, %v2557
  %v2946 = vpack.c.b16 %v2562, %v2560
  %v2947 = vpack.c.b16 %v2563, %v2561
  %v2948 = vpack.c.b16 %v2566, %v2564
  %v2949 = vpack.c.b16 %v2567, %v2565
  %v2950 = vpack.c.b16 %v2570, %v2568
  %v2951 = vpack.c.b16 %v2571, %v2569
  %v2952 = vpack.c.b16 %v2574, %v2572
  %v2953 = vpack.c.b16 %v2575, %v2573
  %v2954 = vpack.c.b16 %v2578, %v2576
  %v2955 = vpack.c.b16 %v2579, %v2577
  %v2956 = vpack.c.b16 %v2582, %v2580
  %v2957 = vpack.c.b16 %v2583, %v2581
  %v2958 = vpack.c.b16 %v2586, %v2584
  %v2959 = vpack.c.b16 %v2587, %v2585
  %v2960 = vpack.c.b16 %v2590, %v2588
  %v2961 = vpack.c.b16 %v2591, %v2589
  %v2962 = vpack.c.b16 %v2594, %v2592
  %v2963 = vpack.c.b16 %v2595, %v2593
  %v2964 = vpack.c.b16 %v2598, %v2596
  %v2965 = vpack.c.b16 %v2599, %v2597
  %v2966 = vpack.c.b16 %v2602, %v2600
  %v2967 = vpack.c.b16 %v2603, %v2601
  %v2968 = vpack.c.b16 %v2606, %v2604
  %v2969 = vpack.c.b16 %v2607, %v2605
  %v2970 = vpack.c.b16 %v2610, %v2608
  %v2971 = vpack.c.b16 %v2611, %v2609
  %v2972 = vpack.c.b16 %v2614, %v2612
  %v2973 = vpack.c.b16 %v2615, %v2613
  %v2974 = vpack.c.b16 %v2618, %v2616
  %v2975 = vpack.c.b16 %v2619, %v2617
  %v2976 = vpack.c.b16 %v2622, %v2620
  %v2977 = vpack.c.b16 %v2623, %v2621
  %v2978 = vpack.c.b16 %v2626, %v2624
  %v2979 = vpack.c.b16 %v2627, %v2625
  %v2980 = vpack.c.b16 %v2630, %v2628
  %v2981 = vpack.c.b16 %v2631, %v2629
  %v2982 = vpack.c.b16 %v2634, %v2632
  %v2983 = vpack.c.b16 %v2635, %v2633
  %v2984 = vpack.c.b16 %v2638, %v2636
  %v2985 = vpack.c.b16 %v2639, %v2637
  %v2986 = vpack.c.b16 %v2642, %v2640
  %v2987 = vpack.c.b16 %v2643, %v2641
  %v2988 = vpack.c.b16 %v2646, %v2644
  %v2989 = vpack.c.b16 %v2647, %v2645
  %v2990 = vpack.c.b16 %v2650, %v2648
  %v2991 = vpack.c.b16 %v2651, %v2649
  %v2992 = vpack.c.b16 %v2654, %v2652
  %v2993 = vpack.c.b16 %v2655, %v2653
  %v2994 = vpack.c.b16 %v2658, %v2656
  %v2995 = vpack.c.b16 %v2659, %v2657
  %v2996 = vpack.c.b16 %v2662, %v2660
  %v2997 = vpack.c.b16 %v2663, %v2661
  %v2998 = vpack.c.b16 %v2666, %v2664
  %v2999 = vpack.c.b16 %v2667, %v2665
  %v3000 = vpack.c.b16 %v2670, %v2668
  %v3001 = vpack.c.b16 %v2671, %v2669
  %v3002 = vpack.c.b16 %v2674, %v2672
  %v3003 = vpack.c.b16 %v2675, %v2673
  %v3004 = vpack.c.b16 %v2678, %v2676
  %v3005 = vpack.c.b16 %v2679, %v2677
  %v3006 = vpack.c.b16 %v2682, %v2680
  %v3007 = vpack.c.b16 %v2683, %v2681
  %v3008 = vpack.c.b16 %v2686, %v2684
  %v3009 = vpack.c.b16 %v2687, %v2685
  %v3010 = vpack.c.b16 %v2690, %v2688
  %v3011 = vpack.c.b16 %v2691, %v2689
  %v3012 = vpack.c.b16 %v2694, %v2692
  %v3013 = vpack.c.b16 %v2695, %v2693
  %v3014 = vpack.c.b16 %v2698, %v2696
  %v3015 = vpack.c.b16 %v2699, %v2697
  %v3016 = vpack.c.b16 %v2702, %v2700
  %v3017 = vpack.c.b16 %v2703, %v2701
  %v3018 = vpack.c.b16 %v2706, %v2704
  %v3019 = vpack.c.b16 %v2707, %v2705
  %v3020 = vpack.c.b16 %v2710, %v2708
  %v3021 = vpack.c.b16 %v2711, %v2709
  %v3022 = vpack.c.b16 %v2714, %v2712
  %v3023 = vpack.c.b16 %v2715, %v2713
  %v3024 = vpack.c.b16 %v2718, %v2716
  %v3025 = vpack.c.b16 %v2719, %v2717
  %v3026 = vpack.c.b16 %v2722, %v2720
  %v3027 = vpack.c.b16 %v2723, %v2721
  %v3028 = vpack.c.b16 %v2726, %v2724
  %v3029 = vpack.c.b16 %v2727, %v2725
  %v3030 = vpack.c.b16 %v2730, %v2728
  %v3031 = vpack.c.b16 %v2731, %v2729
  %v3032 = vpack.c.b16 %v2734, %v2732
  %v3033 = vpack.c.b16 %v2735, %v2733
  %v3034 = vpack.c.b16 %v2738, %v2736
  %v3035 = vpack.c.b16 %v2739, %v2737
  %v3036 = vpack.c.b16 %v2742, %v2740
  %v3037 = vpack.c.b16 %v2743, %v2741
  %v3038 = vpack.c.b16 %v2746, %v2744
  %v3039 = vpack.c.b16 %v2747, %v2745
  %v3040 = vpack.c.b16 %v2750, %v2748
  %v3041 = vpack.c.b16 %v2751, %v2749
  %v3042 = vpack.c.b16 %v2754, %v2752
  %v3043 = vpack.c.b16 %v2755, %v2753
  %v3044 = vpack.c.b16 %v2758, %v2756
  %v3045 = vpack.c.b16 %v2759, %v2757
  %v3046 = vpack.c.b16 %v2762, %v2760
  %v3047 = vpack.c.b16 %v2763, %v2761
  %v3048 = vpack.c.b16 %v2766, %v2764
  %v3049 = vpack.c.b16 %v2767, %v2765
  %v3050 = vpack.c.b16 %v2770, %v2768
  %v3051 = vpack.c.b16 %v2771, %v2769
  %v3052 = vpack.c.b16 %v2774, %v2772
  %v3053 = vpack.c.b16 %v2775, %v2773
  %v3054 = vpack.c.b16 %v2778, %v2776
  %v3055 = vpack.c.b16 %v2779, %v2777
  %v3056 = vpack.c.b16 %v2782, %v2780
  %v3057 = vpack.c.b16 %v2783, %v2781
  %v3058 = vpack.c.b16 %v2786, %v2784
  %v3059 = vpack.c.b16 %v2787, %v2785
  %v3060 = vpack.c.b16 %v2790, %v2788
  %v3061 = vpack.c.b16 %v2791, %v2789
  %v3062 = vpack.c.b16 %v2794, %v2792
  %v3063 = vpack.c.b16 %v2795, %v2793
  %v3064 = vpack.c.b16 %v2798, %v2796
  %v3065 = vpack.c.b16 %v2799, %v2797
  %v3066 = vpack.c.b16 %v2802, %v2800
  %v3067 = vpack.c.b16 %v2803, %v2801
  %v3068 = vpack.c.b16 %v2806, %v2804
  %v3069 = vpack.c.b16 %v2807, %v2805
  %v3070 = vpack.c.b16 %v2810, %v2808
  %v3071 = vpack.c.b16 %v2811, %v2809
  %v3072 = vpack.c.b16 %v2814, %v2812
  %v3073 = vpack.c.b16 %v2815, %v2813
  %v3074 = vpack.c.b16 %v2818, %v2816
  %v3075 = vpack.c.b16 %v2819, %v2817
  %v3076 = vpack.c.b16 %v2822, %v2820
  %v3077 = vpack.c.b16 %v2823, %v2821
  %v3078 = vpack.c.b16 %v2826, %v2824
  %v3079 = vpack.c.b16 %v2827, %v2825
  %v3080 = vpack.c.b16 %v2830, %v2828
  %v3081 = vpack.c.b16 %v2831, %v2829
  %v3082 = vpack.c.b16 %v2834, %v2832
  %v3083 = vpack.c.b16 %v2835, %v2833
  %v3084 = vpack.c.b16 %v2838, %v2836
  %v3085 = vpack.c.b16 %v2839, %v2837
  %v3086 = vpack.c.b16 %v2842, %v2840
  %v3087 = vpack.c.b16 %v2843, %v2841
  %v3088 = vpack.c.b16 %v2846, %v2844
  %v3089 = vpack.c.b16 %v2847, %v2845
  %v3090 = vpack.c.b16 %v2850, %v2848
  %v3091 = vpack.c.b16 %v2851, %v2849
  %3332 = vmatprep.subr.bf16.mxu0 %v2867
  %3333 = vmatpush1.bf16.msra.mxu0 %v2866
  %3334 = vmatprep.subr.bf16.mxu0 %v2865
  %3335 = vmatpush1.bf16.msra.mxu0 %v2864
  %3336 = vmatprep.subr.bf16.mxu0 %v2863
  %3337 = vmatpush1.bf16.msra.mxu0 %v2862
  %3338 = vmatprep.subr.bf16.mxu0 %v2861
  %3339 = vmatpush1.bf16.msra.mxu0 %v2860
  %3340 = vmatprep.subr.bf16.mxu0 %v2859
  %3341 = vmatpush1.bf16.msra.mxu0 %v2858
  %3342 = vmatprep.subr.bf16.mxu0 %v2857
  %3343 = vmatpush1.bf16.msra.mxu0 %v2856
  %3344 = vmatprep.subr.bf16.mxu0 %v2855
  %3345 = vmatpush1.bf16.msra.mxu0 %v2854
  %3346 = vmatprep.subr.bf16.mxu0 %v2853
  %3347 = vmatpush1.bf16.msra.mxu0 %v2852
  %3348 = vmatprep.subr.bf16.mxu0 %v2883
  %3349 = vmatpush2.bf16.msra.mxu0 %v2882
  %3350 = vmatprep.subr.bf16.mxu0 %v2881
  %3351 = vmatpush2.bf16.msra.mxu0 %v2880
  %3352 = vmatprep.subr.bf16.mxu0 %v2879
  %3353 = vmatpush2.bf16.msra.mxu0 %v2878
  %3354 = vmatprep.subr.bf16.mxu0 %v2877
  %3355 = vmatpush2.bf16.msra.mxu0 %v2876
  %3356 = vmatprep.subr.bf16.mxu0 %v2875
  %3357 = vmatpush2.bf16.msra.mxu0 %v2874
  %3358 = vmatprep.subr.bf16.mxu0 %v2873
  %3359 = vmatpush2.bf16.msra.mxu0 %v2872
  %3360 = vmatprep.subr.bf16.mxu0 %v2871
  %3361 = vmatpush2.bf16.msra.mxu0 %v2870
  %3362 = vmatprep.subr.bf16.mxu0 %v2869
  %3363 = vmatpush2.bf16.msra.mxu0 %v2868
  %3364 = vmatprep.mubr.bf16.mxu0 %v318
  %3365 = vmatmul.mubr.bf16.gmra.mxu0 %v317
  %v3366 = vpop.f32.mrf.mxu0
  %v3367 = vadd.f32 0.0, %v3366
  %v3368 = vpop.f32.mrf.mxu0
  %v3369 = vadd.f32 0.0, %v3368
  %v3370 = vpop.f32.mrf.mxu0
  %v3371 = vadd.f32 0.0, %v3370
  %v3372 = vpop.f32.mrf.mxu0
  %v3373 = vadd.f32 0.0, %v3372
  %3374 = vdwg.mxu0
  %3375 = vmatprep.subr.bf16.mxu0 %v2899
  %3376 = vmatpush1.bf16.msra.mxu0 %v2898
  %3377 = vmatprep.subr.bf16.mxu0 %v2897
  %3378 = vmatpush1.bf16.msra.mxu0 %v2896
  %3379 = vmatprep.subr.bf16.mxu0 %v2895
  %3380 = vmatpush1.bf16.msra.mxu0 %v2894
  %3381 = vmatprep.subr.bf16.mxu0 %v2893
  %3382 = vmatpush1.bf16.msra.mxu0 %v2892
  %3383 = vmatprep.subr.bf16.mxu0 %v2891
  %3384 = vmatpush1.bf16.msra.mxu0 %v2890
  %3385 = vmatprep.subr.bf16.mxu0 %v2889
  %3386 = vmatpush1.bf16.msra.mxu0 %v2888
  %3387 = vmatprep.subr.bf16.mxu0 %v2887
  %3388 = vmatpush1.bf16.msra.mxu0 %v2886
  %3389 = vmatprep.subr.bf16.mxu0 %v2885
  %3390 = vmatpush1.bf16.msra.mxu0 %v2884
  %3391 = vmatprep.subr.bf16.mxu0 %v2915
  %3392 = vmatpush2.bf16.msra.mxu0 %v2914
  %3393 = vmatprep.subr.bf16.mxu0 %v2913
  %3394 = vmatpush2.bf16.msra.mxu0 %v2912
  %3395 = vmatprep.subr.bf16.mxu0 %v2911
  %3396 = vmatpush2.bf16.msra.mxu0 %v2910
  %3397 = vmatprep.subr.bf16.mxu0 %v2909
  %3398 = vmatpush2.bf16.msra.mxu0 %v2908
  %3399 = vmatprep.subr.bf16.mxu0 %v2907
  %3400 = vmatpush2.bf16.msra.mxu0 %v2906
  %3401 = vmatprep.subr.bf16.mxu0 %v2905
  %3402 = vmatpush2.bf16.msra.mxu0 %v2904
  %3403 = vmatprep.subr.bf16.mxu0 %v2903
  %3404 = vmatpush2.bf16.msra.mxu0 %v2902
  %3405 = vmatprep.subr.bf16.mxu0 %v2901
  %3406 = vmatpush2.bf16.msra.mxu0 %v2900
  %3407 = vmatprep.mubr.bf16.mxu0 %v320
  %3408 = vmatmul.mubr.bf16.gmra.mxu0 %v319
  %v3409 = vpop.f32.mrf.mxu0
  %v3410 = vadd.f32 %v3367, %v3409
  %v3411 = vpop.f32.mrf.mxu0
  %v3412 = vadd.f32 %v3369, %v3411
  %v3413 = vpop.f32.mrf.mxu0
  %v3414 = vadd.f32 %v3371, %v3413
  %v3415 = vpop.f32.mrf.mxu0
  %v3416 = vadd.f32 %v3373, %v3415
  %3417 = vdwg.mxu0
  %3418 = vmatprep.subr.bf16.mxu0 %v2931
  %3419 = vmatpush1.bf16.msra.mxu0 %v2930
  %3420 = vmatprep.subr.bf16.mxu0 %v2929
  %3421 = vmatpush1.bf16.msra.mxu0 %v2928
  %3422 = vmatprep.subr.bf16.mxu0 %v2927
  %3423 = vmatpush1.bf16.msra.mxu0 %v2926
  %3424 = vmatprep.subr.bf16.mxu0 %v2925
  %3425 = vmatpush1.bf16.msra.mxu0 %v2924
  %3426 = vmatprep.subr.bf16.mxu0 %v2923
  %3427 = vmatpush1.bf16.msra.mxu0 %v2922
  %3428 = vmatprep.subr.bf16.mxu0 %v2921
  %3429 = vmatpush1.bf16.msra.mxu0 %v2920
  %3430 = vmatprep.subr.bf16.mxu0 %v2919
  %3431 = vmatpush1.bf16.msra.mxu0 %v2918
  %3432 = vmatprep.subr.bf16.mxu0 %v2917
  %3433 = vmatpush1.bf16.msra.mxu0 %v2916
  %3434 = vmatprep.subr.bf16.mxu0 %v2947
  %3435 = vmatpush2.bf16.msra.mxu0 %v2946
  %3436 = vmatprep.subr.bf16.mxu0 %v2945
  %3437 = vmatpush2.bf16.msra.mxu0 %v2944
  %3438 = vmatprep.subr.bf16.mxu0 %v2943
  %3439 = vmatpush2.bf16.msra.mxu0 %v2942
  %3440 = vmatprep.subr.bf16.mxu0 %v2941
  %3441 = vmatpush2.bf16.msra.mxu0 %v2940
  %3442 = vmatprep.subr.bf16.mxu0 %v2939
  %3443 = vmatpush2.bf16.msra.mxu0 %v2938
  %3444 = vmatprep.subr.bf16.mxu0 %v2937
  %3445 = vmatpush2.bf16.msra.mxu0 %v2936
  %3446 = vmatprep.subr.bf16.mxu0 %v2935
  %3447 = vmatpush2.bf16.msra.mxu0 %v2934
  %3448 = vmatprep.subr.bf16.mxu0 %v2933
  %3449 = vmatpush2.bf16.msra.mxu0 %v2932
  %3450 = vmatprep.mubr.bf16.mxu0 %v322
  %3451 = vmatmul.mubr.bf16.gmra.mxu0 %v321
  %v3452 = vpop.f32.mrf.mxu0
  %v3453 = vadd.f32 %v3410, %v3452
  %v3454 = vpop.f32.mrf.mxu0
  %v3455 = vadd.f32 %v3412, %v3454
  %v3456 = vpop.f32.mrf.mxu0
  %v3457 = vadd.f32 %v3414, %v3456
  %v3458 = vpop.f32.mrf.mxu0
  %v3459 = vadd.f32 %v3416, %v3458
  %3460 = vdwg.mxu0
  %3461 = vmatprep.subr.bf16.mxu0 %v2963
  %3462 = vmatpush1.bf16.msra.mxu0 %v2962
  %3463 = vmatprep.subr.bf16.mxu0 %v2961
  %3464 = vmatpush1.bf16.msra.mxu0 %v2960
  %3465 = vmatprep.subr.bf16.mxu0 %v2959
  %3466 = vmatpush1.bf16.msra.mxu0 %v2958
  %3467 = vmatprep.subr.bf16.mxu0 %v2957
  %3468 = vmatpush1.bf16.msra.mxu0 %v2956
  %3469 = vmatprep.subr.bf16.mxu0 %v2955
  %3470 = vmatpush1.bf16.msra.mxu0 %v2954
  %3471 = vmatprep.subr.bf16.mxu0 %v2953
  %3472 = vmatpush1.bf16.msra.mxu0 %v2952
  %3473 = vmatprep.subr.bf16.mxu0 %v2951
  %3474 = vmatpush1.bf16.msra.mxu0 %v2950
  %3475 = vmatprep.subr.bf16.mxu0 %v2949
  %3476 = vmatpush1.bf16.msra.mxu0 %v2948
  %3477 = vmatprep.subr.bf16.mxu0 %v2979
  %3478 = vmatpush2.bf16.msra.mxu0 %v2978
  %3479 = vmatprep.subr.bf16.mxu0 %v2977
  %3480 = vmatpush2.bf16.msra.mxu0 %v2976
  %3481 = vmatprep.subr.bf16.mxu0 %v2975
  %3482 = vmatpush2.bf16.msra.mxu0 %v2974
  %3483 = vmatprep.subr.bf16.mxu0 %v2973
  %3484 = vmatpush2.bf16.msra.mxu0 %v2972
  %3485 = vmatprep.subr.bf16.mxu0 %v2971
  %3486 = vmatpush2.bf16.msra.mxu0 %v2970
  %3487 = vmatprep.subr.bf16.mxu0 %v2969
  %3488 = vmatpush2.bf16.msra.mxu0 %v2968
  %3489 = vmatprep.subr.bf16.mxu0 %v2967
  %3490 = vmatpush2.bf16.msra.mxu0 %v2966
  %3491 = vmatprep.subr.bf16.mxu0 %v2965
  %3492 = vmatpush2.bf16.msra.mxu0 %v2964
  %3493 = vmatprep.mubr.bf16.mxu0 %v324
  %3494 = vmatmul.mubr.bf16.gmra.mxu0 %v323
  %v3495 = vpop.f32.mrf.mxu0
  %v3496 = vadd.f32 %v3453, %v3495
  %v3497 = vpop.f32.mrf.mxu0
  %v3498 = vadd.f32 %v3455, %v3497
  %v3499 = vpop.f32.mrf.mxu0
  %v3500 = vadd.f32 %v3457, %v3499
  %v3501 = vpop.f32.mrf.mxu0
  %v3502 = vadd.f32 %v3459, %v3501
  %3503 = vdwg.mxu0
  %3504 = vmatprep.subr.bf16.mxu0 %v2995
  %3505 = vmatpush1.bf16.msra.mxu0 %v2994
  %3506 = vmatprep.subr.bf16.mxu0 %v2993
  %3507 = vmatpush1.bf16.msra.mxu0 %v2992
  %3508 = vmatprep.subr.bf16.mxu0 %v2991
  %3509 = vmatpush1.bf16.msra.mxu0 %v2990
  %3510 = vmatprep.subr.bf16.mxu0 %v2989
  %3511 = vmatpush1.bf16.msra.mxu0 %v2988
  %3512 = vmatprep.subr.bf16.mxu0 %v2987
  %3513 = vmatpush1.bf16.msra.mxu0 %v2986
  %3514 = vmatprep.subr.bf16.mxu0 %v2985
  %3515 = vmatpush1.bf16.msra.mxu0 %v2984
  %3516 = vmatprep.subr.bf16.mxu0 %v2983
  %3517 = vmatpush1.bf16.msra.mxu0 %v2982
  %3518 = vmatprep.subr.bf16.mxu0 %v2981
  %3519 = vmatpush1.bf16.msra.mxu0 %v2980
  %3520 = vmatprep.subr.bf16.mxu0 %v3011
  %3521 = vmatpush2.bf16.msra.mxu0 %v3010
  %3522 = vmatprep.subr.bf16.mxu0 %v3009
  %3523 = vmatpush2.bf16.msra.mxu0 %v3008
  %3524 = vmatprep.subr.bf16.mxu0 %v3007
  %3525 = vmatpush2.bf16.msra.mxu0 %v3006
  %3526 = vmatprep.subr.bf16.mxu0 %v3005
  %3527 = vmatpush2.bf16.msra.mxu0 %v3004
  %3528 = vmatprep.subr.bf16.mxu0 %v3003
  %3529 = vmatpush2.bf16.msra.mxu0 %v3002
  %3530 = vmatprep.subr.bf16.mxu0 %v3001
  %3531 = vmatpush2.bf16.msra.mxu0 %v3000
  %3532 = vmatprep.subr.bf16.mxu0 %v2999
  %3533 = vmatpush2.bf16.msra.mxu0 %v2998
  %3534 = vmatprep.subr.bf16.mxu0 %v2997
  %3535 = vmatpush2.bf16.msra.mxu0 %v2996
  %3536 = vmatprep.mubr.bf16.mxu0 %v326
  %3537 = vmatmul.mubr.bf16.gmra.mxu0 %v325
  %v3538 = vpop.f32.mrf.mxu0
  %v3539 = vadd.f32 %v3496, %v3538
  %v3540 = vpop.f32.mrf.mxu0
  %v3541 = vadd.f32 %v3498, %v3540
  %v3542 = vpop.f32.mrf.mxu0
  %v3543 = vadd.f32 %v3500, %v3542
  %v3544 = vpop.f32.mrf.mxu0
  %v3545 = vadd.f32 %v3502, %v3544
  %3546 = vdwg.mxu0
  %3547 = vmatprep.subr.bf16.mxu0 %v3027
  %3548 = vmatpush1.bf16.msra.mxu0 %v3026
  %3549 = vmatprep.subr.bf16.mxu0 %v3025
  %3550 = vmatpush1.bf16.msra.mxu0 %v3024
  %3551 = vmatprep.subr.bf16.mxu0 %v3023
  %3552 = vmatpush1.bf16.msra.mxu0 %v3022
  %3553 = vmatprep.subr.bf16.mxu0 %v3021
  %3554 = vmatpush1.bf16.msra.mxu0 %v3020
  %3555 = vmatprep.subr.bf16.mxu0 %v3019
  %3556 = vmatpush1.bf16.msra.mxu0 %v3018
  %3557 = vmatprep.subr.bf16.mxu0 %v3017
  %3558 = vmatpush1.bf16.msra.mxu0 %v3016
  %3559 = vmatprep.subr.bf16.mxu0 %v3015
  %3560 = vmatpush1.bf16.msra.mxu0 %v3014
  %3561 = vmatprep.subr.bf16.mxu0 %v3013
  %3562 = vmatpush1.bf16.msra.mxu0 %v3012
  %3563 = vmatprep.subr.bf16.mxu0 %v3043
  %3564 = vmatpush2.bf16.msra.mxu0 %v3042
  %3565 = vmatprep.subr.bf16.mxu0 %v3041
  %3566 = vmatpush2.bf16.msra.mxu0 %v3040
  %3567 = vmatprep.subr.bf16.mxu0 %v3039
  %3568 = vmatpush2.bf16.msra.mxu0 %v3038
  %3569 = vmatprep.subr.bf16.mxu0 %v3037
  %3570 = vmatpush2.bf16.msra.mxu0 %v3036
  %3571 = vmatprep.subr.bf16.mxu0 %v3035
  %3572 = vmatpush2.bf16.msra.mxu0 %v3034
  %3573 = vmatprep.subr.bf16.mxu0 %v3033
  %3574 = vmatpush2.bf16.msra.mxu0 %v3032
  %3575 = vmatprep.subr.bf16.mxu0 %v3031
  %3576 = vmatpush2.bf16.msra.mxu0 %v3030
  %3577 = vmatprep.subr.bf16.mxu0 %v3029
  %3578 = vmatpush2.bf16.msra.mxu0 %v3028
  %3579 = vmatprep.mubr.bf16.mxu0 %v328
  %3580 = vmatmul.mubr.bf16.gmra.mxu0 %v327
  %v3581 = vpop.f32.mrf.mxu0
  %v3582 = vadd.f32 %v3539, %v3581
  %v3583 = vpop.f32.mrf.mxu0
  %v3584 = vadd.f32 %v3541, %v3583
  %v3585 = vpop.f32.mrf.mxu0
  %v3586 = vadd.f32 %v3543, %v3585
  %v3587 = vpop.f32.mrf.mxu0
  %v3588 = vadd.f32 %v3545, %v3587
  %3589 = vdwg.mxu0
  %3590 = vmatprep.subr.bf16.mxu0 %v3059
  %3591 = vmatpush1.bf16.msra.mxu0 %v3058
  %3592 = vmatprep.subr.bf16.mxu0 %v3057
  %3593 = vmatpush1.bf16.msra.mxu0 %v3056
  %3594 = vmatprep.subr.bf16.mxu0 %v3055
  %3595 = vmatpush1.bf16.msra.mxu0 %v3054
  %3596 = vmatprep.subr.bf16.mxu0 %v3053
  %3597 = vmatpush1.bf16.msra.mxu0 %v3052
  %3598 = vmatprep.subr.bf16.mxu0 %v3051
  %3599 = vmatpush1.bf16.msra.mxu0 %v3050
  %3600 = vmatprep.subr.bf16.mxu0 %v3049
  %3601 = vmatpush1.bf16.msra.mxu0 %v3048
  %3602 = vmatprep.subr.bf16.mxu0 %v3047
  %3603 = vmatpush1.bf16.msra.mxu0 %v3046
  %3604 = vmatprep.subr.bf16.mxu0 %v3045
  %3605 = vmatpush1.bf16.msra.mxu0 %v3044
  %3606 = vmatprep.subr.bf16.mxu0 %v3075
  %3607 = vmatpush2.bf16.msra.mxu0 %v3074
  %3608 = vmatprep.subr.bf16.mxu0 %v3073
  %3609 = vmatpush2.bf16.msra.mxu0 %v3072
  %3610 = vmatprep.subr.bf16.mxu0 %v3071
  %3611 = vmatpush2.bf16.msra.mxu0 %v3070
  %3612 = vmatprep.subr.bf16.mxu0 %v3069
  %3613 = vmatpush2.bf16.msra.mxu0 %v3068
  %3614 = vmatprep.subr.bf16.mxu0 %v3067
  %3615 = vmatpush2.bf16.msra.mxu0 %v3066
  %3616 = vmatprep.subr.bf16.mxu0 %v3065
  %3617 = vmatpush2.bf16.msra.mxu0 %v3064
  %3618 = vmatprep.subr.bf16.mxu0 %v3063
  %3619 = vmatpush2.bf16.msra.mxu0 %v3062
  %3620 = vmatprep.subr.bf16.mxu0 %v3061
  %3621 = vmatpush2.bf16.msra.mxu0 %v3060
  %3622 = vmatprep.mubr.bf16.mxu0 %v330
  %3623 = vmatmul.mubr.bf16.gmra.mxu0 %v329
  %v3624 = vpop.f32.mrf.mxu0
  %v3625 = vadd.f32 %v3582, %v3624
  %v3626 = vpop.f32.mrf.mxu0
  %v3627 = vadd.f32 %v3584, %v3626
  %v3628 = vpop.f32.mrf.mxu0
  %v3629 = vadd.f32 %v3586, %v3628
  %v3630 = vpop.f32.mrf.mxu0
  %v3631 = vadd.f32 %v3588, %v3630
  %3632 = vdwg.mxu0
  %3633 = vmatprep.subr.bf16.mxu0 %v3091
  %3634 = vmatpush1.bf16.msra.mxu0 %v3090
  %3635 = vmatprep.subr.bf16.mxu0 %v3089
  %3636 = vmatpush1.bf16.msra.mxu0 %v3088
  %3637 = vmatprep.subr.bf16.mxu0 %v3087
  %3638 = vmatpush1.bf16.msra.mxu0 %v3086
  %3639 = vmatprep.subr.bf16.mxu0 %v3085
  %3640 = vmatpush1.bf16.msra.mxu0 %v3084
  %3641 = vmatprep.subr.bf16.mxu0 %v3083
  %3642 = vmatpush1.bf16.msra.mxu0 %v3082
  %3643 = vmatprep.subr.bf16.mxu0 %v3081
  %3644 = vmatpush1.bf16.msra.mxu0 %v3080
  %3645 = vmatprep.subr.bf16.mxu0 %v3079
  %3646 = vmatpush1.bf16.msra.mxu0 %v3078
  %3647 = vmatprep.subr.bf16.mxu0 %v3077
  %3648 = vmatpush1.bf16.msra.mxu0 %v3076
  %3649 = vmatprep.subr.bf16.mxu0 0
  %3650 = vmatpush2.bf16.msra.mxu0 0
  %3651 = vmatprep.subr.bf16.mxu0 0
  %3652 = vmatpush2.bf16.msra.mxu0 0
  %3653 = vmatprep.subr.bf16.mxu0 0
  %3654 = vmatpush2.bf16.msra.mxu0 0
  %3655 = vmatprep.subr.bf16.mxu0 0
  %3656 = vmatpush2.bf16.msra.mxu0 0
  %3657 = vmatprep.subr.bf16.mxu0 0
  %3658 = vmatpush2.bf16.msra.mxu0 0
  %3659 = vmatprep.subr.bf16.mxu0 0
  %3660 = vmatpush2.bf16.msra.mxu0 0
  %3661 = vmatprep.subr.bf16.mxu0 0
  %3662 = vmatpush2.bf16.msra.mxu0 0
  %3663 = vmatprep.subr.bf16.mxu0 0
  %3664 = vmatpush2.bf16.msra.mxu0 0
  %3665 = vmatprep.mubr.bf16.mxu0 0
  %3666 = vmatmul.mubr.bf16.gmra.mxu0 %v331
  %v3667 = vpop.f32.mrf.mxu0
  %v3668 = vadd.f32 %v3625, %v3667
  %v3669 = vpop.f32.mrf.mxu0
  %v3670 = vadd.f32 %v3627, %v3669
  %v3671 = vpop.f32.mrf.mxu0
  %v3672 = vadd.f32 %v3629, %v3671
  %v3673 = vpop.f32.mrf.mxu0
  %v3674 = vadd.f32 %v3631, %v3673
  %3675 = vdwg.mxu0
  %v3676 = vmax.f32 %v1883, %v3668
  %v3677 = vmax.f32 %v1885, %v3670
  %v3678 = vmax.f32 %v1887, %v3672
  %v3679 = vmax.f32 %v1889, %v3674
  %s3680 = scalar_lea.vmem %s1, 3840
  %v3681 = vld [vmem:[%s3680] sm:$0xff]
  %v3682 = vld [vmem:[%s3680 + $0x8] sm:$0xff]
  %v3683 = vld [vmem:[%s3680 + $0x10] sm:$0xff]
  %v3684 = vld [vmem:[%s3680 + $0x18] sm:$0xff]
  %v3685 = vld [vmem:[%s3680 + $0x20] sm:$0xff]
  %v3686 = vld [vmem:[%s3680 + $0x28] sm:$0xff]
  %v3687 = vld [vmem:[%s3680 + $0x30] sm:$0xff]
  %v3688 = vld [vmem:[%s3680 + $0x38] sm:$0xff]
  %v3689 = vld [vmem:[%s3680 + $0x40] sm:$0xff]
  %v3690 = vld [vmem:[%s3680 + $0x48] sm:$0xff]
  %v3691 = vld [vmem:[%s3680 + $0x50] sm:$0xff]
  %v3692 = vld [vmem:[%s3680 + $0x58] sm:$0xff]
  %v3693 = vld [vmem:[%s3680 + $0x60] sm:$0xff]
  %v3694 = vld [vmem:[%s3680 + $0x68] sm:$0xff]
  %v3695 = vld [vmem:[%s3680 + $0x70] sm:$0xff]
  %v3696 = vld [vmem:[%s3680 + $0x78] sm:$0xff]
  %v3697 = vld [vmem:[%s3680 + $0x80] sm:$0xff]
  %v3698 = vld [vmem:[%s3680 + $0x88] sm:$0xff]
  %v3699 = vld [vmem:[%s3680 + $0x90] sm:$0xff]
  %v3700 = vld [vmem:[%s3680 + $0x98] sm:$0xff]
  %v3701 = vld [vmem:[%s3680 + $0xa0] sm:$0xff]
  %v3702 = vld [vmem:[%s3680 + $0xa8] sm:$0xff]
  %v3703 = vld [vmem:[%s3680 + $0xb0] sm:$0xff]
  %v3704 = vld [vmem:[%s3680 + $0xb8] sm:$0xff]
  %v3705 = vld [vmem:[%s3680 + $0xc0] sm:$0xff]
  %v3706 = vld [vmem:[%s3680 + $0xc8] sm:$0xff]
  %v3707 = vld [vmem:[%s3680 + $0xd0] sm:$0xff]
  %v3708 = vld [vmem:[%s3680 + $0xd8] sm:$0xff]
  %v3709 = vld [vmem:[%s3680 + $0xe0] sm:$0xff]
  %v3710 = vld [vmem:[%s3680 + $0xe8] sm:$0xff]
  %v3711 = vld [vmem:[%s3680 + $0xf0] sm:$0xff]
  %v3712 = vld [vmem:[%s3680 + $0xf8] sm:$0xff]
  %v3713 = vld [vmem:[%s3680 + $0x100] sm:$0xff]
  %v3714 = vld [vmem:[%s3680 + $0x108] sm:$0xff]
  %v3715 = vld [vmem:[%s3680 + $0x110] sm:$0xff]
  %v3716 = vld [vmem:[%s3680 + $0x118] sm:$0xff]
  %v3717 = vld [vmem:[%s3680 + $0x120] sm:$0xff]
  %v3718 = vld [vmem:[%s3680 + $0x128] sm:$0xff]
  %v3719 = vld [vmem:[%s3680 + $0x130] sm:$0xff]
  %v3720 = vld [vmem:[%s3680 + $0x138] sm:$0xff]
  %v3721 = vld [vmem:[%s3680 + $0x140] sm:$0xff]
  %v3722 = vld [vmem:[%s3680 + $0x148] sm:$0xff]
  %v3723 = vld [vmem:[%s3680 + $0x150] sm:$0xff]
  %v3724 = vld [vmem:[%s3680 + $0x158] sm:$0xff]
  %v3725 = vld [vmem:[%s3680 + $0x160] sm:$0xff]
  %v3726 = vld [vmem:[%s3680 + $0x168] sm:$0xff]
  %v3727 = vld [vmem:[%s3680 + $0x170] sm:$0xff]
  %v3728 = vld [vmem:[%s3680 + $0x178] sm:$0xff]
  %v3729 = vld [vmem:[%s3680 + $0x180] sm:$0xff]
  %v3730 = vld [vmem:[%s3680 + $0x188] sm:$0xff]
  %v3731 = vld [vmem:[%s3680 + $0x190] sm:$0xff]
  %v3732 = vld [vmem:[%s3680 + $0x198] sm:$0xff]
  %v3733 = vld [vmem:[%s3680 + $0x1a0] sm:$0xff]
  %v3734 = vld [vmem:[%s3680 + $0x1a8] sm:$0xff]
  %v3735 = vld [vmem:[%s3680 + $0x1b0] sm:$0xff]
  %v3736 = vld [vmem:[%s3680 + $0x1b8] sm:$0xff]
  %v3737 = vld [vmem:[%s3680 + $0x1c0] sm:$0xff]
  %v3738 = vld [vmem:[%s3680 + $0x1c8] sm:$0xff]
  %v3739 = vld [vmem:[%s3680 + $0x1d0] sm:$0xff]
  %v3740 = vld [vmem:[%s3680 + $0x1d8] sm:$0xff]
  %v3741 = vld [vmem:[%s3680 + $0x1e0] sm:$0xff]
  %v3742 = vld [vmem:[%s3680 + $0x1e8] sm:$0xff]
  %v3743 = vld [vmem:[%s3680 + $0x1f0] sm:$0xff]
  %v3744 = vld [vmem:[%s3680 + $0x1f8] sm:$0xff]
  %v3745 = vld [vmem:[%s3680 + $0x200] sm:$0xff]
  %v3746 = vld [vmem:[%s3680 + $0x208] sm:$0xff]
  %v3747 = vld [vmem:[%s3680 + $0x210] sm:$0xff]
  %v3748 = vld [vmem:[%s3680 + $0x218] sm:$0xff]
  %v3749 = vld [vmem:[%s3680 + $0x220] sm:$0xff]
  %v3750 = vld [vmem:[%s3680 + $0x228] sm:$0xff]
  %v3751 = vld [vmem:[%s3680 + $0x230] sm:$0xff]
  %v3752 = vld [vmem:[%s3680 + $0x238] sm:$0xff]
  %v3753 = vld [vmem:[%s3680 + $0x240] sm:$0xff]
  %v3754 = vld [vmem:[%s3680 + $0x248] sm:$0xff]
  %v3755 = vld [vmem:[%s3680 + $0x250] sm:$0xff]
  %v3756 = vld [vmem:[%s3680 + $0x258] sm:$0xff]
  %v3757 = vld [vmem:[%s3680 + $0x260] sm:$0xff]
  %v3758 = vld [vmem:[%s3680 + $0x268] sm:$0xff]
  %v3759 = vld [vmem:[%s3680 + $0x270] sm:$0xff]
  %v3760 = vld [vmem:[%s3680 + $0x278] sm:$0xff]
  %v3761 = vld [vmem:[%s3680 + $0x280] sm:$0xff]
  %v3762 = vld [vmem:[%s3680 + $0x288] sm:$0xff]
  %v3763 = vld [vmem:[%s3680 + $0x290] sm:$0xff]
  %v3764 = vld [vmem:[%s3680 + $0x298] sm:$0xff]
  %v3765 = vld [vmem:[%s3680 + $0x2a0] sm:$0xff]
  %v3766 = vld [vmem:[%s3680 + $0x2a8] sm:$0xff]
  %v3767 = vld [vmem:[%s3680 + $0x2b0] sm:$0xff]
  %v3768 = vld [vmem:[%s3680 + $0x2b8] sm:$0xff]
  %v3769 = vld [vmem:[%s3680 + $0x2c0] sm:$0xff]
  %v3770 = vld [vmem:[%s3680 + $0x2c8] sm:$0xff]
  %v3771 = vld [vmem:[%s3680 + $0x2d0] sm:$0xff]
  %v3772 = vld [vmem:[%s3680 + $0x2d8] sm:$0xff]
  %v3773 = vld [vmem:[%s3680 + $0x2e0] sm:$0xff]
  %v3774 = vld [vmem:[%s3680 + $0x2e8] sm:$0xff]
  %v3775 = vld [vmem:[%s3680 + $0x2f0] sm:$0xff]
  %v3776 = vld [vmem:[%s3680 + $0x2f8] sm:$0xff]
  %v3777 = vld [vmem:[%s3680 + $0x300] sm:$0xff]
  %v3778 = vld [vmem:[%s3680 + $0x308] sm:$0xff]
  %v3779 = vld [vmem:[%s3680 + $0x310] sm:$0xff]
  %v3780 = vld [vmem:[%s3680 + $0x318] sm:$0xff]
  %v3781 = vld [vmem:[%s3680 + $0x320] sm:$0xff]
  %v3782 = vld [vmem:[%s3680 + $0x328] sm:$0xff]
  %v3783 = vld [vmem:[%s3680 + $0x330] sm:$0xff]
  %v3784 = vld [vmem:[%s3680 + $0x338] sm:$0xff]
  %v3785 = vld [vmem:[%s3680 + $0x340] sm:$0xff]
  %v3786 = vld [vmem:[%s3680 + $0x348] sm:$0xff]
  %v3787 = vld [vmem:[%s3680 + $0x350] sm:$0xff]
  %v3788 = vld [vmem:[%s3680 + $0x358] sm:$0xff]
  %v3789 = vld [vmem:[%s3680 + $0x360] sm:$0xff]
  %v3790 = vld [vmem:[%s3680 + $0x368] sm:$0xff]
  %v3791 = vld [vmem:[%s3680 + $0x370] sm:$0xff]
  %v3792 = vld [vmem:[%s3680 + $0x378] sm:$0xff]
  %v3793 = vld [vmem:[%s3680 + $0x380] sm:$0xff]
  %v3794 = vld [vmem:[%s3680 + $0x388] sm:$0xff]
  %v3795 = vld [vmem:[%s3680 + $0x390] sm:$0xff]
  %v3796 = vld [vmem:[%s3680 + $0x398] sm:$0xff]
  %v3797 = vld [vmem:[%s3680 + $0x3a0] sm:$0xff]
  %v3798 = vld [vmem:[%s3680 + $0x3a8] sm:$0xff]
  %v3799 = vld [vmem:[%s3680 + $0x3b0] sm:$0xff]
  %v3800 = vld [vmem:[%s3680 + $0x3b8] sm:$0xff]
  %v3801 = vld [vmem:[%s3680 + $0x3c0] sm:$0xff]
  %v3802 = vld [vmem:[%s3680 + $0x3c8] sm:$0xff]
  %v3803 = vld [vmem:[%s3680 + $0x3d0] sm:$0xff]
  %v3804 = vld [vmem:[%s3680 + $0x3d8] sm:$0xff]
  %v3805 = vld [vmem:[%s3680 + $0x3e0] sm:$0xff]
  %v3806 = vld [vmem:[%s3680 + $0x3e8] sm:$0xff]
  %v3807 = vld [vmem:[%s3680 + $0x3f0] sm:$0xff]
  %v3808 = vld [vmem:[%s3680 + $0x3f8] sm:$0xff]
  %v3809 = vld [vmem:[%s3680 + $0x400] sm:$0xff]
  %v3810 = vld [vmem:[%s3680 + $0x408] sm:$0xff]
  %v3811 = vld [vmem:[%s3680 + $0x410] sm:$0xff]
  %v3812 = vld [vmem:[%s3680 + $0x418] sm:$0xff]
  %v3813 = vld [vmem:[%s3680 + $0x420] sm:$0xff]
  %v3814 = vld [vmem:[%s3680 + $0x428] sm:$0xff]
  %v3815 = vld [vmem:[%s3680 + $0x430] sm:$0xff]
  %v3816 = vld [vmem:[%s3680 + $0x438] sm:$0xff]
  %v3817 = vld [vmem:[%s3680 + $0x440] sm:$0xff]
  %v3818 = vld [vmem:[%s3680 + $0x448] sm:$0xff]
  %v3819 = vld [vmem:[%s3680 + $0x450] sm:$0xff]
  %v3820 = vld [vmem:[%s3680 + $0x458] sm:$0xff]
  %v3821 = vld [vmem:[%s3680 + $0x460] sm:$0xff]
  %v3822 = vld [vmem:[%s3680 + $0x468] sm:$0xff]
  %v3823 = vld [vmem:[%s3680 + $0x470] sm:$0xff]
  %v3824 = vld [vmem:[%s3680 + $0x478] sm:$0xff]
  %v3825 = vld [vmem:[%s3680 + $0x480] sm:$0xff]
  %v3826 = vld [vmem:[%s3680 + $0x488] sm:$0xff]
  %v3827 = vld [vmem:[%s3680 + $0x490] sm:$0xff]
  %v3828 = vld [vmem:[%s3680 + $0x498] sm:$0xff]
  %v3829 = vld [vmem:[%s3680 + $0x4a0] sm:$0xff]
  %v3830 = vld [vmem:[%s3680 + $0x4a8] sm:$0xff]
  %v3831 = vld [vmem:[%s3680 + $0x4b0] sm:$0xff]
  %v3832 = vld [vmem:[%s3680 + $0x4b8] sm:$0xff]
  %v3833 = vld [vmem:[%s3680 + $0x4c0] sm:$0xff]
  %v3834 = vld [vmem:[%s3680 + $0x4c8] sm:$0xff]
  %v3835 = vld [vmem:[%s3680 + $0x4d0] sm:$0xff]
  %v3836 = vld [vmem:[%s3680 + $0x4d8] sm:$0xff]
  %v3837 = vld [vmem:[%s3680 + $0x4e0] sm:$0xff]
  %v3838 = vld [vmem:[%s3680 + $0x4e8] sm:$0xff]
  %v3839 = vld [vmem:[%s3680 + $0x4f0] sm:$0xff]
  %v3840 = vld [vmem:[%s3680 + $0x4f8] sm:$0xff]
  %v3841 = vld [vmem:[%s3680 + $0x500] sm:$0xff]
  %v3842 = vld [vmem:[%s3680 + $0x508] sm:$0xff]
  %v3843 = vld [vmem:[%s3680 + $0x510] sm:$0xff]
  %v3844 = vld [vmem:[%s3680 + $0x518] sm:$0xff]
  %v3845 = vld [vmem:[%s3680 + $0x520] sm:$0xff]
  %v3846 = vld [vmem:[%s3680 + $0x528] sm:$0xff]
  %v3847 = vld [vmem:[%s3680 + $0x530] sm:$0xff]
  %v3848 = vld [vmem:[%s3680 + $0x538] sm:$0xff]
  %v3849 = vld [vmem:[%s3680 + $0x540] sm:$0xff]
  %v3850 = vld [vmem:[%s3680 + $0x548] sm:$0xff]
  %v3851 = vld [vmem:[%s3680 + $0x550] sm:$0xff]
  %v3852 = vld [vmem:[%s3680 + $0x558] sm:$0xff]
  %v3853 = vld [vmem:[%s3680 + $0x560] sm:$0xff]
  %v3854 = vld [vmem:[%s3680 + $0x568] sm:$0xff]
  %v3855 = vld [vmem:[%s3680 + $0x570] sm:$0xff]
  %v3856 = vld [vmem:[%s3680 + $0x578] sm:$0xff]
  %v3857 = vld [vmem:[%s3680 + $0x580] sm:$0xff]
  %v3858 = vld [vmem:[%s3680 + $0x588] sm:$0xff]
  %v3859 = vld [vmem:[%s3680 + $0x590] sm:$0xff]
  %v3860 = vld [vmem:[%s3680 + $0x598] sm:$0xff]
  %v3861 = vld [vmem:[%s3680 + $0x5a0] sm:$0xff]
  %v3862 = vld [vmem:[%s3680 + $0x5a8] sm:$0xff]
  %v3863 = vld [vmem:[%s3680 + $0x5b0] sm:$0xff]
  %v3864 = vld [vmem:[%s3680 + $0x5b8] sm:$0xff]
  %v3865 = vld [vmem:[%s3680 + $0x5c0] sm:$0xff]
  %v3866 = vld [vmem:[%s3680 + $0x5c8] sm:$0xff]
  %v3867 = vld [vmem:[%s3680 + $0x5d0] sm:$0xff]
  %v3868 = vld [vmem:[%s3680 + $0x5d8] sm:$0xff]
  %v3869 = vld [vmem:[%s3680 + $0x5e0] sm:$0xff]
  %v3870 = vld [vmem:[%s3680 + $0x5e8] sm:$0xff]
  %v3871 = vld [vmem:[%s3680 + $0x5f0] sm:$0xff]
  %v3872 = vld [vmem:[%s3680 + $0x5f8] sm:$0xff]
  %v3873 = vld [vmem:[%s3680 + $0x600] sm:$0xff]
  %v3874 = vld [vmem:[%s3680 + $0x608] sm:$0xff]
  %v3875 = vld [vmem:[%s3680 + $0x610] sm:$0xff]
  %v3876 = vld [vmem:[%s3680 + $0x618] sm:$0xff]
  %v3877 = vld [vmem:[%s3680 + $0x620] sm:$0xff]
  %v3878 = vld [vmem:[%s3680 + $0x628] sm:$0xff]
  %v3879 = vld [vmem:[%s3680 + $0x630] sm:$0xff]
  %v3880 = vld [vmem:[%s3680 + $0x638] sm:$0xff]
  %v3881 = vld [vmem:[%s3680 + $0x640] sm:$0xff]
  %v3882 = vld [vmem:[%s3680 + $0x648] sm:$0xff]
  %v3883 = vld [vmem:[%s3680 + $0x650] sm:$0xff]
  %v3884 = vld [vmem:[%s3680 + $0x658] sm:$0xff]
  %v3885 = vld [vmem:[%s3680 + $0x660] sm:$0xff]
  %v3886 = vld [vmem:[%s3680 + $0x668] sm:$0xff]
  %v3887 = vld [vmem:[%s3680 + $0x670] sm:$0xff]
  %v3888 = vld [vmem:[%s3680 + $0x678] sm:$0xff]
  %v3889 = vld [vmem:[%s3680 + $0x680] sm:$0xff]
  %v3890 = vld [vmem:[%s3680 + $0x688] sm:$0xff]
  %v3891 = vld [vmem:[%s3680 + $0x690] sm:$0xff]
  %v3892 = vld [vmem:[%s3680 + $0x698] sm:$0xff]
  %v3893 = vld [vmem:[%s3680 + $0x6a0] sm:$0xff]
  %v3894 = vld [vmem:[%s3680 + $0x6a8] sm:$0xff]
  %v3895 = vld [vmem:[%s3680 + $0x6b0] sm:$0xff]
  %v3896 = vld [vmem:[%s3680 + $0x6b8] sm:$0xff]
  %v3897 = vld [vmem:[%s3680 + $0x6c0] sm:$0xff]
  %v3898 = vld [vmem:[%s3680 + $0x6c8] sm:$0xff]
  %v3899 = vld [vmem:[%s3680 + $0x6d0] sm:$0xff]
  %v3900 = vld [vmem:[%s3680 + $0x6d8] sm:$0xff]
  %v3901 = vld [vmem:[%s3680 + $0x6e0] sm:$0xff]
  %v3902 = vld [vmem:[%s3680 + $0x6e8] sm:$0xff]
  %v3903 = vld [vmem:[%s3680 + $0x6f0] sm:$0xff]
  %v3904 = vld [vmem:[%s3680 + $0x6f8] sm:$0xff]
  %v3905 = vld [vmem:[%s3680 + $0x700] sm:$0xff]
  %v3906 = vld [vmem:[%s3680 + $0x708] sm:$0xff]
  %v3907 = vld [vmem:[%s3680 + $0x710] sm:$0xff]
  %v3908 = vld [vmem:[%s3680 + $0x718] sm:$0xff]
  %v3909 = vld [vmem:[%s3680 + $0x720] sm:$0xff]
  %v3910 = vld [vmem:[%s3680 + $0x728] sm:$0xff]
  %v3911 = vld [vmem:[%s3680 + $0x730] sm:$0xff]
  %v3912 = vld [vmem:[%s3680 + $0x738] sm:$0xff]
  %v3913 = vld [vmem:[%s3680 + $0x740] sm:$0xff]
  %v3914 = vld [vmem:[%s3680 + $0x748] sm:$0xff]
  %v3915 = vld [vmem:[%s3680 + $0x750] sm:$0xff]
  %v3916 = vld [vmem:[%s3680 + $0x758] sm:$0xff]
  %v3917 = vld [vmem:[%s3680 + $0x760] sm:$0xff]
  %v3918 = vld [vmem:[%s3680 + $0x768] sm:$0xff]
  %v3919 = vld [vmem:[%s3680 + $0x770] sm:$0xff]
  %v3920 = vld [vmem:[%s3680 + $0x778] sm:$0xff]
  %v4161 = vunpack.c.l.b16 %v3681
  %v4162 = vunpack.c.h.b16 %v3681
  %v4163 = vunpack.c.l.b16 %v3682
  %v4164 = vunpack.c.h.b16 %v3682
  %v4165 = vunpack.c.l.b16 %v3683
  %v4166 = vunpack.c.h.b16 %v3683
  %v4167 = vunpack.c.l.b16 %v3684
  %v4168 = vunpack.c.h.b16 %v3684
  %v4169 = vunpack.c.l.b16 %v3685
  %v4170 = vunpack.c.h.b16 %v3685
  %v4171 = vunpack.c.l.b16 %v3686
  %v4172 = vunpack.c.h.b16 %v3686
  %v4173 = vunpack.c.l.b16 %v3687
  %v4174 = vunpack.c.h.b16 %v3687
  %v4175 = vunpack.c.l.b16 %v3688
  %v4176 = vunpack.c.h.b16 %v3688
  %v4177 = vunpack.c.l.b16 %v3689
  %v4178 = vunpack.c.h.b16 %v3689
  %v4179 = vunpack.c.l.b16 %v3690
  %v4180 = vunpack.c.h.b16 %v3690
  %v4181 = vunpack.c.l.b16 %v3691
  %v4182 = vunpack.c.h.b16 %v3691
  %v4183 = vunpack.c.l.b16 %v3692
  %v4184 = vunpack.c.h.b16 %v3692
  %v4185 = vunpack.c.l.b16 %v3693
  %v4186 = vunpack.c.h.b16 %v3693
  %v4187 = vunpack.c.l.b16 %v3694
  %v4188 = vunpack.c.h.b16 %v3694
  %v4189 = vunpack.c.l.b16 %v3695
  %v4190 = vunpack.c.h.b16 %v3695
  %v4191 = vunpack.c.l.b16 %v3696
  %v4192 = vunpack.c.h.b16 %v3696
  %v4193 = vunpack.c.l.b16 %v3697
  %v4194 = vunpack.c.h.b16 %v3697
  %v4195 = vunpack.c.l.b16 %v3698
  %v4196 = vunpack.c.h.b16 %v3698
  %v4197 = vunpack.c.l.b16 %v3699
  %v4198 = vunpack.c.h.b16 %v3699
  %v4199 = vunpack.c.l.b16 %v3700
  %v4200 = vunpack.c.h.b16 %v3700
  %v4201 = vunpack.c.l.b16 %v3701
  %v4202 = vunpack.c.h.b16 %v3701
  %v4203 = vunpack.c.l.b16 %v3702
  %v4204 = vunpack.c.h.b16 %v3702
  %v4205 = vunpack.c.l.b16 %v3703
  %v4206 = vunpack.c.h.b16 %v3703
  %v4207 = vunpack.c.l.b16 %v3704
  %v4208 = vunpack.c.h.b16 %v3704
  %v4209 = vunpack.c.l.b16 %v3705
  %v4210 = vunpack.c.h.b16 %v3705
  %v4211 = vunpack.c.l.b16 %v3706
  %v4212 = vunpack.c.h.b16 %v3706
  %v4213 = vunpack.c.l.b16 %v3707
  %v4214 = vunpack.c.h.b16 %v3707
  %v4215 = vunpack.c.l.b16 %v3708
  %v4216 = vunpack.c.h.b16 %v3708
  %v4217 = vunpack.c.l.b16 %v3709
  %v4218 = vunpack.c.h.b16 %v3709
  %v4219 = vunpack.c.l.b16 %v3710
  %v4220 = vunpack.c.h.b16 %v3710
  %v4221 = vunpack.c.l.b16 %v3711
  %v4222 = vunpack.c.h.b16 %v3711
  %v4223 = vunpack.c.l.b16 %v3712
  %v4224 = vunpack.c.h.b16 %v3712
  %v4225 = vunpack.c.l.b16 %v3713
  %v4226 = vunpack.c.h.b16 %v3713
  %v4227 = vunpack.c.l.b16 %v3714
  %v4228 = vunpack.c.h.b16 %v3714
  %v4229 = vunpack.c.l.b16 %v3715
  %v4230 = vunpack.c.h.b16 %v3715
  %v4231 = vunpack.c.l.b16 %v3716
  %v4232 = vunpack.c.h.b16 %v3716
  %v4233 = vunpack.c.l.b16 %v3717
  %v4234 = vunpack.c.h.b16 %v3717
  %v4235 = vunpack.c.l.b16 %v3718
  %v4236 = vunpack.c.h.b16 %v3718
  %v4237 = vunpack.c.l.b16 %v3719
  %v4238 = vunpack.c.h.b16 %v3719
  %v4239 = vunpack.c.l.b16 %v3720
  %v4240 = vunpack.c.h.b16 %v3720
  %v4241 = vunpack.c.l.b16 %v3721
  %v4242 = vunpack.c.h.b16 %v3721
  %v4243 = vunpack.c.l.b16 %v3722
  %v4244 = vunpack.c.h.b16 %v3722
  %v4245 = vunpack.c.l.b16 %v3723
  %v4246 = vunpack.c.h.b16 %v3723
  %v4247 = vunpack.c.l.b16 %v3724
  %v4248 = vunpack.c.h.b16 %v3724
  %v4249 = vunpack.c.l.b16 %v3725
  %v4250 = vunpack.c.h.b16 %v3725
  %v4251 = vunpack.c.l.b16 %v3726
  %v4252 = vunpack.c.h.b16 %v3726
  %v4253 = vunpack.c.l.b16 %v3727
  %v4254 = vunpack.c.h.b16 %v3727
  %v4255 = vunpack.c.l.b16 %v3728
  %v4256 = vunpack.c.h.b16 %v3728
  %v4257 = vunpack.c.l.b16 %v3729
  %v4258 = vunpack.c.h.b16 %v3729
  %v4259 = vunpack.c.l.b16 %v3730
  %v4260 = vunpack.c.h.b16 %v3730
  %v4261 = vunpack.c.l.b16 %v3731
  %v4262 = vunpack.c.h.b16 %v3731
  %v4263 = vunpack.c.l.b16 %v3732
  %v4264 = vunpack.c.h.b16 %v3732
  %v4265 = vunpack.c.l.b16 %v3733
  %v4266 = vunpack.c.h.b16 %v3733
  %v4267 = vunpack.c.l.b16 %v3734
  %v4268 = vunpack.c.h.b16 %v3734
  %v4269 = vunpack.c.l.b16 %v3735
  %v4270 = vunpack.c.h.b16 %v3735
  %v4271 = vunpack.c.l.b16 %v3736
  %v4272 = vunpack.c.h.b16 %v3736
  %v4273 = vunpack.c.l.b16 %v3737
  %v4274 = vunpack.c.h.b16 %v3737
  %v4275 = vunpack.c.l.b16 %v3738
  %v4276 = vunpack.c.h.b16 %v3738
  %v4277 = vunpack.c.l.b16 %v3739
  %v4278 = vunpack.c.h.b16 %v3739
  %v4279 = vunpack.c.l.b16 %v3740
  %v4280 = vunpack.c.h.b16 %v3740
  %v4281 = vunpack.c.l.b16 %v3741
  %v4282 = vunpack.c.h.b16 %v3741
  %v4283 = vunpack.c.l.b16 %v3742
  %v4284 = vunpack.c.h.b16 %v3742
  %v4285 = vunpack.c.l.b16 %v3743
  %v4286 = vunpack.c.h.b16 %v3743
  %v4287 = vunpack.c.l.b16 %v3744
  %v4288 = vunpack.c.h.b16 %v3744
  %v4289 = vunpack.c.l.b16 %v3745
  %v4290 = vunpack.c.h.b16 %v3745
  %v4291 = vunpack.c.l.b16 %v3746
  %v4292 = vunpack.c.h.b16 %v3746
  %v4293 = vunpack.c.l.b16 %v3747
  %v4294 = vunpack.c.h.b16 %v3747
  %v4295 = vunpack.c.l.b16 %v3748
  %v4296 = vunpack.c.h.b16 %v3748
  %v4297 = vunpack.c.l.b16 %v3749
  %v4298 = vunpack.c.h.b16 %v3749
  %v4299 = vunpack.c.l.b16 %v3750
  %v4300 = vunpack.c.h.b16 %v3750
  %v4301 = vunpack.c.l.b16 %v3751
  %v4302 = vunpack.c.h.b16 %v3751
  %v4303 = vunpack.c.l.b16 %v3752
  %v4304 = vunpack.c.h.b16 %v3752
  %v4305 = vunpack.c.l.b16 %v3753
  %v4306 = vunpack.c.h.b16 %v3753
  %v4307 = vunpack.c.l.b16 %v3754
  %v4308 = vunpack.c.h.b16 %v3754
  %v4309 = vunpack.c.l.b16 %v3755
  %v4310 = vunpack.c.h.b16 %v3755
  %v4311 = vunpack.c.l.b16 %v3756
  %v4312 = vunpack.c.h.b16 %v3756
  %v4313 = vunpack.c.l.b16 %v3757
  %v4314 = vunpack.c.h.b16 %v3757
  %v4315 = vunpack.c.l.b16 %v3758
  %v4316 = vunpack.c.h.b16 %v3758
  %v4317 = vunpack.c.l.b16 %v3759
  %v4318 = vunpack.c.h.b16 %v3759
  %v4319 = vunpack.c.l.b16 %v3760
  %v4320 = vunpack.c.h.b16 %v3760
  %v4321 = vunpack.c.l.b16 %v3761
  %v4322 = vunpack.c.h.b16 %v3761
  %v4323 = vunpack.c.l.b16 %v3762
  %v4324 = vunpack.c.h.b16 %v3762
  %v4325 = vunpack.c.l.b16 %v3763
  %v4326 = vunpack.c.h.b16 %v3763
  %v4327 = vunpack.c.l.b16 %v3764
  %v4328 = vunpack.c.h.b16 %v3764
  %v4329 = vunpack.c.l.b16 %v3765
  %v4330 = vunpack.c.h.b16 %v3765
  %v4331 = vunpack.c.l.b16 %v3766
  %v4332 = vunpack.c.h.b16 %v3766
  %v4333 = vunpack.c.l.b16 %v3767
  %v4334 = vunpack.c.h.b16 %v3767
  %v4335 = vunpack.c.l.b16 %v3768
  %v4336 = vunpack.c.h.b16 %v3768
  %v4337 = vunpack.c.l.b16 %v3769
  %v4338 = vunpack.c.h.b16 %v3769
  %v4339 = vunpack.c.l.b16 %v3770
  %v4340 = vunpack.c.h.b16 %v3770
  %v4341 = vunpack.c.l.b16 %v3771
  %v4342 = vunpack.c.h.b16 %v3771
  %v4343 = vunpack.c.l.b16 %v3772
  %v4344 = vunpack.c.h.b16 %v3772
  %v4345 = vunpack.c.l.b16 %v3773
  %v4346 = vunpack.c.h.b16 %v3773
  %v4347 = vunpack.c.l.b16 %v3774
  %v4348 = vunpack.c.h.b16 %v3774
  %v4349 = vunpack.c.l.b16 %v3775
  %v4350 = vunpack.c.h.b16 %v3775
  %v4351 = vunpack.c.l.b16 %v3776
  %v4352 = vunpack.c.h.b16 %v3776
  %v4353 = vunpack.c.l.b16 %v3777
  %v4354 = vunpack.c.h.b16 %v3777
  %v4355 = vunpack.c.l.b16 %v3778
  %v4356 = vunpack.c.h.b16 %v3778
  %v4357 = vunpack.c.l.b16 %v3779
  %v4358 = vunpack.c.h.b16 %v3779
  %v4359 = vunpack.c.l.b16 %v3780
  %v4360 = vunpack.c.h.b16 %v3780
  %v4361 = vunpack.c.l.b16 %v3781
  %v4362 = vunpack.c.h.b16 %v3781
  %v4363 = vunpack.c.l.b16 %v3782
  %v4364 = vunpack.c.h.b16 %v3782
  %v4365 = vunpack.c.l.b16 %v3783
  %v4366 = vunpack.c.h.b16 %v3783
  %v4367 = vunpack.c.l.b16 %v3784
  %v4368 = vunpack.c.h.b16 %v3784
  %v4369 = vunpack.c.l.b16 %v3785
  %v4370 = vunpack.c.h.b16 %v3785
  %v4371 = vunpack.c.l.b16 %v3786
  %v4372 = vunpack.c.h.b16 %v3786
  %v4373 = vunpack.c.l.b16 %v3787
  %v4374 = vunpack.c.h.b16 %v3787
  %v4375 = vunpack.c.l.b16 %v3788
  %v4376 = vunpack.c.h.b16 %v3788
  %v4377 = vunpack.c.l.b16 %v3789
  %v4378 = vunpack.c.h.b16 %v3789
  %v4379 = vunpack.c.l.b16 %v3790
  %v4380 = vunpack.c.h.b16 %v3790
  %v4381 = vunpack.c.l.b16 %v3791
  %v4382 = vunpack.c.h.b16 %v3791
  %v4383 = vunpack.c.l.b16 %v3792
  %v4384 = vunpack.c.h.b16 %v3792
  %v4385 = vunpack.c.l.b16 %v3793
  %v4386 = vunpack.c.h.b16 %v3793
  %v4387 = vunpack.c.l.b16 %v3794
  %v4388 = vunpack.c.h.b16 %v3794
  %v4389 = vunpack.c.l.b16 %v3795
  %v4390 = vunpack.c.h.b16 %v3795
  %v4391 = vunpack.c.l.b16 %v3796
  %v4392 = vunpack.c.h.b16 %v3796
  %v4393 = vunpack.c.l.b16 %v3797
  %v4394 = vunpack.c.h.b16 %v3797
  %v4395 = vunpack.c.l.b16 %v3798
  %v4396 = vunpack.c.h.b16 %v3798
  %v4397 = vunpack.c.l.b16 %v3799
  %v4398 = vunpack.c.h.b16 %v3799
  %v4399 = vunpack.c.l.b16 %v3800
  %v4400 = vunpack.c.h.b16 %v3800
  %v4401 = vunpack.c.l.b16 %v3801
  %v4402 = vunpack.c.h.b16 %v3801
  %v4403 = vunpack.c.l.b16 %v3802
  %v4404 = vunpack.c.h.b16 %v3802
  %v4405 = vunpack.c.l.b16 %v3803
  %v4406 = vunpack.c.h.b16 %v3803
  %v4407 = vunpack.c.l.b16 %v3804
  %v4408 = vunpack.c.h.b16 %v3804
  %v4409 = vunpack.c.l.b16 %v3805
  %v4410 = vunpack.c.h.b16 %v3805
  %v4411 = vunpack.c.l.b16 %v3806
  %v4412 = vunpack.c.h.b16 %v3806
  %v4413 = vunpack.c.l.b16 %v3807
  %v4414 = vunpack.c.h.b16 %v3807
  %v4415 = vunpack.c.l.b16 %v3808
  %v4416 = vunpack.c.h.b16 %v3808
  %v4417 = vunpack.c.l.b16 %v3809
  %v4418 = vunpack.c.h.b16 %v3809
  %v4419 = vunpack.c.l.b16 %v3810
  %v4420 = vunpack.c.h.b16 %v3810
  %v4421 = vunpack.c.l.b16 %v3811
  %v4422 = vunpack.c.h.b16 %v3811
  %v4423 = vunpack.c.l.b16 %v3812
  %v4424 = vunpack.c.h.b16 %v3812
  %v4425 = vunpack.c.l.b16 %v3813
  %v4426 = vunpack.c.h.b16 %v3813
  %v4427 = vunpack.c.l.b16 %v3814
  %v4428 = vunpack.c.h.b16 %v3814
  %v4429 = vunpack.c.l.b16 %v3815
  %v4430 = vunpack.c.h.b16 %v3815
  %v4431 = vunpack.c.l.b16 %v3816
  %v4432 = vunpack.c.h.b16 %v3816
  %v4433 = vunpack.c.l.b16 %v3817
  %v4434 = vunpack.c.h.b16 %v3817
  %v4435 = vunpack.c.l.b16 %v3818
  %v4436 = vunpack.c.h.b16 %v3818
  %v4437 = vunpack.c.l.b16 %v3819
  %v4438 = vunpack.c.h.b16 %v3819
  %v4439 = vunpack.c.l.b16 %v3820
  %v4440 = vunpack.c.h.b16 %v3820
  %v4441 = vunpack.c.l.b16 %v3821
  %v4442 = vunpack.c.h.b16 %v3821
  %v4443 = vunpack.c.l.b16 %v3822
  %v4444 = vunpack.c.h.b16 %v3822
  %v4445 = vunpack.c.l.b16 %v3823
  %v4446 = vunpack.c.h.b16 %v3823
  %v4447 = vunpack.c.l.b16 %v3824
  %v4448 = vunpack.c.h.b16 %v3824
  %v4449 = vunpack.c.l.b16 %v3825
  %v4450 = vunpack.c.h.b16 %v3825
  %v4451 = vunpack.c.l.b16 %v3826
  %v4452 = vunpack.c.h.b16 %v3826
  %v4453 = vunpack.c.l.b16 %v3827
  %v4454 = vunpack.c.h.b16 %v3827
  %v4455 = vunpack.c.l.b16 %v3828
  %v4456 = vunpack.c.h.b16 %v3828
  %v4457 = vunpack.c.l.b16 %v3829
  %v4458 = vunpack.c.h.b16 %v3829
  %v4459 = vunpack.c.l.b16 %v3830
  %v4460 = vunpack.c.h.b16 %v3830
  %v4461 = vunpack.c.l.b16 %v3831
  %v4462 = vunpack.c.h.b16 %v3831
  %v4463 = vunpack.c.l.b16 %v3832
  %v4464 = vunpack.c.h.b16 %v3832
  %v4465 = vunpack.c.l.b16 %v3833
  %v4466 = vunpack.c.h.b16 %v3833
  %v4467 = vunpack.c.l.b16 %v3834
  %v4468 = vunpack.c.h.b16 %v3834
  %v4469 = vunpack.c.l.b16 %v3835
  %v4470 = vunpack.c.h.b16 %v3835
  %v4471 = vunpack.c.l.b16 %v3836
  %v4472 = vunpack.c.h.b16 %v3836
  %v4473 = vunpack.c.l.b16 %v3837
  %v4474 = vunpack.c.h.b16 %v3837
  %v4475 = vunpack.c.l.b16 %v3838
  %v4476 = vunpack.c.h.b16 %v3838
  %v4477 = vunpack.c.l.b16 %v3839
  %v4478 = vunpack.c.h.b16 %v3839
  %v4479 = vunpack.c.l.b16 %v3840
  %v4480 = vunpack.c.h.b16 %v3840
  %v4481 = vunpack.c.l.b16 %v3841
  %v4482 = vunpack.c.h.b16 %v3841
  %v4483 = vunpack.c.l.b16 %v3842
  %v4484 = vunpack.c.h.b16 %v3842
  %v4485 = vunpack.c.l.b16 %v3843
  %v4486 = vunpack.c.h.b16 %v3843
  %v4487 = vunpack.c.l.b16 %v3844
  %v4488 = vunpack.c.h.b16 %v3844
  %v4489 = vunpack.c.l.b16 %v3845
  %v4490 = vunpack.c.h.b16 %v3845
  %v4491 = vunpack.c.l.b16 %v3846
  %v4492 = vunpack.c.h.b16 %v3846
  %v4493 = vunpack.c.l.b16 %v3847
  %v4494 = vunpack.c.h.b16 %v3847
  %v4495 = vunpack.c.l.b16 %v3848
  %v4496 = vunpack.c.h.b16 %v3848
  %v4497 = vunpack.c.l.b16 %v3849
  %v4498 = vunpack.c.h.b16 %v3849
  %v4499 = vunpack.c.l.b16 %v3850
  %v4500 = vunpack.c.h.b16 %v3850
  %v4501 = vunpack.c.l.b16 %v3851
  %v4502 = vunpack.c.h.b16 %v3851
  %v4503 = vunpack.c.l.b16 %v3852
  %v4504 = vunpack.c.h.b16 %v3852
  %v4505 = vunpack.c.l.b16 %v3853
  %v4506 = vunpack.c.h.b16 %v3853
  %v4507 = vunpack.c.l.b16 %v3854
  %v4508 = vunpack.c.h.b16 %v3854
  %v4509 = vunpack.c.l.b16 %v3855
  %v4510 = vunpack.c.h.b16 %v3855
  %v4511 = vunpack.c.l.b16 %v3856
  %v4512 = vunpack.c.h.b16 %v3856
  %v4513 = vunpack.c.l.b16 %v3857
  %v4514 = vunpack.c.h.b16 %v3857
  %v4515 = vunpack.c.l.b16 %v3858
  %v4516 = vunpack.c.h.b16 %v3858
  %v4517 = vunpack.c.l.b16 %v3859
  %v4518 = vunpack.c.h.b16 %v3859
  %v4519 = vunpack.c.l.b16 %v3860
  %v4520 = vunpack.c.h.b16 %v3860
  %v4521 = vunpack.c.l.b16 %v3861
  %v4522 = vunpack.c.h.b16 %v3861
  %v4523 = vunpack.c.l.b16 %v3862
  %v4524 = vunpack.c.h.b16 %v3862
  %v4525 = vunpack.c.l.b16 %v3863
  %v4526 = vunpack.c.h.b16 %v3863
  %v4527 = vunpack.c.l.b16 %v3864
  %v4528 = vunpack.c.h.b16 %v3864
  %v4529 = vunpack.c.l.b16 %v3865
  %v4530 = vunpack.c.h.b16 %v3865
  %v4531 = vunpack.c.l.b16 %v3866
  %v4532 = vunpack.c.h.b16 %v3866
  %v4533 = vunpack.c.l.b16 %v3867
  %v4534 = vunpack.c.h.b16 %v3867
  %v4535 = vunpack.c.l.b16 %v3868
  %v4536 = vunpack.c.h.b16 %v3868
  %v4537 = vunpack.c.l.b16 %v3869
  %v4538 = vunpack.c.h.b16 %v3869
  %v4539 = vunpack.c.l.b16 %v3870
  %v4540 = vunpack.c.h.b16 %v3870
  %v4541 = vunpack.c.l.b16 %v3871
  %v4542 = vunpack.c.h.b16 %v3871
  %v4543 = vunpack.c.l.b16 %v3872
  %v4544 = vunpack.c.h.b16 %v3872
  %v4545 = vunpack.c.l.b16 %v3873
  %v4546 = vunpack.c.h.b16 %v3873
  %v4547 = vunpack.c.l.b16 %v3874
  %v4548 = vunpack.c.h.b16 %v3874
  %v4549 = vunpack.c.l.b16 %v3875
  %v4550 = vunpack.c.h.b16 %v3875
  %v4551 = vunpack.c.l.b16 %v3876
  %v4552 = vunpack.c.h.b16 %v3876
  %v4553 = vunpack.c.l.b16 %v3877
  %v4554 = vunpack.c.h.b16 %v3877
  %v4555 = vunpack.c.l.b16 %v3878
  %v4556 = vunpack.c.h.b16 %v3878
  %v4557 = vunpack.c.l.b16 %v3879
  %v4558 = vunpack.c.h.b16 %v3879
  %v4559 = vunpack.c.l.b16 %v3880
  %v4560 = vunpack.c.h.b16 %v3880
  %v4561 = vunpack.c.l.b16 %v3881
  %v4562 = vunpack.c.h.b16 %v3881
  %v4563 = vunpack.c.l.b16 %v3882
  %v4564 = vunpack.c.h.b16 %v3882
  %v4565 = vunpack.c.l.b16 %v3883
  %v4566 = vunpack.c.h.b16 %v3883
  %v4567 = vunpack.c.l.b16 %v3884
  %v4568 = vunpack.c.h.b16 %v3884
  %v4569 = vunpack.c.l.b16 %v3885
  %v4570 = vunpack.c.h.b16 %v3885
  %v4571 = vunpack.c.l.b16 %v3886
  %v4572 = vunpack.c.h.b16 %v3886
  %v4573 = vunpack.c.l.b16 %v3887
  %v4574 = vunpack.c.h.b16 %v3887
  %v4575 = vunpack.c.l.b16 %v3888
  %v4576 = vunpack.c.h.b16 %v3888
  %v4577 = vunpack.c.l.b16 %v3889
  %v4578 = vunpack.c.h.b16 %v3889
  %v4579 = vunpack.c.l.b16 %v3890
  %v4580 = vunpack.c.h.b16 %v3890
  %v4581 = vunpack.c.l.b16 %v3891
  %v4582 = vunpack.c.h.b16 %v3891
  %v4583 = vunpack.c.l.b16 %v3892
  %v4584 = vunpack.c.h.b16 %v3892
  %v4585 = vunpack.c.l.b16 %v3893
  %v4586 = vunpack.c.h.b16 %v3893
  %v4587 = vunpack.c.l.b16 %v3894
  %v4588 = vunpack.c.h.b16 %v3894
  %v4589 = vunpack.c.l.b16 %v3895
  %v4590 = vunpack.c.h.b16 %v3895
  %v4591 = vunpack.c.l.b16 %v3896
  %v4592 = vunpack.c.h.b16 %v3896
  %v4593 = vunpack.c.l.b16 %v3897
  %v4594 = vunpack.c.h.b16 %v3897
  %v4595 = vunpack.c.l.b16 %v3898
  %v4596 = vunpack.c.h.b16 %v3898
  %v4597 = vunpack.c.l.b16 %v3899
  %v4598 = vunpack.c.h.b16 %v3899
  %v4599 = vunpack.c.l.b16 %v3900
  %v4600 = vunpack.c.h.b16 %v3900
  %v4601 = vunpack.c.l.b16 %v3901
  %v4602 = vunpack.c.h.b16 %v3901
  %v4603 = vunpack.c.l.b16 %v3902
  %v4604 = vunpack.c.h.b16 %v3902
  %v4605 = vunpack.c.l.b16 %v3903
  %v4606 = vunpack.c.h.b16 %v3903
  %v4607 = vunpack.c.l.b16 %v3904
  %v4608 = vunpack.c.h.b16 %v3904
  %v4609 = vunpack.c.l.b16 %v3905
  %v4610 = vunpack.c.h.b16 %v3905
  %v4611 = vunpack.c.l.b16 %v3906
  %v4612 = vunpack.c.h.b16 %v3906
  %v4613 = vunpack.c.l.b16 %v3907
  %v4614 = vunpack.c.h.b16 %v3907
  %v4615 = vunpack.c.l.b16 %v3908
  %v4616 = vunpack.c.h.b16 %v3908
  %v4617 = vunpack.c.l.b16 %v3909
  %v4618 = vunpack.c.h.b16 %v3909
  %v4619 = vunpack.c.l.b16 %v3910
  %v4620 = vunpack.c.h.b16 %v3910
  %v4621 = vunpack.c.l.b16 %v3911
  %v4622 = vunpack.c.h.b16 %v3911
  %v4623 = vunpack.c.l.b16 %v3912
  %v4624 = vunpack.c.h.b16 %v3912
  %v4625 = vunpack.c.l.b16 %v3913
  %v4626 = vunpack.c.h.b16 %v3913
  %v4627 = vunpack.c.l.b16 %v3914
  %v4628 = vunpack.c.h.b16 %v3914
  %v4629 = vunpack.c.l.b16 %v3915
  %v4630 = vunpack.c.h.b16 %v3915
  %v4631 = vunpack.c.l.b16 %v3916
  %v4632 = vunpack.c.h.b16 %v3916
  %v4633 = vunpack.c.l.b16 %v3917
  %v4634 = vunpack.c.h.b16 %v3917
  %v4635 = vunpack.c.l.b16 %v3918
  %v4636 = vunpack.c.h.b16 %v3918
  %v4637 = vunpack.c.l.b16 %v3919
  %v4638 = vunpack.c.h.b16 %v3919
  %v4639 = vunpack.c.l.b16 %v3920
  %v4640 = vunpack.c.h.b16 %v3920
  %v4641 = vpack.c.b16 %v4163, %v4161
  %v4642 = vpack.c.b16 %v4164, %v4162
  %v4643 = vpack.c.b16 %v4167, %v4165
  %v4644 = vpack.c.b16 %v4168, %v4166
  %v4645 = vpack.c.b16 %v4171, %v4169
  %v4646 = vpack.c.b16 %v4172, %v4170
  %v4647 = vpack.c.b16 %v4175, %v4173
  %v4648 = vpack.c.b16 %v4176, %v4174
  %v4649 = vpack.c.b16 %v4179, %v4177
  %v4650 = vpack.c.b16 %v4180, %v4178
  %v4651 = vpack.c.b16 %v4183, %v4181
  %v4652 = vpack.c.b16 %v4184, %v4182
  %v4653 = vpack.c.b16 %v4187, %v4185
  %v4654 = vpack.c.b16 %v4188, %v4186
  %v4655 = vpack.c.b16 %v4191, %v4189
  %v4656 = vpack.c.b16 %v4192, %v4190
  %v4657 = vpack.c.b16 %v4195, %v4193
  %v4658 = vpack.c.b16 %v4196, %v4194
  %v4659 = vpack.c.b16 %v4199, %v4197
  %v4660 = vpack.c.b16 %v4200, %v4198
  %v4661 = vpack.c.b16 %v4203, %v4201
  %v4662 = vpack.c.b16 %v4204, %v4202
  %v4663 = vpack.c.b16 %v4207, %v4205
  %v4664 = vpack.c.b16 %v4208, %v4206
  %v4665 = vpack.c.b16 %v4211, %v4209
  %v4666 = vpack.c.b16 %v4212, %v4210
  %v4667 = vpack.c.b16 %v4215, %v4213
  %v4668 = vpack.c.b16 %v4216, %v4214
  %v4669 = vpack.c.b16 %v4219, %v4217
  %v4670 = vpack.c.b16 %v4220, %v4218
  %v4671 = vpack.c.b16 %v4223, %v4221
  %v4672 = vpack.c.b16 %v4224, %v4222
  %v4673 = vpack.c.b16 %v4227, %v4225
  %v4674 = vpack.c.b16 %v4228, %v4226
  %v4675 = vpack.c.b16 %v4231, %v4229
  %v4676 = vpack.c.b16 %v4232, %v4230
  %v4677 = vpack.c.b16 %v4235, %v4233
  %v4678 = vpack.c.b16 %v4236, %v4234
  %v4679 = vpack.c.b16 %v4239, %v4237
  %v4680 = vpack.c.b16 %v4240, %v4238
  %v4681 = vpack.c.b16 %v4243, %v4241
  %v4682 = vpack.c.b16 %v4244, %v4242
  %v4683 = vpack.c.b16 %v4247, %v4245
  %v4684 = vpack.c.b16 %v4248, %v4246
  %v4685 = vpack.c.b16 %v4251, %v4249
  %v4686 = vpack.c.b16 %v4252, %v4250
  %v4687 = vpack.c.b16 %v4255, %v4253
  %v4688 = vpack.c.b16 %v4256, %v4254
  %v4689 = vpack.c.b16 %v4259, %v4257
  %v4690 = vpack.c.b16 %v4260, %v4258
  %v4691 = vpack.c.b16 %v4263, %v4261
  %v4692 = vpack.c.b16 %v4264, %v4262
  %v4693 = vpack.c.b16 %v4267, %v4265
  %v4694 = vpack.c.b16 %v4268, %v4266
  %v4695 = vpack.c.b16 %v4271, %v4269
  %v4696 = vpack.c.b16 %v4272, %v4270
  %v4697 = vpack.c.b16 %v4275, %v4273
  %v4698 = vpack.c.b16 %v4276, %v4274
  %v4699 = vpack.c.b16 %v4279, %v4277
  %v4700 = vpack.c.b16 %v4280, %v4278
  %v4701 = vpack.c.b16 %v4283, %v4281
  %v4702 = vpack.c.b16 %v4284, %v4282
  %v4703 = vpack.c.b16 %v4287, %v4285
  %v4704 = vpack.c.b16 %v4288, %v4286
  %v4705 = vpack.c.b16 %v4291, %v4289
  %v4706 = vpack.c.b16 %v4292, %v4290
  %v4707 = vpack.c.b16 %v4295, %v4293
  %v4708 = vpack.c.b16 %v4296, %v4294
  %v4709 = vpack.c.b16 %v4299, %v4297
  %v4710 = vpack.c.b16 %v4300, %v4298
  %v4711 = vpack.c.b16 %v4303, %v4301
  %v4712 = vpack.c.b16 %v4304, %v4302
  %v4713 = vpack.c.b16 %v4307, %v4305
  %v4714 = vpack.c.b16 %v4308, %v4306
  %v4715 = vpack.c.b16 %v4311, %v4309
  %v4716 = vpack.c.b16 %v4312, %v4310
  %v4717 = vpack.c.b16 %v4315, %v4313
  %v4718 = vpack.c.b16 %v4316, %v4314
  %v4719 = vpack.c.b16 %v4319, %v4317
  %v4720 = vpack.c.b16 %v4320, %v4318
  %v4721 = vpack.c.b16 %v4323, %v4321
  %v4722 = vpack.c.b16 %v4324, %v4322
  %v4723 = vpack.c.b16 %v4327, %v4325
  %v4724 = vpack.c.b16 %v4328, %v4326
  %v4725 = vpack.c.b16 %v4331, %v4329
  %v4726 = vpack.c.b16 %v4332, %v4330
  %v4727 = vpack.c.b16 %v4335, %v4333
  %v4728 = vpack.c.b16 %v4336, %v4334
  %v4729 = vpack.c.b16 %v4339, %v4337
  %v4730 = vpack.c.b16 %v4340, %v4338
  %v4731 = vpack.c.b16 %v4343, %v4341
  %v4732 = vpack.c.b16 %v4344, %v4342
  %v4733 = vpack.c.b16 %v4347, %v4345
  %v4734 = vpack.c.b16 %v4348, %v4346
  %v4735 = vpack.c.b16 %v4351, %v4349
  %v4736 = vpack.c.b16 %v4352, %v4350
  %v4737 = vpack.c.b16 %v4355, %v4353
  %v4738 = vpack.c.b16 %v4356, %v4354
  %v4739 = vpack.c.b16 %v4359, %v4357
  %v4740 = vpack.c.b16 %v4360, %v4358
  %v4741 = vpack.c.b16 %v4363, %v4361
  %v4742 = vpack.c.b16 %v4364, %v4362
  %v4743 = vpack.c.b16 %v4367, %v4365
  %v4744 = vpack.c.b16 %v4368, %v4366
  %v4745 = vpack.c.b16 %v4371, %v4369
  %v4746 = vpack.c.b16 %v4372, %v4370
  %v4747 = vpack.c.b16 %v4375, %v4373
  %v4748 = vpack.c.b16 %v4376, %v4374
  %v4749 = vpack.c.b16 %v4379, %v4377
  %v4750 = vpack.c.b16 %v4380, %v4378
  %v4751 = vpack.c.b16 %v4383, %v4381
  %v4752 = vpack.c.b16 %v4384, %v4382
  %v4753 = vpack.c.b16 %v4387, %v4385
  %v4754 = vpack.c.b16 %v4388, %v4386
  %v4755 = vpack.c.b16 %v4391, %v4389
  %v4756 = vpack.c.b16 %v4392, %v4390
  %v4757 = vpack.c.b16 %v4395, %v4393
  %v4758 = vpack.c.b16 %v4396, %v4394
  %v4759 = vpack.c.b16 %v4399, %v4397
  %v4760 = vpack.c.b16 %v4400, %v4398
  %v4761 = vpack.c.b16 %v4403, %v4401
  %v4762 = vpack.c.b16 %v4404, %v4402
  %v4763 = vpack.c.b16 %v4407, %v4405
  %v4764 = vpack.c.b16 %v4408, %v4406
  %v4765 = vpack.c.b16 %v4411, %v4409
  %v4766 = vpack.c.b16 %v4412, %v4410
  %v4767 = vpack.c.b16 %v4415, %v4413
  %v4768 = vpack.c.b16 %v4416, %v4414
  %v4769 = vpack.c.b16 %v4419, %v4417
  %v4770 = vpack.c.b16 %v4420, %v4418
  %v4771 = vpack.c.b16 %v4423, %v4421
  %v4772 = vpack.c.b16 %v4424, %v4422
  %v4773 = vpack.c.b16 %v4427, %v4425
  %v4774 = vpack.c.b16 %v4428, %v4426
  %v4775 = vpack.c.b16 %v4431, %v4429
  %v4776 = vpack.c.b16 %v4432, %v4430
  %v4777 = vpack.c.b16 %v4435, %v4433
  %v4778 = vpack.c.b16 %v4436, %v4434
  %v4779 = vpack.c.b16 %v4439, %v4437
  %v4780 = vpack.c.b16 %v4440, %v4438
  %v4781 = vpack.c.b16 %v4443, %v4441
  %v4782 = vpack.c.b16 %v4444, %v4442
  %v4783 = vpack.c.b16 %v4447, %v4445
  %v4784 = vpack.c.b16 %v4448, %v4446
  %v4785 = vpack.c.b16 %v4451, %v4449
  %v4786 = vpack.c.b16 %v4452, %v4450
  %v4787 = vpack.c.b16 %v4455, %v4453
  %v4788 = vpack.c.b16 %v4456, %v4454
  %v4789 = vpack.c.b16 %v4459, %v4457
  %v4790 = vpack.c.b16 %v4460, %v4458
  %v4791 = vpack.c.b16 %v4463, %v4461
  %v4792 = vpack.c.b16 %v4464, %v4462
  %v4793 = vpack.c.b16 %v4467, %v4465
  %v4794 = vpack.c.b16 %v4468, %v4466
  %v4795 = vpack.c.b16 %v4471, %v4469
  %v4796 = vpack.c.b16 %v4472, %v4470
  %v4797 = vpack.c.b16 %v4475, %v4473
  %v4798 = vpack.c.b16 %v4476, %v4474
  %v4799 = vpack.c.b16 %v4479, %v4477
  %v4800 = vpack.c.b16 %v4480, %v4478
  %v4801 = vpack.c.b16 %v4483, %v4481
  %v4802 = vpack.c.b16 %v4484, %v4482
  %v4803 = vpack.c.b16 %v4487, %v4485
  %v4804 = vpack.c.b16 %v4488, %v4486
  %v4805 = vpack.c.b16 %v4491, %v4489
  %v4806 = vpack.c.b16 %v4492, %v4490
  %v4807 = vpack.c.b16 %v4495, %v4493
  %v4808 = vpack.c.b16 %v4496, %v4494
  %v4809 = vpack.c.b16 %v4499, %v4497
  %v4810 = vpack.c.b16 %v4500, %v4498
  %v4811 = vpack.c.b16 %v4503, %v4501
  %v4812 = vpack.c.b16 %v4504, %v4502
  %v4813 = vpack.c.b16 %v4507, %v4505
  %v4814 = vpack.c.b16 %v4508, %v4506
  %v4815 = vpack.c.b16 %v4511, %v4509
  %v4816 = vpack.c.b16 %v4512, %v4510
  %v4817 = vpack.c.b16 %v4515, %v4513
  %v4818 = vpack.c.b16 %v4516, %v4514
  %v4819 = vpack.c.b16 %v4519, %v4517
  %v4820 = vpack.c.b16 %v4520, %v4518
  %v4821 = vpack.c.b16 %v4523, %v4521
  %v4822 = vpack.c.b16 %v4524, %v4522
  %v4823 = vpack.c.b16 %v4527, %v4525
  %v4824 = vpack.c.b16 %v4528, %v4526
  %v4825 = vpack.c.b16 %v4531, %v4529
  %v4826 = vpack.c.b16 %v4532, %v4530
  %v4827 = vpack.c.b16 %v4535, %v4533
  %v4828 = vpack.c.b16 %v4536, %v4534
  %v4829 = vpack.c.b16 %v4539, %v4537
  %v4830 = vpack.c.b16 %v4540, %v4538
  %v4831 = vpack.c.b16 %v4543, %v4541
  %v4832 = vpack.c.b16 %v4544, %v4542
  %v4833 = vpack.c.b16 %v4547, %v4545
  %v4834 = vpack.c.b16 %v4548, %v4546
  %v4835 = vpack.c.b16 %v4551, %v4549
  %v4836 = vpack.c.b16 %v4552, %v4550
  %v4837 = vpack.c.b16 %v4555, %v4553
  %v4838 = vpack.c.b16 %v4556, %v4554
  %v4839 = vpack.c.b16 %v4559, %v4557
  %v4840 = vpack.c.b16 %v4560, %v4558
  %v4841 = vpack.c.b16 %v4563, %v4561
  %v4842 = vpack.c.b16 %v4564, %v4562
  %v4843 = vpack.c.b16 %v4567, %v4565
  %v4844 = vpack.c.b16 %v4568, %v4566
  %v4845 = vpack.c.b16 %v4571, %v4569
  %v4846 = vpack.c.b16 %v4572, %v4570
  %v4847 = vpack.c.b16 %v4575, %v4573
  %v4848 = vpack.c.b16 %v4576, %v4574
  %v4849 = vpack.c.b16 %v4579, %v4577
  %v4850 = vpack.c.b16 %v4580, %v4578
  %v4851 = vpack.c.b16 %v4583, %v4581
  %v4852 = vpack.c.b16 %v4584, %v4582
  %v4853 = vpack.c.b16 %v4587, %v4585
  %v4854 = vpack.c.b16 %v4588, %v4586
  %v4855 = vpack.c.b16 %v4591, %v4589
  %v4856 = vpack.c.b16 %v4592, %v4590
  %v4857 = vpack.c.b16 %v4595, %v4593
  %v4858 = vpack.c.b16 %v4596, %v4594
  %v4859 = vpack.c.b16 %v4599, %v4597
  %v4860 = vpack.c.b16 %v4600, %v4598
  %v4861 = vpack.c.b16 %v4603, %v4601
  %v4862 = vpack.c.b16 %v4604, %v4602
  %v4863 = vpack.c.b16 %v4607, %v4605
  %v4864 = vpack.c.b16 %v4608, %v4606
  %v4865 = vpack.c.b16 %v4611, %v4609
  %v4866 = vpack.c.b16 %v4612, %v4610
  %v4867 = vpack.c.b16 %v4615, %v4613
  %v4868 = vpack.c.b16 %v4616, %v4614
  %v4869 = vpack.c.b16 %v4619, %v4617
  %v4870 = vpack.c.b16 %v4620, %v4618
  %v4871 = vpack.c.b16 %v4623, %v4621
  %v4872 = vpack.c.b16 %v4624, %v4622
  %v4873 = vpack.c.b16 %v4627, %v4625
  %v4874 = vpack.c.b16 %v4628, %v4626
  %v4875 = vpack.c.b16 %v4631, %v4629
  %v4876 = vpack.c.b16 %v4632, %v4630
  %v4877 = vpack.c.b16 %v4635, %v4633
  %v4878 = vpack.c.b16 %v4636, %v4634
  %v4879 = vpack.c.b16 %v4639, %v4637
  %v4880 = vpack.c.b16 %v4640, %v4638
  %5121 = vmatprep.subr.bf16.mxu0 %v4656
  %5122 = vmatpush1.bf16.msra.mxu0 %v4655
  %5123 = vmatprep.subr.bf16.mxu0 %v4654
  %5124 = vmatpush1.bf16.msra.mxu0 %v4653
  %5125 = vmatprep.subr.bf16.mxu0 %v4652
  %5126 = vmatpush1.bf16.msra.mxu0 %v4651
  %5127 = vmatprep.subr.bf16.mxu0 %v4650
  %5128 = vmatpush1.bf16.msra.mxu0 %v4649
  %5129 = vmatprep.subr.bf16.mxu0 %v4648
  %5130 = vmatpush1.bf16.msra.mxu0 %v4647
  %5131 = vmatprep.subr.bf16.mxu0 %v4646
  %5132 = vmatpush1.bf16.msra.mxu0 %v4645
  %5133 = vmatprep.subr.bf16.mxu0 %v4644
  %5134 = vmatpush1.bf16.msra.mxu0 %v4643
  %5135 = vmatprep.subr.bf16.mxu0 %v4642
  %5136 = vmatpush1.bf16.msra.mxu0 %v4641
  %5137 = vmatprep.subr.bf16.mxu0 %v4672
  %5138 = vmatpush2.bf16.msra.mxu0 %v4671
  %5139 = vmatprep.subr.bf16.mxu0 %v4670
  %5140 = vmatpush2.bf16.msra.mxu0 %v4669
  %5141 = vmatprep.subr.bf16.mxu0 %v4668
  %5142 = vmatpush2.bf16.msra.mxu0 %v4667
  %5143 = vmatprep.subr.bf16.mxu0 %v4666
  %5144 = vmatpush2.bf16.msra.mxu0 %v4665
  %5145 = vmatprep.subr.bf16.mxu0 %v4664
  %5146 = vmatpush2.bf16.msra.mxu0 %v4663
  %5147 = vmatprep.subr.bf16.mxu0 %v4662
  %5148 = vmatpush2.bf16.msra.mxu0 %v4661
  %5149 = vmatprep.subr.bf16.mxu0 %v4660
  %5150 = vmatpush2.bf16.msra.mxu0 %v4659
  %5151 = vmatprep.subr.bf16.mxu0 %v4658
  %5152 = vmatpush2.bf16.msra.mxu0 %v4657
  %5153 = vmatprep.mubr.bf16.mxu0 %v318
  %5154 = vmatmul.mubr.bf16.gmra.mxu0 %v317
  %v5155 = vpop.f32.mrf.mxu0
  %v5156 = vadd.f32 0.0, %v5155
  %v5157 = vpop.f32.mrf.mxu0
  %v5158 = vadd.f32 0.0, %v5157
  %v5159 = vpop.f32.mrf.mxu0
  %v5160 = vadd.f32 0.0, %v5159
  %v5161 = vpop.f32.mrf.mxu0
  %v5162 = vadd.f32 0.0, %v5161
  %5163 = vdwg.mxu0
  %5164 = vmatprep.subr.bf16.mxu0 %v4688
  %5165 = vmatpush1.bf16.msra.mxu0 %v4687
  %5166 = vmatprep.subr.bf16.mxu0 %v4686
  %5167 = vmatpush1.bf16.msra.mxu0 %v4685
  %5168 = vmatprep.subr.bf16.mxu0 %v4684
  %5169 = vmatpush1.bf16.msra.mxu0 %v4683
  %5170 = vmatprep.subr.bf16.mxu0 %v4682
  %5171 = vmatpush1.bf16.msra.mxu0 %v4681
  %5172 = vmatprep.subr.bf16.mxu0 %v4680
  %5173 = vmatpush1.bf16.msra.mxu0 %v4679
  %5174 = vmatprep.subr.bf16.mxu0 %v4678
  %5175 = vmatpush1.bf16.msra.mxu0 %v4677
  %5176 = vmatprep.subr.bf16.mxu0 %v4676
  %5177 = vmatpush1.bf16.msra.mxu0 %v4675
  %5178 = vmatprep.subr.bf16.mxu0 %v4674
  %5179 = vmatpush1.bf16.msra.mxu0 %v4673
  %5180 = vmatprep.subr.bf16.mxu0 %v4704
  %5181 = vmatpush2.bf16.msra.mxu0 %v4703
  %5182 = vmatprep.subr.bf16.mxu0 %v4702
  %5183 = vmatpush2.bf16.msra.mxu0 %v4701
  %5184 = vmatprep.subr.bf16.mxu0 %v4700
  %5185 = vmatpush2.bf16.msra.mxu0 %v4699
  %5186 = vmatprep.subr.bf16.mxu0 %v4698
  %5187 = vmatpush2.bf16.msra.mxu0 %v4697
  %5188 = vmatprep.subr.bf16.mxu0 %v4696
  %5189 = vmatpush2.bf16.msra.mxu0 %v4695
  %5190 = vmatprep.subr.bf16.mxu0 %v4694
  %5191 = vmatpush2.bf16.msra.mxu0 %v4693
  %5192 = vmatprep.subr.bf16.mxu0 %v4692
  %5193 = vmatpush2.bf16.msra.mxu0 %v4691
  %5194 = vmatprep.subr.bf16.mxu0 %v4690
  %5195 = vmatpush2.bf16.msra.mxu0 %v4689
  %5196 = vmatprep.mubr.bf16.mxu0 %v320
  %5197 = vmatmul.mubr.bf16.gmra.mxu0 %v319
  %v5198 = vpop.f32.mrf.mxu0
  %v5199 = vadd.f32 %v5156, %v5198
  %v5200 = vpop.f32.mrf.mxu0
  %v5201 = vadd.f32 %v5158, %v5200
  %v5202 = vpop.f32.mrf.mxu0
  %v5203 = vadd.f32 %v5160, %v5202
  %v5204 = vpop.f32.mrf.mxu0
  %v5205 = vadd.f32 %v5162, %v5204
  %5206 = vdwg.mxu0
  %5207 = vmatprep.subr.bf16.mxu0 %v4720
  %5208 = vmatpush1.bf16.msra.mxu0 %v4719
  %5209 = vmatprep.subr.bf16.mxu0 %v4718
  %5210 = vmatpush1.bf16.msra.mxu0 %v4717
  %5211 = vmatprep.subr.bf16.mxu0 %v4716
  %5212 = vmatpush1.bf16.msra.mxu0 %v4715
  %5213 = vmatprep.subr.bf16.mxu0 %v4714
  %5214 = vmatpush1.bf16.msra.mxu0 %v4713
  %5215 = vmatprep.subr.bf16.mxu0 %v4712
  %5216 = vmatpush1.bf16.msra.mxu0 %v4711
  %5217 = vmatprep.subr.bf16.mxu0 %v4710
  %5218 = vmatpush1.bf16.msra.mxu0 %v4709
  %5219 = vmatprep.subr.bf16.mxu0 %v4708
  %5220 = vmatpush1.bf16.msra.mxu0 %v4707
  %5221 = vmatprep.subr.bf16.mxu0 %v4706
  %5222 = vmatpush1.bf16.msra.mxu0 %v4705
  %5223 = vmatprep.subr.bf16.mxu0 %v4736
  %5224 = vmatpush2.bf16.msra.mxu0 %v4735
  %5225 = vmatprep.subr.bf16.mxu0 %v4734
  %5226 = vmatpush2.bf16.msra.mxu0 %v4733
  %5227 = vmatprep.subr.bf16.mxu0 %v4732
  %5228 = vmatpush2.bf16.msra.mxu0 %v4731
  %5229 = vmatprep.subr.bf16.mxu0 %v4730
  %5230 = vmatpush2.bf16.msra.mxu0 %v4729
  %5231 = vmatprep.subr.bf16.mxu0 %v4728
  %5232 = vmatpush2.bf16.msra.mxu0 %v4727
  %5233 = vmatprep.subr.bf16.mxu0 %v4726
  %5234 = vmatpush2.bf16.msra.mxu0 %v4725
  %5235 = vmatprep.subr.bf16.mxu0 %v4724
  %5236 = vmatpush2.bf16.msra.mxu0 %v4723
  %5237 = vmatprep.subr.bf16.mxu0 %v4722
  %5238 = vmatpush2.bf16.msra.mxu0 %v4721
  %5239 = vmatprep.mubr.bf16.mxu0 %v322
  %5240 = vmatmul.mubr.bf16.gmra.mxu0 %v321
  %v5241 = vpop.f32.mrf.mxu0
  %v5242 = vadd.f32 %v5199, %v5241
  %v5243 = vpop.f32.mrf.mxu0
  %v5244 = vadd.f32 %v5201, %v5243
  %v5245 = vpop.f32.mrf.mxu0
  %v5246 = vadd.f32 %v5203, %v5245
  %v5247 = vpop.f32.mrf.mxu0
  %v5248 = vadd.f32 %v5205, %v5247
  %5249 = vdwg.mxu0
  %5250 = vmatprep.subr.bf16.mxu0 %v4752
  %5251 = vmatpush1.bf16.msra.mxu0 %v4751
  %5252 = vmatprep.subr.bf16.mxu0 %v4750
  %5253 = vmatpush1.bf16.msra.mxu0 %v4749
  %5254 = vmatprep.subr.bf16.mxu0 %v4748
  %5255 = vmatpush1.bf16.msra.mxu0 %v4747
  %5256 = vmatprep.subr.bf16.mxu0 %v4746
  %5257 = vmatpush1.bf16.msra.mxu0 %v4745
  %5258 = vmatprep.subr.bf16.mxu0 %v4744
  %5259 = vmatpush1.bf16.msra.mxu0 %v4743
  %5260 = vmatprep.subr.bf16.mxu0 %v4742
  %5261 = vmatpush1.bf16.msra.mxu0 %v4741
  %5262 = vmatprep.subr.bf16.mxu0 %v4740
  %5263 = vmatpush1.bf16.msra.mxu0 %v4739
  %5264 = vmatprep.subr.bf16.mxu0 %v4738
  %5265 = vmatpush1.bf16.msra.mxu0 %v4737
  %5266 = vmatprep.subr.bf16.mxu0 %v4768
  %5267 = vmatpush2.bf16.msra.mxu0 %v4767
  %5268 = vmatprep.subr.bf16.mxu0 %v4766
  %5269 = vmatpush2.bf16.msra.mxu0 %v4765
  %5270 = vmatprep.subr.bf16.mxu0 %v4764
  %5271 = vmatpush2.bf16.msra.mxu0 %v4763
  %5272 = vmatprep.subr.bf16.mxu0 %v4762
  %5273 = vmatpush2.bf16.msra.mxu0 %v4761
  %5274 = vmatprep.subr.bf16.mxu0 %v4760
  %5275 = vmatpush2.bf16.msra.mxu0 %v4759
  %5276 = vmatprep.subr.bf16.mxu0 %v4758
  %5277 = vmatpush2.bf16.msra.mxu0 %v4757
  %5278 = vmatprep.subr.bf16.mxu0 %v4756
  %5279 = vmatpush2.bf16.msra.mxu0 %v4755
  %5280 = vmatprep.subr.bf16.mxu0 %v4754
  %5281 = vmatpush2.bf16.msra.mxu0 %v4753
  %5282 = vmatprep.mubr.bf16.mxu0 %v324
  %5283 = vmatmul.mubr.bf16.gmra.mxu0 %v323
  %v5284 = vpop.f32.mrf.mxu0
  %v5285 = vadd.f32 %v5242, %v5284
  %v5286 = vpop.f32.mrf.mxu0
  %v5287 = vadd.f32 %v5244, %v5286
  %v5288 = vpop.f32.mrf.mxu0
  %v5289 = vadd.f32 %v5246, %v5288
  %v5290 = vpop.f32.mrf.mxu0
  %v5291 = vadd.f32 %v5248, %v5290
  %5292 = vdwg.mxu0
  %5293 = vmatprep.subr.bf16.mxu0 %v4784
  %5294 = vmatpush1.bf16.msra.mxu0 %v4783
  %5295 = vmatprep.subr.bf16.mxu0 %v4782
  %5296 = vmatpush1.bf16.msra.mxu0 %v4781
  %5297 = vmatprep.subr.bf16.mxu0 %v4780
  %5298 = vmatpush1.bf16.msra.mxu0 %v4779
  %5299 = vmatprep.subr.bf16.mxu0 %v4778
  %5300 = vmatpush1.bf16.msra.mxu0 %v4777
  %5301 = vmatprep.subr.bf16.mxu0 %v4776
  %5302 = vmatpush1.bf16.msra.mxu0 %v4775
  %5303 = vmatprep.subr.bf16.mxu0 %v4774
  %5304 = vmatpush1.bf16.msra.mxu0 %v4773
  %5305 = vmatprep.subr.bf16.mxu0 %v4772
  %5306 = vmatpush1.bf16.msra.mxu0 %v4771
  %5307 = vmatprep.subr.bf16.mxu0 %v4770
  %5308 = vmatpush1.bf16.msra.mxu0 %v4769
  %5309 = vmatprep.subr.bf16.mxu0 %v4800
  %5310 = vmatpush2.bf16.msra.mxu0 %v4799
  %5311 = vmatprep.subr.bf16.mxu0 %v4798
  %5312 = vmatpush2.bf16.msra.mxu0 %v4797
  %5313 = vmatprep.subr.bf16.mxu0 %v4796
  %5314 = vmatpush2.bf16.msra.mxu0 %v4795
  %5315 = vmatprep.subr.bf16.mxu0 %v4794
  %5316 = vmatpush2.bf16.msra.mxu0 %v4793
  %5317 = vmatprep.subr.bf16.mxu0 %v4792
  %5318 = vmatpush2.bf16.msra.mxu0 %v4791
  %5319 = vmatprep.subr.bf16.mxu0 %v4790
  %5320 = vmatpush2.bf16.msra.mxu0 %v4789
  %5321 = vmatprep.subr.bf16.mxu0 %v4788
  %5322 = vmatpush2.bf16.msra.mxu0 %v4787
  %5323 = vmatprep.subr.bf16.mxu0 %v4786
  %5324 = vmatpush2.bf16.msra.mxu0 %v4785
  %5325 = vmatprep.mubr.bf16.mxu0 %v326
  %5326 = vmatmul.mubr.bf16.gmra.mxu0 %v325
  %v5327 = vpop.f32.mrf.mxu0
  %v5328 = vadd.f32 %v5285, %v5327
  %v5329 = vpop.f32.mrf.mxu0
  %v5330 = vadd.f32 %v5287, %v5329
  %v5331 = vpop.f32.mrf.mxu0
  %v5332 = vadd.f32 %v5289, %v5331
  %v5333 = vpop.f32.mrf.mxu0
  %v5334 = vadd.f32 %v5291, %v5333
  %5335 = vdwg.mxu0
  %5336 = vmatprep.subr.bf16.mxu0 %v4816
  %5337 = vmatpush1.bf16.msra.mxu0 %v4815
  %5338 = vmatprep.subr.bf16.mxu0 %v4814
  %5339 = vmatpush1.bf16.msra.mxu0 %v4813
  %5340 = vmatprep.subr.bf16.mxu0 %v4812
  %5341 = vmatpush1.bf16.msra.mxu0 %v4811
  %5342 = vmatprep.subr.bf16.mxu0 %v4810
  %5343 = vmatpush1.bf16.msra.mxu0 %v4809
  %5344 = vmatprep.subr.bf16.mxu0 %v4808
  %5345 = vmatpush1.bf16.msra.mxu0 %v4807
  %5346 = vmatprep.subr.bf16.mxu0 %v4806
  %5347 = vmatpush1.bf16.msra.mxu0 %v4805
  %5348 = vmatprep.subr.bf16.mxu0 %v4804
  %5349 = vmatpush1.bf16.msra.mxu0 %v4803
  %5350 = vmatprep.subr.bf16.mxu0 %v4802
  %5351 = vmatpush1.bf16.msra.mxu0 %v4801
  %5352 = vmatprep.subr.bf16.mxu0 %v4832
  %5353 = vmatpush2.bf16.msra.mxu0 %v4831
  %5354 = vmatprep.subr.bf16.mxu0 %v4830
  %5355 = vmatpush2.bf16.msra.mxu0 %v4829
  %5356 = vmatprep.subr.bf16.mxu0 %v4828
  %5357 = vmatpush2.bf16.msra.mxu0 %v4827
  %5358 = vmatprep.subr.bf16.mxu0 %v4826
  %5359 = vmatpush2.bf16.msra.mxu0 %v4825
  %5360 = vmatprep.subr.bf16.mxu0 %v4824
  %5361 = vmatpush2.bf16.msra.mxu0 %v4823
  %5362 = vmatprep.subr.bf16.mxu0 %v4822
  %5363 = vmatpush2.bf16.msra.mxu0 %v4821
  %5364 = vmatprep.subr.bf16.mxu0 %v4820
  %5365 = vmatpush2.bf16.msra.mxu0 %v4819
  %5366 = vmatprep.subr.bf16.mxu0 %v4818
  %5367 = vmatpush2.bf16.msra.mxu0 %v4817
  %5368 = vmatprep.mubr.bf16.mxu0 %v328
  %5369 = vmatmul.mubr.bf16.gmra.mxu0 %v327
  %v5370 = vpop.f32.mrf.mxu0
  %v5371 = vadd.f32 %v5328, %v5370
  %v5372 = vpop.f32.mrf.mxu0
  %v5373 = vadd.f32 %v5330, %v5372
  %v5374 = vpop.f32.mrf.mxu0
  %v5375 = vadd.f32 %v5332, %v5374
  %v5376 = vpop.f32.mrf.mxu0
  %v5377 = vadd.f32 %v5334, %v5376
  %5378 = vdwg.mxu0
  %5379 = vmatprep.subr.bf16.mxu0 %v4848
  %5380 = vmatpush1.bf16.msra.mxu0 %v4847
  %5381 = vmatprep.subr.bf16.mxu0 %v4846
  %5382 = vmatpush1.bf16.msra.mxu0 %v4845
  %5383 = vmatprep.subr.bf16.mxu0 %v4844
  %5384 = vmatpush1.bf16.msra.mxu0 %v4843
  %5385 = vmatprep.subr.bf16.mxu0 %v4842
  %5386 = vmatpush1.bf16.msra.mxu0 %v4841
  %5387 = vmatprep.subr.bf16.mxu0 %v4840
  %5388 = vmatpush1.bf16.msra.mxu0 %v4839
  %5389 = vmatprep.subr.bf16.mxu0 %v4838
  %5390 = vmatpush1.bf16.msra.mxu0 %v4837
  %5391 = vmatprep.subr.bf16.mxu0 %v4836
  %5392 = vmatpush1.bf16.msra.mxu0 %v4835
  %5393 = vmatprep.subr.bf16.mxu0 %v4834
  %5394 = vmatpush1.bf16.msra.mxu0 %v4833
  %5395 = vmatprep.subr.bf16.mxu0 %v4864
  %5396 = vmatpush2.bf16.msra.mxu0 %v4863
  %5397 = vmatprep.subr.bf16.mxu0 %v4862
  %5398 = vmatpush2.bf16.msra.mxu0 %v4861
  %5399 = vmatprep.subr.bf16.mxu0 %v4860
  %5400 = vmatpush2.bf16.msra.mxu0 %v4859
  %5401 = vmatprep.subr.bf16.mxu0 %v4858
  %5402 = vmatpush2.bf16.msra.mxu0 %v4857
  %5403 = vmatprep.subr.bf16.mxu0 %v4856
  %5404 = vmatpush2.bf16.msra.mxu0 %v4855
  %5405 = vmatprep.subr.bf16.mxu0 %v4854
  %5406 = vmatpush2.bf16.msra.mxu0 %v4853
  %5407 = vmatprep.subr.bf16.mxu0 %v4852
  %5408 = vmatpush2.bf16.msra.mxu0 %v4851
  %5409 = vmatprep.subr.bf16.mxu0 %v4850
  %5410 = vmatpush2.bf16.msra.mxu0 %v4849
  %5411 = vmatprep.mubr.bf16.mxu0 %v330
  %5412 = vmatmul.mubr.bf16.gmra.mxu0 %v329
  %v5413 = vpop.f32.mrf.mxu0
  %v5414 = vadd.f32 %v5371, %v5413
  %v5415 = vpop.f32.mrf.mxu0
  %v5416 = vadd.f32 %v5373, %v5415
  %v5417 = vpop.f32.mrf.mxu0
  %v5418 = vadd.f32 %v5375, %v5417
  %v5419 = vpop.f32.mrf.mxu0
  %v5420 = vadd.f32 %v5377, %v5419
  %5421 = vdwg.mxu0
  %5422 = vmatprep.subr.bf16.mxu0 %v4880
  %5423 = vmatpush1.bf16.msra.mxu0 %v4879
  %5424 = vmatprep.subr.bf16.mxu0 %v4878
  %5425 = vmatpush1.bf16.msra.mxu0 %v4877
  %5426 = vmatprep.subr.bf16.mxu0 %v4876
  %5427 = vmatpush1.bf16.msra.mxu0 %v4875
  %5428 = vmatprep.subr.bf16.mxu0 %v4874
  %5429 = vmatpush1.bf16.msra.mxu0 %v4873
  %5430 = vmatprep.subr.bf16.mxu0 %v4872
  %5431 = vmatpush1.bf16.msra.mxu0 %v4871
  %5432 = vmatprep.subr.bf16.mxu0 %v4870
  %5433 = vmatpush1.bf16.msra.mxu0 %v4869
  %5434 = vmatprep.subr.bf16.mxu0 %v4868
  %5435 = vmatpush1.bf16.msra.mxu0 %v4867
  %5436 = vmatprep.subr.bf16.mxu0 %v4866
  %5437 = vmatpush1.bf16.msra.mxu0 %v4865
  %5438 = vmatprep.subr.bf16.mxu0 0
  %5439 = vmatpush2.bf16.msra.mxu0 0
  %5440 = vmatprep.subr.bf16.mxu0 0
  %5441 = vmatpush2.bf16.msra.mxu0 0
  %5442 = vmatprep.subr.bf16.mxu0 0
  %5443 = vmatpush2.bf16.msra.mxu0 0
  %5444 = vmatprep.subr.bf16.mxu0 0
  %5445 = vmatpush2.bf16.msra.mxu0 0
  %5446 = vmatprep.subr.bf16.mxu0 0
  %5447 = vmatpush2.bf16.msra.mxu0 0
  %5448 = vmatprep.subr.bf16.mxu0 0
  %5449 = vmatpush2.bf16.msra.mxu0 0
  %5450 = vmatprep.subr.bf16.mxu0 0
  %5451 = vmatpush2.bf16.msra.mxu0 0
  %5452 = vmatprep.subr.bf16.mxu0 0
  %5453 = vmatpush2.bf16.msra.mxu0 0
  %5454 = vmatprep.mubr.bf16.mxu0 0
  %5455 = vmatmul.mubr.bf16.gmra.mxu0 %v331
  %v5456 = vpop.f32.mrf.mxu0
  %v5457 = vadd.f32 %v5414, %v5456
  %v5458 = vpop.f32.mrf.mxu0
  %v5459 = vadd.f32 %v5416, %v5458
  %v5460 = vpop.f32.mrf.mxu0
  %v5461 = vadd.f32 %v5418, %v5460
  %v5462 = vpop.f32.mrf.mxu0
  %v5463 = vadd.f32 %v5420, %v5462
  %5464 = vdwg.mxu0
  %v5465 = vmax.f32 %v3676, %v5457
  %v5466 = vmax.f32 %v3677, %v5459
  %v5467 = vmax.f32 %v3678, %v5461
  %v5468 = vmax.f32 %v3679, %v5463
  %s5469 = scalar_lea.vmem %s1, 5760
  %v5470 = vld [vmem:[%s5469] sm:$0xff]
  %v5471 = vld [vmem:[%s5469 + $0x8] sm:$0xff]
  %v5472 = vld [vmem:[%s5469 + $0x10] sm:$0xff]
  %v5473 = vld [vmem:[%s5469 + $0x18] sm:$0xff]
  %v5474 = vld [vmem:[%s5469 + $0x20] sm:$0xff]
  %v5475 = vld [vmem:[%s5469 + $0x28] sm:$0xff]
  %v5476 = vld [vmem:[%s5469 + $0x30] sm:$0xff]
  %v5477 = vld [vmem:[%s5469 + $0x38] sm:$0xff]
  %v5478 = vld [vmem:[%s5469 + $0x40] sm:$0xff]
  %v5479 = vld [vmem:[%s5469 + $0x48] sm:$0xff]
  %v5480 = vld [vmem:[%s5469 + $0x50] sm:$0xff]
  %v5481 = vld [vmem:[%s5469 + $0x58] sm:$0xff]
  %v5482 = vld [vmem:[%s5469 + $0x60] sm:$0xff]
  %v5483 = vld [vmem:[%s5469 + $0x68] sm:$0xff]
  %v5484 = vld [vmem:[%s5469 + $0x70] sm:$0xff]
  %v5485 = vld [vmem:[%s5469 + $0x78] sm:$0xff]
  %v5486 = vld [vmem:[%s5469 + $0x80] sm:$0xff]
  %v5487 = vld [vmem:[%s5469 + $0x88] sm:$0xff]
  %v5488 = vld [vmem:[%s5469 + $0x90] sm:$0xff]
  %v5489 = vld [vmem:[%s5469 + $0x98] sm:$0xff]
  %v5490 = vld [vmem:[%s5469 + $0xa0] sm:$0xff]
  %v5491 = vld [vmem:[%s5469 + $0xa8] sm:$0xff]
  %v5492 = vld [vmem:[%s5469 + $0xb0] sm:$0xff]
  %v5493 = vld [vmem:[%s5469 + $0xb8] sm:$0xff]
  %v5494 = vld [vmem:[%s5469 + $0xc0] sm:$0xff]
  %v5495 = vld [vmem:[%s5469 + $0xc8] sm:$0xff]
  %v5496 = vld [vmem:[%s5469 + $0xd0] sm:$0xff]
  %v5497 = vld [vmem:[%s5469 + $0xd8] sm:$0xff]
  %v5498 = vld [vmem:[%s5469 + $0xe0] sm:$0xff]
  %v5499 = vld [vmem:[%s5469 + $0xe8] sm:$0xff]
  %v5500 = vld [vmem:[%s5469 + $0xf0] sm:$0xff]
  %v5501 = vld [vmem:[%s5469 + $0xf8] sm:$0xff]
  %v5502 = vld [vmem:[%s5469 + $0x100] sm:$0xff]
  %v5503 = vld [vmem:[%s5469 + $0x108] sm:$0xff]
  %v5504 = vld [vmem:[%s5469 + $0x110] sm:$0xff]
  %v5505 = vld [vmem:[%s5469 + $0x118] sm:$0xff]
  %v5506 = vld [vmem:[%s5469 + $0x120] sm:$0xff]
  %v5507 = vld [vmem:[%s5469 + $0x128] sm:$0xff]
  %v5508 = vld [vmem:[%s5469 + $0x130] sm:$0xff]
  %v5509 = vld [vmem:[%s5469 + $0x138] sm:$0xff]
  %v5510 = vld [vmem:[%s5469 + $0x140] sm:$0xff]
  %v5511 = vld [vmem:[%s5469 + $0x148] sm:$0xff]
  %v5512 = vld [vmem:[%s5469 + $0x150] sm:$0xff]
  %v5513 = vld [vmem:[%s5469 + $0x158] sm:$0xff]
  %v5514 = vld [vmem:[%s5469 + $0x160] sm:$0xff]
  %v5515 = vld [vmem:[%s5469 + $0x168] sm:$0xff]
  %v5516 = vld [vmem:[%s5469 + $0x170] sm:$0xff]
  %v5517 = vld [vmem:[%s5469 + $0x178] sm:$0xff]
  %v5518 = vld [vmem:[%s5469 + $0x180] sm:$0xff]
  %v5519 = vld [vmem:[%s5469 + $0x188] sm:$0xff]
  %v5520 = vld [vmem:[%s5469 + $0x190] sm:$0xff]
  %v5521 = vld [vmem:[%s5469 + $0x198] sm:$0xff]
  %v5522 = vld [vmem:[%s5469 + $0x1a0] sm:$0xff]
  %v5523 = vld [vmem:[%s5469 + $0x1a8] sm:$0xff]
  %v5524 = vld [vmem:[%s5469 + $0x1b0] sm:$0xff]
  %v5525 = vld [vmem:[%s5469 + $0x1b8] sm:$0xff]
  %v5526 = vld [vmem:[%s5469 + $0x1c0] sm:$0xff]
  %v5527 = vld [vmem:[%s5469 + $0x1c8] sm:$0xff]
  %v5528 = vld [vmem:[%s5469 + $0x1d0] sm:$0xff]
  %v5529 = vld [vmem:[%s5469 + $0x1d8] sm:$0xff]
  %v5530 = vld [vmem:[%s5469 + $0x1e0] sm:$0xff]
  %v5531 = vld [vmem:[%s5469 + $0x1e8] sm:$0xff]
  %v5532 = vld [vmem:[%s5469 + $0x1f0] sm:$0xff]
  %v5533 = vld [vmem:[%s5469 + $0x1f8] sm:$0xff]
  %v5534 = vld [vmem:[%s5469 + $0x200] sm:$0xff]
  %v5535 = vld [vmem:[%s5469 + $0x208] sm:$0xff]
  %v5536 = vld [vmem:[%s5469 + $0x210] sm:$0xff]
  %v5537 = vld [vmem:[%s5469 + $0x218] sm:$0xff]
  %v5538 = vld [vmem:[%s5469 + $0x220] sm:$0xff]
  %v5539 = vld [vmem:[%s5469 + $0x228] sm:$0xff]
  %v5540 = vld [vmem:[%s5469 + $0x230] sm:$0xff]
  %v5541 = vld [vmem:[%s5469 + $0x238] sm:$0xff]
  %v5542 = vld [vmem:[%s5469 + $0x240] sm:$0xff]
  %v5543 = vld [vmem:[%s5469 + $0x248] sm:$0xff]
  %v5544 = vld [vmem:[%s5469 + $0x250] sm:$0xff]
  %v5545 = vld [vmem:[%s5469 + $0x258] sm:$0xff]
  %v5546 = vld [vmem:[%s5469 + $0x260] sm:$0xff]
  %v5547 = vld [vmem:[%s5469 + $0x268] sm:$0xff]
  %v5548 = vld [vmem:[%s5469 + $0x270] sm:$0xff]
  %v5549 = vld [vmem:[%s5469 + $0x278] sm:$0xff]
  %v5550 = vld [vmem:[%s5469 + $0x280] sm:$0xff]
  %v5551 = vld [vmem:[%s5469 + $0x288] sm:$0xff]
  %v5552 = vld [vmem:[%s5469 + $0x290] sm:$0xff]
  %v5553 = vld [vmem:[%s5469 + $0x298] sm:$0xff]
  %v5554 = vld [vmem:[%s5469 + $0x2a0] sm:$0xff]
  %v5555 = vld [vmem:[%s5469 + $0x2a8] sm:$0xff]
  %v5556 = vld [vmem:[%s5469 + $0x2b0] sm:$0xff]
  %v5557 = vld [vmem:[%s5469 + $0x2b8] sm:$0xff]
  %v5558 = vld [vmem:[%s5469 + $0x2c0] sm:$0xff]
  %v5559 = vld [vmem:[%s5469 + $0x2c8] sm:$0xff]
  %v5560 = vld [vmem:[%s5469 + $0x2d0] sm:$0xff]
  %v5561 = vld [vmem:[%s5469 + $0x2d8] sm:$0xff]
  %v5562 = vld [vmem:[%s5469 + $0x2e0] sm:$0xff]
  %v5563 = vld [vmem:[%s5469 + $0x2e8] sm:$0xff]
  %v5564 = vld [vmem:[%s5469 + $0x2f0] sm:$0xff]
  %v5565 = vld [vmem:[%s5469 + $0x2f8] sm:$0xff]
  %v5566 = vld [vmem:[%s5469 + $0x300] sm:$0xff]
  %v5567 = vld [vmem:[%s5469 + $0x308] sm:$0xff]
  %v5568 = vld [vmem:[%s5469 + $0x310] sm:$0xff]
  %v5569 = vld [vmem:[%s5469 + $0x318] sm:$0xff]
  %v5570 = vld [vmem:[%s5469 + $0x320] sm:$0xff]
  %v5571 = vld [vmem:[%s5469 + $0x328] sm:$0xff]
  %v5572 = vld [vmem:[%s5469 + $0x330] sm:$0xff]
  %v5573 = vld [vmem:[%s5469 + $0x338] sm:$0xff]
  %v5574 = vld [vmem:[%s5469 + $0x340] sm:$0xff]
  %v5575 = vld [vmem:[%s5469 + $0x348] sm:$0xff]
  %v5576 = vld [vmem:[%s5469 + $0x350] sm:$0xff]
  %v5577 = vld [vmem:[%s5469 + $0x358] sm:$0xff]
  %v5578 = vld [vmem:[%s5469 + $0x360] sm:$0xff]
  %v5579 = vld [vmem:[%s5469 + $0x368] sm:$0xff]
  %v5580 = vld [vmem:[%s5469 + $0x370] sm:$0xff]
  %v5581 = vld [vmem:[%s5469 + $0x378] sm:$0xff]
  %v5582 = vld [vmem:[%s5469 + $0x380] sm:$0xff]
  %v5583 = vld [vmem:[%s5469 + $0x388] sm:$0xff]
  %v5584 = vld [vmem:[%s5469 + $0x390] sm:$0xff]
  %v5585 = vld [vmem:[%s5469 + $0x398] sm:$0xff]
  %v5586 = vld [vmem:[%s5469 + $0x3a0] sm:$0xff]
  %v5587 = vld [vmem:[%s5469 + $0x3a8] sm:$0xff]
  %v5588 = vld [vmem:[%s5469 + $0x3b0] sm:$0xff]
  %v5589 = vld [vmem:[%s5469 + $0x3b8] sm:$0xff]
  %v5590 = vld [vmem:[%s5469 + $0x3c0] sm:$0xff]
  %v5591 = vld [vmem:[%s5469 + $0x3c8] sm:$0xff]
  %v5592 = vld [vmem:[%s5469 + $0x3d0] sm:$0xff]
  %v5593 = vld [vmem:[%s5469 + $0x3d8] sm:$0xff]
  %v5594 = vld [vmem:[%s5469 + $0x3e0] sm:$0xff]
  %v5595 = vld [vmem:[%s5469 + $0x3e8] sm:$0xff]
  %v5596 = vld [vmem:[%s5469 + $0x3f0] sm:$0xff]
  %v5597 = vld [vmem:[%s5469 + $0x3f8] sm:$0xff]
  %v5598 = vld [vmem:[%s5469 + $0x400] sm:$0xff]
  %v5599 = vld [vmem:[%s5469 + $0x408] sm:$0xff]
  %v5600 = vld [vmem:[%s5469 + $0x410] sm:$0xff]
  %v5601 = vld [vmem:[%s5469 + $0x418] sm:$0xff]
  %v5602 = vld [vmem:[%s5469 + $0x420] sm:$0xff]
  %v5603 = vld [vmem:[%s5469 + $0x428] sm:$0xff]
  %v5604 = vld [vmem:[%s5469 + $0x430] sm:$0xff]
  %v5605 = vld [vmem:[%s5469 + $0x438] sm:$0xff]
  %v5606 = vld [vmem:[%s5469 + $0x440] sm:$0xff]
  %v5607 = vld [vmem:[%s5469 + $0x448] sm:$0xff]
  %v5608 = vld [vmem:[%s5469 + $0x450] sm:$0xff]
  %v5609 = vld [vmem:[%s5469 + $0x458] sm:$0xff]
  %v5610 = vld [vmem:[%s5469 + $0x460] sm:$0xff]
  %v5611 = vld [vmem:[%s5469 + $0x468] sm:$0xff]
  %v5612 = vld [vmem:[%s5469 + $0x470] sm:$0xff]
  %v5613 = vld [vmem:[%s5469 + $0x478] sm:$0xff]
  %v5614 = vld [vmem:[%s5469 + $0x480] sm:$0xff]
  %v5615 = vld [vmem:[%s5469 + $0x488] sm:$0xff]
  %v5616 = vld [vmem:[%s5469 + $0x490] sm:$0xff]
  %v5617 = vld [vmem:[%s5469 + $0x498] sm:$0xff]
  %v5618 = vld [vmem:[%s5469 + $0x4a0] sm:$0xff]
  %v5619 = vld [vmem:[%s5469 + $0x4a8] sm:$0xff]
  %v5620 = vld [vmem:[%s5469 + $0x4b0] sm:$0xff]
  %v5621 = vld [vmem:[%s5469 + $0x4b8] sm:$0xff]
  %v5622 = vld [vmem:[%s5469 + $0x4c0] sm:$0xff]
  %v5623 = vld [vmem:[%s5469 + $0x4c8] sm:$0xff]
  %v5624 = vld [vmem:[%s5469 + $0x4d0] sm:$0xff]
  %v5625 = vld [vmem:[%s5469 + $0x4d8] sm:$0xff]
  %v5626 = vld [vmem:[%s5469 + $0x4e0] sm:$0xff]
  %v5627 = vld [vmem:[%s5469 + $0x4e8] sm:$0xff]
  %v5628 = vld [vmem:[%s5469 + $0x4f0] sm:$0xff]
  %v5629 = vld [vmem:[%s5469 + $0x4f8] sm:$0xff]
  %v5630 = vld [vmem:[%s5469 + $0x500] sm:$0xff]
  %v5631 = vld [vmem:[%s5469 + $0x508] sm:$0xff]
  %v5632 = vld [vmem:[%s5469 + $0x510] sm:$0xff]
  %v5633 = vld [vmem:[%s5469 + $0x518] sm:$0xff]
  %v5634 = vld [vmem:[%s5469 + $0x520] sm:$0xff]
  %v5635 = vld [vmem:[%s5469 + $0x528] sm:$0xff]
  %v5636 = vld [vmem:[%s5469 + $0x530] sm:$0xff]
  %v5637 = vld [vmem:[%s5469 + $0x538] sm:$0xff]
  %v5638 = vld [vmem:[%s5469 + $0x540] sm:$0xff]
  %v5639 = vld [vmem:[%s5469 + $0x548] sm:$0xff]
  %v5640 = vld [vmem:[%s5469 + $0x550] sm:$0xff]
  %v5641 = vld [vmem:[%s5469 + $0x558] sm:$0xff]
  %v5642 = vld [vmem:[%s5469 + $0x560] sm:$0xff]
  %v5643 = vld [vmem:[%s5469 + $0x568] sm:$0xff]
  %v5644 = vld [vmem:[%s5469 + $0x570] sm:$0xff]
  %v5645 = vld [vmem:[%s5469 + $0x578] sm:$0xff]
  %v5646 = vld [vmem:[%s5469 + $0x580] sm:$0xff]
  %v5647 = vld [vmem:[%s5469 + $0x588] sm:$0xff]
  %v5648 = vld [vmem:[%s5469 + $0x590] sm:$0xff]
  %v5649 = vld [vmem:[%s5469 + $0x598] sm:$0xff]
  %v5650 = vld [vmem:[%s5469 + $0x5a0] sm:$0xff]
  %v5651 = vld [vmem:[%s5469 + $0x5a8] sm:$0xff]
  %v5652 = vld [vmem:[%s5469 + $0x5b0] sm:$0xff]
  %v5653 = vld [vmem:[%s5469 + $0x5b8] sm:$0xff]
  %v5654 = vld [vmem:[%s5469 + $0x5c0] sm:$0xff]
  %v5655 = vld [vmem:[%s5469 + $0x5c8] sm:$0xff]
  %v5656 = vld [vmem:[%s5469 + $0x5d0] sm:$0xff]
  %v5657 = vld [vmem:[%s5469 + $0x5d8] sm:$0xff]
  %v5658 = vld [vmem:[%s5469 + $0x5e0] sm:$0xff]
  %v5659 = vld [vmem:[%s5469 + $0x5e8] sm:$0xff]
  %v5660 = vld [vmem:[%s5469 + $0x5f0] sm:$0xff]
  %v5661 = vld [vmem:[%s5469 + $0x5f8] sm:$0xff]
  %v5662 = vld [vmem:[%s5469 + $0x600] sm:$0xff]
  %v5663 = vld [vmem:[%s5469 + $0x608] sm:$0xff]
  %v5664 = vld [vmem:[%s5469 + $0x610] sm:$0xff]
  %v5665 = vld [vmem:[%s5469 + $0x618] sm:$0xff]
  %v5666 = vld [vmem:[%s5469 + $0x620] sm:$0xff]
  %v5667 = vld [vmem:[%s5469 + $0x628] sm:$0xff]
  %v5668 = vld [vmem:[%s5469 + $0x630] sm:$0xff]
  %v5669 = vld [vmem:[%s5469 + $0x638] sm:$0xff]
  %v5670 = vld [vmem:[%s5469 + $0x640] sm:$0xff]
  %v5671 = vld [vmem:[%s5469 + $0x648] sm:$0xff]
  %v5672 = vld [vmem:[%s5469 + $0x650] sm:$0xff]
  %v5673 = vld [vmem:[%s5469 + $0x658] sm:$0xff]
  %v5674 = vld [vmem:[%s5469 + $0x660] sm:$0xff]
  %v5675 = vld [vmem:[%s5469 + $0x668] sm:$0xff]
  %v5676 = vld [vmem:[%s5469 + $0x670] sm:$0xff]
  %v5677 = vld [vmem:[%s5469 + $0x678] sm:$0xff]
  %v5678 = vld [vmem:[%s5469 + $0x680] sm:$0xff]
  %v5679 = vld [vmem:[%s5469 + $0x688] sm:$0xff]
  %v5680 = vld [vmem:[%s5469 + $0x690] sm:$0xff]
  %v5681 = vld [vmem:[%s5469 + $0x698] sm:$0xff]
  %v5682 = vld [vmem:[%s5469 + $0x6a0] sm:$0xff]
  %v5683 = vld [vmem:[%s5469 + $0x6a8] sm:$0xff]
  %v5684 = vld [vmem:[%s5469 + $0x6b0] sm:$0xff]
  %v5685 = vld [vmem:[%s5469 + $0x6b8] sm:$0xff]
  %v5686 = vld [vmem:[%s5469 + $0x6c0] sm:$0xff]
  %v5687 = vld [vmem:[%s5469 + $0x6c8] sm:$0xff]
  %v5688 = vld [vmem:[%s5469 + $0x6d0] sm:$0xff]
  %v5689 = vld [vmem:[%s5469 + $0x6d8] sm:$0xff]
  %v5690 = vld [vmem:[%s5469 + $0x6e0] sm:$0xff]
  %v5691 = vld [vmem:[%s5469 + $0x6e8] sm:$0xff]
  %v5692 = vld [vmem:[%s5469 + $0x6f0] sm:$0xff]
  %v5693 = vld [vmem:[%s5469 + $0x6f8] sm:$0xff]
  %v5694 = vld [vmem:[%s5469 + $0x700] sm:$0xff]
  %v5695 = vld [vmem:[%s5469 + $0x708] sm:$0xff]
  %v5696 = vld [vmem:[%s5469 + $0x710] sm:$0xff]
  %v5697 = vld [vmem:[%s5469 + $0x718] sm:$0xff]
  %v5698 = vld [vmem:[%s5469 + $0x720] sm:$0xff]
  %v5699 = vld [vmem:[%s5469 + $0x728] sm:$0xff]
  %v5700 = vld [vmem:[%s5469 + $0x730] sm:$0xff]
  %v5701 = vld [vmem:[%s5469 + $0x738] sm:$0xff]
  %v5702 = vld [vmem:[%s5469 + $0x740] sm:$0xff]
  %v5703 = vld [vmem:[%s5469 + $0x748] sm:$0xff]
  %v5704 = vld [vmem:[%s5469 + $0x750] sm:$0xff]
  %v5705 = vld [vmem:[%s5469 + $0x758] sm:$0xff]
  %v5706 = vld [vmem:[%s5469 + $0x760] sm:$0xff]
  %v5707 = vld [vmem:[%s5469 + $0x768] sm:$0xff]
  %v5708 = vld [vmem:[%s5469 + $0x770] sm:$0xff]
  %v5709 = vld [vmem:[%s5469 + $0x778] sm:$0xff]
  %v5950 = vunpack.c.l.b16 %v5470
  %v5951 = vunpack.c.h.b16 %v5470
  %v5952 = vunpack.c.l.b16 %v5471
  %v5953 = vunpack.c.h.b16 %v5471
  %v5954 = vunpack.c.l.b16 %v5472
  %v5955 = vunpack.c.h.b16 %v5472
  %v5956 = vunpack.c.l.b16 %v5473
  %v5957 = vunpack.c.h.b16 %v5473
  %v5958 = vunpack.c.l.b16 %v5474
  %v5959 = vunpack.c.h.b16 %v5474
  %v5960 = vunpack.c.l.b16 %v5475
  %v5961 = vunpack.c.h.b16 %v5475
  %v5962 = vunpack.c.l.b16 %v5476
  %v5963 = vunpack.c.h.b16 %v5476
  %v5964 = vunpack.c.l.b16 %v5477
  %v5965 = vunpack.c.h.b16 %v5477
  %v5966 = vunpack.c.l.b16 %v5478
  %v5967 = vunpack.c.h.b16 %v5478
  %v5968 = vunpack.c.l.b16 %v5479
  %v5969 = vunpack.c.h.b16 %v5479
  %v5970 = vunpack.c.l.b16 %v5480
  %v5971 = vunpack.c.h.b16 %v5480
  %v5972 = vunpack.c.l.b16 %v5481
  %v5973 = vunpack.c.h.b16 %v5481
  %v5974 = vunpack.c.l.b16 %v5482
  %v5975 = vunpack.c.h.b16 %v5482
  %v5976 = vunpack.c.l.b16 %v5483
  %v5977 = vunpack.c.h.b16 %v5483
  %v5978 = vunpack.c.l.b16 %v5484
  %v5979 = vunpack.c.h.b16 %v5484
  %v5980 = vunpack.c.l.b16 %v5485
  %v5981 = vunpack.c.h.b16 %v5485
  %v5982 = vunpack.c.l.b16 %v5486
  %v5983 = vunpack.c.h.b16 %v5486
  %v5984 = vunpack.c.l.b16 %v5487
  %v5985 = vunpack.c.h.b16 %v5487
  %v5986 = vunpack.c.l.b16 %v5488
  %v5987 = vunpack.c.h.b16 %v5488
  %v5988 = vunpack.c.l.b16 %v5489
  %v5989 = vunpack.c.h.b16 %v5489
  %v5990 = vunpack.c.l.b16 %v5490
  %v5991 = vunpack.c.h.b16 %v5490
  %v5992 = vunpack.c.l.b16 %v5491
  %v5993 = vunpack.c.h.b16 %v5491
  %v5994 = vunpack.c.l.b16 %v5492
  %v5995 = vunpack.c.h.b16 %v5492
  %v5996 = vunpack.c.l.b16 %v5493
  %v5997 = vunpack.c.h.b16 %v5493
  %v5998 = vunpack.c.l.b16 %v5494
  %v5999 = vunpack.c.h.b16 %v5494
  %v6000 = vunpack.c.l.b16 %v5495
  %v6001 = vunpack.c.h.b16 %v5495
  %v6002 = vunpack.c.l.b16 %v5496
  %v6003 = vunpack.c.h.b16 %v5496
  %v6004 = vunpack.c.l.b16 %v5497
  %v6005 = vunpack.c.h.b16 %v5497
  %v6006 = vunpack.c.l.b16 %v5498
  %v6007 = vunpack.c.h.b16 %v5498
  %v6008 = vunpack.c.l.b16 %v5499
  %v6009 = vunpack.c.h.b16 %v5499
  %v6010 = vunpack.c.l.b16 %v5500
  %v6011 = vunpack.c.h.b16 %v5500
  %v6012 = vunpack.c.l.b16 %v5501
  %v6013 = vunpack.c.h.b16 %v5501
  %v6014 = vunpack.c.l.b16 %v5502
  %v6015 = vunpack.c.h.b16 %v5502
  %v6016 = vunpack.c.l.b16 %v5503
  %v6017 = vunpack.c.h.b16 %v5503
  %v6018 = vunpack.c.l.b16 %v5504
  %v6019 = vunpack.c.h.b16 %v5504
  %v6020 = vunpack.c.l.b16 %v5505
  %v6021 = vunpack.c.h.b16 %v5505
  %v6022 = vunpack.c.l.b16 %v5506
  %v6023 = vunpack.c.h.b16 %v5506
  %v6024 = vunpack.c.l.b16 %v5507
  %v6025 = vunpack.c.h.b16 %v5507
  %v6026 = vunpack.c.l.b16 %v5508
  %v6027 = vunpack.c.h.b16 %v5508
  %v6028 = vunpack.c.l.b16 %v5509
  %v6029 = vunpack.c.h.b16 %v5509
  %v6030 = vunpack.c.l.b16 %v5510
  %v6031 = vunpack.c.h.b16 %v5510
  %v6032 = vunpack.c.l.b16 %v5511
  %v6033 = vunpack.c.h.b16 %v5511
  %v6034 = vunpack.c.l.b16 %v5512
  %v6035 = vunpack.c.h.b16 %v5512
  %v6036 = vunpack.c.l.b16 %v5513
  %v6037 = vunpack.c.h.b16 %v5513
  %v6038 = vunpack.c.l.b16 %v5514
  %v6039 = vunpack.c.h.b16 %v5514
  %v6040 = vunpack.c.l.b16 %v5515
  %v6041 = vunpack.c.h.b16 %v5515
  %v6042 = vunpack.c.l.b16 %v5516
  %v6043 = vunpack.c.h.b16 %v5516
  %v6044 = vunpack.c.l.b16 %v5517
  %v6045 = vunpack.c.h.b16 %v5517
  %v6046 = vunpack.c.l.b16 %v5518
  %v6047 = vunpack.c.h.b16 %v5518
  %v6048 = vunpack.c.l.b16 %v5519
  %v6049 = vunpack.c.h.b16 %v5519
  %v6050 = vunpack.c.l.b16 %v5520
  %v6051 = vunpack.c.h.b16 %v5520
  %v6052 = vunpack.c.l.b16 %v5521
  %v6053 = vunpack.c.h.b16 %v5521
  %v6054 = vunpack.c.l.b16 %v5522
  %v6055 = vunpack.c.h.b16 %v5522
  %v6056 = vunpack.c.l.b16 %v5523
  %v6057 = vunpack.c.h.b16 %v5523
  %v6058 = vunpack.c.l.b16 %v5524
  %v6059 = vunpack.c.h.b16 %v5524
  %v6060 = vunpack.c.l.b16 %v5525
  %v6061 = vunpack.c.h.b16 %v5525
  %v6062 = vunpack.c.l.b16 %v5526
  %v6063 = vunpack.c.h.b16 %v5526
  %v6064 = vunpack.c.l.b16 %v5527
  %v6065 = vunpack.c.h.b16 %v5527
  %v6066 = vunpack.c.l.b16 %v5528
  %v6067 = vunpack.c.h.b16 %v5528
  %v6068 = vunpack.c.l.b16 %v5529
  %v6069 = vunpack.c.h.b16 %v5529
  %v6070 = vunpack.c.l.b16 %v5530
  %v6071 = vunpack.c.h.b16 %v5530
  %v6072 = vunpack.c.l.b16 %v5531
  %v6073 = vunpack.c.h.b16 %v5531
  %v6074 = vunpack.c.l.b16 %v5532
  %v6075 = vunpack.c.h.b16 %v5532
  %v6076 = vunpack.c.l.b16 %v5533
  %v6077 = vunpack.c.h.b16 %v5533
  %v6078 = vunpack.c.l.b16 %v5534
  %v6079 = vunpack.c.h.b16 %v5534
  %v6080 = vunpack.c.l.b16 %v5535
  %v6081 = vunpack.c.h.b16 %v5535
  %v6082 = vunpack.c.l.b16 %v5536
  %v6083 = vunpack.c.h.b16 %v5536
  %v6084 = vunpack.c.l.b16 %v5537
  %v6085 = vunpack.c.h.b16 %v5537
  %v6086 = vunpack.c.l.b16 %v5538
  %v6087 = vunpack.c.h.b16 %v5538
  %v6088 = vunpack.c.l.b16 %v5539
  %v6089 = vunpack.c.h.b16 %v5539
  %v6090 = vunpack.c.l.b16 %v5540
  %v6091 = vunpack.c.h.b16 %v5540
  %v6092 = vunpack.c.l.b16 %v5541
  %v6093 = vunpack.c.h.b16 %v5541
  %v6094 = vunpack.c.l.b16 %v5542
  %v6095 = vunpack.c.h.b16 %v5542
  %v6096 = vunpack.c.l.b16 %v5543
  %v6097 = vunpack.c.h.b16 %v5543
  %v6098 = vunpack.c.l.b16 %v5544
  %v6099 = vunpack.c.h.b16 %v5544
  %v6100 = vunpack.c.l.b16 %v5545
  %v6101 = vunpack.c.h.b16 %v5545
  %v6102 = vunpack.c.l.b16 %v5546
  %v6103 = vunpack.c.h.b16 %v5546
  %v6104 = vunpack.c.l.b16 %v5547
  %v6105 = vunpack.c.h.b16 %v5547
  %v6106 = vunpack.c.l.b16 %v5548
  %v6107 = vunpack.c.h.b16 %v5548
  %v6108 = vunpack.c.l.b16 %v5549
  %v6109 = vunpack.c.h.b16 %v5549
  %v6110 = vunpack.c.l.b16 %v5550
  %v6111 = vunpack.c.h.b16 %v5550
  %v6112 = vunpack.c.l.b16 %v5551
  %v6113 = vunpack.c.h.b16 %v5551
  %v6114 = vunpack.c.l.b16 %v5552
  %v6115 = vunpack.c.h.b16 %v5552
  %v6116 = vunpack.c.l.b16 %v5553
  %v6117 = vunpack.c.h.b16 %v5553
  %v6118 = vunpack.c.l.b16 %v5554
  %v6119 = vunpack.c.h.b16 %v5554
  %v6120 = vunpack.c.l.b16 %v5555
  %v6121 = vunpack.c.h.b16 %v5555
  %v6122 = vunpack.c.l.b16 %v5556
  %v6123 = vunpack.c.h.b16 %v5556
  %v6124 = vunpack.c.l.b16 %v5557
  %v6125 = vunpack.c.h.b16 %v5557
  %v6126 = vunpack.c.l.b16 %v5558
  %v6127 = vunpack.c.h.b16 %v5558
  %v6128 = vunpack.c.l.b16 %v5559
  %v6129 = vunpack.c.h.b16 %v5559
  %v6130 = vunpack.c.l.b16 %v5560
  %v6131 = vunpack.c.h.b16 %v5560
  %v6132 = vunpack.c.l.b16 %v5561
  %v6133 = vunpack.c.h.b16 %v5561
  %v6134 = vunpack.c.l.b16 %v5562
  %v6135 = vunpack.c.h.b16 %v5562
  %v6136 = vunpack.c.l.b16 %v5563
  %v6137 = vunpack.c.h.b16 %v5563
  %v6138 = vunpack.c.l.b16 %v5564
  %v6139 = vunpack.c.h.b16 %v5564
  %v6140 = vunpack.c.l.b16 %v5565
  %v6141 = vunpack.c.h.b16 %v5565
  %v6142 = vunpack.c.l.b16 %v5566
  %v6143 = vunpack.c.h.b16 %v5566
  %v6144 = vunpack.c.l.b16 %v5567
  %v6145 = vunpack.c.h.b16 %v5567
  %v6146 = vunpack.c.l.b16 %v5568
  %v6147 = vunpack.c.h.b16 %v5568
  %v6148 = vunpack.c.l.b16 %v5569
  %v6149 = vunpack.c.h.b16 %v5569
  %v6150 = vunpack.c.l.b16 %v5570
  %v6151 = vunpack.c.h.b16 %v5570
  %v6152 = vunpack.c.l.b16 %v5571
  %v6153 = vunpack.c.h.b16 %v5571
  %v6154 = vunpack.c.l.b16 %v5572
  %v6155 = vunpack.c.h.b16 %v5572
  %v6156 = vunpack.c.l.b16 %v5573
  %v6157 = vunpack.c.h.b16 %v5573
  %v6158 = vunpack.c.l.b16 %v5574
  %v6159 = vunpack.c.h.b16 %v5574
  %v6160 = vunpack.c.l.b16 %v5575
  %v6161 = vunpack.c.h.b16 %v5575
  %v6162 = vunpack.c.l.b16 %v5576
  %v6163 = vunpack.c.h.b16 %v5576
  %v6164 = vunpack.c.l.b16 %v5577
  %v6165 = vunpack.c.h.b16 %v5577
  %v6166 = vunpack.c.l.b16 %v5578
  %v6167 = vunpack.c.h.b16 %v5578
  %v6168 = vunpack.c.l.b16 %v5579
  %v6169 = vunpack.c.h.b16 %v5579
  %v6170 = vunpack.c.l.b16 %v5580
  %v6171 = vunpack.c.h.b16 %v5580
  %v6172 = vunpack.c.l.b16 %v5581
  %v6173 = vunpack.c.h.b16 %v5581
  %v6174 = vunpack.c.l.b16 %v5582
  %v6175 = vunpack.c.h.b16 %v5582
  %v6176 = vunpack.c.l.b16 %v5583
  %v6177 = vunpack.c.h.b16 %v5583
  %v6178 = vunpack.c.l.b16 %v5584
  %v6179 = vunpack.c.h.b16 %v5584
  %v6180 = vunpack.c.l.b16 %v5585
  %v6181 = vunpack.c.h.b16 %v5585
  %v6182 = vunpack.c.l.b16 %v5586
  %v6183 = vunpack.c.h.b16 %v5586
  %v6184 = vunpack.c.l.b16 %v5587
  %v6185 = vunpack.c.h.b16 %v5587
  %v6186 = vunpack.c.l.b16 %v5588
  %v6187 = vunpack.c.h.b16 %v5588
  %v6188 = vunpack.c.l.b16 %v5589
  %v6189 = vunpack.c.h.b16 %v5589
  %v6190 = vunpack.c.l.b16 %v5590
  %v6191 = vunpack.c.h.b16 %v5590
  %v6192 = vunpack.c.l.b16 %v5591
  %v6193 = vunpack.c.h.b16 %v5591
  %v6194 = vunpack.c.l.b16 %v5592
  %v6195 = vunpack.c.h.b16 %v5592
  %v6196 = vunpack.c.l.b16 %v5593
  %v6197 = vunpack.c.h.b16 %v5593
  %v6198 = vunpack.c.l.b16 %v5594
  %v6199 = vunpack.c.h.b16 %v5594
  %v6200 = vunpack.c.l.b16 %v5595
  %v6201 = vunpack.c.h.b16 %v5595
  %v6202 = vunpack.c.l.b16 %v5596
  %v6203 = vunpack.c.h.b16 %v5596
  %v6204 = vunpack.c.l.b16 %v5597
  %v6205 = vunpack.c.h.b16 %v5597
  %v6206 = vunpack.c.l.b16 %v5598
  %v6207 = vunpack.c.h.b16 %v5598
  %v6208 = vunpack.c.l.b16 %v5599
  %v6209 = vunpack.c.h.b16 %v5599
  %v6210 = vunpack.c.l.b16 %v5600
  %v6211 = vunpack.c.h.b16 %v5600
  %v6212 = vunpack.c.l.b16 %v5601
  %v6213 = vunpack.c.h.b16 %v5601
  %v6214 = vunpack.c.l.b16 %v5602
  %v6215 = vunpack.c.h.b16 %v5602
  %v6216 = vunpack.c.l.b16 %v5603
  %v6217 = vunpack.c.h.b16 %v5603
  %v6218 = vunpack.c.l.b16 %v5604
  %v6219 = vunpack.c.h.b16 %v5604
  %v6220 = vunpack.c.l.b16 %v5605
  %v6221 = vunpack.c.h.b16 %v5605
  %v6222 = vunpack.c.l.b16 %v5606
  %v6223 = vunpack.c.h.b16 %v5606
  %v6224 = vunpack.c.l.b16 %v5607
  %v6225 = vunpack.c.h.b16 %v5607
  %v6226 = vunpack.c.l.b16 %v5608
  %v6227 = vunpack.c.h.b16 %v5608
  %v6228 = vunpack.c.l.b16 %v5609
  %v6229 = vunpack.c.h.b16 %v5609
  %v6230 = vunpack.c.l.b16 %v5610
  %v6231 = vunpack.c.h.b16 %v5610
  %v6232 = vunpack.c.l.b16 %v5611
  %v6233 = vunpack.c.h.b16 %v5611
  %v6234 = vunpack.c.l.b16 %v5612
  %v6235 = vunpack.c.h.b16 %v5612
  %v6236 = vunpack.c.l.b16 %v5613
  %v6237 = vunpack.c.h.b16 %v5613
  %v6238 = vunpack.c.l.b16 %v5614
  %v6239 = vunpack.c.h.b16 %v5614
  %v6240 = vunpack.c.l.b16 %v5615
  %v6241 = vunpack.c.h.b16 %v5615
  %v6242 = vunpack.c.l.b16 %v5616
  %v6243 = vunpack.c.h.b16 %v5616
  %v6244 = vunpack.c.l.b16 %v5617
  %v6245 = vunpack.c.h.b16 %v5617
  %v6246 = vunpack.c.l.b16 %v5618
  %v6247 = vunpack.c.h.b16 %v5618
  %v6248 = vunpack.c.l.b16 %v5619
  %v6249 = vunpack.c.h.b16 %v5619
  %v6250 = vunpack.c.l.b16 %v5620
  %v6251 = vunpack.c.h.b16 %v5620
  %v6252 = vunpack.c.l.b16 %v5621
  %v6253 = vunpack.c.h.b16 %v5621
  %v6254 = vunpack.c.l.b16 %v5622
  %v6255 = vunpack.c.h.b16 %v5622
  %v6256 = vunpack.c.l.b16 %v5623
  %v6257 = vunpack.c.h.b16 %v5623
  %v6258 = vunpack.c.l.b16 %v5624
  %v6259 = vunpack.c.h.b16 %v5624
  %v6260 = vunpack.c.l.b16 %v5625
  %v6261 = vunpack.c.h.b16 %v5625
  %v6262 = vunpack.c.l.b16 %v5626
  %v6263 = vunpack.c.h.b16 %v5626
  %v6264 = vunpack.c.l.b16 %v5627
  %v6265 = vunpack.c.h.b16 %v5627
  %v6266 = vunpack.c.l.b16 %v5628
  %v6267 = vunpack.c.h.b16 %v5628
  %v6268 = vunpack.c.l.b16 %v5629
  %v6269 = vunpack.c.h.b16 %v5629
  %v6270 = vunpack.c.l.b16 %v5630
  %v6271 = vunpack.c.h.b16 %v5630
  %v6272 = vunpack.c.l.b16 %v5631
  %v6273 = vunpack.c.h.b16 %v5631
  %v6274 = vunpack.c.l.b16 %v5632
  %v6275 = vunpack.c.h.b16 %v5632
  %v6276 = vunpack.c.l.b16 %v5633
  %v6277 = vunpack.c.h.b16 %v5633
  %v6278 = vunpack.c.l.b16 %v5634
  %v6279 = vunpack.c.h.b16 %v5634
  %v6280 = vunpack.c.l.b16 %v5635
  %v6281 = vunpack.c.h.b16 %v5635
  %v6282 = vunpack.c.l.b16 %v5636
  %v6283 = vunpack.c.h.b16 %v5636
  %v6284 = vunpack.c.l.b16 %v5637
  %v6285 = vunpack.c.h.b16 %v5637
  %v6286 = vunpack.c.l.b16 %v5638
  %v6287 = vunpack.c.h.b16 %v5638
  %v6288 = vunpack.c.l.b16 %v5639
  %v6289 = vunpack.c.h.b16 %v5639
  %v6290 = vunpack.c.l.b16 %v5640
  %v6291 = vunpack.c.h.b16 %v5640
  %v6292 = vunpack.c.l.b16 %v5641
  %v6293 = vunpack.c.h.b16 %v5641
  %v6294 = vunpack.c.l.b16 %v5642
  %v6295 = vunpack.c.h.b16 %v5642
  %v6296 = vunpack.c.l.b16 %v5643
  %v6297 = vunpack.c.h.b16 %v5643
  %v6298 = vunpack.c.l.b16 %v5644
  %v6299 = vunpack.c.h.b16 %v5644
  %v6300 = vunpack.c.l.b16 %v5645
  %v6301 = vunpack.c.h.b16 %v5645
  %v6302 = vunpack.c.l.b16 %v5646
  %v6303 = vunpack.c.h.b16 %v5646
  %v6304 = vunpack.c.l.b16 %v5647
  %v6305 = vunpack.c.h.b16 %v5647
  %v6306 = vunpack.c.l.b16 %v5648
  %v6307 = vunpack.c.h.b16 %v5648
  %v6308 = vunpack.c.l.b16 %v5649
  %v6309 = vunpack.c.h.b16 %v5649
  %v6310 = vunpack.c.l.b16 %v5650
  %v6311 = vunpack.c.h.b16 %v5650
  %v6312 = vunpack.c.l.b16 %v5651
  %v6313 = vunpack.c.h.b16 %v5651
  %v6314 = vunpack.c.l.b16 %v5652
  %v6315 = vunpack.c.h.b16 %v5652
  %v6316 = vunpack.c.l.b16 %v5653
  %v6317 = vunpack.c.h.b16 %v5653
  %v6318 = vunpack.c.l.b16 %v5654
  %v6319 = vunpack.c.h.b16 %v5654
  %v6320 = vunpack.c.l.b16 %v5655
  %v6321 = vunpack.c.h.b16 %v5655
  %v6322 = vunpack.c.l.b16 %v5656
  %v6323 = vunpack.c.h.b16 %v5656
  %v6324 = vunpack.c.l.b16 %v5657
  %v6325 = vunpack.c.h.b16 %v5657
  %v6326 = vunpack.c.l.b16 %v5658
  %v6327 = vunpack.c.h.b16 %v5658
  %v6328 = vunpack.c.l.b16 %v5659
  %v6329 = vunpack.c.h.b16 %v5659
  %v6330 = vunpack.c.l.b16 %v5660
  %v6331 = vunpack.c.h.b16 %v5660
  %v6332 = vunpack.c.l.b16 %v5661
  %v6333 = vunpack.c.h.b16 %v5661
  %v6334 = vunpack.c.l.b16 %v5662
  %v6335 = vunpack.c.h.b16 %v5662
  %v6336 = vunpack.c.l.b16 %v5663
  %v6337 = vunpack.c.h.b16 %v5663
  %v6338 = vunpack.c.l.b16 %v5664
  %v6339 = vunpack.c.h.b16 %v5664
  %v6340 = vunpack.c.l.b16 %v5665
  %v6341 = vunpack.c.h.b16 %v5665
  %v6342 = vunpack.c.l.b16 %v5666
  %v6343 = vunpack.c.h.b16 %v5666
  %v6344 = vunpack.c.l.b16 %v5667
  %v6345 = vunpack.c.h.b16 %v5667
  %v6346 = vunpack.c.l.b16 %v5668
  %v6347 = vunpack.c.h.b16 %v5668
  %v6348 = vunpack.c.l.b16 %v5669
  %v6349 = vunpack.c.h.b16 %v5669
  %v6350 = vunpack.c.l.b16 %v5670
  %v6351 = vunpack.c.h.b16 %v5670
  %v6352 = vunpack.c.l.b16 %v5671
  %v6353 = vunpack.c.h.b16 %v5671
  %v6354 = vunpack.c.l.b16 %v5672
  %v6355 = vunpack.c.h.b16 %v5672
  %v6356 = vunpack.c.l.b16 %v5673
  %v6357 = vunpack.c.h.b16 %v5673
  %v6358 = vunpack.c.l.b16 %v5674
  %v6359 = vunpack.c.h.b16 %v5674
  %v6360 = vunpack.c.l.b16 %v5675
  %v6361 = vunpack.c.h.b16 %v5675
  %v6362 = vunpack.c.l.b16 %v5676
  %v6363 = vunpack.c.h.b16 %v5676
  %v6364 = vunpack.c.l.b16 %v5677
  %v6365 = vunpack.c.h.b16 %v5677
  %v6366 = vunpack.c.l.b16 %v5678
  %v6367 = vunpack.c.h.b16 %v5678
  %v6368 = vunpack.c.l.b16 %v5679
  %v6369 = vunpack.c.h.b16 %v5679
  %v6370 = vunpack.c.l.b16 %v5680
  %v6371 = vunpack.c.h.b16 %v5680
  %v6372 = vunpack.c.l.b16 %v5681
  %v6373 = vunpack.c.h.b16 %v5681
  %v6374 = vunpack.c.l.b16 %v5682
  %v6375 = vunpack.c.h.b16 %v5682
  %v6376 = vunpack.c.l.b16 %v5683
  %v6377 = vunpack.c.h.b16 %v5683
  %v6378 = vunpack.c.l.b16 %v5684
  %v6379 = vunpack.c.h.b16 %v5684
  %v6380 = vunpack.c.l.b16 %v5685
  %v6381 = vunpack.c.h.b16 %v5685
  %v6382 = vunpack.c.l.b16 %v5686
  %v6383 = vunpack.c.h.b16 %v5686
  %v6384 = vunpack.c.l.b16 %v5687
  %v6385 = vunpack.c.h.b16 %v5687
  %v6386 = vunpack.c.l.b16 %v5688
  %v6387 = vunpack.c.h.b16 %v5688
  %v6388 = vunpack.c.l.b16 %v5689
  %v6389 = vunpack.c.h.b16 %v5689
  %v6390 = vunpack.c.l.b16 %v5690
  %v6391 = vunpack.c.h.b16 %v5690
  %v6392 = vunpack.c.l.b16 %v5691
  %v6393 = vunpack.c.h.b16 %v5691
  %v6394 = vunpack.c.l.b16 %v5692
  %v6395 = vunpack.c.h.b16 %v5692
  %v6396 = vunpack.c.l.b16 %v5693
  %v6397 = vunpack.c.h.b16 %v5693
  %v6398 = vunpack.c.l.b16 %v5694
  %v6399 = vunpack.c.h.b16 %v5694
  %v6400 = vunpack.c.l.b16 %v5695
  %v6401 = vunpack.c.h.b16 %v5695
  %v6402 = vunpack.c.l.b16 %v5696
  %v6403 = vunpack.c.h.b16 %v5696
  %v6404 = vunpack.c.l.b16 %v5697
  %v6405 = vunpack.c.h.b16 %v5697
  %v6406 = vunpack.c.l.b16 %v5698
  %v6407 = vunpack.c.h.b16 %v5698
  %v6408 = vunpack.c.l.b16 %v5699
  %v6409 = vunpack.c.h.b16 %v5699
  %v6410 = vunpack.c.l.b16 %v5700
  %v6411 = vunpack.c.h.b16 %v5700
  %v6412 = vunpack.c.l.b16 %v5701
  %v6413 = vunpack.c.h.b16 %v5701
  %v6414 = vunpack.c.l.b16 %v5702
  %v6415 = vunpack.c.h.b16 %v5702
  %v6416 = vunpack.c.l.b16 %v5703
  %v6417 = vunpack.c.h.b16 %v5703
  %v6418 = vunpack.c.l.b16 %v5704
  %v6419 = vunpack.c.h.b16 %v5704
  %v6420 = vunpack.c.l.b16 %v5705
  %v6421 = vunpack.c.h.b16 %v5705
  %v6422 = vunpack.c.l.b16 %v5706
  %v6423 = vunpack.c.h.b16 %v5706
  %v6424 = vunpack.c.l.b16 %v5707
  %v6425 = vunpack.c.h.b16 %v5707
  %v6426 = vunpack.c.l.b16 %v5708
  %v6427 = vunpack.c.h.b16 %v5708
  %v6428 = vunpack.c.l.b16 %v5709
  %v6429 = vunpack.c.h.b16 %v5709
  %v6430 = vpack.c.b16 %v5952, %v5950
  %v6431 = vpack.c.b16 %v5953, %v5951
  %v6432 = vpack.c.b16 %v5956, %v5954
  %v6433 = vpack.c.b16 %v5957, %v5955
  %v6434 = vpack.c.b16 %v5960, %v5958
  %v6435 = vpack.c.b16 %v5961, %v5959
  %v6436 = vpack.c.b16 %v5964, %v5962
  %v6437 = vpack.c.b16 %v5965, %v5963
  %v6438 = vpack.c.b16 %v5968, %v5966
  %v6439 = vpack.c.b16 %v5969, %v5967
  %v6440 = vpack.c.b16 %v5972, %v5970
  %v6441 = vpack.c.b16 %v5973, %v5971
  %v6442 = vpack.c.b16 %v5976, %v5974
  %v6443 = vpack.c.b16 %v5977, %v5975
  %v6444 = vpack.c.b16 %v5980, %v5978
  %v6445 = vpack.c.b16 %v5981, %v5979
  %v6446 = vpack.c.b16 %v5984, %v5982
  %v6447 = vpack.c.b16 %v5985, %v5983
  %v6448 = vpack.c.b16 %v5988, %v5986
  %v6449 = vpack.c.b16 %v5989, %v5987
  %v6450 = vpack.c.b16 %v5992, %v5990
  %v6451 = vpack.c.b16 %v5993, %v5991
  %v6452 = vpack.c.b16 %v5996, %v5994
  %v6453 = vpack.c.b16 %v5997, %v5995
  %v6454 = vpack.c.b16 %v6000, %v5998
  %v6455 = vpack.c.b16 %v6001, %v5999
  %v6456 = vpack.c.b16 %v6004, %v6002
  %v6457 = vpack.c.b16 %v6005, %v6003
  %v6458 = vpack.c.b16 %v6008, %v6006
  %v6459 = vpack.c.b16 %v6009, %v6007
  %v6460 = vpack.c.b16 %v6012, %v6010
  %v6461 = vpack.c.b16 %v6013, %v6011
  %v6462 = vpack.c.b16 %v6016, %v6014
  %v6463 = vpack.c.b16 %v6017, %v6015
  %v6464 = vpack.c.b16 %v6020, %v6018
  %v6465 = vpack.c.b16 %v6021, %v6019
  %v6466 = vpack.c.b16 %v6024, %v6022
  %v6467 = vpack.c.b16 %v6025, %v6023
  %v6468 = vpack.c.b16 %v6028, %v6026
  %v6469 = vpack.c.b16 %v6029, %v6027
  %v6470 = vpack.c.b16 %v6032, %v6030
  %v6471 = vpack.c.b16 %v6033, %v6031
  %v6472 = vpack.c.b16 %v6036, %v6034
  %v6473 = vpack.c.b16 %v6037, %v6035
  %v6474 = vpack.c.b16 %v6040, %v6038
  %v6475 = vpack.c.b16 %v6041, %v6039
  %v6476 = vpack.c.b16 %v6044, %v6042
  %v6477 = vpack.c.b16 %v6045, %v6043
  %v6478 = vpack.c.b16 %v6048, %v6046
  %v6479 = vpack.c.b16 %v6049, %v6047
  %v6480 = vpack.c.b16 %v6052, %v6050
  %v6481 = vpack.c.b16 %v6053, %v6051
  %v6482 = vpack.c.b16 %v6056, %v6054
  %v6483 = vpack.c.b16 %v6057, %v6055
  %v6484 = vpack.c.b16 %v6060, %v6058
  %v6485 = vpack.c.b16 %v6061, %v6059
  %v6486 = vpack.c.b16 %v6064, %v6062
  %v6487 = vpack.c.b16 %v6065, %v6063
  %v6488 = vpack.c.b16 %v6068, %v6066
  %v6489 = vpack.c.b16 %v6069, %v6067
  %v6490 = vpack.c.b16 %v6072, %v6070
  %v6491 = vpack.c.b16 %v6073, %v6071
  %v6492 = vpack.c.b16 %v6076, %v6074
  %v6493 = vpack.c.b16 %v6077, %v6075
  %v6494 = vpack.c.b16 %v6080, %v6078
  %v6495 = vpack.c.b16 %v6081, %v6079
  %v6496 = vpack.c.b16 %v6084, %v6082
  %v6497 = vpack.c.b16 %v6085, %v6083
  %v6498 = vpack.c.b16 %v6088, %v6086
  %v6499 = vpack.c.b16 %v6089, %v6087
  %v6500 = vpack.c.b16 %v6092, %v6090
  %v6501 = vpack.c.b16 %v6093, %v6091
  %v6502 = vpack.c.b16 %v6096, %v6094
  %v6503 = vpack.c.b16 %v6097, %v6095
  %v6504 = vpack.c.b16 %v6100, %v6098
  %v6505 = vpack.c.b16 %v6101, %v6099
  %v6506 = vpack.c.b16 %v6104, %v6102
  %v6507 = vpack.c.b16 %v6105, %v6103
  %v6508 = vpack.c.b16 %v6108, %v6106
  %v6509 = vpack.c.b16 %v6109, %v6107
  %v6510 = vpack.c.b16 %v6112, %v6110
  %v6511 = vpack.c.b16 %v6113, %v6111
  %v6512 = vpack.c.b16 %v6116, %v6114
  %v6513 = vpack.c.b16 %v6117, %v6115
  %v6514 = vpack.c.b16 %v6120, %v6118
  %v6515 = vpack.c.b16 %v6121, %v6119
  %v6516 = vpack.c.b16 %v6124, %v6122
  %v6517 = vpack.c.b16 %v6125, %v6123
  %v6518 = vpack.c.b16 %v6128, %v6126
  %v6519 = vpack.c.b16 %v6129, %v6127
  %v6520 = vpack.c.b16 %v6132, %v6130
  %v6521 = vpack.c.b16 %v6133, %v6131
  %v6522 = vpack.c.b16 %v6136, %v6134
  %v6523 = vpack.c.b16 %v6137, %v6135
  %v6524 = vpack.c.b16 %v6140, %v6138
  %v6525 = vpack.c.b16 %v6141, %v6139
  %v6526 = vpack.c.b16 %v6144, %v6142
  %v6527 = vpack.c.b16 %v6145, %v6143
  %v6528 = vpack.c.b16 %v6148, %v6146
  %v6529 = vpack.c.b16 %v6149, %v6147
  %v6530 = vpack.c.b16 %v6152, %v6150
  %v6531 = vpack.c.b16 %v6153, %v6151
  %v6532 = vpack.c.b16 %v6156, %v6154
  %v6533 = vpack.c.b16 %v6157, %v6155
  %v6534 = vpack.c.b16 %v6160, %v6158
  %v6535 = vpack.c.b16 %v6161, %v6159
  %v6536 = vpack.c.b16 %v6164, %v6162
  %v6537 = vpack.c.b16 %v6165, %v6163
  %v6538 = vpack.c.b16 %v6168, %v6166
  %v6539 = vpack.c.b16 %v6169, %v6167
  %v6540 = vpack.c.b16 %v6172, %v6170
  %v6541 = vpack.c.b16 %v6173, %v6171
  %v6542 = vpack.c.b16 %v6176, %v6174
  %v6543 = vpack.c.b16 %v6177, %v6175
  %v6544 = vpack.c.b16 %v6180, %v6178
  %v6545 = vpack.c.b16 %v6181, %v6179
  %v6546 = vpack.c.b16 %v6184, %v6182
  %v6547 = vpack.c.b16 %v6185, %v6183
  %v6548 = vpack.c.b16 %v6188, %v6186
  %v6549 = vpack.c.b16 %v6189, %v6187
  %v6550 = vpack.c.b16 %v6192, %v6190
  %v6551 = vpack.c.b16 %v6193, %v6191
  %v6552 = vpack.c.b16 %v6196, %v6194
  %v6553 = vpack.c.b16 %v6197, %v6195
  %v6554 = vpack.c.b16 %v6200, %v6198
  %v6555 = vpack.c.b16 %v6201, %v6199
  %v6556 = vpack.c.b16 %v6204, %v6202
  %v6557 = vpack.c.b16 %v6205, %v6203
  %v6558 = vpack.c.b16 %v6208, %v6206
  %v6559 = vpack.c.b16 %v6209, %v6207
  %v6560 = vpack.c.b16 %v6212, %v6210
  %v6561 = vpack.c.b16 %v6213, %v6211
  %v6562 = vpack.c.b16 %v6216, %v6214
  %v6563 = vpack.c.b16 %v6217, %v6215
  %v6564 = vpack.c.b16 %v6220, %v6218
  %v6565 = vpack.c.b16 %v6221, %v6219
  %v6566 = vpack.c.b16 %v6224, %v6222
  %v6567 = vpack.c.b16 %v6225, %v6223
  %v6568 = vpack.c.b16 %v6228, %v6226
  %v6569 = vpack.c.b16 %v6229, %v6227
  %v6570 = vpack.c.b16 %v6232, %v6230
  %v6571 = vpack.c.b16 %v6233, %v6231
  %v6572 = vpack.c.b16 %v6236, %v6234
  %v6573 = vpack.c.b16 %v6237, %v6235
  %v6574 = vpack.c.b16 %v6240, %v6238
  %v6575 = vpack.c.b16 %v6241, %v6239
  %v6576 = vpack.c.b16 %v6244, %v6242
  %v6577 = vpack.c.b16 %v6245, %v6243
  %v6578 = vpack.c.b16 %v6248, %v6246
  %v6579 = vpack.c.b16 %v6249, %v6247
  %v6580 = vpack.c.b16 %v6252, %v6250
  %v6581 = vpack.c.b16 %v6253, %v6251
  %v6582 = vpack.c.b16 %v6256, %v6254
  %v6583 = vpack.c.b16 %v6257, %v6255
  %v6584 = vpack.c.b16 %v6260, %v6258
  %v6585 = vpack.c.b16 %v6261, %v6259
  %v6586 = vpack.c.b16 %v6264, %v6262
  %v6587 = vpack.c.b16 %v6265, %v6263
  %v6588 = vpack.c.b16 %v6268, %v6266
  %v6589 = vpack.c.b16 %v6269, %v6267
  %v6590 = vpack.c.b16 %v6272, %v6270
  %v6591 = vpack.c.b16 %v6273, %v6271
  %v6592 = vpack.c.b16 %v6276, %v6274
  %v6593 = vpack.c.b16 %v6277, %v6275
  %v6594 = vpack.c.b16 %v6280, %v6278
  %v6595 = vpack.c.b16 %v6281, %v6279
  %v6596 = vpack.c.b16 %v6284, %v6282
  %v6597 = vpack.c.b16 %v6285, %v6283
  %v6598 = vpack.c.b16 %v6288, %v6286
  %v6599 = vpack.c.b16 %v6289, %v6287
  %v6600 = vpack.c.b16 %v6292, %v6290
  %v6601 = vpack.c.b16 %v6293, %v6291
  %v6602 = vpack.c.b16 %v6296, %v6294
  %v6603 = vpack.c.b16 %v6297, %v6295
  %v6604 = vpack.c.b16 %v6300, %v6298
  %v6605 = vpack.c.b16 %v6301, %v6299
  %v6606 = vpack.c.b16 %v6304, %v6302
  %v6607 = vpack.c.b16 %v6305, %v6303
  %v6608 = vpack.c.b16 %v6308, %v6306
  %v6609 = vpack.c.b16 %v6309, %v6307
  %v6610 = vpack.c.b16 %v6312, %v6310
  %v6611 = vpack.c.b16 %v6313, %v6311
  %v6612 = vpack.c.b16 %v6316, %v6314
  %v6613 = vpack.c.b16 %v6317, %v6315
  %v6614 = vpack.c.b16 %v6320, %v6318
  %v6615 = vpack.c.b16 %v6321, %v6319
  %v6616 = vpack.c.b16 %v6324, %v6322
  %v6617 = vpack.c.b16 %v6325, %v6323
  %v6618 = vpack.c.b16 %v6328, %v6326
  %v6619 = vpack.c.b16 %v6329, %v6327
  %v6620 = vpack.c.b16 %v6332, %v6330
  %v6621 = vpack.c.b16 %v6333, %v6331
  %v6622 = vpack.c.b16 %v6336, %v6334
  %v6623 = vpack.c.b16 %v6337, %v6335
  %v6624 = vpack.c.b16 %v6340, %v6338
  %v6625 = vpack.c.b16 %v6341, %v6339
  %v6626 = vpack.c.b16 %v6344, %v6342
  %v6627 = vpack.c.b16 %v6345, %v6343
  %v6628 = vpack.c.b16 %v6348, %v6346
  %v6629 = vpack.c.b16 %v6349, %v6347
  %v6630 = vpack.c.b16 %v6352, %v6350
  %v6631 = vpack.c.b16 %v6353, %v6351
  %v6632 = vpack.c.b16 %v6356, %v6354
  %v6633 = vpack.c.b16 %v6357, %v6355
  %v6634 = vpack.c.b16 %v6360, %v6358
  %v6635 = vpack.c.b16 %v6361, %v6359
  %v6636 = vpack.c.b16 %v6364, %v6362
  %v6637 = vpack.c.b16 %v6365, %v6363
  %v6638 = vpack.c.b16 %v6368, %v6366
  %v6639 = vpack.c.b16 %v6369, %v6367
  %v6640 = vpack.c.b16 %v6372, %v6370
  %v6641 = vpack.c.b16 %v6373, %v6371
  %v6642 = vpack.c.b16 %v6376, %v6374
  %v6643 = vpack.c.b16 %v6377, %v6375
  %v6644 = vpack.c.b16 %v6380, %v6378
  %v6645 = vpack.c.b16 %v6381, %v6379
  %v6646 = vpack.c.b16 %v6384, %v6382
  %v6647 = vpack.c.b16 %v6385, %v6383
  %v6648 = vpack.c.b16 %v6388, %v6386
  %v6649 = vpack.c.b16 %v6389, %v6387
  %v6650 = vpack.c.b16 %v6392, %v6390
  %v6651 = vpack.c.b16 %v6393, %v6391
  %v6652 = vpack.c.b16 %v6396, %v6394
  %v6653 = vpack.c.b16 %v6397, %v6395
  %v6654 = vpack.c.b16 %v6400, %v6398
  %v6655 = vpack.c.b16 %v6401, %v6399
  %v6656 = vpack.c.b16 %v6404, %v6402
  %v6657 = vpack.c.b16 %v6405, %v6403
  %v6658 = vpack.c.b16 %v6408, %v6406
  %v6659 = vpack.c.b16 %v6409, %v6407
  %v6660 = vpack.c.b16 %v6412, %v6410
  %v6661 = vpack.c.b16 %v6413, %v6411
  %v6662 = vpack.c.b16 %v6416, %v6414
  %v6663 = vpack.c.b16 %v6417, %v6415
  %v6664 = vpack.c.b16 %v6420, %v6418
  %v6665 = vpack.c.b16 %v6421, %v6419
  %v6666 = vpack.c.b16 %v6424, %v6422
  %v6667 = vpack.c.b16 %v6425, %v6423
  %v6668 = vpack.c.b16 %v6428, %v6426
  %v6669 = vpack.c.b16 %v6429, %v6427
  %6910 = vmatprep.subr.bf16.mxu0 %v6445
  %6911 = vmatpush1.bf16.msra.mxu0 %v6444
  %6912 = vmatprep.subr.bf16.mxu0 %v6443
  %6913 = vmatpush1.bf16.msra.mxu0 %v6442
  %6914 = vmatprep.subr.bf16.mxu0 %v6441
  %6915 = vmatpush1.bf16.msra.mxu0 %v6440
  %6916 = vmatprep.subr.bf16.mxu0 %v6439
  %6917 = vmatpush1.bf16.msra.mxu0 %v6438
  %6918 = vmatprep.subr.bf16.mxu0 %v6437
  %6919 = vmatpush1.bf16.msra.mxu0 %v6436
  %6920 = vmatprep.subr.bf16.mxu0 %v6435
  %6921 = vmatpush1.bf16.msra.mxu0 %v6434
  %6922 = vmatprep.subr.bf16.mxu0 %v6433
  %6923 = vmatpush1.bf16.msra.mxu0 %v6432
  %6924 = vmatprep.subr.bf16.mxu0 %v6431
  %6925 = vmatpush1.bf16.msra.mxu0 %v6430
  %6926 = vmatprep.subr.bf16.mxu0 %v6461
  %6927 = vmatpush2.bf16.msra.mxu0 %v6460
  %6928 = vmatprep.subr.bf16.mxu0 %v6459
  %6929 = vmatpush2.bf16.msra.mxu0 %v6458
  %6930 = vmatprep.subr.bf16.mxu0 %v6457
  %6931 = vmatpush2.bf16.msra.mxu0 %v6456
  %6932 = vmatprep.subr.bf16.mxu0 %v6455
  %6933 = vmatpush2.bf16.msra.mxu0 %v6454
  %6934 = vmatprep.subr.bf16.mxu0 %v6453
  %6935 = vmatpush2.bf16.msra.mxu0 %v6452
  %6936 = vmatprep.subr.bf16.mxu0 %v6451
  %6937 = vmatpush2.bf16.msra.mxu0 %v6450
  %6938 = vmatprep.subr.bf16.mxu0 %v6449
  %6939 = vmatpush2.bf16.msra.mxu0 %v6448
  %6940 = vmatprep.subr.bf16.mxu0 %v6447
  %6941 = vmatpush2.bf16.msra.mxu0 %v6446
  %6942 = vmatprep.mubr.bf16.mxu0 %v318
  %6943 = vmatmul.mubr.bf16.gmra.mxu0 %v317
  %v6944 = vpop.f32.mrf.mxu0
  %v6945 = vadd.f32 0.0, %v6944
  %v6946 = vpop.f32.mrf.mxu0
  %v6947 = vadd.f32 0.0, %v6946
  %v6948 = vpop.f32.mrf.mxu0
  %v6949 = vadd.f32 0.0, %v6948
  %v6950 = vpop.f32.mrf.mxu0
  %v6951 = vadd.f32 0.0, %v6950
  %6952 = vdwg.mxu0
  %6953 = vmatprep.subr.bf16.mxu0 %v6477
  %6954 = vmatpush1.bf16.msra.mxu0 %v6476
  %6955 = vmatprep.subr.bf16.mxu0 %v6475
  %6956 = vmatpush1.bf16.msra.mxu0 %v6474
  %6957 = vmatprep.subr.bf16.mxu0 %v6473
  %6958 = vmatpush1.bf16.msra.mxu0 %v6472
  %6959 = vmatprep.subr.bf16.mxu0 %v6471
  %6960 = vmatpush1.bf16.msra.mxu0 %v6470
  %6961 = vmatprep.subr.bf16.mxu0 %v6469
  %6962 = vmatpush1.bf16.msra.mxu0 %v6468
  %6963 = vmatprep.subr.bf16.mxu0 %v6467
  %6964 = vmatpush1.bf16.msra.mxu0 %v6466
  %6965 = vmatprep.subr.bf16.mxu0 %v6465
  %6966 = vmatpush1.bf16.msra.mxu0 %v6464
  %6967 = vmatprep.subr.bf16.mxu0 %v6463
  %6968 = vmatpush1.bf16.msra.mxu0 %v6462
  %6969 = vmatprep.subr.bf16.mxu0 %v6493
  %6970 = vmatpush2.bf16.msra.mxu0 %v6492
  %6971 = vmatprep.subr.bf16.mxu0 %v6491
  %6972 = vmatpush2.bf16.msra.mxu0 %v6490
  %6973 = vmatprep.subr.bf16.mxu0 %v6489
  %6974 = vmatpush2.bf16.msra.mxu0 %v6488
  %6975 = vmatprep.subr.bf16.mxu0 %v6487
  %6976 = vmatpush2.bf16.msra.mxu0 %v6486
  %6977 = vmatprep.subr.bf16.mxu0 %v6485
  %6978 = vmatpush2.bf16.msra.mxu0 %v6484
  %6979 = vmatprep.subr.bf16.mxu0 %v6483
  %6980 = vmatpush2.bf16.msra.mxu0 %v6482
  %6981 = vmatprep.subr.bf16.mxu0 %v6481
  %6982 = vmatpush2.bf16.msra.mxu0 %v6480
  %6983 = vmatprep.subr.bf16.mxu0 %v6479
  %6984 = vmatpush2.bf16.msra.mxu0 %v6478
  %6985 = vmatprep.mubr.bf16.mxu0 %v320
  %6986 = vmatmul.mubr.bf16.gmra.mxu0 %v319
  %v6987 = vpop.f32.mrf.mxu0
  %v6988 = vadd.f32 %v6945, %v6987
  %v6989 = vpop.f32.mrf.mxu0
  %v6990 = vadd.f32 %v6947, %v6989
  %v6991 = vpop.f32.mrf.mxu0
  %v6992 = vadd.f32 %v6949, %v6991
  %v6993 = vpop.f32.mrf.mxu0
  %v6994 = vadd.f32 %v6951, %v6993
  %6995 = vdwg.mxu0
  %6996 = vmatprep.subr.bf16.mxu0 %v6509
  %6997 = vmatpush1.bf16.msra.mxu0 %v6508
  %6998 = vmatprep.subr.bf16.mxu0 %v6507
  %6999 = vmatpush1.bf16.msra.mxu0 %v6506
  %7000 = vmatprep.subr.bf16.mxu0 %v6505
  %7001 = vmatpush1.bf16.msra.mxu0 %v6504
  %7002 = vmatprep.subr.bf16.mxu0 %v6503
  %7003 = vmatpush1.bf16.msra.mxu0 %v6502
  %7004 = vmatprep.subr.bf16.mxu0 %v6501
  %7005 = vmatpush1.bf16.msra.mxu0 %v6500
  %7006 = vmatprep.subr.bf16.mxu0 %v6499
  %7007 = vmatpush1.bf16.msra.mxu0 %v6498
  %7008 = vmatprep.subr.bf16.mxu0 %v6497
  %7009 = vmatpush1.bf16.msra.mxu0 %v6496
  %7010 = vmatprep.subr.bf16.mxu0 %v6495
  %7011 = vmatpush1.bf16.msra.mxu0 %v6494
  %7012 = vmatprep.subr.bf16.mxu0 %v6525
  %7013 = vmatpush2.bf16.msra.mxu0 %v6524
  %7014 = vmatprep.subr.bf16.mxu0 %v6523
  %7015 = vmatpush2.bf16.msra.mxu0 %v6522
  %7016 = vmatprep.subr.bf16.mxu0 %v6521
  %7017 = vmatpush2.bf16.msra.mxu0 %v6520
  %7018 = vmatprep.subr.bf16.mxu0 %v6519
  %7019 = vmatpush2.bf16.msra.mxu0 %v6518
  %7020 = vmatprep.subr.bf16.mxu0 %v6517
  %7021 = vmatpush2.bf16.msra.mxu0 %v6516
  %7022 = vmatprep.subr.bf16.mxu0 %v6515
  %7023 = vmatpush2.bf16.msra.mxu0 %v6514
  %7024 = vmatprep.subr.bf16.mxu0 %v6513
  %7025 = vmatpush2.bf16.msra.mxu0 %v6512
  %7026 = vmatprep.subr.bf16.mxu0 %v6511
  %7027 = vmatpush2.bf16.msra.mxu0 %v6510
  %7028 = vmatprep.mubr.bf16.mxu0 %v322
  %7029 = vmatmul.mubr.bf16.gmra.mxu0 %v321
  %v7030 = vpop.f32.mrf.mxu0
  %v7031 = vadd.f32 %v6988, %v7030
  %v7032 = vpop.f32.mrf.mxu0
  %v7033 = vadd.f32 %v6990, %v7032
  %v7034 = vpop.f32.mrf.mxu0
  %v7035 = vadd.f32 %v6992, %v7034
  %v7036 = vpop.f32.mrf.mxu0
  %v7037 = vadd.f32 %v6994, %v7036
  %7038 = vdwg.mxu0
  %7039 = vmatprep.subr.bf16.mxu0 %v6541
  %7040 = vmatpush1.bf16.msra.mxu0 %v6540
  %7041 = vmatprep.subr.bf16.mxu0 %v6539
  %7042 = vmatpush1.bf16.msra.mxu0 %v6538
  %7043 = vmatprep.subr.bf16.mxu0 %v6537
  %7044 = vmatpush1.bf16.msra.mxu0 %v6536
  %7045 = vmatprep.subr.bf16.mxu0 %v6535
  %7046 = vmatpush1.bf16.msra.mxu0 %v6534
  %7047 = vmatprep.subr.bf16.mxu0 %v6533
  %7048 = vmatpush1.bf16.msra.mxu0 %v6532
  %7049 = vmatprep.subr.bf16.mxu0 %v6531
  %7050 = vmatpush1.bf16.msra.mxu0 %v6530
  %7051 = vmatprep.subr.bf16.mxu0 %v6529
  %7052 = vmatpush1.bf16.msra.mxu0 %v6528
  %7053 = vmatprep.subr.bf16.mxu0 %v6527
  %7054 = vmatpush1.bf16.msra.mxu0 %v6526
  %7055 = vmatprep.subr.bf16.mxu0 %v6557
  %7056 = vmatpush2.bf16.msra.mxu0 %v6556
  %7057 = vmatprep.subr.bf16.mxu0 %v6555
  %7058 = vmatpush2.bf16.msra.mxu0 %v6554
  %7059 = vmatprep.subr.bf16.mxu0 %v6553
  %7060 = vmatpush2.bf16.msra.mxu0 %v6552
  %7061 = vmatprep.subr.bf16.mxu0 %v6551
  %7062 = vmatpush2.bf16.msra.mxu0 %v6550
  %7063 = vmatprep.subr.bf16.mxu0 %v6549
  %7064 = vmatpush2.bf16.msra.mxu0 %v6548
  %7065 = vmatprep.subr.bf16.mxu0 %v6547
  %7066 = vmatpush2.bf16.msra.mxu0 %v6546
  %7067 = vmatprep.subr.bf16.mxu0 %v6545
  %7068 = vmatpush2.bf16.msra.mxu0 %v6544
  %7069 = vmatprep.subr.bf16.mxu0 %v6543
  %7070 = vmatpush2.bf16.msra.mxu0 %v6542
  %7071 = vmatprep.mubr.bf16.mxu0 %v324
  %7072 = vmatmul.mubr.bf16.gmra.mxu0 %v323
  %v7073 = vpop.f32.mrf.mxu0
  %v7074 = vadd.f32 %v7031, %v7073
  %v7075 = vpop.f32.mrf.mxu0
  %v7076 = vadd.f32 %v7033, %v7075
  %v7077 = vpop.f32.mrf.mxu0
  %v7078 = vadd.f32 %v7035, %v7077
  %v7079 = vpop.f32.mrf.mxu0
  %v7080 = vadd.f32 %v7037, %v7079
  %7081 = vdwg.mxu0
  %7082 = vmatprep.subr.bf16.mxu0 %v6573
  %7083 = vmatpush1.bf16.msra.mxu0 %v6572
  %7084 = vmatprep.subr.bf16.mxu0 %v6571
  %7085 = vmatpush1.bf16.msra.mxu0 %v6570
  %7086 = vmatprep.subr.bf16.mxu0 %v6569
  %7087 = vmatpush1.bf16.msra.mxu0 %v6568
  %7088 = vmatprep.subr.bf16.mxu0 %v6567
  %7089 = vmatpush1.bf16.msra.mxu0 %v6566
  %7090 = vmatprep.subr.bf16.mxu0 %v6565
  %7091 = vmatpush1.bf16.msra.mxu0 %v6564
  %7092 = vmatprep.subr.bf16.mxu0 %v6563
  %7093 = vmatpush1.bf16.msra.mxu0 %v6562
  %7094 = vmatprep.subr.bf16.mxu0 %v6561
  %7095 = vmatpush1.bf16.msra.mxu0 %v6560
  %7096 = vmatprep.subr.bf16.mxu0 %v6559
  %7097 = vmatpush1.bf16.msra.mxu0 %v6558
  %7098 = vmatprep.subr.bf16.mxu0 %v6589
  %7099 = vmatpush2.bf16.msra.mxu0 %v6588
  %7100 = vmatprep.subr.bf16.mxu0 %v6587
  %7101 = vmatpush2.bf16.msra.mxu0 %v6586
  %7102 = vmatprep.subr.bf16.mxu0 %v6585
  %7103 = vmatpush2.bf16.msra.mxu0 %v6584
  %7104 = vmatprep.subr.bf16.mxu0 %v6583
  %7105 = vmatpush2.bf16.msra.mxu0 %v6582
  %7106 = vmatprep.subr.bf16.mxu0 %v6581
  %7107 = vmatpush2.bf16.msra.mxu0 %v6580
  %7108 = vmatprep.subr.bf16.mxu0 %v6579
  %7109 = vmatpush2.bf16.msra.mxu0 %v6578
  %7110 = vmatprep.subr.bf16.mxu0 %v6577
  %7111 = vmatpush2.bf16.msra.mxu0 %v6576
  %7112 = vmatprep.subr.bf16.mxu0 %v6575
  %7113 = vmatpush2.bf16.msra.mxu0 %v6574
  %7114 = vmatprep.mubr.bf16.mxu0 %v326
  %7115 = vmatmul.mubr.bf16.gmra.mxu0 %v325
  %v7116 = vpop.f32.mrf.mxu0
  %v7117 = vadd.f32 %v7074, %v7116
  %v7118 = vpop.f32.mrf.mxu0
  %v7119 = vadd.f32 %v7076, %v7118
  %v7120 = vpop.f32.mrf.mxu0
  %v7121 = vadd.f32 %v7078, %v7120
  %v7122 = vpop.f32.mrf.mxu0
  %v7123 = vadd.f32 %v7080, %v7122
  %7124 = vdwg.mxu0
  %7125 = vmatprep.subr.bf16.mxu0 %v6605
  %7126 = vmatpush1.bf16.msra.mxu0 %v6604
  %7127 = vmatprep.subr.bf16.mxu0 %v6603
  %7128 = vmatpush1.bf16.msra.mxu0 %v6602
  %7129 = vmatprep.subr.bf16.mxu0 %v6601
  %7130 = vmatpush1.bf16.msra.mxu0 %v6600
  %7131 = vmatprep.subr.bf16.mxu0 %v6599
  %7132 = vmatpush1.bf16.msra.mxu0 %v6598
  %7133 = vmatprep.subr.bf16.mxu0 %v6597
  %7134 = vmatpush1.bf16.msra.mxu0 %v6596
  %7135 = vmatprep.subr.bf16.mxu0 %v6595
  %7136 = vmatpush1.bf16.msra.mxu0 %v6594
  %7137 = vmatprep.subr.bf16.mxu0 %v6593
  %7138 = vmatpush1.bf16.msra.mxu0 %v6592
  %7139 = vmatprep.subr.bf16.mxu0 %v6591
  %7140 = vmatpush1.bf16.msra.mxu0 %v6590
  %7141 = vmatprep.subr.bf16.mxu0 %v6621
  %7142 = vmatpush2.bf16.msra.mxu0 %v6620
  %7143 = vmatprep.subr.bf16.mxu0 %v6619
  %7144 = vmatpush2.bf16.msra.mxu0 %v6618
  %7145 = vmatprep.subr.bf16.mxu0 %v6617
  %7146 = vmatpush2.bf16.msra.mxu0 %v6616
  %7147 = vmatprep.subr.bf16.mxu0 %v6615
  %7148 = vmatpush2.bf16.msra.mxu0 %v6614
  %7149 = vmatprep.subr.bf16.mxu0 %v6613
  %7150 = vmatpush2.bf16.msra.mxu0 %v6612
  %7151 = vmatprep.subr.bf16.mxu0 %v6611
  %7152 = vmatpush2.bf16.msra.mxu0 %v6610
  %7153 = vmatprep.subr.bf16.mxu0 %v6609
  %7154 = vmatpush2.bf16.msra.mxu0 %v6608
  %7155 = vmatprep.subr.bf16.mxu0 %v6607
  %7156 = vmatpush2.bf16.msra.mxu0 %v6606
  %7157 = vmatprep.mubr.bf16.mxu0 %v328
  %7158 = vmatmul.mubr.bf16.gmra.mxu0 %v327
  %v7159 = vpop.f32.mrf.mxu0
  %v7160 = vadd.f32 %v7117, %v7159
  %v7161 = vpop.f32.mrf.mxu0
  %v7162 = vadd.f32 %v7119, %v7161
  %v7163 = vpop.f32.mrf.mxu0
  %v7164 = vadd.f32 %v7121, %v7163
  %v7165 = vpop.f32.mrf.mxu0
  %v7166 = vadd.f32 %v7123, %v7165
  %7167 = vdwg.mxu0
  %7168 = vmatprep.subr.bf16.mxu0 %v6637
  %7169 = vmatpush1.bf16.msra.mxu0 %v6636
  %7170 = vmatprep.subr.bf16.mxu0 %v6635
  %7171 = vmatpush1.bf16.msra.mxu0 %v6634
  %7172 = vmatprep.subr.bf16.mxu0 %v6633
  %7173 = vmatpush1.bf16.msra.mxu0 %v6632
  %7174 = vmatprep.subr.bf16.mxu0 %v6631
  %7175 = vmatpush1.bf16.msra.mxu0 %v6630
  %7176 = vmatprep.subr.bf16.mxu0 %v6629
  %7177 = vmatpush1.bf16.msra.mxu0 %v6628
  %7178 = vmatprep.subr.bf16.mxu0 %v6627
  %7179 = vmatpush1.bf16.msra.mxu0 %v6626
  %7180 = vmatprep.subr.bf16.mxu0 %v6625
  %7181 = vmatpush1.bf16.msra.mxu0 %v6624
  %7182 = vmatprep.subr.bf16.mxu0 %v6623
  %7183 = vmatpush1.bf16.msra.mxu0 %v6622
  %7184 = vmatprep.subr.bf16.mxu0 %v6653
  %7185 = vmatpush2.bf16.msra.mxu0 %v6652
  %7186 = vmatprep.subr.bf16.mxu0 %v6651
  %7187 = vmatpush2.bf16.msra.mxu0 %v6650
  %7188 = vmatprep.subr.bf16.mxu0 %v6649
  %7189 = vmatpush2.bf16.msra.mxu0 %v6648
  %7190 = vmatprep.subr.bf16.mxu0 %v6647
  %7191 = vmatpush2.bf16.msra.mxu0 %v6646
  %7192 = vmatprep.subr.bf16.mxu0 %v6645
  %7193 = vmatpush2.bf16.msra.mxu0 %v6644
  %7194 = vmatprep.subr.bf16.mxu0 %v6643
  %7195 = vmatpush2.bf16.msra.mxu0 %v6642
  %7196 = vmatprep.subr.bf16.mxu0 %v6641
  %7197 = vmatpush2.bf16.msra.mxu0 %v6640
  %7198 = vmatprep.subr.bf16.mxu0 %v6639
  %7199 = vmatpush2.bf16.msra.mxu0 %v6638
  %7200 = vmatprep.mubr.bf16.mxu0 %v330
  %7201 = vmatmul.mubr.bf16.gmra.mxu0 %v329
  %v7202 = vpop.f32.mrf.mxu0
  %v7203 = vadd.f32 %v7160, %v7202
  %v7204 = vpop.f32.mrf.mxu0
  %v7205 = vadd.f32 %v7162, %v7204
  %v7206 = vpop.f32.mrf.mxu0
  %v7207 = vadd.f32 %v7164, %v7206
  %v7208 = vpop.f32.mrf.mxu0
  %v7209 = vadd.f32 %v7166, %v7208
  %7210 = vdwg.mxu0
  %7211 = vmatprep.subr.bf16.mxu0 %v6669
  %7212 = vmatpush1.bf16.msra.mxu0 %v6668
  %7213 = vmatprep.subr.bf16.mxu0 %v6667
  %7214 = vmatpush1.bf16.msra.mxu0 %v6666
  %7215 = vmatprep.subr.bf16.mxu0 %v6665
  %7216 = vmatpush1.bf16.msra.mxu0 %v6664
  %7217 = vmatprep.subr.bf16.mxu0 %v6663
  %7218 = vmatpush1.bf16.msra.mxu0 %v6662
  %7219 = vmatprep.subr.bf16.mxu0 %v6661
  %7220 = vmatpush1.bf16.msra.mxu0 %v6660
  %7221 = vmatprep.subr.bf16.mxu0 %v6659
  %7222 = vmatpush1.bf16.msra.mxu0 %v6658
  %7223 = vmatprep.subr.bf16.mxu0 %v6657
  %7224 = vmatpush1.bf16.msra.mxu0 %v6656
  %7225 = vmatprep.subr.bf16.mxu0 %v6655
  %7226 = vmatpush1.bf16.msra.mxu0 %v6654
  %7227 = vmatprep.subr.bf16.mxu0 0
  %7228 = vmatpush2.bf16.msra.mxu0 0
  %7229 = vmatprep.subr.bf16.mxu0 0
  %7230 = vmatpush2.bf16.msra.mxu0 0
  %7231 = vmatprep.subr.bf16.mxu0 0
  %7232 = vmatpush2.bf16.msra.mxu0 0
  %7233 = vmatprep.subr.bf16.mxu0 0
  %7234 = vmatpush2.bf16.msra.mxu0 0
  %7235 = vmatprep.subr.bf16.mxu0 0
  %7236 = vmatpush2.bf16.msra.mxu0 0
  %7237 = vmatprep.subr.bf16.mxu0 0
  %7238 = vmatpush2.bf16.msra.mxu0 0
  %7239 = vmatprep.subr.bf16.mxu0 0
  %7240 = vmatpush2.bf16.msra.mxu0 0
  %7241 = vmatprep.subr.bf16.mxu0 0
  %7242 = vmatpush2.bf16.msra.mxu0 0
  %7243 = vmatprep.mubr.bf16.mxu0 0
  %7244 = vmatmul.mubr.bf16.gmra.mxu0 %v331
  %v7245 = vpop.f32.mrf.mxu0
  %v7246 = vadd.f32 %v7203, %v7245
  %v7247 = vpop.f32.mrf.mxu0
  %v7248 = vadd.f32 %v7205, %v7247
  %v7249 = vpop.f32.mrf.mxu0
  %v7250 = vadd.f32 %v7207, %v7249
  %v7251 = vpop.f32.mrf.mxu0
  %v7252 = vadd.f32 %v7209, %v7251
  %7253 = vdwg.mxu0
  %v7254 = vmax.f32 %v5465, %v7246
  %v7255 = vmax.f32 %v5466, %v7248
  %v7256 = vmax.f32 %v5467, %v7250
  %v7257 = vmax.f32 %v5468, %v7252
  %v7258 = vld [vmem:[%s2] sm:$0x3]
  %v7260 = vlaneseq
  %v7261 = vshrl.u32 %v7260, 7
  %v7262 = vsub.s32 0, %v7261
  %v7263 = vrot.slane %v7258, %v7262
  %v7264 = vlaneseq
  %v7265 = vshrl.u32 %v7264, 7
  %v7266 = vsub.s32 1, %v7265
  %v7267 = vrot.slane %v7258, %v7266
  %v7270 = vadd.f32 %v7254, %v7263
  %v7271 = vadd.f32 %v7255, %v7267
  %v7272 = vadd.f32 %v7256, %v7263
  %v7273 = vadd.f32 %v7257, %v7267
  %v7274 = vmax.f32 %v7270, 0.0
  %v7275 = vmax.f32 %v7271, 0.0
  %v7276 = vmax.f32 %v7272, 0.0
  %v7277 = vmax.f32 %v7273, 0.0
  %v7278 = vpack.c.bf16 %v7276, %v7274
  %v7279 = vpack.c.bf16 %v7277, %v7275
  %v7282 = vunpack.c.l.b16 %v7278
  %v7283 = vunpack.c.l.b16 %v7279
  %v7284 = vunpack.c.h.b16 %v7278
  %v7285 = vunpack.c.h.b16 %v7279
  %v7286 = vpack.c.b16 %v7283, %v7282
  %v7287 = vpack.c.b16 %v7285, %v7284
  %7290 = vst [vmem:[%s3] sm:$0xff] %v7286
  %7291 = vst [vmem:[%s3 + $0x8] sm:$0xff] %v7287
  // Predicated region
  $region14: #{joint_embedding_forward.4} parent=0 // pred_check
    _
  $region15: #{joint_embedding_forward.4} parent=0 // pred_check_branch
    %7293 = sbr.rel (0) target = $region17
  $region16: #{joint_embedding_forward.4} parent=0 // pred_region
    _
  $region17: #{joint_embedding_forward.4} parent=0 // pred_fallthru
    _
  // Predicated region
  $region18: #{joint_embedding_forward.4} parent=0 // pred_check
    _
  $region19: #{joint_embedding_forward.4} parent=0 // pred_check_branch
    %7295 = sbr.rel (0) target = $region21
  $region20: #{joint_embedding_forward.4} parent=0 // pred_region
    _
  $region21: #{joint_embedding_forward.4} parent=0 // pred_fallthru
    _

</llo_original>
